<compile_context>
chip_gen: v7x
topology: tpu7x:2x2x1
jax: 0.10.0
libtpu: 0.0.40
codegen_flags: <defaults>
</compile_context>

<pallas_src>
import jax
import jax.numpy as jnp
from jax import lax
from jax.experimental import pallas as pl
from jax.experimental.pallas import tpu as pltpu


# ------------------------------- forward pass -------------------------------

def energy_model_forward(x, params):
    """Matches EnergyModelCNN.forward: x (B, n_fields, H, W) -> (B*H*W, 1)."""
    b, n_fields, height, width = x.shape
    c2 = params["w1"].shape[0]                 # conv channels (16)
    hidden = params["l1_w"].shape[0]
    hw = height * width
    feat = n_fields * c2                       # MLP input features (64)
    assert hw % feat == 0, "H*W must be a multiple of n_fields*16"
    ncq = hw // feat                           # xm rows per (sample, channel)
    n = b * n_fields                           # number of 1-channel conv samples

    # Samples per grid block: largest of (4, 2, 1) that divides n.  For n = 8
    # this gives 2 parallel blocks (both v7x TensorCores busy) and only 2
    # cheap grid steps on single-core chips.
    sblk = 4 if n % 4 == 0 else (2 if n % 2 == 0 else 1)
    gblk = n // sblk

    f32 = jnp.float32
    xf = x.reshape(gblk, sblk, hw).astype(f32)             # flat-spatial layout

    # Weight prep (tiny, done in plain JAX).
    w1f = params["w1"].reshape(c2, 9).astype(f32)          # (co, kh*3+kw)
    b1c = params["b1"].reshape(c2, 1).astype(f32)
    w2t = params["w2"].transpose(2, 3, 0, 1).reshape(9, c2, c2).astype(f32)
    b2c = params["b2"].reshape(c2, 1).astype(f32)
    eye = jnp.eye(ncq, dtype=f32)
    # Block-diagonal MLP weights make the torch row-major flatten implicit.
    m1 = jnp.kron(eye, params["l1_w"].T.astype(f32))        # (hw, ncq*hidden)
    mb1 = jnp.tile(params["l1_b"].reshape(1, hidden).astype(f32), (1, ncq))
    m2 = jnp.kron(eye, params["l2_w"].reshape(hidden, 1).astype(f32))
    lane_pad = 128 if ncq < 128 else ncq                    # keep matmul N lane-friendly
    m2p = jnp.pad(m2, ((0, 0), (0, lane_pad - ncq)))         # (ncq*hidden, lane_pad)
    l2b = params["l2_b"].reshape(1).astype(f32)              # SMEM scalar

    def kernel(x_ref, w1_ref, b1_ref, w2_ref, b2_ref,
               m1_ref, mb1_ref, m2_ref, l2b_ref, out_ref):

        def wshift(arr, dw, col):
            # circular shift by dw inside each row of `width` lanes
            if dw == 0:
                return arr
            base = jnp.roll(arr, -dw, axis=1)
            wrap = jnp.roll(arr, -dw + (width if dw > 0 else -width), axis=1)
            mask = (col >= (width - dw)) if dw > 0 else (col < (-dw))
            return jnp.where(mask, wrap, base)

        col_x = lax.broadcasted_iota(jnp.int32, (sblk, hw), 1) % width
        col_a = lax.broadcasted_iota(jnp.int32, (c2, hw), 1) % width

        # 9 torus-shifted copies of the raw fields (all samples at once) for conv1.
        xall = x_ref[0]                                        # (sblk, hw)
        xtaps = []
        for dh in (-1, 0, 1):
            xh = xall if dh == 0 else jnp.roll(xall, -dh * width, axis=1)
            for dw in (-1, 0, 1):
                xtaps.append(wshift(xh, dw, col_x))

        bias2 = l2b_ref[0]

        for s in range(sblk):
            # conv1 + relu: 9 broadcast MACs on full 256-lane rows (VPU).
            a1 = jnp.zeros((c2, hw), jnp.float32)
            for t in range(9):
                a1 = a1 + w1_ref[:, t:t + 1] * xtaps[t][s:s + 1, :]
            a1 = jnp.maximum(a1 + b1_ref[...], 0.0)            # (c2, hw)

            # conv2 + relu: 9 (co,ci)@(ci,hw) matmuls on the MXU.
            acc = jnp.zeros((c2, hw), jnp.float32)
            t = 0
            for dh in (-1, 0, 1):
                ah = a1 if dh == 0 else jnp.roll(a1, -dh * width, axis=1)
                for dw in (-1, 0, 1):
                    at = wshift(ah, dw, col_a)
                    acc = acc + jnp.dot(w2_ref[t], at,
                                        preferred_element_type=jnp.float32)
                    t += 1
            o2 = jnp.maximum(acc + b2_ref[...], 0.0)            # (c2, hw)

            # Fused MLP head (MXU): block-diag weights == torch flatten+linear.
            hid = jnp.dot(o2, m1_ref[...], preferred_element_type=jnp.float32)
            hid = jnp.maximum(hid + mb1_ref[...], 0.0)          # (c2, ncq*hidden)
            e_full = jnp.dot(hid, m2_ref[...],
                             preferred_element_type=jnp.float32)  # (c2, lane_pad)
            out_ref[0, s] = e_full[:, :ncq] + bias2             # (c2, ncq)

    out = pl.pallas_call(
        kernel,
        out_shape=jax.ShapeDtypeStruct((gblk, sblk, c2, ncq), f32),
        grid_spec=pltpu.PrefetchScalarGridSpec(
            num_scalar_prefetch=0,
            grid=(gblk,),
            in_specs=[
                pl.BlockSpec((1, sblk, hw), lambda i: (i, 0, 0)),          # x
                pl.BlockSpec((c2, 9), lambda i: (0, 0)),                   # w1
                pl.BlockSpec((c2, 1), lambda i: (0, 0)),                   # b1
                pl.BlockSpec((9, c2, c2), lambda i: (0, 0, 0)),            # w2 taps
                pl.BlockSpec((c2, 1), lambda i: (0, 0)),                   # b2
                pl.BlockSpec((hw, ncq * hidden), lambda i: (0, 0)),        # mlp1
                pl.BlockSpec((1, ncq * hidden), lambda i: (0, 0)),         # mlp1 bias
                pl.BlockSpec((ncq * hidden, lane_pad), lambda i: (0, 0)),  # mlp2
                pl.BlockSpec(memory_space=pltpu.MemorySpace.SMEM),         # l2 bias
            ],
            out_specs=pl.BlockSpec((1, sblk, c2, ncq), lambda i: (i, 0, 0, 0)),
        ),
        compiler_params=pltpu.CompilerParams(
            dimension_semantics=("parallel",),
            vmem_limit_bytes=32 * 1024 * 1024,
        ),
    )(xf, w1f, b1c, w2t, b2c, m1, mb1, m2p, l2b)

    # (gblk, sblk, c2, ncq) row-major == torch's (-1, n_fields*16) row order.
    return out.reshape(n * c2 * ncq, 1)


# --------------------- independent reference (pure XLA) ---------------------

def reference_forward(x, params):
    hi = lax.Precision.HIGHEST
    b, n_fields, h, w = x.shape
    y = x.reshape(-1, 1, h, w)
    y = jnp.pad(y, ((0, 0), (0, 0), (1, 1), (1, 1)), mode="wrap")
    y = lax.conv_general_dilated(y, params["w1"], (1, 1), "VALID",
                                 dimension_numbers=("NCHW", "OIHW", "NCHW"),
                                 precision=hi)
    y = jnp.maximum(y + params["b1"][None, :, None, None], 0.0)
    y = jnp.pad(y, ((0, 0), (0, 0), (1, 1), (1, 1)), mode="wrap")
    y = lax.conv_general_dilated(y, params["w2"], (1, 1), "VALID",
                                 dimension_numbers=("NCHW", "OIHW", "NCHW"),
                                 precision=hi)
    y = jnp.maximum(y + params["b2"][None, :, None, None], 0.0)
    y = y.reshape(-1, n_fields * 16)
    y = jnp.maximum(jnp.matmul(y, params["l1_w"].T, precision=hi)
                    + params["l1_b"], 0.0)
    return jnp.matmul(y, params["l2_w"].T, precision=hi) + params["l2_b"]


if __name__ == "__main__":
    B, N_FIELDS, H, W, HIDDEN = 2, 4, 16, 16, 32

    key = jax.random.PRNGKey(0)
    keys = jax.random.split(key, 9)
    x = jax.random.normal(keys[0], (B, N_FIELDS, H, W), jnp.float32)

    params = dict(
        w1=jax.random.normal(keys[1], (16, 1, 3, 3), jnp.float32) * 0.1,
        b1=jax.random.normal(keys[2], (16,), jnp.float32) * 0.1,
        w2=jax.random.normal(keys[3], (16, 16, 3, 3), jnp.float32) * 0.1,
        b2=jax.random.normal(keys[4], (16,), jnp.float32) * 0.1,
        l1_w=jax.random.normal(keys[5], (HIDDEN, N_FIELDS * 16), jnp.float32) * 0.1,
        l1_b=jax.random.normal(keys[6], (HIDDEN,), jnp.float32) * 0.1,
        l2_w=jax.random.normal(keys[7], (1, HIDDEN), jnp.float32) * 0.1,
        l2_b=jax.random.normal(keys[8], (1,), jnp.float32) * 0.1,
    )

    fwd = jax.jit(energy_model_forward)
    out = jax.block_until_ready(fwd(x, params))
    assert out.shape == (B * H * W, 1), out.shape

    ref = jax.block_until_ready(reference_forward(x, params))
    err = float(jnp.max(jnp.abs(out - ref)))
    assert err < 2e-2, f"max abs err vs reference: {err}"

    print("KERNEL_OK")
</pallas_src>

<mosaic_0001>
module attributes {stable_mosaic.version = 11 : i64} {
  func.func @kernel(%arg0: i32, %arg1: memref<1x4x256xf32, #tpu.memory_space<vmem>>, %arg2: memref<16x9xf32, #tpu.memory_space<vmem>>, %arg3: memref<16x1xf32, #tpu.memory_space<vmem>>, %arg4: memref<9x16x16xf32, #tpu.memory_space<vmem>>, %arg5: memref<16x1xf32, #tpu.memory_space<vmem>>, %arg6: memref<256x128xf32, #tpu.memory_space<vmem>>, %arg7: memref<1x128xf32, #tpu.memory_space<vmem>>, %arg8: memref<128x128xf32, #tpu.memory_space<vmem>>, %arg9: memref<1xf32, #tpu.memory_space<smem>>, %arg10: memref<1x4x16x4xf32, #tpu.memory_space<vmem>>) attributes {dimension_semantics = [#tpu.dimension_semantics<parallel>], iteration_bounds = array<i64: 2>, scalar_prefetch = 0 : i64, scratch_operands = 0 : i64, tpu.core_type = #tpu.core_type<tc>, window_params = [{transform_indices = @transform_0, window_bounds = array<i64: 1, 4, 256>}, {pipeline_mode = #tpu.pipeline_mode<synchronous>, transform_indices = @transform_1, window_bounds = array<i64: 16, 9>}, {pipeline_mode = #tpu.pipeline_mode<synchronous>, transform_indices = @transform_2, window_bounds = array<i64: 16, 1>}, {pipeline_mode = #tpu.pipeline_mode<synchronous>, transform_indices = @transform_3, window_bounds = array<i64: 9, 16, 16>}, {pipeline_mode = #tpu.pipeline_mode<synchronous>, transform_indices = @transform_4, window_bounds = array<i64: 16, 1>}, {pipeline_mode = #tpu.pipeline_mode<synchronous>, transform_indices = @transform_5, window_bounds = array<i64: 256, 128>}, {pipeline_mode = #tpu.pipeline_mode<synchronous>, transform_indices = @transform_6, window_bounds = array<i64: 1, 128>}, {pipeline_mode = #tpu.pipeline_mode<synchronous>, transform_indices = @transform_7, window_bounds = array<i64: 128, 128>}, {transform_indices = @transform_8, window_bounds = array<i64: 1>}, {transform_indices = @transform_9, window_bounds = array<i64: 1, 4, 16, 4>}]} {
    %0 = tpu.iota {dimensions = array<i32: 1>} : vector<4x256xi32>
    %c16_i32 = arith.constant 16 : i32
    %c0_i32 = arith.constant 0 : i32
    %1 = arith.cmpi eq, %c16_i32, %c0_i32 : i32
    %c1_i32 = arith.constant 1 : i32
    %2 = arith.select %1, %c1_i32, %c16_i32 : i32
    %3 = vector.broadcast %2 : i32 to vector<4x256xi32>
    %4 = arith.remsi %0, %3 : vector<4x256xi32>
    %c0_i32_0 = arith.constant 0 : i32
    %5 = vector.broadcast %c0_i32_0 : i32 to vector<4x256xi32>
    %6 = arith.cmpi ne, %4, %5 : vector<4x256xi32>
    %c0_i32_1 = arith.constant 0 : i32
    %7 = vector.broadcast %c0_i32_1 : i32 to vector<4x256xi32>
    %8 = arith.cmpi slt, %4, %7 : vector<4x256xi32>
    %c0_i32_2 = arith.constant 0 : i32
    %9 = arith.cmpi slt, %2, %c0_i32_2 : i32
    %10 = vector.broadcast %9 : i1 to vector<4x256xi1>
    %11 = vector.broadcast %10 : vector<4x256xi1> to vector<4x256xi1>
    %12 = arith.xori %8, %11 : vector<4x256xi1>
    %13 = arith.andi %12, %6 : vector<4x256xi1>
    %14 = vector.broadcast %2 : i32 to vector<4x256xi32>
    %15 = arith.addi %4, %14 : vector<4x256xi32>
    %16 = arith.select %13, %15, %4 : vector<4x256xi1>, vector<4x256xi32>
    %17 = tpu.iota {dimensions = array<i32: 1>} : vector<16x256xi32>
    %c16_i32_3 = arith.constant 16 : i32
    %c0_i32_4 = arith.constant 0 : i32
    %18 = arith.cmpi eq, %c16_i32_3, %c0_i32_4 : i32
    %c1_i32_5 = arith.constant 1 : i32
    %19 = arith.select %18, %c1_i32_5, %c16_i32_3 : i32
    %20 = vector.broadcast %19 : i32 to vector<16x256xi32>
    %21 = arith.remsi %17, %20 : vector<16x256xi32>
    %c0_i32_6 = arith.constant 0 : i32
    %22 = vector.broadcast %c0_i32_6 : i32 to vector<16x256xi32>
    %23 = arith.cmpi ne, %21, %22 : vector<16x256xi32>
    %c0_i32_7 = arith.constant 0 : i32
    %24 = vector.broadcast %c0_i32_7 : i32 to vector<16x256xi32>
    %25 = arith.cmpi slt, %21, %24 : vector<16x256xi32>
    %c0_i32_8 = arith.constant 0 : i32
    %26 = arith.cmpi slt, %19, %c0_i32_8 : i32
    %27 = vector.broadcast %26 : i1 to vector<16x256xi1>
    %28 = vector.broadcast %27 : vector<16x256xi1> to vector<16x256xi1>
    %29 = arith.xori %25, %28 : vector<16x256xi1>
    %30 = arith.andi %29, %23 : vector<16x256xi1>
    %31 = vector.broadcast %19 : i32 to vector<16x256xi32>
    %32 = arith.addi %21, %31 : vector<16x256xi32>
    %33 = arith.select %30, %32, %21 : vector<16x256xi1>, vector<16x256xi32>
    %c0 = arith.constant 0 : index
    %c0_9 = arith.constant 0 : index
    %c0_10 = arith.constant 0 : index
    %34 = vector.load %arg1[%c0, %c0_9, %c0_10] : memref<1x4x256xf32, #tpu.memory_space<vmem>>, vector<1x4x256xf32>
    %35 = vector.shape_cast %34 : vector<1x4x256xf32> to vector<4x256xf32>
    %36 = vector.extract_strided_slice %35 {offsets = [0, 240], sizes = [4, 16], strides = [1, 1]} : vector<4x256xf32> to vector<4x16xf32>
    %37 = vector.extract_strided_slice %35 {offsets = [0, 0], sizes = [4, 240], strides = [1, 1]} : vector<4x256xf32> to vector<4x240xf32>
    %38 = tpu.concatenate %36, %37 in 1 : vector<4x16xf32>, vector<4x240xf32> -> vector<4x256xf32>
    %39 = vector.extract_strided_slice %38 {offsets = [0, 255], sizes = [4, 1], strides = [1, 1]} : vector<4x256xf32> to vector<4x1xf32>
    %40 = vector.extract_strided_slice %38 {offsets = [0, 0], sizes = [4, 255], strides = [1, 1]} : vector<4x256xf32> to vector<4x255xf32>
    %41 = tpu.concatenate %39, %40 in 1 : vector<4x1xf32>, vector<4x255xf32> -> vector<4x256xf32>
    %42 = vector.extract_strided_slice %38 {offsets = [0, 15], sizes = [4, 241], strides = [1, 1]} : vector<4x256xf32> to vector<4x241xf32>
    %43 = vector.extract_strided_slice %38 {offsets = [0, 0], sizes = [4, 15], strides = [1, 1]} : vector<4x256xf32> to vector<4x15xf32>
    %44 = tpu.concatenate %42, %43 in 1 : vector<4x241xf32>, vector<4x15xf32> -> vector<4x256xf32>
    %c1_i32_11 = arith.constant 1 : i32
    %45 = vector.broadcast %c1_i32_11 : i32 to vector<4x256xi32>
    %46 = arith.cmpi slt, %16, %45 : vector<4x256xi32>
    %47 = arith.select %46, %44, %41 : vector<4x256xi1>, vector<4x256xf32>
    %48 = vector.extract_strided_slice %38 {offsets = [0, 1], sizes = [4, 255], strides = [1, 1]} : vector<4x256xf32> to vector<4x255xf32>
    %49 = vector.extract_strided_slice %38 {offsets = [0, 0], sizes = [4, 1], strides = [1, 1]} : vector<4x256xf32> to vector<4x1xf32>
    %50 = tpu.concatenate %48, %49 in 1 : vector<4x255xf32>, vector<4x1xf32> -> vector<4x256xf32>
    %51 = vector.extract_strided_slice %38 {offsets = [0, 241], sizes = [4, 15], strides = [1, 1]} : vector<4x256xf32> to vector<4x15xf32>
    %52 = vector.extract_strided_slice %38 {offsets = [0, 0], sizes = [4, 241], strides = [1, 1]} : vector<4x256xf32> to vector<4x241xf32>
    %53 = tpu.concatenate %51, %52 in 1 : vector<4x15xf32>, vector<4x241xf32> -> vector<4x256xf32>
    %c15_i32 = arith.constant 15 : i32
    %54 = vector.broadcast %c15_i32 : i32 to vector<4x256xi32>
    %55 = arith.cmpi sge, %16, %54 : vector<4x256xi32>
    %56 = arith.select %55, %53, %50 : vector<4x256xi1>, vector<4x256xf32>
    %57 = vector.extract_strided_slice %35 {offsets = [0, 255], sizes = [4, 1], strides = [1, 1]} : vector<4x256xf32> to vector<4x1xf32>
    %58 = vector.extract_strided_slice %35 {offsets = [0, 0], sizes = [4, 255], strides = [1, 1]} : vector<4x256xf32> to vector<4x255xf32>
    %59 = tpu.concatenate %57, %58 in 1 : vector<4x1xf32>, vector<4x255xf32> -> vector<4x256xf32>
    %60 = vector.extract_strided_slice %35 {offsets = [0, 15], sizes = [4, 241], strides = [1, 1]} : vector<4x256xf32> to vector<4x241xf32>
    %61 = vector.extract_strided_slice %35 {offsets = [0, 0], sizes = [4, 15], strides = [1, 1]} : vector<4x256xf32> to vector<4x15xf32>
    %62 = tpu.concatenate %60, %61 in 1 : vector<4x241xf32>, vector<4x15xf32> -> vector<4x256xf32>
    %c1_i32_12 = arith.constant 1 : i32
    %63 = vector.broadcast %c1_i32_12 : i32 to vector<4x256xi32>
    %64 = arith.cmpi slt, %16, %63 : vector<4x256xi32>
    %65 = arith.select %64, %62, %59 : vector<4x256xi1>, vector<4x256xf32>
    %66 = vector.extract_strided_slice %35 {offsets = [0, 1], sizes = [4, 255], strides = [1, 1]} : vector<4x256xf32> to vector<4x255xf32>
    %67 = vector.extract_strided_slice %35 {offsets = [0, 0], sizes = [4, 1], strides = [1, 1]} : vector<4x256xf32> to vector<4x1xf32>
    %68 = tpu.concatenate %66, %67 in 1 : vector<4x255xf32>, vector<4x1xf32> -> vector<4x256xf32>
    %69 = vector.extract_strided_slice %35 {offsets = [0, 241], sizes = [4, 15], strides = [1, 1]} : vector<4x256xf32> to vector<4x15xf32>
    %70 = vector.extract_strided_slice %35 {offsets = [0, 0], sizes = [4, 241], strides = [1, 1]} : vector<4x256xf32> to vector<4x241xf32>
    %71 = tpu.concatenate %69, %70 in 1 : vector<4x15xf32>, vector<4x241xf32> -> vector<4x256xf32>
    %c15_i32_13 = arith.constant 15 : i32
    %72 = vector.broadcast %c15_i32_13 : i32 to vector<4x256xi32>
    %73 = arith.cmpi sge, %16, %72 : vector<4x256xi32>
    %74 = arith.select %73, %71, %68 : vector<4x256xi1>, vector<4x256xf32>
    %75 = vector.extract_strided_slice %35 {offsets = [0, 16], sizes = [4, 240], strides = [1, 1]} : vector<4x256xf32> to vector<4x240xf32>
    %76 = vector.extract_strided_slice %35 {offsets = [0, 0], sizes = [4, 16], strides = [1, 1]} : vector<4x256xf32> to vector<4x16xf32>
    %77 = tpu.concatenate %75, %76 in 1 : vector<4x240xf32>, vector<4x16xf32> -> vector<4x256xf32>
    %78 = vector.extract_strided_slice %77 {offsets = [0, 255], sizes = [4, 1], strides = [1, 1]} : vector<4x256xf32> to vector<4x1xf32>
    %79 = vector.extract_strided_slice %77 {offsets = [0, 0], sizes = [4, 255], strides = [1, 1]} : vector<4x256xf32> to vector<4x255xf32>
    %80 = tpu.concatenate %78, %79 in 1 : vector<4x1xf32>, vector<4x255xf32> -> vector<4x256xf32>
    %81 = vector.extract_strided_slice %77 {offsets = [0, 15], sizes = [4, 241], strides = [1, 1]} : vector<4x256xf32> to vector<4x241xf32>
    %82 = vector.extract_strided_slice %77 {offsets = [0, 0], sizes = [4, 15], strides = [1, 1]} : vector<4x256xf32> to vector<4x15xf32>
    %83 = tpu.concatenate %81, %82 in 1 : vector<4x241xf32>, vector<4x15xf32> -> vector<4x256xf32>
    %c1_i32_14 = arith.constant 1 : i32
    %84 = vector.broadcast %c1_i32_14 : i32 to vector<4x256xi32>
    %85 = arith.cmpi slt, %16, %84 : vector<4x256xi32>
    %86 = arith.select %85, %83, %80 : vector<4x256xi1>, vector<4x256xf32>
    %87 = vector.extract_strided_slice %77 {offsets = [0, 1], sizes = [4, 255], strides = [1, 1]} : vector<4x256xf32> to vector<4x255xf32>
    %88 = vector.extract_strided_slice %77 {offsets = [0, 0], sizes = [4, 1], strides = [1, 1]} : vector<4x256xf32> to vector<4x1xf32>
    %89 = tpu.concatenate %87, %88 in 1 : vector<4x255xf32>, vector<4x1xf32> -> vector<4x256xf32>
    %90 = vector.extract_strided_slice %77 {offsets = [0, 241], sizes = [4, 15], strides = [1, 1]} : vector<4x256xf32> to vector<4x15xf32>
    %91 = vector.extract_strided_slice %77 {offsets = [0, 0], sizes = [4, 241], strides = [1, 1]} : vector<4x256xf32> to vector<4x241xf32>
    %92 = tpu.concatenate %90, %91 in 1 : vector<4x15xf32>, vector<4x241xf32> -> vector<4x256xf32>
    %c15_i32_15 = arith.constant 15 : i32
    %93 = vector.broadcast %c15_i32_15 : i32 to vector<4x256xi32>
    %94 = arith.cmpi sge, %16, %93 : vector<4x256xi32>
    %95 = arith.select %94, %92, %89 : vector<4x256xi1>, vector<4x256xf32>
    %c0_16 = arith.constant 0 : index
    %96 = memref.load %arg9[%c0_16] : memref<1xf32, #tpu.memory_space<smem>>
    %cst = arith.constant 0.000000e+00 : f32
    %97 = vector.broadcast %cst : f32 to vector<16x256xf32>
    %c0_17 = arith.constant 0 : index
    %c0_18 = arith.constant 0 : index
    %98 = vector.load %arg2[%c0_17, %c0_18] : memref<16x9xf32, #tpu.memory_space<vmem>>, vector<16x1xf32>
    %99 = vector.extract_strided_slice %47 {offsets = [0, 0], sizes = [1, 256], strides = [1, 1]} : vector<4x256xf32> to vector<1x256xf32>
    %100 = vector.broadcast %98 : vector<16x1xf32> to vector<16x256xf32>
    %101 = vector.broadcast %99 : vector<1x256xf32> to vector<16x256xf32>
    %102 = arith.mulf %100, %101 : vector<16x256xf32>
    %103 = arith.addf %97, %102 : vector<16x256xf32>
    %c0_19 = arith.constant 0 : index
    %c1 = arith.constant 1 : index
    %104 = vector.load %arg2[%c0_19, %c1] : memref<16x9xf32, #tpu.memory_space<vmem>>, vector<16x1xf32>
    %105 = vector.extract_strided_slice %38 {offsets = [0, 0], sizes = [1, 256], strides = [1, 1]} : vector<4x256xf32> to vector<1x256xf32>
    %106 = vector.broadcast %104 : vector<16x1xf32> to vector<16x256xf32>
    %107 = vector.broadcast %105 : vector<1x256xf32> to vector<16x256xf32>
    %108 = arith.mulf %106, %107 : vector<16x256xf32>
    %109 = arith.addf %103, %108 : vector<16x256xf32>
    %c0_20 = arith.constant 0 : index
    %c2 = arith.constant 2 : index
    %110 = vector.load %arg2[%c0_20, %c2] : memref<16x9xf32, #tpu.memory_space<vmem>>, vector<16x1xf32>
    %111 = vector.extract_strided_slice %56 {offsets = [0, 0], sizes = [1, 256], strides = [1, 1]} : vector<4x256xf32> to vector<1x256xf32>
    %112 = vector.broadcast %110 : vector<16x1xf32> to vector<16x256xf32>
    %113 = vector.broadcast %111 : vector<1x256xf32> to vector<16x256xf32>
    %114 = arith.mulf %112, %113 : vector<16x256xf32>
    %115 = arith.addf %109, %114 : vector<16x256xf32>
    %c0_21 = arith.constant 0 : index
    %c3 = arith.constant 3 : index
    %116 = vector.load %arg2[%c0_21, %c3] : memref<16x9xf32, #tpu.memory_space<vmem>>, vector<16x1xf32>
    %117 = vector.extract_strided_slice %65 {offsets = [0, 0], sizes = [1, 256], strides = [1, 1]} : vector<4x256xf32> to vector<1x256xf32>
    %118 = vector.broadcast %116 : vector<16x1xf32> to vector<16x256xf32>
    %119 = vector.broadcast %117 : vector<1x256xf32> to vector<16x256xf32>
    %120 = arith.mulf %118, %119 : vector<16x256xf32>
    %121 = arith.addf %115, %120 : vector<16x256xf32>
    %c0_22 = arith.constant 0 : index
    %c4 = arith.constant 4 : index
    %122 = vector.load %arg2[%c0_22, %c4] : memref<16x9xf32, #tpu.memory_space<vmem>>, vector<16x1xf32>
    %123 = vector.extract_strided_slice %35 {offsets = [0, 0], sizes = [1, 256], strides = [1, 1]} : vector<4x256xf32> to vector<1x256xf32>
    %124 = vector.broadcast %122 : vector<16x1xf32> to vector<16x256xf32>
    %125 = vector.broadcast %123 : vector<1x256xf32> to vector<16x256xf32>
    %126 = arith.mulf %124, %125 : vector<16x256xf32>
    %127 = arith.addf %121, %126 : vector<16x256xf32>
    %c0_23 = arith.constant 0 : index
    %c5 = arith.constant 5 : index
    %128 = vector.load %arg2[%c0_23, %c5] : memref<16x9xf32, #tpu.memory_space<vmem>>, vector<16x1xf32>
    %129 = vector.extract_strided_slice %74 {offsets = [0, 0], sizes = [1, 256], strides = [1, 1]} : vector<4x256xf32> to vector<1x256xf32>
    %130 = vector.broadcast %128 : vector<16x1xf32> to vector<16x256xf32>
    %131 = vector.broadcast %129 : vector<1x256xf32> to vector<16x256xf32>
    %132 = arith.mulf %130, %131 : vector<16x256xf32>
    %133 = arith.addf %127, %132 : vector<16x256xf32>
    %c0_24 = arith.constant 0 : index
    %c6 = arith.constant 6 : index
    %134 = vector.load %arg2[%c0_24, %c6] : memref<16x9xf32, #tpu.memory_space<vmem>>, vector<16x1xf32>
    %135 = vector.extract_strided_slice %86 {offsets = [0, 0], sizes = [1, 256], strides = [1, 1]} : vector<4x256xf32> to vector<1x256xf32>
    %136 = vector.broadcast %134 : vector<16x1xf32> to vector<16x256xf32>
    %137 = vector.broadcast %135 : vector<1x256xf32> to vector<16x256xf32>
    %138 = arith.mulf %136, %137 : vector<16x256xf32>
    %139 = arith.addf %133, %138 : vector<16x256xf32>
    %c0_25 = arith.constant 0 : index
    %c7 = arith.constant 7 : index
    %140 = vector.load %arg2[%c0_25, %c7] : memref<16x9xf32, #tpu.memory_space<vmem>>, vector<16x1xf32>
    %141 = vector.extract_strided_slice %77 {offsets = [0, 0], sizes = [1, 256], strides = [1, 1]} : vector<4x256xf32> to vector<1x256xf32>
    %142 = vector.broadcast %140 : vector<16x1xf32> to vector<16x256xf32>
    %143 = vector.broadcast %141 : vector<1x256xf32> to vector<16x256xf32>
    %144 = arith.mulf %142, %143 : vector<16x256xf32>
    %145 = arith.addf %139, %144 : vector<16x256xf32>
    %c0_26 = arith.constant 0 : index
    %c8 = arith.constant 8 : index
    %146 = vector.load %arg2[%c0_26, %c8] : memref<16x9xf32, #tpu.memory_space<vmem>>, vector<16x1xf32>
    %147 = vector.extract_strided_slice %95 {offsets = [0, 0], sizes = [1, 256], strides = [1, 1]} : vector<4x256xf32> to vector<1x256xf32>
    %148 = vector.broadcast %146 : vector<16x1xf32> to vector<16x256xf32>
    %149 = vector.broadcast %147 : vector<1x256xf32> to vector<16x256xf32>
    %150 = arith.mulf %148, %149 : vector<16x256xf32>
    %151 = arith.addf %145, %150 : vector<16x256xf32>
    %c0_27 = arith.constant 0 : index
    %c0_28 = arith.constant 0 : index
    %152 = vector.load %arg3[%c0_27, %c0_28] : memref<16x1xf32, #tpu.memory_space<vmem>>, vector<16x1xf32>
    %153 = vector.broadcast %152 : vector<16x1xf32> to vector<16x256xf32>
    %154 = arith.addf %151, %153 : vector<16x256xf32>
    %cst_29 = arith.constant 0.000000e+00 : f32
    %155 = vector.broadcast %cst_29 : f32 to vector<16x256xf32>
    %156 = arith.maximumf %154, %155 : vector<16x256xf32>
    %cst_30 = arith.constant 0.000000e+00 : f32
    %157 = vector.broadcast %cst_30 : f32 to vector<16x256xf32>
    %158 = vector.extract_strided_slice %156 {offsets = [0, 240], sizes = [16, 16], strides = [1, 1]} : vector<16x256xf32> to vector<16x16xf32>
    %159 = vector.extract_strided_slice %156 {offsets = [0, 0], sizes = [16, 240], strides = [1, 1]} : vector<16x256xf32> to vector<16x240xf32>
    %160 = tpu.concatenate %158, %159 in 1 : vector<16x16xf32>, vector<16x240xf32> -> vector<16x256xf32>
    %161 = vector.extract_strided_slice %160 {offsets = [0, 255], sizes = [16, 1], strides = [1, 1]} : vector<16x256xf32> to vector<16x1xf32>
    %162 = vector.extract_strided_slice %160 {offsets = [0, 0], sizes = [16, 255], strides = [1, 1]} : vector<16x256xf32> to vector<16x255xf32>
    %163 = tpu.concatenate %161, %162 in 1 : vector<16x1xf32>, vector<16x255xf32> -> vector<16x256xf32>
    %164 = vector.extract_strided_slice %160 {offsets = [0, 15], sizes = [16, 241], strides = [1, 1]} : vector<16x256xf32> to vector<16x241xf32>
    %165 = vector.extract_strided_slice %160 {offsets = [0, 0], sizes = [16, 15], strides = [1, 1]} : vector<16x256xf32> to vector<16x15xf32>
    %166 = tpu.concatenate %164, %165 in 1 : vector<16x241xf32>, vector<16x15xf32> -> vector<16x256xf32>
    %c1_i32_31 = arith.constant 1 : i32
    %167 = vector.broadcast %c1_i32_31 : i32 to vector<16x256xi32>
    %168 = arith.cmpi slt, %33, %167 : vector<16x256xi32>
    %169 = arith.select %168, %166, %163 : vector<16x256xi1>, vector<16x256xf32>
    %c0_32 = arith.constant 0 : index
    %c0_33 = arith.constant 0 : index
    %c0_34 = arith.constant 0 : index
    %170 = vector.load %arg4[%c0_32, %c0_33, %c0_34] : memref<9x16x16xf32, #tpu.memory_space<vmem>>, vector<1x16x16xf32>
    %171 = vector.shape_cast %170 : vector<1x16x16xf32> to vector<16x16xf32>
    %cst_35 = arith.constant dense<0.000000e+00> : vector<16x256xf32>
    %172 = tpu.matmul %171, %169, %cst_35 {dimension_numbers = #tpu.dot_dimension_numbers<[1], [0], [0], [1], [0, 0, 1, 1], [], []>} : vector<16x16xf32>, vector<16x256xf32>, vector<16x256xf32> -> vector<16x256xf32>
    %173 = arith.addf %157, %172 : vector<16x256xf32>
    %c1_36 = arith.constant 1 : index
    %c0_37 = arith.constant 0 : index
    %c0_38 = arith.constant 0 : index
    %174 = vector.load %arg4[%c1_36, %c0_37, %c0_38] : memref<9x16x16xf32, #tpu.memory_space<vmem>>, vector<1x16x16xf32>
    %175 = vector.shape_cast %174 : vector<1x16x16xf32> to vector<16x16xf32>
    %cst_39 = arith.constant dense<0.000000e+00> : vector<16x256xf32>
    %176 = tpu.matmul %175, %160, %cst_39 {dimension_numbers = #tpu.dot_dimension_numbers<[1], [0], [0], [1], [0, 0, 1, 1], [], []>} : vector<16x16xf32>, vector<16x256xf32>, vector<16x256xf32> -> vector<16x256xf32>
    %177 = arith.addf %173, %176 : vector<16x256xf32>
    %178 = vector.extract_strided_slice %160 {offsets = [0, 1], sizes = [16, 255], strides = [1, 1]} : vector<16x256xf32> to vector<16x255xf32>
    %179 = vector.extract_strided_slice %160 {offsets = [0, 0], sizes = [16, 1], strides = [1, 1]} : vector<16x256xf32> to vector<16x1xf32>
    %180 = tpu.concatenate %178, %179 in 1 : vector<16x255xf32>, vector<16x1xf32> -> vector<16x256xf32>
    %181 = vector.extract_strided_slice %160 {offsets = [0, 241], sizes = [16, 15], strides = [1, 1]} : vector<16x256xf32> to vector<16x15xf32>
    %182 = vector.extract_strided_slice %160 {offsets = [0, 0], sizes = [16, 241], strides = [1, 1]} : vector<16x256xf32> to vector<16x241xf32>
    %183 = tpu.concatenate %181, %182 in 1 : vector<16x15xf32>, vector<16x241xf32> -> vector<16x256xf32>
    %c15_i32_40 = arith.constant 15 : i32
    %184 = vector.broadcast %c15_i32_40 : i32 to vector<16x256xi32>
    %185 = arith.cmpi sge, %33, %184 : vector<16x256xi32>
    %186 = arith.select %185, %183, %180 : vector<16x256xi1>, vector<16x256xf32>
    %c2_41 = arith.constant 2 : index
    %c0_42 = arith.constant 0 : index
    %c0_43 = arith.constant 0 : index
    %187 = vector.load %arg4[%c2_41, %c0_42, %c0_43] : memref<9x16x16xf32, #tpu.memory_space<vmem>>, vector<1x16x16xf32>
    %188 = vector.shape_cast %187 : vector<1x16x16xf32> to vector<16x16xf32>
    %cst_44 = arith.constant dense<0.000000e+00> : vector<16x256xf32>
    %189 = tpu.matmul %188, %186, %cst_44 {dimension_numbers = #tpu.dot_dimension_numbers<[1], [0], [0], [1], [0, 0, 1, 1], [], []>} : vector<16x16xf32>, vector<16x256xf32>, vector<16x256xf32> -> vector<16x256xf32>
    %190 = arith.addf %177, %189 : vector<16x256xf32>
    %191 = vector.extract_strided_slice %156 {offsets = [0, 255], sizes = [16, 1], strides = [1, 1]} : vector<16x256xf32> to vector<16x1xf32>
    %192 = vector.extract_strided_slice %156 {offsets = [0, 0], sizes = [16, 255], strides = [1, 1]} : vector<16x256xf32> to vector<16x255xf32>
    %193 = tpu.concatenate %191, %192 in 1 : vector<16x1xf32>, vector<16x255xf32> -> vector<16x256xf32>
    %194 = vector.extract_strided_slice %156 {offsets = [0, 15], sizes = [16, 241], strides = [1, 1]} : vector<16x256xf32> to vector<16x241xf32>
    %195 = vector.extract_strided_slice %156 {offsets = [0, 0], sizes = [16, 15], strides = [1, 1]} : vector<16x256xf32> to vector<16x15xf32>
    %196 = tpu.concatenate %194, %195 in 1 : vector<16x241xf32>, vector<16x15xf32> -> vector<16x256xf32>
    %c1_i32_45 = arith.constant 1 : i32
    %197 = vector.broadcast %c1_i32_45 : i32 to vector<16x256xi32>
    %198 = arith.cmpi slt, %33, %197 : vector<16x256xi32>
    %199 = arith.select %198, %196, %193 : vector<16x256xi1>, vector<16x256xf32>
    %c3_46 = arith.constant 3 : index
    %c0_47 = arith.constant 0 : index
    %c0_48 = arith.constant 0 : index
    %200 = vector.load %arg4[%c3_46, %c0_47, %c0_48] : memref<9x16x16xf32, #tpu.memory_space<vmem>>, vector<1x16x16xf32>
    %201 = vector.shape_cast %200 : vector<1x16x16xf32> to vector<16x16xf32>
    %cst_49 = arith.constant dense<0.000000e+00> : vector<16x256xf32>
    %202 = tpu.matmul %201, %199, %cst_49 {dimension_numbers = #tpu.dot_dimension_numbers<[1], [0], [0], [1], [0, 0, 1, 1], [], []>} : vector<16x16xf32>, vector<16x256xf32>, vector<16x256xf32> -> vector<16x256xf32>
    %203 = arith.addf %190, %202 : vector<16x256xf32>
    %c4_50 = arith.constant 4 : index
    %c0_51 = arith.constant 0 : index
    %c0_52 = arith.constant 0 : index
    %204 = vector.load %arg4[%c4_50, %c0_51, %c0_52] : memref<9x16x16xf32, #tpu.memory_space<vmem>>, vector<1x16x16xf32>
    %205 = vector.shape_cast %204 : vector<1x16x16xf32> to vector<16x16xf32>
    %cst_53 = arith.constant dense<0.000000e+00> : vector<16x256xf32>
    %206 = tpu.matmul %205, %156, %cst_53 {dimension_numbers = #tpu.dot_dimension_numbers<[1], [0], [0], [1], [0, 0, 1, 1], [], []>} : vector<16x16xf32>, vector<16x256xf32>, vector<16x256xf32> -> vector<16x256xf32>
    %207 = arith.addf %203, %206 : vector<16x256xf32>
    %208 = vector.extract_strided_slice %156 {offsets = [0, 1], sizes = [16, 255], strides = [1, 1]} : vector<16x256xf32> to vector<16x255xf32>
    %209 = vector.extract_strided_slice %156 {offsets = [0, 0], sizes = [16, 1], strides = [1, 1]} : vector<16x256xf32> to vector<16x1xf32>
    %210 = tpu.concatenate %208, %209 in 1 : vector<16x255xf32>, vector<16x1xf32> -> vector<16x256xf32>
    %211 = vector.extract_strided_slice %156 {offsets = [0, 241], sizes = [16, 15], strides = [1, 1]} : vector<16x256xf32> to vector<16x15xf32>
    %212 = vector.extract_strided_slice %156 {offsets = [0, 0], sizes = [16, 241], strides = [1, 1]} : vector<16x256xf32> to vector<16x241xf32>
    %213 = tpu.concatenate %211, %212 in 1 : vector<16x15xf32>, vector<16x241xf32> -> vector<16x256xf32>
    %c15_i32_54 = arith.constant 15 : i32
    %214 = vector.broadcast %c15_i32_54 : i32 to vector<16x256xi32>
    %215 = arith.cmpi sge, %33, %214 : vector<16x256xi32>
    %216 = arith.select %215, %213, %210 : vector<16x256xi1>, vector<16x256xf32>
    %c5_55 = arith.constant 5 : index
    %c0_56 = arith.constant 0 : index
    %c0_57 = arith.constant 0 : index
    %217 = vector.load %arg4[%c5_55, %c0_56, %c0_57] : memref<9x16x16xf32, #tpu.memory_space<vmem>>, vector<1x16x16xf32>
    %218 = vector.shape_cast %217 : vector<1x16x16xf32> to vector<16x16xf32>
    %cst_58 = arith.constant dense<0.000000e+00> : vector<16x256xf32>
    %219 = tpu.matmul %218, %216, %cst_58 {dimension_numbers = #tpu.dot_dimension_numbers<[1], [0], [0], [1], [0, 0, 1, 1], [], []>} : vector<16x16xf32>, vector<16x256xf32>, vector<16x256xf32> -> vector<16x256xf32>
    %220 = arith.addf %207, %219 : vector<16x256xf32>
    %221 = vector.extract_strided_slice %156 {offsets = [0, 16], sizes = [16, 240], strides = [1, 1]} : vector<16x256xf32> to vector<16x240xf32>
    %222 = vector.extract_strided_slice %156 {offsets = [0, 0], sizes = [16, 16], strides = [1, 1]} : vector<16x256xf32> to vector<16x16xf32>
    %223 = tpu.concatenate %221, %222 in 1 : vector<16x240xf32>, vector<16x16xf32> -> vector<16x256xf32>
    %224 = vector.extract_strided_slice %223 {offsets = [0, 255], sizes = [16, 1], strides = [1, 1]} : vector<16x256xf32> to vector<16x1xf32>
    %225 = vector.extract_strided_slice %223 {offsets = [0, 0], sizes = [16, 255], strides = [1, 1]} : vector<16x256xf32> to vector<16x255xf32>
    %226 = tpu.concatenate %224, %225 in 1 : vector<16x1xf32>, vector<16x255xf32> -> vector<16x256xf32>
    %227 = vector.extract_strided_slice %223 {offsets = [0, 15], sizes = [16, 241], strides = [1, 1]} : vector<16x256xf32> to vector<16x241xf32>
    %228 = vector.extract_strided_slice %223 {offsets = [0, 0], sizes = [16, 15], strides = [1, 1]} : vector<16x256xf32> to vector<16x15xf32>
    %229 = tpu.concatenate %227, %228 in 1 : vector<16x241xf32>, vector<16x15xf32> -> vector<16x256xf32>
    %c1_i32_59 = arith.constant 1 : i32
    %230 = vector.broadcast %c1_i32_59 : i32 to vector<16x256xi32>
    %231 = arith.cmpi slt, %33, %230 : vector<16x256xi32>
    %232 = arith.select %231, %229, %226 : vector<16x256xi1>, vector<16x256xf32>
    %c6_60 = arith.constant 6 : index
    %c0_61 = arith.constant 0 : index
    %c0_62 = arith.constant 0 : index
    %233 = vector.load %arg4[%c6_60, %c0_61, %c0_62] : memref<9x16x16xf32, #tpu.memory_space<vmem>>, vector<1x16x16xf32>
    %234 = vector.shape_cast %233 : vector<1x16x16xf32> to vector<16x16xf32>
    %cst_63 = arith.constant dense<0.000000e+00> : vector<16x256xf32>
    %235 = tpu.matmul %234, %232, %cst_63 {dimension_numbers = #tpu.dot_dimension_numbers<[1], [0], [0], [1], [0, 0, 1, 1], [], []>} : vector<16x16xf32>, vector<16x256xf32>, vector<16x256xf32> -> vector<16x256xf32>
    %236 = arith.addf %220, %235 : vector<16x256xf32>
    %c7_64 = arith.constant 7 : index
    %c0_65 = arith.constant 0 : index
    %c0_66 = arith.constant 0 : index
    %237 = vector.load %arg4[%c7_64, %c0_65, %c0_66] : memref<9x16x16xf32, #tpu.memory_space<vmem>>, vector<1x16x16xf32>
    %238 = vector.shape_cast %237 : vector<1x16x16xf32> to vector<16x16xf32>
    %cst_67 = arith.constant dense<0.000000e+00> : vector<16x256xf32>
    %239 = tpu.matmul %238, %223, %cst_67 {dimension_numbers = #tpu.dot_dimension_numbers<[1], [0], [0], [1], [0, 0, 1, 1], [], []>} : vector<16x16xf32>, vector<16x256xf32>, vector<16x256xf32> -> vector<16x256xf32>
    %240 = arith.addf %236, %239 : vector<16x256xf32>
    %241 = vector.extract_strided_slice %223 {offsets = [0, 1], sizes = [16, 255], strides = [1, 1]} : vector<16x256xf32> to vector<16x255xf32>
    %242 = vector.extract_strided_slice %223 {offsets = [0, 0], sizes = [16, 1], strides = [1, 1]} : vector<16x256xf32> to vector<16x1xf32>
    %243 = tpu.concatenate %241, %242 in 1 : vector<16x255xf32>, vector<16x1xf32> -> vector<16x256xf32>
    %244 = vector.extract_strided_slice %223 {offsets = [0, 241], sizes = [16, 15], strides = [1, 1]} : vector<16x256xf32> to vector<16x15xf32>
    %245 = vector.extract_strided_slice %223 {offsets = [0, 0], sizes = [16, 241], strides = [1, 1]} : vector<16x256xf32> to vector<16x241xf32>
    %246 = tpu.concatenate %244, %245 in 1 : vector<16x15xf32>, vector<16x241xf32> -> vector<16x256xf32>
    %c15_i32_68 = arith.constant 15 : i32
    %247 = vector.broadcast %c15_i32_68 : i32 to vector<16x256xi32>
    %248 = arith.cmpi sge, %33, %247 : vector<16x256xi32>
    %249 = arith.select %248, %246, %243 : vector<16x256xi1>, vector<16x256xf32>
    %c8_69 = arith.constant 8 : index
    %c0_70 = arith.constant 0 : index
    %c0_71 = arith.constant 0 : index
    %250 = vector.load %arg4[%c8_69, %c0_70, %c0_71] : memref<9x16x16xf32, #tpu.memory_space<vmem>>, vector<1x16x16xf32>
    %251 = vector.shape_cast %250 : vector<1x16x16xf32> to vector<16x16xf32>
    %cst_72 = arith.constant dense<0.000000e+00> : vector<16x256xf32>
    %252 = tpu.matmul %251, %249, %cst_72 {dimension_numbers = #tpu.dot_dimension_numbers<[1], [0], [0], [1], [0, 0, 1, 1], [], []>} : vector<16x16xf32>, vector<16x256xf32>, vector<16x256xf32> -> vector<16x256xf32>
    %253 = arith.addf %240, %252 : vector<16x256xf32>
    %c0_73 = arith.constant 0 : index
    %c0_74 = arith.constant 0 : index
    %254 = vector.load %arg5[%c0_73, %c0_74] : memref<16x1xf32, #tpu.memory_space<vmem>>, vector<16x1xf32>
    %255 = vector.broadcast %254 : vector<16x1xf32> to vector<16x256xf32>
    %256 = arith.addf %253, %255 : vector<16x256xf32>
    %cst_75 = arith.constant 0.000000e+00 : f32
    %257 = vector.broadcast %cst_75 : f32 to vector<16x256xf32>
    %258 = arith.maximumf %256, %257 : vector<16x256xf32>
    %c0_76 = arith.constant 0 : index
    %c0_77 = arith.constant 0 : index
    %259 = vector.load %arg6[%c0_76, %c0_77] : memref<256x128xf32, #tpu.memory_space<vmem>>, vector<256x128xf32>
    %cst_78 = arith.constant dense<0.000000e+00> : vector<16x128xf32>
    %260 = tpu.matmul %258, %259, %cst_78 {dimension_numbers = #tpu.dot_dimension_numbers<[1], [0], [0], [1], [0, 0, 1, 1], [], []>} : vector<16x256xf32>, vector<256x128xf32>, vector<16x128xf32> -> vector<16x128xf32>
    %c0_79 = arith.constant 0 : index
    %c0_80 = arith.constant 0 : index
    %261 = vector.load %arg7[%c0_79, %c0_80] : memref<1x128xf32, #tpu.memory_space<vmem>>, vector<1x128xf32>
    %262 = vector.broadcast %261 : vector<1x128xf32> to vector<16x128xf32>
    %263 = arith.addf %260, %262 : vector<16x128xf32>
    %cst_81 = arith.constant 0.000000e+00 : f32
    %264 = vector.broadcast %cst_81 : f32 to vector<16x128xf32>
    %265 = arith.maximumf %263, %264 : vector<16x128xf32>
    %c0_82 = arith.constant 0 : index
    %c0_83 = arith.constant 0 : index
    %266 = vector.load %arg8[%c0_82, %c0_83] : memref<128x128xf32, #tpu.memory_space<vmem>>, vector<128x128xf32>
    %cst_84 = arith.constant dense<0.000000e+00> : vector<16x128xf32>
    %267 = tpu.matmul %265, %266, %cst_84 {dimension_numbers = #tpu.dot_dimension_numbers<[1], [0], [0], [1], [0, 0, 1, 1], [], []>} : vector<16x128xf32>, vector<128x128xf32>, vector<16x128xf32> -> vector<16x128xf32>
    %268 = vector.extract_strided_slice %267 {offsets = [0, 0], sizes = [16, 4], strides = [1, 1]} : vector<16x128xf32> to vector<16x4xf32>
    %269 = vector.broadcast %96 : f32 to vector<16x4xf32>
    %270 = arith.addf %268, %269 : vector<16x4xf32>
    %c0_85 = arith.constant 0 : index
    %c0_86 = arith.constant 0 : index
    %c0_87 = arith.constant 0 : index
    %c0_88 = arith.constant 0 : index
    %271 = vector.load %arg10[%c0_85, %c0_86, %c0_87, %c0_88] : memref<1x4x16x4xf32, #tpu.memory_space<vmem>>, vector<1x1x16x4xf32>
    %272 = vector.shape_cast %271 : vector<1x1x16x4xf32> to vector<16x4xf32>
    %273 = vector.shape_cast %270 : vector<16x4xf32> to vector<1x1x16x4xf32>
    tpu.vector_store %arg10[%c0_85, %c0_86, %c0_87, %c0_88], %273 {strides = array<i32>} : memref<1x4x16x4xf32, #tpu.memory_space<vmem>>, vector<1x1x16x4xf32>,
    %cst_89 = arith.constant 0.000000e+00 : f32
    %274 = vector.broadcast %cst_89 : f32 to vector<16x256xf32>
    %c0_90 = arith.constant 0 : index
    %c0_91 = arith.constant 0 : index
    %275 = vector.load %arg2[%c0_90, %c0_91] : memref<16x9xf32, #tpu.memory_space<vmem>>, vector<16x1xf32>
    %276 = vector.extract_strided_slice %47 {offsets = [1, 0], sizes = [1, 256], strides = [1, 1]} : vector<4x256xf32> to vector<1x256xf32>
    %277 = vector.broadcast %275 : vector<16x1xf32> to vector<16x256xf32>
    %278 = vector.broadcast %276 : vector<1x256xf32> to vector<16x256xf32>
    %279 = arith.mulf %277, %278 : vector<16x256xf32>
    %280 = arith.addf %274, %279 : vector<16x256xf32>
    %c0_92 = arith.constant 0 : index
    %c1_93 = arith.constant 1 : index
    %281 = vector.load %arg2[%c0_92, %c1_93] : memref<16x9xf32, #tpu.memory_space<vmem>>, vector<16x1xf32>
    %282 = vector.extract_strided_slice %38 {offsets = [1, 0], sizes = [1, 256], strides = [1, 1]} : vector<4x256xf32> to vector<1x256xf32>
    %283 = vector.broadcast %281 : vector<16x1xf32> to vector<16x256xf32>
    %284 = vector.broadcast %282 : vector<1x256xf32> to vector<16x256xf32>
    %285 = arith.mulf %283, %284 : vector<16x256xf32>
    %286 = arith.addf %280, %285 : vector<16x256xf32>
    %c0_94 = arith.constant 0 : index
    %c2_95 = arith.constant 2 : index
    %287 = vector.load %arg2[%c0_94, %c2_95] : memref<16x9xf32, #tpu.memory_space<vmem>>, vector<16x1xf32>
    %288 = vector.extract_strided_slice %56 {offsets = [1, 0], sizes = [1, 256], strides = [1, 1]} : vector<4x256xf32> to vector<1x256xf32>
    %289 = vector.broadcast %287 : vector<16x1xf32> to vector<16x256xf32>
    %290 = vector.broadcast %288 : vector<1x256xf32> to vector<16x256xf32>
    %291 = arith.mulf %289, %290 : vector<16x256xf32>
    %292 = arith.addf %286, %291 : vector<16x256xf32>
    %c0_96 = arith.constant 0 : index
    %c3_97 = arith.constant 3 : index
    %293 = vector.load %arg2[%c0_96, %c3_97] : memref<16x9xf32, #tpu.memory_space<vmem>>, vector<16x1xf32>
    %294 = vector.extract_strided_slice %65 {offsets = [1, 0], sizes = [1, 256], strides = [1, 1]} : vector<4x256xf32> to vector<1x256xf32>
    %295 = vector.broadcast %293 : vector<16x1xf32> to vector<16x256xf32>
    %296 = vector.broadcast %294 : vector<1x256xf32> to vector<16x256xf32>
    %297 = arith.mulf %295, %296 : vector<16x256xf32>
    %298 = arith.addf %292, %297 : vector<16x256xf32>
    %c0_98 = arith.constant 0 : index
    %c4_99 = arith.constant 4 : index
    %299 = vector.load %arg2[%c0_98, %c4_99] : memref<16x9xf32, #tpu.memory_space<vmem>>, vector<16x1xf32>
    %300 = vector.extract_strided_slice %35 {offsets = [1, 0], sizes = [1, 256], strides = [1, 1]} : vector<4x256xf32> to vector<1x256xf32>
    %301 = vector.broadcast %299 : vector<16x1xf32> to vector<16x256xf32>
    %302 = vector.broadcast %300 : vector<1x256xf32> to vector<16x256xf32>
    %303 = arith.mulf %301, %302 : vector<16x256xf32>
    %304 = arith.addf %298, %303 : vector<16x256xf32>
    %c0_100 = arith.constant 0 : index
    %c5_101 = arith.constant 5 : index
    %305 = vector.load %arg2[%c0_100, %c5_101] : memref<16x9xf32, #tpu.memory_space<vmem>>, vector<16x1xf32>
    %306 = vector.extract_strided_slice %74 {offsets = [1, 0], sizes = [1, 256], strides = [1, 1]} : vector<4x256xf32> to vector<1x256xf32>
    %307 = vector.broadcast %305 : vector<16x1xf32> to vector<16x256xf32>
    %308 = vector.broadcast %306 : vector<1x256xf32> to vector<16x256xf32>
    %309 = arith.mulf %307, %308 : vector<16x256xf32>
    %310 = arith.addf %304, %309 : vector<16x256xf32>
    %c0_102 = arith.constant 0 : index
    %c6_103 = arith.constant 6 : index
    %311 = vector.load %arg2[%c0_102, %c6_103] : memref<16x9xf32, #tpu.memory_space<vmem>>, vector<16x1xf32>
    %312 = vector.extract_strided_slice %86 {offsets = [1, 0], sizes = [1, 256], strides = [1, 1]} : vector<4x256xf32> to vector<1x256xf32>
    %313 = vector.broadcast %311 : vector<16x1xf32> to vector<16x256xf32>
    %314 = vector.broadcast %312 : vector<1x256xf32> to vector<16x256xf32>
    %315 = arith.mulf %313, %314 : vector<16x256xf32>
    %316 = arith.addf %310, %315 : vector<16x256xf32>
    %c0_104 = arith.constant 0 : index
    %c7_105 = arith.constant 7 : index
    %317 = vector.load %arg2[%c0_104, %c7_105] : memref<16x9xf32, #tpu.memory_space<vmem>>, vector<16x1xf32>
    %318 = vector.extract_strided_slice %77 {offsets = [1, 0], sizes = [1, 256], strides = [1, 1]} : vector<4x256xf32> to vector<1x256xf32>
    %319 = vector.broadcast %317 : vector<16x1xf32> to vector<16x256xf32>
    %320 = vector.broadcast %318 : vector<1x256xf32> to vector<16x256xf32>
    %321 = arith.mulf %319, %320 : vector<16x256xf32>
    %322 = arith.addf %316, %321 : vector<16x256xf32>
    %c0_106 = arith.constant 0 : index
    %c8_107 = arith.constant 8 : index
    %323 = vector.load %arg2[%c0_106, %c8_107] : memref<16x9xf32, #tpu.memory_space<vmem>>, vector<16x1xf32>
    %324 = vector.extract_strided_slice %95 {offsets = [1, 0], sizes = [1, 256], strides = [1, 1]} : vector<4x256xf32> to vector<1x256xf32>
    %325 = vector.broadcast %323 : vector<16x1xf32> to vector<16x256xf32>
    %326 = vector.broadcast %324 : vector<1x256xf32> to vector<16x256xf32>
    %327 = arith.mulf %325, %326 : vector<16x256xf32>
    %328 = arith.addf %322, %327 : vector<16x256xf32>
    %c0_108 = arith.constant 0 : index
    %c0_109 = arith.constant 0 : index
    %329 = vector.load %arg3[%c0_108, %c0_109] : memref<16x1xf32, #tpu.memory_space<vmem>>, vector<16x1xf32>
    %330 = vector.broadcast %329 : vector<16x1xf32> to vector<16x256xf32>
    %331 = arith.addf %328, %330 : vector<16x256xf32>
    %cst_110 = arith.constant 0.000000e+00 : f32
    %332 = vector.broadcast %cst_110 : f32 to vector<16x256xf32>
    %333 = arith.maximumf %331, %332 : vector<16x256xf32>
    %cst_111 = arith.constant 0.000000e+00 : f32
    %334 = vector.broadcast %cst_111 : f32 to vector<16x256xf32>
    %335 = vector.extract_strided_slice %333 {offsets = [0, 240], sizes = [16, 16], strides = [1, 1]} : vector<16x256xf32> to vector<16x16xf32>
    %336 = vector.extract_strided_slice %333 {offsets = [0, 0], sizes = [16, 240], strides = [1, 1]} : vector<16x256xf32> to vector<16x240xf32>
    %337 = tpu.concatenate %335, %336 in 1 : vector<16x16xf32>, vector<16x240xf32> -> vector<16x256xf32>
    %338 = vector.extract_strided_slice %337 {offsets = [0, 255], sizes = [16, 1], strides = [1, 1]} : vector<16x256xf32> to vector<16x1xf32>
    %339 = vector.extract_strided_slice %337 {offsets = [0, 0], sizes = [16, 255], strides = [1, 1]} : vector<16x256xf32> to vector<16x255xf32>
    %340 = tpu.concatenate %338, %339 in 1 : vector<16x1xf32>, vector<16x255xf32> -> vector<16x256xf32>
    %341 = vector.extract_strided_slice %337 {offsets = [0, 15], sizes = [16, 241], strides = [1, 1]} : vector<16x256xf32> to vector<16x241xf32>
    %342 = vector.extract_strided_slice %337 {offsets = [0, 0], sizes = [16, 15], strides = [1, 1]} : vector<16x256xf32> to vector<16x15xf32>
    %343 = tpu.concatenate %341, %342 in 1 : vector<16x241xf32>, vector<16x15xf32> -> vector<16x256xf32>
    %c1_i32_112 = arith.constant 1 : i32
    %344 = vector.broadcast %c1_i32_112 : i32 to vector<16x256xi32>
    %345 = arith.cmpi slt, %33, %344 : vector<16x256xi32>
    %346 = arith.select %345, %343, %340 : vector<16x256xi1>, vector<16x256xf32>
    %c0_113 = arith.constant 0 : index
    %c0_114 = arith.constant 0 : index
    %c0_115 = arith.constant 0 : index
    %347 = vector.load %arg4[%c0_113, %c0_114, %c0_115] : memref<9x16x16xf32, #tpu.memory_space<vmem>>, vector<1x16x16xf32>
    %348 = vector.shape_cast %347 : vector<1x16x16xf32> to vector<16x16xf32>
    %cst_116 = arith.constant dense<0.000000e+00> : vector<16x256xf32>
    %349 = tpu.matmul %348, %346, %cst_116 {dimension_numbers = #tpu.dot_dimension_numbers<[1], [0], [0], [1], [0, 0, 1, 1], [], []>} : vector<16x16xf32>, vector<16x256xf32>, vector<16x256xf32> -> vector<16x256xf32>
    %350 = arith.addf %334, %349 : vector<16x256xf32>
    %c1_117 = arith.constant 1 : index
    %c0_118 = arith.constant 0 : index
    %c0_119 = arith.constant 0 : index
    %351 = vector.load %arg4[%c1_117, %c0_118, %c0_119] : memref<9x16x16xf32, #tpu.memory_space<vmem>>, vector<1x16x16xf32>
    %352 = vector.shape_cast %351 : vector<1x16x16xf32> to vector<16x16xf32>
    %cst_120 = arith.constant dense<0.000000e+00> : vector<16x256xf32>
    %353 = tpu.matmul %352, %337, %cst_120 {dimension_numbers = #tpu.dot_dimension_numbers<[1], [0], [0], [1], [0, 0, 1, 1], [], []>} : vector<16x16xf32>, vector<16x256xf32>, vector<16x256xf32> -> vector<16x256xf32>
    %354 = arith.addf %350, %353 : vector<16x256xf32>
    %355 = vector.extract_strided_slice %337 {offsets = [0, 1], sizes = [16, 255], strides = [1, 1]} : vector<16x256xf32> to vector<16x255xf32>
    %356 = vector.extract_strided_slice %337 {offsets = [0, 0], sizes = [16, 1], strides = [1, 1]} : vector<16x256xf32> to vector<16x1xf32>
    %357 = tpu.concatenate %355, %356 in 1 : vector<16x255xf32>, vector<16x1xf32> -> vector<16x256xf32>
    %358 = vector.extract_strided_slice %337 {offsets = [0, 241], sizes = [16, 15], strides = [1, 1]} : vector<16x256xf32> to vector<16x15xf32>
    %359 = vector.extract_strided_slice %337 {offsets = [0, 0], sizes = [16, 241], strides = [1, 1]} : vector<16x256xf32> to vector<16x241xf32>
    %360 = tpu.concatenate %358, %359 in 1 : vector<16x15xf32>, vector<16x241xf32> -> vector<16x256xf32>
    %c15_i32_121 = arith.constant 15 : i32
    %361 = vector.broadcast %c15_i32_121 : i32 to vector<16x256xi32>
    %362 = arith.cmpi sge, %33, %361 : vector<16x256xi32>
    %363 = arith.select %362, %360, %357 : vector<16x256xi1>, vector<16x256xf32>
    %c2_122 = arith.constant 2 : index
    %c0_123 = arith.constant 0 : index
    %c0_124 = arith.constant 0 : index
    %364 = vector.load %arg4[%c2_122, %c0_123, %c0_124] : memref<9x16x16xf32, #tpu.memory_space<vmem>>, vector<1x16x16xf32>
    %365 = vector.shape_cast %364 : vector<1x16x16xf32> to vector<16x16xf32>
    %cst_125 = arith.constant dense<0.000000e+00> : vector<16x256xf32>
    %366 = tpu.matmul %365, %363, %cst_125 {dimension_numbers = #tpu.dot_dimension_numbers<[1], [0], [0], [1], [0, 0, 1, 1], [], []>} : vector<16x16xf32>, vector<16x256xf32>, vector<16x256xf32> -> vector<16x256xf32>
    %367 = arith.addf %354, %366 : vector<16x256xf32>
    %368 = vector.extract_strided_slice %333 {offsets = [0, 255], sizes = [16, 1], strides = [1, 1]} : vector<16x256xf32> to vector<16x1xf32>
    %369 = vector.extract_strided_slice %333 {offsets = [0, 0], sizes = [16, 255], strides = [1, 1]} : vector<16x256xf32> to vector<16x255xf32>
    %370 = tpu.concatenate %368, %369 in 1 : vector<16x1xf32>, vector<16x255xf32> -> vector<16x256xf32>
    %371 = vector.extract_strided_slice %333 {offsets = [0, 15], sizes = [16, 241], strides = [1, 1]} : vector<16x256xf32> to vector<16x241xf32>
    %372 = vector.extract_strided_slice %333 {offsets = [0, 0], sizes = [16, 15], strides = [1, 1]} : vector<16x256xf32> to vector<16x15xf32>
    %373 = tpu.concatenate %371, %372 in 1 : vector<16x241xf32>, vector<16x15xf32> -> vector<16x256xf32>
    %c1_i32_126 = arith.constant 1 : i32
    %374 = vector.broadcast %c1_i32_126 : i32 to vector<16x256xi32>
    %375 = arith.cmpi slt, %33, %374 : vector<16x256xi32>
    %376 = arith.select %375, %373, %370 : vector<16x256xi1>, vector<16x256xf32>
    %c3_127 = arith.constant 3 : index
    %c0_128 = arith.constant 0 : index
    %c0_129 = arith.constant 0 : index
    %377 = vector.load %arg4[%c3_127, %c0_128, %c0_129] : memref<9x16x16xf32, #tpu.memory_space<vmem>>, vector<1x16x16xf32>
    %378 = vector.shape_cast %377 : vector<1x16x16xf32> to vector<16x16xf32>
    %cst_130 = arith.constant dense<0.000000e+00> : vector<16x256xf32>
    %379 = tpu.matmul %378, %376, %cst_130 {dimension_numbers = #tpu.dot_dimension_numbers<[1], [0], [0], [1], [0, 0, 1, 1], [], []>} : vector<16x16xf32>, vector<16x256xf32>, vector<16x256xf32> -> vector<16x256xf32>
    %380 = arith.addf %367, %379 : vector<16x256xf32>
    %c4_131 = arith.constant 4 : index
    %c0_132 = arith.constant 0 : index
    %c0_133 = arith.constant 0 : index
    %381 = vector.load %arg4[%c4_131, %c0_132, %c0_133] : memref<9x16x16xf32, #tpu.memory_space<vmem>>, vector<1x16x16xf32>
    %382 = vector.shape_cast %381 : vector<1x16x16xf32> to vector<16x16xf32>
    %cst_134 = arith.constant dense<0.000000e+00> : vector<16x256xf32>
    %383 = tpu.matmul %382, %333, %cst_134 {dimension_numbers = #tpu.dot_dimension_numbers<[1], [0], [0], [1], [0, 0, 1, 1], [], []>} : vector<16x16xf32>, vector<16x256xf32>, vector<16x256xf32> -> vector<16x256xf32>
    %384 = arith.addf %380, %383 : vector<16x256xf32>
    %385 = vector.extract_strided_slice %333 {offsets = [0, 1], sizes = [16, 255], strides = [1, 1]} : vector<16x256xf32> to vector<16x255xf32>
    %386 = vector.extract_strided_slice %333 {offsets = [0, 0], sizes = [16, 1], strides = [1, 1]} : vector<16x256xf32> to vector<16x1xf32>
    %387 = tpu.concatenate %385, %386 in 1 : vector<16x255xf32>, vector<16x1xf32> -> vector<16x256xf32>
    %388 = vector.extract_strided_slice %333 {offsets = [0, 241], sizes = [16, 15], strides = [1, 1]} : vector<16x256xf32> to vector<16x15xf32>
    %389 = vector.extract_strided_slice %333 {offsets = [0, 0], sizes = [16, 241], strides = [1, 1]} : vector<16x256xf32> to vector<16x241xf32>
    %390 = tpu.concatenate %388, %389 in 1 : vector<16x15xf32>, vector<16x241xf32> -> vector<16x256xf32>
    %c15_i32_135 = arith.constant 15 : i32
    %391 = vector.broadcast %c15_i32_135 : i32 to vector<16x256xi32>
    %392 = arith.cmpi sge, %33, %391 : vector<16x256xi32>
    %393 = arith.select %392, %390, %387 : vector<16x256xi1>, vector<16x256xf32>
    %c5_136 = arith.constant 5 : index
    %c0_137 = arith.constant 0 : index
    %c0_138 = arith.constant 0 : index
    %394 = vector.load %arg4[%c5_136, %c0_137, %c0_138] : memref<9x16x16xf32, #tpu.memory_space<vmem>>, vector<1x16x16xf32>
    %395 = vector.shape_cast %394 : vector<1x16x16xf32> to vector<16x16xf32>
    %cst_139 = arith.constant dense<0.000000e+00> : vector<16x256xf32>
    %396 = tpu.matmul %395, %393, %cst_139 {dimension_numbers = #tpu.dot_dimension_numbers<[1], [0], [0], [1], [0, 0, 1, 1], [], []>} : vector<16x16xf32>, vector<16x256xf32>, vector<16x256xf32> -> vector<16x256xf32>
    %397 = arith.addf %384, %396 : vector<16x256xf32>
    %398 = vector.extract_strided_slice %333 {offsets = [0, 16], sizes = [16, 240], strides = [1, 1]} : vector<16x256xf32> to vector<16x240xf32>
    %399 = vector.extract_strided_slice %333 {offsets = [0, 0], sizes = [16, 16], strides = [1, 1]} : vector<16x256xf32> to vector<16x16xf32>
    %400 = tpu.concatenate %398, %399 in 1 : vector<16x240xf32>, vector<16x16xf32> -> vector<16x256xf32>
    %401 = vector.extract_strided_slice %400 {offsets = [0, 255], sizes = [16, 1], strides = [1, 1]} : vector<16x256xf32> to vector<16x1xf32>
    %402 = vector.extract_strided_slice %400 {offsets = [0, 0], sizes = [16, 255], strides = [1, 1]} : vector<16x256xf32> to vector<16x255xf32>
    %403 = tpu.concatenate %401, %402 in 1 : vector<16x1xf32>, vector<16x255xf32> -> vector<16x256xf32>
    %404 = vector.extract_strided_slice %400 {offsets = [0, 15], sizes = [16, 241], strides = [1, 1]} : vector<16x256xf32> to vector<16x241xf32>
    %405 = vector.extract_strided_slice %400 {offsets = [0, 0], sizes = [16, 15], strides = [1, 1]} : vector<16x256xf32> to vector<16x15xf32>
    %406 = tpu.concatenate %404, %405 in 1 : vector<16x241xf32>, vector<16x15xf32> -> vector<16x256xf32>
    %c1_i32_140 = arith.constant 1 : i32
    %407 = vector.broadcast %c1_i32_140 : i32 to vector<16x256xi32>
    %408 = arith.cmpi slt, %33, %407 : vector<16x256xi32>
    %409 = arith.select %408, %406, %403 : vector<16x256xi1>, vector<16x256xf32>
    %c6_141 = arith.constant 6 : index
    %c0_142 = arith.constant 0 : index
    %c0_143 = arith.constant 0 : index
    %410 = vector.load %arg4[%c6_141, %c0_142, %c0_143] : memref<9x16x16xf32, #tpu.memory_space<vmem>>, vector<1x16x16xf32>
    %411 = vector.shape_cast %410 : vector<1x16x16xf32> to vector<16x16xf32>
    %cst_144 = arith.constant dense<0.000000e+00> : vector<16x256xf32>
    %412 = tpu.matmul %411, %409, %cst_144 {dimension_numbers = #tpu.dot_dimension_numbers<[1], [0], [0], [1], [0, 0, 1, 1], [], []>} : vector<16x16xf32>, vector<16x256xf32>, vector<16x256xf32> -> vector<16x256xf32>
    %413 = arith.addf %397, %412 : vector<16x256xf32>
    %c7_145 = arith.constant 7 : index
    %c0_146 = arith.constant 0 : index
    %c0_147 = arith.constant 0 : index
    %414 = vector.load %arg4[%c7_145, %c0_146, %c0_147] : memref<9x16x16xf32, #tpu.memory_space<vmem>>, vector<1x16x16xf32>
    %415 = vector.shape_cast %414 : vector<1x16x16xf32> to vector<16x16xf32>
    %cst_148 = arith.constant dense<0.000000e+00> : vector<16x256xf32>
    %416 = tpu.matmul %415, %400, %cst_148 {dimension_numbers = #tpu.dot_dimension_numbers<[1], [0], [0], [1], [0, 0, 1, 1], [], []>} : vector<16x16xf32>, vector<16x256xf32>, vector<16x256xf32> -> vector<16x256xf32>
    %417 = arith.addf %413, %416 : vector<16x256xf32>
    %418 = vector.extract_strided_slice %400 {offsets = [0, 1], sizes = [16, 255], strides = [1, 1]} : vector<16x256xf32> to vector<16x255xf32>
    %419 = vector.extract_strided_slice %400 {offsets = [0, 0], sizes = [16, 1], strides = [1, 1]} : vector<16x256xf32> to vector<16x1xf32>
    %420 = tpu.concatenate %418, %419 in 1 : vector<16x255xf32>, vector<16x1xf32> -> vector<16x256xf32>
    %421 = vector.extract_strided_slice %400 {offsets = [0, 241], sizes = [16, 15], strides = [1, 1]} : vector<16x256xf32> to vector<16x15xf32>
    %422 = vector.extract_strided_slice %400 {offsets = [0, 0], sizes = [16, 241], strides = [1, 1]} : vector<16x256xf32> to vector<16x241xf32>
    %423 = tpu.concatenate %421, %422 in 1 : vector<16x15xf32>, vector<16x241xf32> -> vector<16x256xf32>
    %c15_i32_149 = arith.constant 15 : i32
    %424 = vector.broadcast %c15_i32_149 : i32 to vector<16x256xi32>
    %425 = arith.cmpi sge, %33, %424 : vector<16x256xi32>
    %426 = arith.select %425, %423, %420 : vector<16x256xi1>, vector<16x256xf32>
    %c8_150 = arith.constant 8 : index
    %c0_151 = arith.constant 0 : index
    %c0_152 = arith.constant 0 : index
    %427 = vector.load %arg4[%c8_150, %c0_151, %c0_152] : memref<9x16x16xf32, #tpu.memory_space<vmem>>, vector<1x16x16xf32>
    %428 = vector.shape_cast %427 : vector<1x16x16xf32> to vector<16x16xf32>
    %cst_153 = arith.constant dense<0.000000e+00> : vector<16x256xf32>
    %429 = tpu.matmul %428, %426, %cst_153 {dimension_numbers = #tpu.dot_dimension_numbers<[1], [0], [0], [1], [0, 0, 1, 1], [], []>} : vector<16x16xf32>, vector<16x256xf32>, vector<16x256xf32> -> vector<16x256xf32>
    %430 = arith.addf %417, %429 : vector<16x256xf32>
    %c0_154 = arith.constant 0 : index
    %c0_155 = arith.constant 0 : index
    %431 = vector.load %arg5[%c0_154, %c0_155] : memref<16x1xf32, #tpu.memory_space<vmem>>, vector<16x1xf32>
    %432 = vector.broadcast %431 : vector<16x1xf32> to vector<16x256xf32>
    %433 = arith.addf %430, %432 : vector<16x256xf32>
    %cst_156 = arith.constant 0.000000e+00 : f32
    %434 = vector.broadcast %cst_156 : f32 to vector<16x256xf32>
    %435 = arith.maximumf %433, %434 : vector<16x256xf32>
    %c0_157 = arith.constant 0 : index
    %c0_158 = arith.constant 0 : index
    %436 = vector.load %arg6[%c0_157, %c0_158] : memref<256x128xf32, #tpu.memory_space<vmem>>, vector<256x128xf32>
    %cst_159 = arith.constant dense<0.000000e+00> : vector<16x128xf32>
    %437 = tpu.matmul %435, %436, %cst_159 {dimension_numbers = #tpu.dot_dimension_numbers<[1], [0], [0], [1], [0, 0, 1, 1], [], []>} : vector<16x256xf32>, vector<256x128xf32>, vector<16x128xf32> -> vector<16x128xf32>
    %c0_160 = arith.constant 0 : index
    %c0_161 = arith.constant 0 : index
    %438 = vector.load %arg7[%c0_160, %c0_161] : memref<1x128xf32, #tpu.memory_space<vmem>>, vector<1x128xf32>
    %439 = vector.broadcast %438 : vector<1x128xf32> to vector<16x128xf32>
    %440 = arith.addf %437, %439 : vector<16x128xf32>
    %cst_162 = arith.constant 0.000000e+00 : f32
    %441 = vector.broadcast %cst_162 : f32 to vector<16x128xf32>
    %442 = arith.maximumf %440, %441 : vector<16x128xf32>
    %c0_163 = arith.constant 0 : index
    %c0_164 = arith.constant 0 : index
    %443 = vector.load %arg8[%c0_163, %c0_164] : memref<128x128xf32, #tpu.memory_space<vmem>>, vector<128x128xf32>
    %cst_165 = arith.constant dense<0.000000e+00> : vector<16x128xf32>
    %444 = tpu.matmul %442, %443, %cst_165 {dimension_numbers = #tpu.dot_dimension_numbers<[1], [0], [0], [1], [0, 0, 1, 1], [], []>} : vector<16x128xf32>, vector<128x128xf32>, vector<16x128xf32> -> vector<16x128xf32>
    %445 = vector.extract_strided_slice %444 {offsets = [0, 0], sizes = [16, 4], strides = [1, 1]} : vector<16x128xf32> to vector<16x4xf32>
    %446 = vector.broadcast %96 : f32 to vector<16x4xf32>
    %447 = arith.addf %445, %446 : vector<16x4xf32>
    %c0_166 = arith.constant 0 : index
    %c1_167 = arith.constant 1 : index
    %c0_168 = arith.constant 0 : index
    %c0_169 = arith.constant 0 : index
    %448 = vector.load %arg10[%c0_166, %c1_167, %c0_168, %c0_169] : memref<1x4x16x4xf32, #tpu.memory_space<vmem>>, vector<1x1x16x4xf32>
    %449 = vector.shape_cast %448 : vector<1x1x16x4xf32> to vector<16x4xf32>
    %450 = vector.shape_cast %447 : vector<16x4xf32> to vector<1x1x16x4xf32>
    tpu.vector_store %arg10[%c0_166, %c1_167, %c0_168, %c0_169], %450 {strides = array<i32>} : memref<1x4x16x4xf32, #tpu.memory_space<vmem>>, vector<1x1x16x4xf32>,
    %cst_170 = arith.constant 0.000000e+00 : f32
    %451 = vector.broadcast %cst_170 : f32 to vector<16x256xf32>
    %c0_171 = arith.constant 0 : index
    %c0_172 = arith.constant 0 : index
    %452 = vector.load %arg2[%c0_171, %c0_172] : memref<16x9xf32, #tpu.memory_space<vmem>>, vector<16x1xf32>
    %453 = vector.extract_strided_slice %47 {offsets = [2, 0], sizes = [1, 256], strides = [1, 1]} : vector<4x256xf32> to vector<1x256xf32>
    %454 = vector.broadcast %452 : vector<16x1xf32> to vector<16x256xf32>
    %455 = vector.broadcast %453 : vector<1x256xf32> to vector<16x256xf32>
    %456 = arith.mulf %454, %455 : vector<16x256xf32>
    %457 = arith.addf %451, %456 : vector<16x256xf32>
    %c0_173 = arith.constant 0 : index
    %c1_174 = arith.constant 1 : index
    %458 = vector.load %arg2[%c0_173, %c1_174] : memref<16x9xf32, #tpu.memory_space<vmem>>, vector<16x1xf32>
    %459 = vector.extract_strided_slice %38 {offsets = [2, 0], sizes = [1, 256], strides = [1, 1]} : vector<4x256xf32> to vector<1x256xf32>
    %460 = vector.broadcast %458 : vector<16x1xf32> to vector<16x256xf32>
    %461 = vector.broadcast %459 : vector<1x256xf32> to vector<16x256xf32>
    %462 = arith.mulf %460, %461 : vector<16x256xf32>
    %463 = arith.addf %457, %462 : vector<16x256xf32>
    %c0_175 = arith.constant 0 : index
    %c2_176 = arith.constant 2 : index
    %464 = vector.load %arg2[%c0_175, %c2_176] : memref<16x9xf32, #tpu.memory_space<vmem>>, vector<16x1xf32>
    %465 = vector.extract_strided_slice %56 {offsets = [2, 0], sizes = [1, 256], strides = [1, 1]} : vector<4x256xf32> to vector<1x256xf32>
    %466 = vector.broadcast %464 : vector<16x1xf32> to vector<16x256xf32>
    %467 = vector.broadcast %465 : vector<1x256xf32> to vector<16x256xf32>
    %468 = arith.mulf %466, %467 : vector<16x256xf32>
    %469 = arith.addf %463, %468 : vector<16x256xf32>
    %c0_177 = arith.constant 0 : index
    %c3_178 = arith.constant 3 : index
    %470 = vector.load %arg2[%c0_177, %c3_178] : memref<16x9xf32, #tpu.memory_space<vmem>>, vector<16x1xf32>
    %471 = vector.extract_strided_slice %65 {offsets = [2, 0], sizes = [1, 256], strides = [1, 1]} : vector<4x256xf32> to vector<1x256xf32>
    %472 = vector.broadcast %470 : vector<16x1xf32> to vector<16x256xf32>
    %473 = vector.broadcast %471 : vector<1x256xf32> to vector<16x256xf32>
    %474 = arith.mulf %472, %473 : vector<16x256xf32>
    %475 = arith.addf %469, %474 : vector<16x256xf32>
    %c0_179 = arith.constant 0 : index
    %c4_180 = arith.constant 4 : index
    %476 = vector.load %arg2[%c0_179, %c4_180] : memref<16x9xf32, #tpu.memory_space<vmem>>, vector<16x1xf32>
    %477 = vector.extract_strided_slice %35 {offsets = [2, 0], sizes = [1, 256], strides = [1, 1]} : vector<4x256xf32> to vector<1x256xf32>
    %478 = vector.broadcast %476 : vector<16x1xf32> to vector<16x256xf32>
    %479 = vector.broadcast %477 : vector<1x256xf32> to vector<16x256xf32>
    %480 = arith.mulf %478, %479 : vector<16x256xf32>
    %481 = arith.addf %475, %480 : vector<16x256xf32>
    %c0_181 = arith.constant 0 : index
    %c5_182 = arith.constant 5 : index
    %482 = vector.load %arg2[%c0_181, %c5_182] : memref<16x9xf32, #tpu.memory_space<vmem>>, vector<16x1xf32>
    %483 = vector.extract_strided_slice %74 {offsets = [2, 0], sizes = [1, 256], strides = [1, 1]} : vector<4x256xf32> to vector<1x256xf32>
    %484 = vector.broadcast %482 : vector<16x1xf32> to vector<16x256xf32>
    %485 = vector.broadcast %483 : vector<1x256xf32> to vector<16x256xf32>
    %486 = arith.mulf %484, %485 : vector<16x256xf32>
    %487 = arith.addf %481, %486 : vector<16x256xf32>
    %c0_183 = arith.constant 0 : index
    %c6_184 = arith.constant 6 : index
    %488 = vector.load %arg2[%c0_183, %c6_184] : memref<16x9xf32, #tpu.memory_space<vmem>>, vector<16x1xf32>
    %489 = vector.extract_strided_slice %86 {offsets = [2, 0], sizes = [1, 256], strides = [1, 1]} : vector<4x256xf32> to vector<1x256xf32>
    %490 = vector.broadcast %488 : vector<16x1xf32> to vector<16x256xf32>
    %491 = vector.broadcast %489 : vector<1x256xf32> to vector<16x256xf32>
    %492 = arith.mulf %490, %491 : vector<16x256xf32>
    %493 = arith.addf %487, %492 : vector<16x256xf32>
    %c0_185 = arith.constant 0 : index
    %c7_186 = arith.constant 7 : index
    %494 = vector.load %arg2[%c0_185, %c7_186] : memref<16x9xf32, #tpu.memory_space<vmem>>, vector<16x1xf32>
    %495 = vector.extract_strided_slice %77 {offsets = [2, 0], sizes = [1, 256], strides = [1, 1]} : vector<4x256xf32> to vector<1x256xf32>
    %496 = vector.broadcast %494 : vector<16x1xf32> to vector<16x256xf32>
    %497 = vector.broadcast %495 : vector<1x256xf32> to vector<16x256xf32>
    %498 = arith.mulf %496, %497 : vector<16x256xf32>
    %499 = arith.addf %493, %498 : vector<16x256xf32>
    %c0_187 = arith.constant 0 : index
    %c8_188 = arith.constant 8 : index
    %500 = vector.load %arg2[%c0_187, %c8_188] : memref<16x9xf32, #tpu.memory_space<vmem>>, vector<16x1xf32>
    %501 = vector.extract_strided_slice %95 {offsets = [2, 0], sizes = [1, 256], strides = [1, 1]} : vector<4x256xf32> to vector<1x256xf32>
    %502 = vector.broadcast %500 : vector<16x1xf32> to vector<16x256xf32>
    %503 = vector.broadcast %501 : vector<1x256xf32> to vector<16x256xf32>
    %504 = arith.mulf %502, %503 : vector<16x256xf32>
    %505 = arith.addf %499, %504 : vector<16x256xf32>
    %c0_189 = arith.constant 0 : index
    %c0_190 = arith.constant 0 : index
    %506 = vector.load %arg3[%c0_189, %c0_190] : memref<16x1xf32, #tpu.memory_space<vmem>>, vector<16x1xf32>
    %507 = vector.broadcast %506 : vector<16x1xf32> to vector<16x256xf32>
    %508 = arith.addf %505, %507 : vector<16x256xf32>
    %cst_191 = arith.constant 0.000000e+00 : f32
    %509 = vector.broadcast %cst_191 : f32 to vector<16x256xf32>
    %510 = arith.maximumf %508, %509 : vector<16x256xf32>
    %cst_192 = arith.constant 0.000000e+00 : f32
    %511 = vector.broadcast %cst_192 : f32 to vector<16x256xf32>
    %512 = vector.extract_strided_slice %510 {offsets = [0, 240], sizes = [16, 16], strides = [1, 1]} : vector<16x256xf32> to vector<16x16xf32>
    %513 = vector.extract_strided_slice %510 {offsets = [0, 0], sizes = [16, 240], strides = [1, 1]} : vector<16x256xf32> to vector<16x240xf32>
    %514 = tpu.concatenate %512, %513 in 1 : vector<16x16xf32>, vector<16x240xf32> -> vector<16x256xf32>
    %515 = vector.extract_strided_slice %514 {offsets = [0, 255], sizes = [16, 1], strides = [1, 1]} : vector<16x256xf32> to vector<16x1xf32>
    %516 = vector.extract_strided_slice %514 {offsets = [0, 0], sizes = [16, 255], strides = [1, 1]} : vector<16x256xf32> to vector<16x255xf32>
    %517 = tpu.concatenate %515, %516 in 1 : vector<16x1xf32>, vector<16x255xf32> -> vector<16x256xf32>
    %518 = vector.extract_strided_slice %514 {offsets = [0, 15], sizes = [16, 241], strides = [1, 1]} : vector<16x256xf32> to vector<16x241xf32>
    %519 = vector.extract_strided_slice %514 {offsets = [0, 0], sizes = [16, 15], strides = [1, 1]} : vector<16x256xf32> to vector<16x15xf32>
    %520 = tpu.concatenate %518, %519 in 1 : vector<16x241xf32>, vector<16x15xf32> -> vector<16x256xf32>
    %c1_i32_193 = arith.constant 1 : i32
    %521 = vector.broadcast %c1_i32_193 : i32 to vector<16x256xi32>
    %522 = arith.cmpi slt, %33, %521 : vector<16x256xi32>
    %523 = arith.select %522, %520, %517 : vector<16x256xi1>, vector<16x256xf32>
    %c0_194 = arith.constant 0 : index
    %c0_195 = arith.constant 0 : index
    %c0_196 = arith.constant 0 : index
    %524 = vector.load %arg4[%c0_194, %c0_195, %c0_196] : memref<9x16x16xf32, #tpu.memory_space<vmem>>, vector<1x16x16xf32>
    %525 = vector.shape_cast %524 : vector<1x16x16xf32> to vector<16x16xf32>
    %cst_197 = arith.constant dense<0.000000e+00> : vector<16x256xf32>
    %526 = tpu.matmul %525, %523, %cst_197 {dimension_numbers = #tpu.dot_dimension_numbers<[1], [0], [0], [1], [0, 0, 1, 1], [], []>} : vector<16x16xf32>, vector<16x256xf32>, vector<16x256xf32> -> vector<16x256xf32>
    %527 = arith.addf %511, %526 : vector<16x256xf32>
    %c1_198 = arith.constant 1 : index
    %c0_199 = arith.constant 0 : index
    %c0_200 = arith.constant 0 : index
    %528 = vector.load %arg4[%c1_198, %c0_199, %c0_200] : memref<9x16x16xf32, #tpu.memory_space<vmem>>, vector<1x16x16xf32>
    %529 = vector.shape_cast %528 : vector<1x16x16xf32> to vector<16x16xf32>
    %cst_201 = arith.constant dense<0.000000e+00> : vector<16x256xf32>
    %530 = tpu.matmul %529, %514, %cst_201 {dimension_numbers = #tpu.dot_dimension_numbers<[1], [0], [0], [1], [0, 0, 1, 1], [], []>} : vector<16x16xf32>, vector<16x256xf32>, vector<16x256xf32> -> vector<16x256xf32>
    %531 = arith.addf %527, %530 : vector<16x256xf32>
    %532 = vector.extract_strided_slice %514 {offsets = [0, 1], sizes = [16, 255], strides = [1, 1]} : vector<16x256xf32> to vector<16x255xf32>
    %533 = vector.extract_strided_slice %514 {offsets = [0, 0], sizes = [16, 1], strides = [1, 1]} : vector<16x256xf32> to vector<16x1xf32>
    %534 = tpu.concatenate %532, %533 in 1 : vector<16x255xf32>, vector<16x1xf32> -> vector<16x256xf32>
    %535 = vector.extract_strided_slice %514 {offsets = [0, 241], sizes = [16, 15], strides = [1, 1]} : vector<16x256xf32> to vector<16x15xf32>
    %536 = vector.extract_strided_slice %514 {offsets = [0, 0], sizes = [16, 241], strides = [1, 1]} : vector<16x256xf32> to vector<16x241xf32>
    %537 = tpu.concatenate %535, %536 in 1 : vector<16x15xf32>, vector<16x241xf32> -> vector<16x256xf32>
    %c15_i32_202 = arith.constant 15 : i32
    %538 = vector.broadcast %c15_i32_202 : i32 to vector<16x256xi32>
    %539 = arith.cmpi sge, %33, %538 : vector<16x256xi32>
    %540 = arith.select %539, %537, %534 : vector<16x256xi1>, vector<16x256xf32>
    %c2_203 = arith.constant 2 : index
    %c0_204 = arith.constant 0 : index
    %c0_205 = arith.constant 0 : index
    %541 = vector.load %arg4[%c2_203, %c0_204, %c0_205] : memref<9x16x16xf32, #tpu.memory_space<vmem>>, vector<1x16x16xf32>
    %542 = vector.shape_cast %541 : vector<1x16x16xf32> to vector<16x16xf32>
    %cst_206 = arith.constant dense<0.000000e+00> : vector<16x256xf32>
    %543 = tpu.matmul %542, %540, %cst_206 {dimension_numbers = #tpu.dot_dimension_numbers<[1], [0], [0], [1], [0, 0, 1, 1], [], []>} : vector<16x16xf32>, vector<16x256xf32>, vector<16x256xf32> -> vector<16x256xf32>
    %544 = arith.addf %531, %543 : vector<16x256xf32>
    %545 = vector.extract_strided_slice %510 {offsets = [0, 255], sizes = [16, 1], strides = [1, 1]} : vector<16x256xf32> to vector<16x1xf32>
    %546 = vector.extract_strided_slice %510 {offsets = [0, 0], sizes = [16, 255], strides = [1, 1]} : vector<16x256xf32> to vector<16x255xf32>
    %547 = tpu.concatenate %545, %546 in 1 : vector<16x1xf32>, vector<16x255xf32> -> vector<16x256xf32>
    %548 = vector.extract_strided_slice %510 {offsets = [0, 15], sizes = [16, 241], strides = [1, 1]} : vector<16x256xf32> to vector<16x241xf32>
    %549 = vector.extract_strided_slice %510 {offsets = [0, 0], sizes = [16, 15], strides = [1, 1]} : vector<16x256xf32> to vector<16x15xf32>
    %550 = tpu.concatenate %548, %549 in 1 : vector<16x241xf32>, vector<16x15xf32> -> vector<16x256xf32>
    %c1_i32_207 = arith.constant 1 : i32
    %551 = vector.broadcast %c1_i32_207 : i32 to vector<16x256xi32>
    %552 = arith.cmpi slt, %33, %551 : vector<16x256xi32>
    %553 = arith.select %552, %550, %547 : vector<16x256xi1>, vector<16x256xf32>
    %c3_208 = arith.constant 3 : index
    %c0_209 = arith.constant 0 : index
    %c0_210 = arith.constant 0 : index
    %554 = vector.load %arg4[%c3_208, %c0_209, %c0_210] : memref<9x16x16xf32, #tpu.memory_space<vmem>>, vector<1x16x16xf32>
    %555 = vector.shape_cast %554 : vector<1x16x16xf32> to vector<16x16xf32>
    %cst_211 = arith.constant dense<0.000000e+00> : vector<16x256xf32>
    %556 = tpu.matmul %555, %553, %cst_211 {dimension_numbers = #tpu.dot_dimension_numbers<[1], [0], [0], [1], [0, 0, 1, 1], [], []>} : vector<16x16xf32>, vector<16x256xf32>, vector<16x256xf32> -> vector<16x256xf32>
    %557 = arith.addf %544, %556 : vector<16x256xf32>
    %c4_212 = arith.constant 4 : index
    %c0_213 = arith.constant 0 : index
    %c0_214 = arith.constant 0 : index
    %558 = vector.load %arg4[%c4_212, %c0_213, %c0_214] : memref<9x16x16xf32, #tpu.memory_space<vmem>>, vector<1x16x16xf32>
    %559 = vector.shape_cast %558 : vector<1x16x16xf32> to vector<16x16xf32>
    %cst_215 = arith.constant dense<0.000000e+00> : vector<16x256xf32>
    %560 = tpu.matmul %559, %510, %cst_215 {dimension_numbers = #tpu.dot_dimension_numbers<[1], [0], [0], [1], [0, 0, 1, 1], [], []>} : vector<16x16xf32>, vector<16x256xf32>, vector<16x256xf32> -> vector<16x256xf32>
    %561 = arith.addf %557, %560 : vector<16x256xf32>
    %562 = vector.extract_strided_slice %510 {offsets = [0, 1], sizes = [16, 255], strides = [1, 1]} : vector<16x256xf32> to vector<16x255xf32>
    %563 = vector.extract_strided_slice %510 {offsets = [0, 0], sizes = [16, 1], strides = [1, 1]} : vector<16x256xf32> to vector<16x1xf32>
    %564 = tpu.concatenate %562, %563 in 1 : vector<16x255xf32>, vector<16x1xf32> -> vector<16x256xf32>
    %565 = vector.extract_strided_slice %510 {offsets = [0, 241], sizes = [16, 15], strides = [1, 1]} : vector<16x256xf32> to vector<16x15xf32>
    %566 = vector.extract_strided_slice %510 {offsets = [0, 0], sizes = [16, 241], strides = [1, 1]} : vector<16x256xf32> to vector<16x241xf32>
    %567 = tpu.concatenate %565, %566 in 1 : vector<16x15xf32>, vector<16x241xf32> -> vector<16x256xf32>
    %c15_i32_216 = arith.constant 15 : i32
    %568 = vector.broadcast %c15_i32_216 : i32 to vector<16x256xi32>
    %569 = arith.cmpi sge, %33, %568 : vector<16x256xi32>
    %570 = arith.select %569, %567, %564 : vector<16x256xi1>, vector<16x256xf32>
    %c5_217 = arith.constant 5 : index
    %c0_218 = arith.constant 0 : index
    %c0_219 = arith.constant 0 : index
    %571 = vector.load %arg4[%c5_217, %c0_218, %c0_219] : memref<9x16x16xf32, #tpu.memory_space<vmem>>, vector<1x16x16xf32>
    %572 = vector.shape_cast %571 : vector<1x16x16xf32> to vector<16x16xf32>
    %cst_220 = arith.constant dense<0.000000e+00> : vector<16x256xf32>
    %573 = tpu.matmul %572, %570, %cst_220 {dimension_numbers = #tpu.dot_dimension_numbers<[1], [0], [0], [1], [0, 0, 1, 1], [], []>} : vector<16x16xf32>, vector<16x256xf32>, vector<16x256xf32> -> vector<16x256xf32>
    %574 = arith.addf %561, %573 : vector<16x256xf32>
    %575 = vector.extract_strided_slice %510 {offsets = [0, 16], sizes = [16, 240], strides = [1, 1]} : vector<16x256xf32> to vector<16x240xf32>
    %576 = vector.extract_strided_slice %510 {offsets = [0, 0], sizes = [16, 16], strides = [1, 1]} : vector<16x256xf32> to vector<16x16xf32>
    %577 = tpu.concatenate %575, %576 in 1 : vector<16x240xf32>, vector<16x16xf32> -> vector<16x256xf32>
    %578 = vector.extract_strided_slice %577 {offsets = [0, 255], sizes = [16, 1], strides = [1, 1]} : vector<16x256xf32> to vector<16x1xf32>
    %579 = vector.extract_strided_slice %577 {offsets = [0, 0], sizes = [16, 255], strides = [1, 1]} : vector<16x256xf32> to vector<16x255xf32>
    %580 = tpu.concatenate %578, %579 in 1 : vector<16x1xf32>, vector<16x255xf32> -> vector<16x256xf32>
    %581 = vector.extract_strided_slice %577 {offsets = [0, 15], sizes = [16, 241], strides = [1, 1]} : vector<16x256xf32> to vector<16x241xf32>
    %582 = vector.extract_strided_slice %577 {offsets = [0, 0], sizes = [16, 15], strides = [1, 1]} : vector<16x256xf32> to vector<16x15xf32>
    %583 = tpu.concatenate %581, %582 in 1 : vector<16x241xf32>, vector<16x15xf32> -> vector<16x256xf32>
    %c1_i32_221 = arith.constant 1 : i32
    %584 = vector.broadcast %c1_i32_221 : i32 to vector<16x256xi32>
    %585 = arith.cmpi slt, %33, %584 : vector<16x256xi32>
    %586 = arith.select %585, %583, %580 : vector<16x256xi1>, vector<16x256xf32>
    %c6_222 = arith.constant 6 : index
    %c0_223 = arith.constant 0 : index
    %c0_224 = arith.constant 0 : index
    %587 = vector.load %arg4[%c6_222, %c0_223, %c0_224] : memref<9x16x16xf32, #tpu.memory_space<vmem>>, vector<1x16x16xf32>
    %588 = vector.shape_cast %587 : vector<1x16x16xf32> to vector<16x16xf32>
    %cst_225 = arith.constant dense<0.000000e+00> : vector<16x256xf32>
    %589 = tpu.matmul %588, %586, %cst_225 {dimension_numbers = #tpu.dot_dimension_numbers<[1], [0], [0], [1], [0, 0, 1, 1], [], []>} : vector<16x16xf32>, vector<16x256xf32>, vector<16x256xf32> -> vector<16x256xf32>
    %590 = arith.addf %574, %589 : vector<16x256xf32>
    %c7_226 = arith.constant 7 : index
    %c0_227 = arith.constant 0 : index
    %c0_228 = arith.constant 0 : index
    %591 = vector.load %arg4[%c7_226, %c0_227, %c0_228] : memref<9x16x16xf32, #tpu.memory_space<vmem>>, vector<1x16x16xf32>
    %592 = vector.shape_cast %591 : vector<1x16x16xf32> to vector<16x16xf32>
    %cst_229 = arith.constant dense<0.000000e+00> : vector<16x256xf32>
    %593 = tpu.matmul %592, %577, %cst_229 {dimension_numbers = #tpu.dot_dimension_numbers<[1], [0], [0], [1], [0, 0, 1, 1], [], []>} : vector<16x16xf32>, vector<16x256xf32>, vector<16x256xf32> -> vector<16x256xf32>
    %594 = arith.addf %590, %593 : vector<16x256xf32>
    %595 = vector.extract_strided_slice %577 {offsets = [0, 1], sizes = [16, 255], strides = [1, 1]} : vector<16x256xf32> to vector<16x255xf32>
    %596 = vector.extract_strided_slice %577 {offsets = [0, 0], sizes = [16, 1], strides = [1, 1]} : vector<16x256xf32> to vector<16x1xf32>
    %597 = tpu.concatenate %595, %596 in 1 : vector<16x255xf32>, vector<16x1xf32> -> vector<16x256xf32>
    %598 = vector.extract_strided_slice %577 {offsets = [0, 241], sizes = [16, 15], strides = [1, 1]} : vector<16x256xf32> to vector<16x15xf32>
    %599 = vector.extract_strided_slice %577 {offsets = [0, 0], sizes = [16, 241], strides = [1, 1]} : vector<16x256xf32> to vector<16x241xf32>
    %600 = tpu.concatenate %598, %599 in 1 : vector<16x15xf32>, vector<16x241xf32> -> vector<16x256xf32>
    %c15_i32_230 = arith.constant 15 : i32
    %601 = vector.broadcast %c15_i32_230 : i32 to vector<16x256xi32>
    %602 = arith.cmpi sge, %33, %601 : vector<16x256xi32>
    %603 = arith.select %602, %600, %597 : vector<16x256xi1>, vector<16x256xf32>
    %c8_231 = arith.constant 8 : index
    %c0_232 = arith.constant 0 : index
    %c0_233 = arith.constant 0 : index
    %604 = vector.load %arg4[%c8_231, %c0_232, %c0_233] : memref<9x16x16xf32, #tpu.memory_space<vmem>>, vector<1x16x16xf32>
    %605 = vector.shape_cast %604 : vector<1x16x16xf32> to vector<16x16xf32>
    %cst_234 = arith.constant dense<0.000000e+00> : vector<16x256xf32>
    %606 = tpu.matmul %605, %603, %cst_234 {dimension_numbers = #tpu.dot_dimension_numbers<[1], [0], [0], [1], [0, 0, 1, 1], [], []>} : vector<16x16xf32>, vector<16x256xf32>, vector<16x256xf32> -> vector<16x256xf32>
    %607 = arith.addf %594, %606 : vector<16x256xf32>
    %c0_235 = arith.constant 0 : index
    %c0_236 = arith.constant 0 : index
    %608 = vector.load %arg5[%c0_235, %c0_236] : memref<16x1xf32, #tpu.memory_space<vmem>>, vector<16x1xf32>
    %609 = vector.broadcast %608 : vector<16x1xf32> to vector<16x256xf32>
    %610 = arith.addf %607, %609 : vector<16x256xf32>
    %cst_237 = arith.constant 0.000000e+00 : f32
    %611 = vector.broadcast %cst_237 : f32 to vector<16x256xf32>
    %612 = arith.maximumf %610, %611 : vector<16x256xf32>
    %c0_238 = arith.constant 0 : index
    %c0_239 = arith.constant 0 : index
    %613 = vector.load %arg6[%c0_238, %c0_239] : memref<256x128xf32, #tpu.memory_space<vmem>>, vector<256x128xf32>
    %cst_240 = arith.constant dense<0.000000e+00> : vector<16x128xf32>
    %614 = tpu.matmul %612, %613, %cst_240 {dimension_numbers = #tpu.dot_dimension_numbers<[1], [0], [0], [1], [0, 0, 1, 1], [], []>} : vector<16x256xf32>, vector<256x128xf32>, vector<16x128xf32> -> vector<16x128xf32>
    %c0_241 = arith.constant 0 : index
    %c0_242 = arith.constant 0 : index
    %615 = vector.load %arg7[%c0_241, %c0_242] : memref<1x128xf32, #tpu.memory_space<vmem>>, vector<1x128xf32>
    %616 = vector.broadcast %615 : vector<1x128xf32> to vector<16x128xf32>
    %617 = arith.addf %614, %616 : vector<16x128xf32>
    %cst_243 = arith.constant 0.000000e+00 : f32
    %618 = vector.broadcast %cst_243 : f32 to vector<16x128xf32>
    %619 = arith.maximumf %617, %618 : vector<16x128xf32>
    %c0_244 = arith.constant 0 : index
    %c0_245 = arith.constant 0 : index
    %620 = vector.load %arg8[%c0_244, %c0_245] : memref<128x128xf32, #tpu.memory_space<vmem>>, vector<128x128xf32>
    %cst_246 = arith.constant dense<0.000000e+00> : vector<16x128xf32>
    %621 = tpu.matmul %619, %620, %cst_246 {dimension_numbers = #tpu.dot_dimension_numbers<[1], [0], [0], [1], [0, 0, 1, 1], [], []>} : vector<16x128xf32>, vector<128x128xf32>, vector<16x128xf32> -> vector<16x128xf32>
    %622 = vector.extract_strided_slice %621 {offsets = [0, 0], sizes = [16, 4], strides = [1, 1]} : vector<16x128xf32> to vector<16x4xf32>
    %623 = vector.broadcast %96 : f32 to vector<16x4xf32>
    %624 = arith.addf %622, %623 : vector<16x4xf32>
    %c0_247 = arith.constant 0 : index
    %c2_248 = arith.constant 2 : index
    %c0_249 = arith.constant 0 : index
    %c0_250 = arith.constant 0 : index
    %625 = vector.load %arg10[%c0_247, %c2_248, %c0_249, %c0_250] : memref<1x4x16x4xf32, #tpu.memory_space<vmem>>, vector<1x1x16x4xf32>
    %626 = vector.shape_cast %625 : vector<1x1x16x4xf32> to vector<16x4xf32>
    %627 = vector.shape_cast %624 : vector<16x4xf32> to vector<1x1x16x4xf32>
    tpu.vector_store %arg10[%c0_247, %c2_248, %c0_249, %c0_250], %627 {strides = array<i32>} : memref<1x4x16x4xf32, #tpu.memory_space<vmem>>, vector<1x1x16x4xf32>,
    %cst_251 = arith.constant 0.000000e+00 : f32
    %628 = vector.broadcast %cst_251 : f32 to vector<16x256xf32>
    %c0_252 = arith.constant 0 : index
    %c0_253 = arith.constant 0 : index
    %629 = vector.load %arg2[%c0_252, %c0_253] : memref<16x9xf32, #tpu.memory_space<vmem>>, vector<16x1xf32>
    %630 = vector.extract_strided_slice %47 {offsets = [3, 0], sizes = [1, 256], strides = [1, 1]} : vector<4x256xf32> to vector<1x256xf32>
    %631 = vector.broadcast %629 : vector<16x1xf32> to vector<16x256xf32>
    %632 = vector.broadcast %630 : vector<1x256xf32> to vector<16x256xf32>
    %633 = arith.mulf %631, %632 : vector<16x256xf32>
    %634 = arith.addf %628, %633 : vector<16x256xf32>
    %c0_254 = arith.constant 0 : index
    %c1_255 = arith.constant 1 : index
    %635 = vector.load %arg2[%c0_254, %c1_255] : memref<16x9xf32, #tpu.memory_space<vmem>>, vector<16x1xf32>
    %636 = vector.extract_strided_slice %38 {offsets = [3, 0], sizes = [1, 256], strides = [1, 1]} : vector<4x256xf32> to vector<1x256xf32>
    %637 = vector.broadcast %635 : vector<16x1xf32> to vector<16x256xf32>
    %638 = vector.broadcast %636 : vector<1x256xf32> to vector<16x256xf32>
    %639 = arith.mulf %637, %638 : vector<16x256xf32>
    %640 = arith.addf %634, %639 : vector<16x256xf32>
    %c0_256 = arith.constant 0 : index
    %c2_257 = arith.constant 2 : index
    %641 = vector.load %arg2[%c0_256, %c2_257] : memref<16x9xf32, #tpu.memory_space<vmem>>, vector<16x1xf32>
    %642 = vector.extract_strided_slice %56 {offsets = [3, 0], sizes = [1, 256], strides = [1, 1]} : vector<4x256xf32> to vector<1x256xf32>
    %643 = vector.broadcast %641 : vector<16x1xf32> to vector<16x256xf32>
    %644 = vector.broadcast %642 : vector<1x256xf32> to vector<16x256xf32>
    %645 = arith.mulf %643, %644 : vector<16x256xf32>
    %646 = arith.addf %640, %645 : vector<16x256xf32>
    %c0_258 = arith.constant 0 : index
    %c3_259 = arith.constant 3 : index
    %647 = vector.load %arg2[%c0_258, %c3_259] : memref<16x9xf32, #tpu.memory_space<vmem>>, vector<16x1xf32>
    %648 = vector.extract_strided_slice %65 {offsets = [3, 0], sizes = [1, 256], strides = [1, 1]} : vector<4x256xf32> to vector<1x256xf32>
    %649 = vector.broadcast %647 : vector<16x1xf32> to vector<16x256xf32>
    %650 = vector.broadcast %648 : vector<1x256xf32> to vector<16x256xf32>
    %651 = arith.mulf %649, %650 : vector<16x256xf32>
    %652 = arith.addf %646, %651 : vector<16x256xf32>
    %c0_260 = arith.constant 0 : index
    %c4_261 = arith.constant 4 : index
    %653 = vector.load %arg2[%c0_260, %c4_261] : memref<16x9xf32, #tpu.memory_space<vmem>>, vector<16x1xf32>
    %654 = vector.extract_strided_slice %35 {offsets = [3, 0], sizes = [1, 256], strides = [1, 1]} : vector<4x256xf32> to vector<1x256xf32>
    %655 = vector.broadcast %653 : vector<16x1xf32> to vector<16x256xf32>
    %656 = vector.broadcast %654 : vector<1x256xf32> to vector<16x256xf32>
    %657 = arith.mulf %655, %656 : vector<16x256xf32>
    %658 = arith.addf %652, %657 : vector<16x256xf32>
    %c0_262 = arith.constant 0 : index
    %c5_263 = arith.constant 5 : index
    %659 = vector.load %arg2[%c0_262, %c5_263] : memref<16x9xf32, #tpu.memory_space<vmem>>, vector<16x1xf32>
    %660 = vector.extract_strided_slice %74 {offsets = [3, 0], sizes = [1, 256], strides = [1, 1]} : vector<4x256xf32> to vector<1x256xf32>
    %661 = vector.broadcast %659 : vector<16x1xf32> to vector<16x256xf32>
    %662 = vector.broadcast %660 : vector<1x256xf32> to vector<16x256xf32>
    %663 = arith.mulf %661, %662 : vector<16x256xf32>
    %664 = arith.addf %658, %663 : vector<16x256xf32>
    %c0_264 = arith.constant 0 : index
    %c6_265 = arith.constant 6 : index
    %665 = vector.load %arg2[%c0_264, %c6_265] : memref<16x9xf32, #tpu.memory_space<vmem>>, vector<16x1xf32>
    %666 = vector.extract_strided_slice %86 {offsets = [3, 0], sizes = [1, 256], strides = [1, 1]} : vector<4x256xf32> to vector<1x256xf32>
    %667 = vector.broadcast %665 : vector<16x1xf32> to vector<16x256xf32>
    %668 = vector.broadcast %666 : vector<1x256xf32> to vector<16x256xf32>
    %669 = arith.mulf %667, %668 : vector<16x256xf32>
    %670 = arith.addf %664, %669 : vector<16x256xf32>
    %c0_266 = arith.constant 0 : index
    %c7_267 = arith.constant 7 : index
    %671 = vector.load %arg2[%c0_266, %c7_267] : memref<16x9xf32, #tpu.memory_space<vmem>>, vector<16x1xf32>
    %672 = vector.extract_strided_slice %77 {offsets = [3, 0], sizes = [1, 256], strides = [1, 1]} : vector<4x256xf32> to vector<1x256xf32>
    %673 = vector.broadcast %671 : vector<16x1xf32> to vector<16x256xf32>
    %674 = vector.broadcast %672 : vector<1x256xf32> to vector<16x256xf32>
    %675 = arith.mulf %673, %674 : vector<16x256xf32>
    %676 = arith.addf %670, %675 : vector<16x256xf32>
    %c0_268 = arith.constant 0 : index
    %c8_269 = arith.constant 8 : index
    %677 = vector.load %arg2[%c0_268, %c8_269] : memref<16x9xf32, #tpu.memory_space<vmem>>, vector<16x1xf32>
    %678 = vector.extract_strided_slice %95 {offsets = [3, 0], sizes = [1, 256], strides = [1, 1]} : vector<4x256xf32> to vector<1x256xf32>
    %679 = vector.broadcast %677 : vector<16x1xf32> to vector<16x256xf32>
    %680 = vector.broadcast %678 : vector<1x256xf32> to vector<16x256xf32>
    %681 = arith.mulf %679, %680 : vector<16x256xf32>
    %682 = arith.addf %676, %681 : vector<16x256xf32>
    %c0_270 = arith.constant 0 : index
    %c0_271 = arith.constant 0 : index
    %683 = vector.load %arg3[%c0_270, %c0_271] : memref<16x1xf32, #tpu.memory_space<vmem>>, vector<16x1xf32>
    %684 = vector.broadcast %683 : vector<16x1xf32> to vector<16x256xf32>
    %685 = arith.addf %682, %684 : vector<16x256xf32>
    %cst_272 = arith.constant 0.000000e+00 : f32
    %686 = vector.broadcast %cst_272 : f32 to vector<16x256xf32>
    %687 = arith.maximumf %685, %686 : vector<16x256xf32>
    %cst_273 = arith.constant 0.000000e+00 : f32
    %688 = vector.broadcast %cst_273 : f32 to vector<16x256xf32>
    %689 = vector.extract_strided_slice %687 {offsets = [0, 240], sizes = [16, 16], strides = [1, 1]} : vector<16x256xf32> to vector<16x16xf32>
    %690 = vector.extract_strided_slice %687 {offsets = [0, 0], sizes = [16, 240], strides = [1, 1]} : vector<16x256xf32> to vector<16x240xf32>
    %691 = tpu.concatenate %689, %690 in 1 : vector<16x16xf32>, vector<16x240xf32> -> vector<16x256xf32>
    %692 = vector.extract_strided_slice %691 {offsets = [0, 255], sizes = [16, 1], strides = [1, 1]} : vector<16x256xf32> to vector<16x1xf32>
    %693 = vector.extract_strided_slice %691 {offsets = [0, 0], sizes = [16, 255], strides = [1, 1]} : vector<16x256xf32> to vector<16x255xf32>
    %694 = tpu.concatenate %692, %693 in 1 : vector<16x1xf32>, vector<16x255xf32> -> vector<16x256xf32>
    %695 = vector.extract_strided_slice %691 {offsets = [0, 15], sizes = [16, 241], strides = [1, 1]} : vector<16x256xf32> to vector<16x241xf32>
    %696 = vector.extract_strided_slice %691 {offsets = [0, 0], sizes = [16, 15], strides = [1, 1]} : vector<16x256xf32> to vector<16x15xf32>
    %697 = tpu.concatenate %695, %696 in 1 : vector<16x241xf32>, vector<16x15xf32> -> vector<16x256xf32>
    %c1_i32_274 = arith.constant 1 : i32
    %698 = vector.broadcast %c1_i32_274 : i32 to vector<16x256xi32>
    %699 = arith.cmpi slt, %33, %698 : vector<16x256xi32>
    %700 = arith.select %699, %697, %694 : vector<16x256xi1>, vector<16x256xf32>
    %c0_275 = arith.constant 0 : index
    %c0_276 = arith.constant 0 : index
    %c0_277 = arith.constant 0 : index
    %701 = vector.load %arg4[%c0_275, %c0_276, %c0_277] : memref<9x16x16xf32, #tpu.memory_space<vmem>>, vector<1x16x16xf32>
    %702 = vector.shape_cast %701 : vector<1x16x16xf32> to vector<16x16xf32>
    %cst_278 = arith.constant dense<0.000000e+00> : vector<16x256xf32>
    %703 = tpu.matmul %702, %700, %cst_278 {dimension_numbers = #tpu.dot_dimension_numbers<[1], [0], [0], [1], [0, 0, 1, 1], [], []>} : vector<16x16xf32>, vector<16x256xf32>, vector<16x256xf32> -> vector<16x256xf32>
    %704 = arith.addf %688, %703 : vector<16x256xf32>
    %c1_279 = arith.constant 1 : index
    %c0_280 = arith.constant 0 : index
    %c0_281 = arith.constant 0 : index
    %705 = vector.load %arg4[%c1_279, %c0_280, %c0_281] : memref<9x16x16xf32, #tpu.memory_space<vmem>>, vector<1x16x16xf32>
    %706 = vector.shape_cast %705 : vector<1x16x16xf32> to vector<16x16xf32>
    %cst_282 = arith.constant dense<0.000000e+00> : vector<16x256xf32>
    %707 = tpu.matmul %706, %691, %cst_282 {dimension_numbers = #tpu.dot_dimension_numbers<[1], [0], [0], [1], [0, 0, 1, 1], [], []>} : vector<16x16xf32>, vector<16x256xf32>, vector<16x256xf32> -> vector<16x256xf32>
    %708 = arith.addf %704, %707 : vector<16x256xf32>
    %709 = vector.extract_strided_slice %691 {offsets = [0, 1], sizes = [16, 255], strides = [1, 1]} : vector<16x256xf32> to vector<16x255xf32>
    %710 = vector.extract_strided_slice %691 {offsets = [0, 0], sizes = [16, 1], strides = [1, 1]} : vector<16x256xf32> to vector<16x1xf32>
    %711 = tpu.concatenate %709, %710 in 1 : vector<16x255xf32>, vector<16x1xf32> -> vector<16x256xf32>
    %712 = vector.extract_strided_slice %691 {offsets = [0, 241], sizes = [16, 15], strides = [1, 1]} : vector<16x256xf32> to vector<16x15xf32>
    %713 = vector.extract_strided_slice %691 {offsets = [0, 0], sizes = [16, 241], strides = [1, 1]} : vector<16x256xf32> to vector<16x241xf32>
    %714 = tpu.concatenate %712, %713 in 1 : vector<16x15xf32>, vector<16x241xf32> -> vector<16x256xf32>
    %c15_i32_283 = arith.constant 15 : i32
    %715 = vector.broadcast %c15_i32_283 : i32 to vector<16x256xi32>
    %716 = arith.cmpi sge, %33, %715 : vector<16x256xi32>
    %717 = arith.select %716, %714, %711 : vector<16x256xi1>, vector<16x256xf32>
    %c2_284 = arith.constant 2 : index
    %c0_285 = arith.constant 0 : index
    %c0_286 = arith.constant 0 : index
    %718 = vector.load %arg4[%c2_284, %c0_285, %c0_286] : memref<9x16x16xf32, #tpu.memory_space<vmem>>, vector<1x16x16xf32>
    %719 = vector.shape_cast %718 : vector<1x16x16xf32> to vector<16x16xf32>
    %cst_287 = arith.constant dense<0.000000e+00> : vector<16x256xf32>
    %720 = tpu.matmul %719, %717, %cst_287 {dimension_numbers = #tpu.dot_dimension_numbers<[1], [0], [0], [1], [0, 0, 1, 1], [], []>} : vector<16x16xf32>, vector<16x256xf32>, vector<16x256xf32> -> vector<16x256xf32>
    %721 = arith.addf %708, %720 : vector<16x256xf32>
    %722 = vector.extract_strided_slice %687 {offsets = [0, 255], sizes = [16, 1], strides = [1, 1]} : vector<16x256xf32> to vector<16x1xf32>
    %723 = vector.extract_strided_slice %687 {offsets = [0, 0], sizes = [16, 255], strides = [1, 1]} : vector<16x256xf32> to vector<16x255xf32>
    %724 = tpu.concatenate %722, %723 in 1 : vector<16x1xf32>, vector<16x255xf32> -> vector<16x256xf32>
    %725 = vector.extract_strided_slice %687 {offsets = [0, 15], sizes = [16, 241], strides = [1, 1]} : vector<16x256xf32> to vector<16x241xf32>
    %726 = vector.extract_strided_slice %687 {offsets = [0, 0], sizes = [16, 15], strides = [1, 1]} : vector<16x256xf32> to vector<16x15xf32>
    %727 = tpu.concatenate %725, %726 in 1 : vector<16x241xf32>, vector<16x15xf32> -> vector<16x256xf32>
    %c1_i32_288 = arith.constant 1 : i32
    %728 = vector.broadcast %c1_i32_288 : i32 to vector<16x256xi32>
    %729 = arith.cmpi slt, %33, %728 : vector<16x256xi32>
    %730 = arith.select %729, %727, %724 : vector<16x256xi1>, vector<16x256xf32>
    %c3_289 = arith.constant 3 : index
    %c0_290 = arith.constant 0 : index
    %c0_291 = arith.constant 0 : index
    %731 = vector.load %arg4[%c3_289, %c0_290, %c0_291] : memref<9x16x16xf32, #tpu.memory_space<vmem>>, vector<1x16x16xf32>
    %732 = vector.shape_cast %731 : vector<1x16x16xf32> to vector<16x16xf32>
    %cst_292 = arith.constant dense<0.000000e+00> : vector<16x256xf32>
    %733 = tpu.matmul %732, %730, %cst_292 {dimension_numbers = #tpu.dot_dimension_numbers<[1], [0], [0], [1], [0, 0, 1, 1], [], []>} : vector<16x16xf32>, vector<16x256xf32>, vector<16x256xf32> -> vector<16x256xf32>
    %734 = arith.addf %721, %733 : vector<16x256xf32>
    %c4_293 = arith.constant 4 : index
    %c0_294 = arith.constant 0 : index
    %c0_295 = arith.constant 0 : index
    %735 = vector.load %arg4[%c4_293, %c0_294, %c0_295] : memref<9x16x16xf32, #tpu.memory_space<vmem>>, vector<1x16x16xf32>
    %736 = vector.shape_cast %735 : vector<1x16x16xf32> to vector<16x16xf32>
    %cst_296 = arith.constant dense<0.000000e+00> : vector<16x256xf32>
    %737 = tpu.matmul %736, %687, %cst_296 {dimension_numbers = #tpu.dot_dimension_numbers<[1], [0], [0], [1], [0, 0, 1, 1], [], []>} : vector<16x16xf32>, vector<16x256xf32>, vector<16x256xf32> -> vector<16x256xf32>
    %738 = arith.addf %734, %737 : vector<16x256xf32>
    %739 = vector.extract_strided_slice %687 {offsets = [0, 1], sizes = [16, 255], strides = [1, 1]} : vector<16x256xf32> to vector<16x255xf32>
    %740 = vector.extract_strided_slice %687 {offsets = [0, 0], sizes = [16, 1], strides = [1, 1]} : vector<16x256xf32> to vector<16x1xf32>
    %741 = tpu.concatenate %739, %740 in 1 : vector<16x255xf32>, vector<16x1xf32> -> vector<16x256xf32>
    %742 = vector.extract_strided_slice %687 {offsets = [0, 241], sizes = [16, 15], strides = [1, 1]} : vector<16x256xf32> to vector<16x15xf32>
    %743 = vector.extract_strided_slice %687 {offsets = [0, 0], sizes = [16, 241], strides = [1, 1]} : vector<16x256xf32> to vector<16x241xf32>
    %744 = tpu.concatenate %742, %743 in 1 : vector<16x15xf32>, vector<16x241xf32> -> vector<16x256xf32>
    %c15_i32_297 = arith.constant 15 : i32
    %745 = vector.broadcast %c15_i32_297 : i32 to vector<16x256xi32>
    %746 = arith.cmpi sge, %33, %745 : vector<16x256xi32>
    %747 = arith.select %746, %744, %741 : vector<16x256xi1>, vector<16x256xf32>
    %c5_298 = arith.constant 5 : index
    %c0_299 = arith.constant 0 : index
    %c0_300 = arith.constant 0 : index
    %748 = vector.load %arg4[%c5_298, %c0_299, %c0_300] : memref<9x16x16xf32, #tpu.memory_space<vmem>>, vector<1x16x16xf32>
    %749 = vector.shape_cast %748 : vector<1x16x16xf32> to vector<16x16xf32>
    %cst_301 = arith.constant dense<0.000000e+00> : vector<16x256xf32>
    %750 = tpu.matmul %749, %747, %cst_301 {dimension_numbers = #tpu.dot_dimension_numbers<[1], [0], [0], [1], [0, 0, 1, 1], [], []>} : vector<16x16xf32>, vector<16x256xf32>, vector<16x256xf32> -> vector<16x256xf32>
    %751 = arith.addf %738, %750 : vector<16x256xf32>
    %752 = vector.extract_strided_slice %687 {offsets = [0, 16], sizes = [16, 240], strides = [1, 1]} : vector<16x256xf32> to vector<16x240xf32>
    %753 = vector.extract_strided_slice %687 {offsets = [0, 0], sizes = [16, 16], strides = [1, 1]} : vector<16x256xf32> to vector<16x16xf32>
    %754 = tpu.concatenate %752, %753 in 1 : vector<16x240xf32>, vector<16x16xf32> -> vector<16x256xf32>
    %755 = vector.extract_strided_slice %754 {offsets = [0, 255], sizes = [16, 1], strides = [1, 1]} : vector<16x256xf32> to vector<16x1xf32>
    %756 = vector.extract_strided_slice %754 {offsets = [0, 0], sizes = [16, 255], strides = [1, 1]} : vector<16x256xf32> to vector<16x255xf32>
    %757 = tpu.concatenate %755, %756 in 1 : vector<16x1xf32>, vector<16x255xf32> -> vector<16x256xf32>
    %758 = vector.extract_strided_slice %754 {offsets = [0, 15], sizes = [16, 241], strides = [1, 1]} : vector<16x256xf32> to vector<16x241xf32>
    %759 = vector.extract_strided_slice %754 {offsets = [0, 0], sizes = [16, 15], strides = [1, 1]} : vector<16x256xf32> to vector<16x15xf32>
    %760 = tpu.concatenate %758, %759 in 1 : vector<16x241xf32>, vector<16x15xf32> -> vector<16x256xf32>
    %c1_i32_302 = arith.constant 1 : i32
    %761 = vector.broadcast %c1_i32_302 : i32 to vector<16x256xi32>
    %762 = arith.cmpi slt, %33, %761 : vector<16x256xi32>
    %763 = arith.select %762, %760, %757 : vector<16x256xi1>, vector<16x256xf32>
    %c6_303 = arith.constant 6 : index
    %c0_304 = arith.constant 0 : index
    %c0_305 = arith.constant 0 : index
    %764 = vector.load %arg4[%c6_303, %c0_304, %c0_305] : memref<9x16x16xf32, #tpu.memory_space<vmem>>, vector<1x16x16xf32>
    %765 = vector.shape_cast %764 : vector<1x16x16xf32> to vector<16x16xf32>
    %cst_306 = arith.constant dense<0.000000e+00> : vector<16x256xf32>
    %766 = tpu.matmul %765, %763, %cst_306 {dimension_numbers = #tpu.dot_dimension_numbers<[1], [0], [0], [1], [0, 0, 1, 1], [], []>} : vector<16x16xf32>, vector<16x256xf32>, vector<16x256xf32> -> vector<16x256xf32>
    %767 = arith.addf %751, %766 : vector<16x256xf32>
    %c7_307 = arith.constant 7 : index
    %c0_308 = arith.constant 0 : index
    %c0_309 = arith.constant 0 : index
    %768 = vector.load %arg4[%c7_307, %c0_308, %c0_309] : memref<9x16x16xf32, #tpu.memory_space<vmem>>, vector<1x16x16xf32>
    %769 = vector.shape_cast %768 : vector<1x16x16xf32> to vector<16x16xf32>
    %cst_310 = arith.constant dense<0.000000e+00> : vector<16x256xf32>
    %770 = tpu.matmul %769, %754, %cst_310 {dimension_numbers = #tpu.dot_dimension_numbers<[1], [0], [0], [1], [0, 0, 1, 1], [], []>} : vector<16x16xf32>, vector<16x256xf32>, vector<16x256xf32> -> vector<16x256xf32>
    %771 = arith.addf %767, %770 : vector<16x256xf32>
    %772 = vector.extract_strided_slice %754 {offsets = [0, 1], sizes = [16, 255], strides = [1, 1]} : vector<16x256xf32> to vector<16x255xf32>
    %773 = vector.extract_strided_slice %754 {offsets = [0, 0], sizes = [16, 1], strides = [1, 1]} : vector<16x256xf32> to vector<16x1xf32>
    %774 = tpu.concatenate %772, %773 in 1 : vector<16x255xf32>, vector<16x1xf32> -> vector<16x256xf32>
    %775 = vector.extract_strided_slice %754 {offsets = [0, 241], sizes = [16, 15], strides = [1, 1]} : vector<16x256xf32> to vector<16x15xf32>
    %776 = vector.extract_strided_slice %754 {offsets = [0, 0], sizes = [16, 241], strides = [1, 1]} : vector<16x256xf32> to vector<16x241xf32>
    %777 = tpu.concatenate %775, %776 in 1 : vector<16x15xf32>, vector<16x241xf32> -> vector<16x256xf32>
    %c15_i32_311 = arith.constant 15 : i32
    %778 = vector.broadcast %c15_i32_311 : i32 to vector<16x256xi32>
    %779 = arith.cmpi sge, %33, %778 : vector<16x256xi32>
    %780 = arith.select %779, %777, %774 : vector<16x256xi1>, vector<16x256xf32>
    %c8_312 = arith.constant 8 : index
    %c0_313 = arith.constant 0 : index
    %c0_314 = arith.constant 0 : index
    %781 = vector.load %arg4[%c8_312, %c0_313, %c0_314] : memref<9x16x16xf32, #tpu.memory_space<vmem>>, vector<1x16x16xf32>
    %782 = vector.shape_cast %781 : vector<1x16x16xf32> to vector<16x16xf32>
    %cst_315 = arith.constant dense<0.000000e+00> : vector<16x256xf32>
    %783 = tpu.matmul %782, %780, %cst_315 {dimension_numbers = #tpu.dot_dimension_numbers<[1], [0], [0], [1], [0, 0, 1, 1], [], []>} : vector<16x16xf32>, vector<16x256xf32>, vector<16x256xf32> -> vector<16x256xf32>
    %784 = arith.addf %771, %783 : vector<16x256xf32>
    %c0_316 = arith.constant 0 : index
    %c0_317 = arith.constant 0 : index
    %785 = vector.load %arg5[%c0_316, %c0_317] : memref<16x1xf32, #tpu.memory_space<vmem>>, vector<16x1xf32>
    %786 = vector.broadcast %785 : vector<16x1xf32> to vector<16x256xf32>
    %787 = arith.addf %784, %786 : vector<16x256xf32>
    %cst_318 = arith.constant 0.000000e+00 : f32
    %788 = vector.broadcast %cst_318 : f32 to vector<16x256xf32>
    %789 = arith.maximumf %787, %788 : vector<16x256xf32>
    %c0_319 = arith.constant 0 : index
    %c0_320 = arith.constant 0 : index
    %790 = vector.load %arg6[%c0_319, %c0_320] : memref<256x128xf32, #tpu.memory_space<vmem>>, vector<256x128xf32>
    %cst_321 = arith.constant dense<0.000000e+00> : vector<16x128xf32>
    %791 = tpu.matmul %789, %790, %cst_321 {dimension_numbers = #tpu.dot_dimension_numbers<[1], [0], [0], [1], [0, 0, 1, 1], [], []>} : vector<16x256xf32>, vector<256x128xf32>, vector<16x128xf32> -> vector<16x128xf32>
    %c0_322 = arith.constant 0 : index
    %c0_323 = arith.constant 0 : index
    %792 = vector.load %arg7[%c0_322, %c0_323] : memref<1x128xf32, #tpu.memory_space<vmem>>, vector<1x128xf32>
    %793 = vector.broadcast %792 : vector<1x128xf32> to vector<16x128xf32>
    %794 = arith.addf %791, %793 : vector<16x128xf32>
    %cst_324 = arith.constant 0.000000e+00 : f32
    %795 = vector.broadcast %cst_324 : f32 to vector<16x128xf32>
    %796 = arith.maximumf %794, %795 : vector<16x128xf32>
    %c0_325 = arith.constant 0 : index
    %c0_326 = arith.constant 0 : index
    %797 = vector.load %arg8[%c0_325, %c0_326] : memref<128x128xf32, #tpu.memory_space<vmem>>, vector<128x128xf32>
    %cst_327 = arith.constant dense<0.000000e+00> : vector<16x128xf32>
    %798 = tpu.matmul %796, %797, %cst_327 {dimension_numbers = #tpu.dot_dimension_numbers<[1], [0], [0], [1], [0, 0, 1, 1], [], []>} : vector<16x128xf32>, vector<128x128xf32>, vector<16x128xf32> -> vector<16x128xf32>
    %799 = vector.extract_strided_slice %798 {offsets = [0, 0], sizes = [16, 4], strides = [1, 1]} : vector<16x128xf32> to vector<16x4xf32>
    %800 = vector.broadcast %96 : f32 to vector<16x4xf32>
    %801 = arith.addf %799, %800 : vector<16x4xf32>
    %c0_328 = arith.constant 0 : index
    %c3_329 = arith.constant 3 : index
    %c0_330 = arith.constant 0 : index
    %c0_331 = arith.constant 0 : index
    %802 = vector.load %arg10[%c0_328, %c3_329, %c0_330, %c0_331] : memref<1x4x16x4xf32, #tpu.memory_space<vmem>>, vector<1x1x16x4xf32>
    %803 = vector.shape_cast %802 : vector<1x1x16x4xf32> to vector<16x4xf32>
    %804 = vector.shape_cast %801 : vector<16x4xf32> to vector<1x1x16x4xf32>
    tpu.vector_store %arg10[%c0_328, %c3_329, %c0_330, %c0_331], %804 {strides = array<i32>} : memref<1x4x16x4xf32, #tpu.memory_space<vmem>>, vector<1x1x16x4xf32>,
    return
  }
  func.func @transform_0(%arg0: i32) -> (i32, i32, i32) {
    %c0_i32 = arith.constant 0 : i32
    %c0_i32_0 = arith.constant 0 : i32
    %c0_i32_1 = arith.constant 0 : i32
    return %arg0, %c0_i32, %c0_i32_0 : i32, i32, i32
  }
  func.func @transform_1(%arg0: i32) -> (i32, i32) {
    %c0_i32 = arith.constant 0 : i32
    %c0_i32_0 = arith.constant 0 : i32
    %c0_i32_1 = arith.constant 0 : i32
    return %c0_i32, %c0_i32_0 : i32, i32
  }
  func.func @transform_2(%arg0: i32) -> (i32, i32) {
    %c0_i32 = arith.constant 0 : i32
    %c0_i32_0 = arith.constant 0 : i32
    %c0_i32_1 = arith.constant 0 : i32
    return %c0_i32, %c0_i32_0 : i32, i32
  }
  func.func @transform_3(%arg0: i32) -> (i32, i32, i32) {
    %c0_i32 = arith.constant 0 : i32
    %c0_i32_0 = arith.constant 0 : i32
    %c0_i32_1 = arith.constant 0 : i32
    %c0_i32_2 = arith.constant 0 : i32
    return %c0_i32, %c0_i32_0, %c0_i32_1 : i32, i32, i32
  }
  func.func @transform_4(%arg0: i32) -> (i32, i32) {
    %c0_i32 = arith.constant 0 : i32
    %c0_i32_0 = arith.constant 0 : i32
    %c0_i32_1 = arith.constant 0 : i32
    return %c0_i32, %c0_i32_0 : i32, i32
  }
  func.func @transform_5(%arg0: i32) -> (i32, i32) {
    %c0_i32 = arith.constant 0 : i32
    %c0_i32_0 = arith.constant 0 : i32
    %c0_i32_1 = arith.constant 0 : i32
    return %c0_i32, %c0_i32_0 : i32, i32
  }
  func.func @transform_6(%arg0: i32) -> (i32, i32) {
    %c0_i32 = arith.constant 0 : i32
    %c0_i32_0 = arith.constant 0 : i32
    %c0_i32_1 = arith.constant 0 : i32
    return %c0_i32, %c0_i32_0 : i32, i32
  }
  func.func @transform_7(%arg0: i32) -> (i32, i32) {
    %c0_i32 = arith.constant 0 : i32
    %c0_i32_0 = arith.constant 0 : i32
    %c0_i32_1 = arith.constant 0 : i32
    return %c0_i32, %c0_i32_0 : i32, i32
  }
  func.func @transform_8(%arg0: i32) -> i32 {
    %c0_i32 = arith.constant 0 : i32
    %c0_i32_0 = arith.constant 0 : i32
    return %c0_i32 : i32
  }
  func.func @transform_9(%arg0: i32) -> (i32, i32, i32, i32) {
    %c0_i32 = arith.constant 0 : i32
    %c0_i32_0 = arith.constant 0 : i32
    %c0_i32_1 = arith.constant 0 : i32
    %c0_i32_2 = arith.constant 0 : i32
    return %arg0, %c0_i32, %c0_i32_0, %c0_i32_1 : i32, i32, i32, i32
  }
}

</mosaic_0001>

<llo_original>
// kernel: energy_model_forward.1
$region0: #{energy_model_forward.1}
  #allocation0 [shape = 'u32[]', space=smem, size = 0x4, offset = 0x4, fixed_abs, tag = 'smem constant byte address 0x4 - core index']
  #allocation1 [shape = 'u32[144,128]{1,0:T(1,128)}', space=vmem, size = 0x12000, scoped, tag = 'internal scratch']
  #allocation2 [shape = 'f32[1]{0:T(128)S(6)}', space=smem, size = 0x200, scoped, tag = 'scoped memory for energy_model_forward.1']
  %s0 = inlined_call_operand.vmem [shape: f32[2,4,256], index: 0, kind: input, shape index: {}]
  %s1 = inlined_call_operand.vmem [shape: f32[16,9], index: 1, kind: input, shape index: {}]
  %s2 = inlined_call_operand.vmem [shape: f32[16,1], index: 2, kind: input, shape index: {}]
  %s3 = inlined_call_operand.vmem [shape: f32[9,16,16], index: 3, kind: input, shape index: {}]
  %s4 = inlined_call_operand.vmem [shape: f32[16,1], index: 4, kind: input, shape index: {}]
  %s5 = inlined_call_operand.vmem [shape: f32[256,128], index: 5, kind: input, shape index: {}]
  %s6 = inlined_call_operand.vmem [shape: f32[1,128], index: 6, kind: input, shape index: {}]
  %s7 = inlined_call_operand.vmem [shape: f32[128,128], index: 7, kind: input, shape index: {}]
  %s8 = inlined_call_operand.<no memory space> [shape: f32[1], index: 8, kind: input, shape index: {}]
  %s9 = inlined_call_operand.vmem [shape: f32[2,4,16,4], index: 9, kind: output, shape index: {}]
  %s10 = sld [smem:[#allocation0]]
  $region69: #{energy_model_forward.1} parent=0
    _
  %s12 = ssub.s32 1, %s10
  %s13 = scalar_select 0, %s12, %s10
  %14 = sst [smem:[#allocation2]] %s8
  loop: start=0, step=1, limit=4
  $region2: #{energy_model_forward.1} parent=0 // loop_pre_header
    _
  $region3: #{energy_model_forward.1} parent=0 // loop_header
    %s16 = sphi 0, %s20
    %p17 = scmp.ge.s32.totalorder %s16, 4
    %s26 = sphi 0, %s28
    %s29 = sphi 0, %s26
    %s30 = sphi 0, %s29
    %s46 = sphi 0, %s30
    %s50 = sphi 0, %s50
    %s52 = sphi 0, %s50
    %s53 = sphi 0, %s52
    %s67 = sphi 0, %s53
    %s71 = sphi 0, %s71
    %s73 = sphi 0, %s71
    %s74 = sphi 0, %s73
    %s88 = sphi 0, %s74
    %s92 = sphi 0, %s92
    %s94 = sphi 0, %s92
    %s95 = sphi 0, %s94
    %s109 = sphi 0, %s95
    %s113 = sphi 0, %s113
    %s115 = sphi 0, %s113
    %s116 = sphi 0, %s115
    %s130 = sphi 0, %s116
    %s134 = sphi 0, %s134
    %s136 = sphi 0, %s134
    %s137 = sphi 0, %s136
    %s151 = sphi 0, %s137
    %s155 = sphi 0, %s155
    %s157 = sphi 0, %s155
    %s158 = sphi 0, %s157
    %s172 = sphi 0, %s158
    %s176 = sphi 0, %s176
    %s178 = sphi 0, %s176
    %s179 = sphi 0, %s178
    %s193 = sphi 0, %s179
    %s197 = sphi 0, %s197
    %s199 = sphi 0, %s197
    %s200 = sphi 0, %s199
    %s214 = sphi 0, %s200
    %s220 = sphi 0, %s222
    %s223 = sphi 0, %s220
    %s224 = sphi 0, %s223
    %s240 = sphi 0, %s224
  $region4: #{energy_model_forward.1} parent=0 // loop_header_branch
    %19 = sbr.rel (%p17) target = $region8
  $region5: #{energy_model_forward.1} parent=0 // loop_body
    %s21 = ssub.s32 %s16, 1
    %s22 = ssub.s32 %s16, 2
    %s23 = sadd.s32 %s16, 1
    %s24 = ssub.s32 %s16, %s23
    %p25 = scmp.eq.s32.totalorder %s24, 0
    %s27 = sadd.s32 %s26, 1
    %s28 = scalar_select %p25, %s26, %s27
    %p31 = pneg %p25
    %p32 = scmp.eq.s32.totalorder %s16, 1
    %p33 = por %p31, %p32
    %p34 = scmp.ne.s32.totalorder %s26, %s29
    %p35 = scmp.eq.s32.totalorder %s16, 0
    %p36 = por %p34, %p35
    %p37 = scmp.ne.s32.totalorder %s26, %s29
    %p38 = scmp.eq.s32.totalorder %s21, 1
    %p39 = por %p37, %p38
    %p40 = scmp.ne.s32.totalorder %s29, %s30
    %p41 = scmp.eq.s32.totalorder %s21, 0
    %p42 = por %p40, %p41
    %p43 = scmp.ne.s32.totalorder %s29, %s30
    %p44 = scmp.eq.s32.totalorder %s22, 1
    %p45 = por %p43, %p44
    %p47 = scmp.ne.s32.totalorder %s30, %s46
    %p48 = scmp.eq.s32.totalorder %s22, 0
    %p49 = por %p47, %p48
    %s51 = sadd.s32 %s50, 1
    %p54 = scmp.eq.s32.totalorder %s16, 1
    %p55 = scmp.ne.s32.totalorder %s50, %s52
    %p56 = scmp.eq.s32.totalorder %s16, 0
    %p57 = por %p55, %p56
    %p58 = scmp.ne.s32.totalorder %s50, %s52
    %p59 = scmp.eq.s32.totalorder %s21, 1
    %p60 = por %p58, %p59
    %p61 = scmp.ne.s32.totalorder %s52, %s53
    %p62 = scmp.eq.s32.totalorder %s21, 0
    %p63 = por %p61, %p62
    %p64 = scmp.ne.s32.totalorder %s52, %s53
    %p65 = scmp.eq.s32.totalorder %s22, 1
    %p66 = por %p64, %p65
    %p68 = scmp.ne.s32.totalorder %s53, %s67
    %p69 = scmp.eq.s32.totalorder %s22, 0
    %p70 = por %p68, %p69
    %s72 = sadd.s32 %s71, 1
    %p75 = scmp.eq.s32.totalorder %s16, 1
    %p76 = scmp.ne.s32.totalorder %s71, %s73
    %p77 = scmp.eq.s32.totalorder %s16, 0
    %p78 = por %p76, %p77
    %p79 = scmp.ne.s32.totalorder %s71, %s73
    %p80 = scmp.eq.s32.totalorder %s21, 1
    %p81 = por %p79, %p80
    %p82 = scmp.ne.s32.totalorder %s73, %s74
    %p83 = scmp.eq.s32.totalorder %s21, 0
    %p84 = por %p82, %p83
    %p85 = scmp.ne.s32.totalorder %s73, %s74
    %p86 = scmp.eq.s32.totalorder %s22, 1
    %p87 = por %p85, %p86
    %p89 = scmp.ne.s32.totalorder %s74, %s88
    %p90 = scmp.eq.s32.totalorder %s22, 0
    %p91 = por %p89, %p90
    %s93 = sadd.s32 %s92, 1
    %p96 = scmp.eq.s32.totalorder %s16, 1
    %p97 = scmp.ne.s32.totalorder %s92, %s94
    %p98 = scmp.eq.s32.totalorder %s16, 0
    %p99 = por %p97, %p98
    %p100 = scmp.ne.s32.totalorder %s92, %s94
    %p101 = scmp.eq.s32.totalorder %s21, 1
    %p102 = por %p100, %p101
    %p103 = scmp.ne.s32.totalorder %s94, %s95
    %p104 = scmp.eq.s32.totalorder %s21, 0
    %p105 = por %p103, %p104
    %p106 = scmp.ne.s32.totalorder %s94, %s95
    %p107 = scmp.eq.s32.totalorder %s22, 1
    %p108 = por %p106, %p107
    %p110 = scmp.ne.s32.totalorder %s95, %s109
    %p111 = scmp.eq.s32.totalorder %s22, 0
    %p112 = por %p110, %p111
    %s114 = sadd.s32 %s113, 1
    %p117 = scmp.eq.s32.totalorder %s16, 1
    %p118 = scmp.ne.s32.totalorder %s113, %s115
    %p119 = scmp.eq.s32.totalorder %s16, 0
    %p120 = por %p118, %p119
    %p121 = scmp.ne.s32.totalorder %s113, %s115
    %p122 = scmp.eq.s32.totalorder %s21, 1
    %p123 = por %p121, %p122
    %p124 = scmp.ne.s32.totalorder %s115, %s116
    %p125 = scmp.eq.s32.totalorder %s21, 0
    %p126 = por %p124, %p125
    %p127 = scmp.ne.s32.totalorder %s115, %s116
    %p128 = scmp.eq.s32.totalorder %s22, 1
    %p129 = por %p127, %p128
    %p131 = scmp.ne.s32.totalorder %s116, %s130
    %p132 = scmp.eq.s32.totalorder %s22, 0
    %p133 = por %p131, %p132
    %s135 = sadd.s32 %s134, 1
    %p138 = scmp.eq.s32.totalorder %s16, 1
    %p139 = scmp.ne.s32.totalorder %s134, %s136
    %p140 = scmp.eq.s32.totalorder %s16, 0
    %p141 = por %p139, %p140
    %p142 = scmp.ne.s32.totalorder %s134, %s136
    %p143 = scmp.eq.s32.totalorder %s21, 1
    %p144 = por %p142, %p143
    %p145 = scmp.ne.s32.totalorder %s136, %s137
    %p146 = scmp.eq.s32.totalorder %s21, 0
    %p147 = por %p145, %p146
    %p148 = scmp.ne.s32.totalorder %s136, %s137
    %p149 = scmp.eq.s32.totalorder %s22, 1
    %p150 = por %p148, %p149
    %p152 = scmp.ne.s32.totalorder %s137, %s151
    %p153 = scmp.eq.s32.totalorder %s22, 0
    %p154 = por %p152, %p153
    %s156 = sadd.s32 %s155, 1
    %p159 = scmp.eq.s32.totalorder %s16, 1
    %p160 = scmp.ne.s32.totalorder %s155, %s157
    %p161 = scmp.eq.s32.totalorder %s16, 0
    %p162 = por %p160, %p161
    %p163 = scmp.ne.s32.totalorder %s155, %s157
    %p164 = scmp.eq.s32.totalorder %s21, 1
    %p165 = por %p163, %p164
    %p166 = scmp.ne.s32.totalorder %s157, %s158
    %p167 = scmp.eq.s32.totalorder %s21, 0
    %p168 = por %p166, %p167
    %p169 = scmp.ne.s32.totalorder %s157, %s158
    %p170 = scmp.eq.s32.totalorder %s22, 1
    %p171 = por %p169, %p170
    %p173 = scmp.ne.s32.totalorder %s158, %s172
    %p174 = scmp.eq.s32.totalorder %s22, 0
    %p175 = por %p173, %p174
    %s177 = sadd.s32 %s176, 1
    %p180 = scmp.eq.s32.totalorder %s16, 1
    %p181 = scmp.ne.s32.totalorder %s176, %s178
    %p182 = scmp.eq.s32.totalorder %s16, 0
    %p183 = por %p181, %p182
    %p184 = scmp.ne.s32.totalorder %s176, %s178
    %p185 = scmp.eq.s32.totalorder %s21, 1
    %p186 = por %p184, %p185
    %p187 = scmp.ne.s32.totalorder %s178, %s179
    %p188 = scmp.eq.s32.totalorder %s21, 0
    %p189 = por %p187, %p188
    %p190 = scmp.ne.s32.totalorder %s178, %s179
    %p191 = scmp.eq.s32.totalorder %s22, 1
    %p192 = por %p190, %p191
    %p194 = scmp.ne.s32.totalorder %s179, %s193
    %p195 = scmp.eq.s32.totalorder %s22, 0
    %p196 = por %p194, %p195
    %s198 = sadd.s32 %s197, 1
    %p201 = scmp.eq.s32.totalorder %s16, 1
    %p202 = scmp.ne.s32.totalorder %s197, %s199
    %p203 = scmp.eq.s32.totalorder %s16, 0
    %p204 = por %p202, %p203
    %p205 = scmp.ne.s32.totalorder %s197, %s199
    %p206 = scmp.eq.s32.totalorder %s21, 1
    %p207 = por %p205, %p206
    %p208 = scmp.ne.s32.totalorder %s199, %s200
    %p209 = scmp.eq.s32.totalorder %s21, 0
    %p210 = por %p208, %p209
    %p211 = scmp.ne.s32.totalorder %s199, %s200
    %p212 = scmp.eq.s32.totalorder %s22, 1
    %p213 = por %p211, %p212
    %p215 = scmp.ne.s32.totalorder %s200, %s214
    %p216 = scmp.eq.s32.totalorder %s22, 0
    %p217 = por %p215, %p216
    %s218 = ssub.s32 %s16, %s23
    %p219 = scmp.eq.s32.totalorder %s218, 0
    %s221 = sadd.s32 %s220, 1
    %s222 = scalar_select %p219, %s220, %s221
    %p225 = pneg %p219
    %p226 = scmp.eq.s32.totalorder %s16, 1
    %p227 = por %p225, %p226
    %p228 = scmp.ne.s32.totalorder %s220, %s223
    %p229 = scmp.eq.s32.totalorder %s16, 0
    %p230 = por %p228, %p229
    %p231 = scmp.ne.s32.totalorder %s220, %s223
    %p232 = scmp.eq.s32.totalorder %s21, 1
    %p233 = por %p231, %p232
    %p234 = scmp.ne.s32.totalorder %s223, %s224
    %p235 = scmp.eq.s32.totalorder %s21, 0
    %p236 = por %p234, %p235
    %p237 = scmp.ne.s32.totalorder %s223, %s224
    %p238 = scmp.eq.s32.totalorder %s22, 1
    %p239 = por %p237, %p238
    %p241 = scmp.ne.s32.totalorder %s224, %s240
    %p242 = scmp.eq.s32.totalorder %s22, 0
    %p243 = por %p241, %p242
    %p244 = scmp.le.s32.totalorder 1, %s16
    %p245 = scmp.lt.s32.totalorder %s16, 3
    %p246 = pnand %p244, %p245
    %p247 = pneg %p246
    // Predicated region
    $region9: #{energy_model_forward.1} parent=5 // pred_check
      _
    $region10: #{energy_model_forward.1} parent=5 // pred_check_branch
      %249 = sbr.rel (%p246) target = $region12
    $region11: #{energy_model_forward.1} parent=5 // pred_region
      %s250 = ssub.s32 %s16, 1
      // Predicated region
      $region13: #{energy_model_forward.1} parent=11 // pred_check
        %p251 = pneg %p63
      $region14: #{energy_model_forward.1} parent=11 // pred_check_branch
        %253 = sbr.rel (%p251) target = $region16
      $region15: #{energy_model_forward.1} parent=11 // pred_region
        _
      $region16: #{energy_model_forward.1} parent=11 // pred_fallthru
        _
      // Predicated region
      $region17: #{energy_model_forward.1} parent=11 // pred_check
        %p254 = pneg %p84
      $region18: #{energy_model_forward.1} parent=11 // pred_check_branch
        %256 = sbr.rel (%p254) target = $region20
      $region19: #{energy_model_forward.1} parent=11 // pred_region
        _
      $region20: #{energy_model_forward.1} parent=11 // pred_fallthru
        _
      // Predicated region
      $region21: #{energy_model_forward.1} parent=11 // pred_check
        %p257 = pneg %p105
      $region22: #{energy_model_forward.1} parent=11 // pred_check_branch
        %259 = sbr.rel (%p257) target = $region24
      $region23: #{energy_model_forward.1} parent=11 // pred_region
        _
      $region24: #{energy_model_forward.1} parent=11 // pred_fallthru
        _
      // Predicated region
      $region25: #{energy_model_forward.1} parent=11 // pred_check
        %p260 = pneg %p126
      $region26: #{energy_model_forward.1} parent=11 // pred_check_branch
        %262 = sbr.rel (%p260) target = $region28
      $region27: #{energy_model_forward.1} parent=11 // pred_region
        _
      $region28: #{energy_model_forward.1} parent=11 // pred_fallthru
        _
      // Predicated region
      $region29: #{energy_model_forward.1} parent=11 // pred_check
        %p263 = pneg %p147
      $region30: #{energy_model_forward.1} parent=11 // pred_check_branch
        %265 = sbr.rel (%p263) target = $region32
      $region31: #{energy_model_forward.1} parent=11 // pred_region
        _
      $region32: #{energy_model_forward.1} parent=11 // pred_fallthru
        _
      // Predicated region
      $region33: #{energy_model_forward.1} parent=11 // pred_check
        %p266 = pneg %p168
      $region34: #{energy_model_forward.1} parent=11 // pred_check_branch
        %268 = sbr.rel (%p266) target = $region36
      $region35: #{energy_model_forward.1} parent=11 // pred_region
        _
      $region36: #{energy_model_forward.1} parent=11 // pred_fallthru
        _
      // Predicated region
      $region37: #{energy_model_forward.1} parent=11 // pred_check
        %p269 = pneg %p189
      $region38: #{energy_model_forward.1} parent=11 // pred_check_branch
        %271 = sbr.rel (%p269) target = $region40
      $region39: #{energy_model_forward.1} parent=11 // pred_region
        _
      $region40: #{energy_model_forward.1} parent=11 // pred_fallthru
        _
      // Predicated region
      $region41: #{energy_model_forward.1} parent=11 // pred_check
        %p272 = pneg %p210
      $region42: #{energy_model_forward.1} parent=11 // pred_check_branch
        %274 = sbr.rel (%p272) target = $region44
      $region43: #{energy_model_forward.1} parent=11 // pred_region
        _
      $region44: #{energy_model_forward.1} parent=11 // pred_fallthru
        _
    $region12: #{energy_model_forward.1} parent=5 // pred_fallthru
      _
    %p275 = scmp.lt.s32.totalorder %s16, 2
    // Predicated region
    $region45: #{energy_model_forward.1} parent=5 // pred_check
      %p276 = pneg %p275
    $region46: #{energy_model_forward.1} parent=5 // pred_check_branch
      %278 = sbr.rel (%p276) target = $region48
    $region47: #{energy_model_forward.1} parent=5 // pred_region
      // Predicated region
      $region49: #{energy_model_forward.1} parent=47 // pred_check
        %p279 = pneg %p36
      $region50: #{energy_model_forward.1} parent=47 // pred_check_branch
        %281 = sbr.rel (%p279) target = $region52
      $region51: #{energy_model_forward.1} parent=47 // pred_region
        %p282 = scmp.lt.s32.totalorder %s16, 1
        %s283 = scalar_select %p282, %s16, 1
        %s284 = smul.addr %s283, 2
        %s285 = smul.addr %s284, 4
        %s286 = scalar_lea.vmem %s0, %s285
      $region52: #{energy_model_forward.1} parent=47 // pred_fallthru
        _
    $region48: #{energy_model_forward.1} parent=5 // pred_fallthru
      _
    %p287 = scmp.le.s32.totalorder 1, %s16
    %p288 = scmp.lt.s32.totalorder %s16, 3
    %p289 = pnand %p287, %p288
    %p290 = pneg %p289
    // Predicated region
    $region53: #{energy_model_forward.1} parent=5 // pred_check
      _
    $region54: #{energy_model_forward.1} parent=5 // pred_check_branch
      %292 = sbr.rel (%p289) target = $region56
    $region55: #{energy_model_forward.1} parent=5 // pred_region
      %s293 = ssub.s32 %s16, 1
      %p294 = scmp.lt.s32.totalorder %s21, 1
      %s295 = scalar_select %p294, %s21, 1
      %s296 = smul.addr %s295, 2
      %s297 = smul.addr %s296, 4
      %s298 = scalar_lea.vmem %s0, %s297
      %p299 = pneg %p42
      %p300 = pneg %p39
      %p301 = pneg %p63
      %p302 = pneg %p60
      %p303 = pneg %p84
      %p304 = pneg %p81
      %p305 = pneg %p105
      %p306 = pneg %p102
      %p307 = pneg %p126
      %p308 = pneg %p123
      %p309 = pneg %p147
      %p310 = pneg %p144
      %p311 = pneg %p168
      %p312 = pneg %p165
      %p313 = pneg %p189
      %p314 = pneg %p186
      %p315 = pneg %p210
      %p316 = pneg %p207
      %p317 = pneg %p236
      %p318 = pneg %p233
      %p319 = scmp.lt.s32.totalorder %s21, 1
      %s320 = scalar_select %p319, %s21, 1
      %s321 = smul.addr %s320, 8
      %s322 = smul.addr %s321, 8
      %s323 = scalar_lea.vmem %s9, %s322
      %p324 = scmp.lt.s32.totalorder %s21, 1
      %s325 = scalar_select %p324, %s21, 1
      %s326 = smul.addr %s325, 2
      %s327 = smul.addr %s326, 4
      %s328 = scalar_lea.vmem %s0, %s327
      %p329 = scmp.lt.s32.totalorder %s21, 1
      %s330 = scalar_select %p329, %s21, 1
      %s331 = smul.addr %s330, 8
      %s332 = smul.addr %s331, 8
      %s333 = scalar_lea.vmem %s9, %s332
      %v334 = vlaneseq
      %v335 = vand.u32 %v334, 127
      %v336 = vadd.s32 %v335, 128
      %vm337 = vcmp.lt.s32.totalorder %v335, 0
      %v338 = vsub.s32 0, %v335
      %v339 = vsel %vm337, %v338, %v335
      %v340 = vshrl.u32 %v339, 4
      %v341 = vand.u32 %v339, 15
      %v342 = vsub.s32 0, %v341
      %v343 = vsel %vm337, %v342, %v341
      %vm344 = vcmp.lt.s32.totalorder %v336, 0
      %v345 = vsub.s32 0, %v336
      %v346 = vsel %vm344, %v345, %v336
      %v347 = vshrl.u32 %v346, 4
      %v348 = vand.u32 %v346, 15
      %v349 = vsub.s32 0, %v348
      %v350 = vsel %vm344, %v349, %v348
      %vm351 = vcmp.ne.s32.totalorder %v343, 0
      %vm352 = vcmp.ne.s32.totalorder %v350, 0
      %vm353 = vcmp.lt.s32.totalorder %v343, 0
      %vm354 = vcmp.lt.s32.totalorder %v350, 0
      %vm355 = vmand %vm353, %vm351
      %vm356 = vmand %vm354, %vm352
      %v357 = vadd.s32 %v343, 16
      %v358 = vadd.s32 %v350, 16
      %v359 = vsel %vm355, %v357, %v343
      %v360 = vsel %vm356, %v358, %v350
      %v361 = vld [vmem:[%s328] sm:$0xff]
      %v363 = vcombine.high %v361, %v361
      %364 = vrot.lane.b32.xlu0 %v363, 16
      %v365 = vpop.permute.xlu0 %364
      %367 = vrot.lane.b32.xlu0 %v361, 16
      %v368 = vpop.permute.xlu0 %367
      %vm369 = vcmask 130048
      %v370 = vsel %vm369, %v368, %v365
      %v373 = vsel %vm369, %v365, %v368
      %374 = vrot.lane.b32.xlu0 %v370, 1
      %v375 = vpop.permute.xlu0 %374
      %378 = vrot.lane.b32.xlu0 %v373, 1
      %v379 = vpop.permute.xlu0 %378
      %vm380 = vcmask 7168
      %v381 = vsel %vm380, %v379, %v375
      %v384 = vsel %vm380, %v375, %v379
      %385 = vrot.lane.b32.xlu0 %v373, 113
      %v386 = vpop.permute.xlu0 %385
      %387 = vrot.lane.b32.xlu0 %v370, 113
      %v388 = vpop.permute.xlu0 %387
      %vm389 = vcmask 924672
      %v390 = vsel %vm389, %v386, %v388
      %v394 = vsel %vm389, %v388, %v386
      %vm395 = vcmp.lt.s32.totalorder %v359, 1
      %vm396 = vcmp.lt.s32.totalorder %v360, 1
      %v397 = vsel %vm395, %v390, %v384
      %v398 = vsel %vm396, %v394, %v381
      %399 = vrot.lane.b32.xlu0 %v373, 127
      %v400 = vpop.permute.xlu0 %399
      %401 = vrot.lane.b32.xlu0 %v370, 127
      %v402 = vpop.permute.xlu0 %401
      %vm403 = vcmask 1039360
      %v404 = vsel %vm403, %v400, %v402
      %v408 = vsel %vm403, %v402, %v400
      %409 = vrot.lane.b32.xlu0 %v370, 15
      %v410 = vpop.permute.xlu0 %409
      %412 = vrot.lane.b32.xlu0 %v373, 15
      %v413 = vpop.permute.xlu0 %412
      %vm414 = vcmask 121856
      %v415 = vsel %vm414, %v413, %v410
      %v418 = vsel %vm414, %v410, %v413
      %vm419 = vcmp.ge.s32.totalorder %v359, 15
      %vm420 = vcmp.ge.s32.totalorder %v360, 15
      %v421 = vsel %vm419, %v418, %v404
      %v422 = vsel %vm420, %v415, %v408
      %423 = vrot.lane.b32.xlu0 %v363, 1
      %v424 = vpop.permute.xlu0 %423
      %426 = vrot.lane.b32.xlu0 %v361, 1
      %v427 = vpop.permute.xlu0 %426
      %v428 = vsel %vm380, %v427, %v424
      %v431 = vsel %vm380, %v424, %v427
      %432 = vrot.lane.b32.xlu0 %v361, 113
      %v433 = vpop.permute.xlu0 %432
      %434 = vrot.lane.b32.xlu0 %v363, 113
      %v435 = vpop.permute.xlu0 %434
      %v436 = vsel %vm389, %v433, %v435
      %v440 = vsel %vm389, %v435, %v433
      %v441 = vsel %vm395, %v436, %v431
      %v442 = vsel %vm396, %v440, %v428
      %443 = vrot.lane.b32.xlu0 %v361, 127
      %v444 = vpop.permute.xlu0 %443
      %445 = vrot.lane.b32.xlu0 %v363, 127
      %v446 = vpop.permute.xlu0 %445
      %v447 = vsel %vm403, %v444, %v446
      %v451 = vsel %vm403, %v446, %v444
      %452 = vrot.lane.b32.xlu0 %v363, 15
      %v453 = vpop.permute.xlu0 %452
      %455 = vrot.lane.b32.xlu0 %v361, 15
      %v456 = vpop.permute.xlu0 %455
      %v457 = vsel %vm414, %v456, %v453
      %v460 = vsel %vm414, %v453, %v456
      %v461 = vsel %vm419, %v460, %v447
      %v462 = vsel %vm420, %v457, %v451
      %463 = vrot.lane.b32.xlu0 %v361, 112
      %v464 = vpop.permute.xlu0 %463
      %465 = vrot.lane.b32.xlu0 %v363, 112
      %v466 = vpop.permute.xlu0 %465
      %vm467 = vcmask 916480
      %v468 = vsel %vm467, %v464, %v466
      %v472 = vsel %vm467, %v466, %v464
      %474 = vrot.lane.b32.xlu0 %v472, 1
      %v475 = vpop.permute.xlu0 %474
      %477 = vrot.lane.b32.xlu0 %v468, 1
      %v478 = vpop.permute.xlu0 %477
      %v479 = vsel %vm380, %v478, %v475
      %v482 = vsel %vm380, %v475, %v478
      %483 = vrot.lane.b32.xlu0 %v468, 113
      %v484 = vpop.permute.xlu0 %483
      %485 = vrot.lane.b32.xlu0 %v472, 113
      %v486 = vpop.permute.xlu0 %485
      %v487 = vsel %vm389, %v484, %v486
      %v491 = vsel %vm389, %v486, %v484
      %v492 = vsel %vm395, %v487, %v482
      %v493 = vsel %vm396, %v491, %v479
      %494 = vrot.lane.b32.xlu0 %v468, 127
      %v495 = vpop.permute.xlu0 %494
      %496 = vrot.lane.b32.xlu0 %v472, 127
      %v497 = vpop.permute.xlu0 %496
      %v498 = vsel %vm403, %v495, %v497
      %v502 = vsel %vm403, %v497, %v495
      %503 = vrot.lane.b32.xlu0 %v472, 15
      %v504 = vpop.permute.xlu0 %503
      %506 = vrot.lane.b32.xlu0 %v468, 15
      %v507 = vpop.permute.xlu0 %506
      %v508 = vsel %vm414, %v507, %v504
      %v511 = vsel %vm414, %v504, %v507
      %v512 = vsel %vm419, %v511, %v498
      %v513 = vsel %vm420, %v508, %v502
      %s514 = sld [smem:[#allocation2]]
      %v515 = vld [vmem:[%s1] sm:$0xff]
      %v516 = vld [vmem:[%s1 + $0x8] sm:$0xff]
      %518 = vset.pattern.permute.xlu0 0
      %519 = vperm.xlu0 %518, %v515
      %v520 = vpop.permute.xlu0 %519
      %523 = vset.pattern.permute.xlu0 0
      %524 = vperm.xlu0 %523, %v516
      %v525 = vpop.permute.xlu0 %524
      %v527 = vlaneseq
      %v528 = vshrl.u32 %v527, 7
      %v529 = vsub.s32 0, %v528
      %v530 = vrot.slane %v397, %v529
      %v531 = vlaneseq
      %v532 = vshrl.u32 %v531, 7
      %v533 = vsub.s32 0, %v532
      %v534 = vrot.slane %v398, %v533
      %v535 = vmul.f32 %v520, %v530
      %v536 = vmul.f32 %v520, %v534
      %v537 = vmul.f32 %v525, %v530
      %v538 = vmul.f32 %v525, %v534
      %v539 = vadd.f32 %v535, 0.0
      %v540 = vadd.f32 %v536, 0.0
      %v541 = vadd.f32 %v537, 0.0
      %v542 = vadd.f32 %v538, 0.0
      %543 = vset.pattern.permute.xlu0 1
      %544 = vperm.xlu0 %543, %v515
      %v545 = vpop.permute.xlu0 %544
      %547 = vset.pattern.permute.xlu0 1
      %548 = vperm.xlu0 %547, %v516
      %v549 = vpop.permute.xlu0 %548
      %v551 = vlaneseq
      %v552 = vshrl.u32 %v551, 7
      %v553 = vsub.s32 0, %v552
      %v554 = vrot.slane %v373, %v553
      %v555 = vlaneseq
      %v556 = vshrl.u32 %v555, 7
      %v557 = vsub.s32 0, %v556
      %v558 = vrot.slane %v370, %v557
      %v559 = vmul.f32 %v545, %v554
      %v560 = vmul.f32 %v545, %v558
      %v561 = vmul.f32 %v549, %v554
      %v562 = vmul.f32 %v549, %v558
      %v563 = vadd.f32 %v539, %v559
      %v564 = vadd.f32 %v540, %v560
      %v565 = vadd.f32 %v541, %v561
      %v566 = vadd.f32 %v542, %v562
      %567 = vset.pattern.permute.xlu0 2
      %568 = vperm.xlu0 %567, %v515
      %v569 = vpop.permute.xlu0 %568
      %571 = vset.pattern.permute.xlu0 2
      %572 = vperm.xlu0 %571, %v516
      %v573 = vpop.permute.xlu0 %572
      %v575 = vlaneseq
      %v576 = vshrl.u32 %v575, 7
      %v577 = vsub.s32 0, %v576
      %v578 = vrot.slane %v421, %v577
      %v579 = vlaneseq
      %v580 = vshrl.u32 %v579, 7
      %v581 = vsub.s32 0, %v580
      %v582 = vrot.slane %v422, %v581
      %v583 = vmul.f32 %v569, %v578
      %v584 = vmul.f32 %v569, %v582
      %v585 = vmul.f32 %v573, %v578
      %v586 = vmul.f32 %v573, %v582
      %v587 = vadd.f32 %v563, %v583
      %v588 = vadd.f32 %v564, %v584
      %v589 = vadd.f32 %v565, %v585
      %v590 = vadd.f32 %v566, %v586
      %591 = vset.pattern.permute.xlu0 3
      %592 = vperm.xlu0 %591, %v515
      %v593 = vpop.permute.xlu0 %592
      %595 = vset.pattern.permute.xlu0 3
      %596 = vperm.xlu0 %595, %v516
      %v597 = vpop.permute.xlu0 %596
      %v599 = vlaneseq
      %v600 = vshrl.u32 %v599, 7
      %v601 = vsub.s32 0, %v600
      %v602 = vrot.slane %v441, %v601
      %v603 = vlaneseq
      %v604 = vshrl.u32 %v603, 7
      %v605 = vsub.s32 0, %v604
      %v606 = vrot.slane %v442, %v605
      %v607 = vmul.f32 %v593, %v602
      %v608 = vmul.f32 %v593, %v606
      %v609 = vmul.f32 %v597, %v602
      %v610 = vmul.f32 %v597, %v606
      %v611 = vadd.f32 %v587, %v607
      %v612 = vadd.f32 %v588, %v608
      %v613 = vadd.f32 %v589, %v609
      %v614 = vadd.f32 %v590, %v610
      %615 = vset.pattern.permute.xlu0 4
      %616 = vperm.xlu0 %615, %v515
      %v617 = vpop.permute.xlu0 %616
      %619 = vset.pattern.permute.xlu0 4
      %620 = vperm.xlu0 %619, %v516
      %v621 = vpop.permute.xlu0 %620
      %v623 = vlaneseq
      %v624 = vshrl.u32 %v623, 7
      %v625 = vsub.s32 0, %v624
      %v626 = vrot.slane %v361, %v625
      %v627 = vlaneseq
      %v628 = vshrl.u32 %v627, 7
      %v629 = vsub.s32 4, %v628
      %v630 = vrot.slane %v361, %v629
      %v633 = vlaneseq
      %v634 = vshrl.u32 %v633, 7
      %v635 = vsub.s32 0, %v634
      %v636 = vrot.slane %v626, %v635
      %v637 = vlaneseq
      %v638 = vshrl.u32 %v637, 7
      %v639 = vsub.s32 0, %v638
      %v640 = vrot.slane %v630, %v639
      %v641 = vmul.f32 %v617, %v636
      %v642 = vmul.f32 %v617, %v640
      %v643 = vmul.f32 %v621, %v636
      %v644 = vmul.f32 %v621, %v640
      %v645 = vadd.f32 %v611, %v641
      %v646 = vadd.f32 %v612, %v642
      %v647 = vadd.f32 %v613, %v643
      %v648 = vadd.f32 %v614, %v644
      %649 = vset.pattern.permute.xlu0 5
      %650 = vperm.xlu0 %649, %v515
      %v651 = vpop.permute.xlu0 %650
      %653 = vset.pattern.permute.xlu0 5
      %654 = vperm.xlu0 %653, %v516
      %v655 = vpop.permute.xlu0 %654
      %v657 = vlaneseq
      %v658 = vshrl.u32 %v657, 7
      %v659 = vsub.s32 0, %v658
      %v660 = vrot.slane %v461, %v659
      %v661 = vlaneseq
      %v662 = vshrl.u32 %v661, 7
      %v663 = vsub.s32 0, %v662
      %v664 = vrot.slane %v462, %v663
      %v665 = vmul.f32 %v651, %v660
      %v666 = vmul.f32 %v651, %v664
      %v667 = vmul.f32 %v655, %v660
      %v668 = vmul.f32 %v655, %v664
      %v669 = vadd.f32 %v645, %v665
      %v670 = vadd.f32 %v646, %v666
      %v671 = vadd.f32 %v647, %v667
      %v672 = vadd.f32 %v648, %v668
      %673 = vset.pattern.permute.xlu0 6
      %674 = vperm.xlu0 %673, %v515
      %v675 = vpop.permute.xlu0 %674
      %677 = vset.pattern.permute.xlu0 6
      %678 = vperm.xlu0 %677, %v516
      %v679 = vpop.permute.xlu0 %678
      %v681 = vlaneseq
      %v682 = vshrl.u32 %v681, 7
      %v683 = vsub.s32 0, %v682
      %v684 = vrot.slane %v492, %v683
      %v685 = vlaneseq
      %v686 = vshrl.u32 %v685, 7
      %v687 = vsub.s32 0, %v686
      %v688 = vrot.slane %v493, %v687
      %v689 = vmul.f32 %v675, %v684
      %v690 = vmul.f32 %v675, %v688
      %v691 = vmul.f32 %v679, %v684
      %v692 = vmul.f32 %v679, %v688
      %v693 = vadd.f32 %v669, %v689
      %v694 = vadd.f32 %v670, %v690
      %v695 = vadd.f32 %v671, %v691
      %v696 = vadd.f32 %v672, %v692
      %697 = vset.pattern.permute.xlu0 7
      %698 = vperm.xlu0 %697, %v515
      %v699 = vpop.permute.xlu0 %698
      %701 = vset.pattern.permute.xlu0 7
      %702 = vperm.xlu0 %701, %v516
      %v703 = vpop.permute.xlu0 %702
      %v705 = vlaneseq
      %v706 = vshrl.u32 %v705, 7
      %v707 = vsub.s32 0, %v706
      %v708 = vrot.slane %v468, %v707
      %v709 = vlaneseq
      %v710 = vshrl.u32 %v709, 7
      %v711 = vsub.s32 0, %v710
      %v712 = vrot.slane %v472, %v711
      %v713 = vmul.f32 %v699, %v708
      %v714 = vmul.f32 %v699, %v712
      %v715 = vmul.f32 %v703, %v708
      %v716 = vmul.f32 %v703, %v712
      %v717 = vadd.f32 %v693, %v713
      %v718 = vadd.f32 %v694, %v714
      %v719 = vadd.f32 %v695, %v715
      %v720 = vadd.f32 %v696, %v716
      %721 = vset.pattern.permute.xlu0 8
      %722 = vperm.xlu0 %721, %v515
      %v723 = vpop.permute.xlu0 %722
      %725 = vset.pattern.permute.xlu0 8
      %726 = vperm.xlu0 %725, %v516
      %v727 = vpop.permute.xlu0 %726
      %v729 = vlaneseq
      %v730 = vshrl.u32 %v729, 7
      %v731 = vsub.s32 0, %v730
      %v732 = vrot.slane %v512, %v731
      %v733 = vlaneseq
      %v734 = vshrl.u32 %v733, 7
      %v735 = vsub.s32 0, %v734
      %v736 = vrot.slane %v513, %v735
      %v737 = vmul.f32 %v723, %v732
      %v738 = vmul.f32 %v723, %v736
      %v739 = vmul.f32 %v727, %v732
      %v740 = vmul.f32 %v727, %v736
      %v741 = vadd.f32 %v717, %v737
      %v742 = vadd.f32 %v718, %v738
      %v743 = vadd.f32 %v719, %v739
      %v744 = vadd.f32 %v720, %v740
      %v745 = vld [vmem:[%s2] sm:$0xff]
      %v746 = vld [vmem:[%s2 + $0x8] sm:$0xff]
      %748 = vset.pattern.permute.xlu0 0
      %749 = vperm.xlu0 %748, %v745
      %v750 = vpop.permute.xlu0 %749
      %753 = vset.pattern.permute.xlu0 0
      %754 = vperm.xlu0 %753, %v746
      %v755 = vpop.permute.xlu0 %754
      %v757 = vadd.f32 %v741, %v750
      %v758 = vadd.f32 %v742, %v750
      %v759 = vadd.f32 %v743, %v755
      %v760 = vadd.f32 %v744, %v755
      %v761 = vmax.f32 %v757, 0.0
      %v762 = vmax.f32 %v758, 0.0
      %v763 = vmax.f32 %v759, 0.0
      %v764 = vmax.f32 %v760, 0.0
      %767 = vrot.lane.b32.xlu0 %v762, 16
      %v768 = vpop.permute.xlu0 %767
      %769 = vrot.lane.b32.xlu0 %v764, 16
      %v770 = vpop.permute.xlu0 %769
      %775 = vrot.lane.b32.xlu0 %v761, 16
      %v776 = vpop.permute.xlu0 %775
      %777 = vrot.lane.b32.xlu0 %v763, 16
      %v778 = vpop.permute.xlu0 %777
      %v779 = vsel %vm369, %v776, %v768
      %v780 = vsel %vm369, %v778, %v770
      %v785 = vsel %vm369, %v768, %v776
      %v786 = vsel %vm369, %v770, %v778
      %787 = vrot.lane.b32.xlu0 %v779, 1
      %v788 = vpop.permute.xlu0 %787
      %789 = vrot.lane.b32.xlu0 %v780, 1
      %v790 = vpop.permute.xlu0 %789
      %795 = vrot.lane.b32.xlu0 %v785, 1
      %v796 = vpop.permute.xlu0 %795
      %797 = vrot.lane.b32.xlu0 %v786, 1
      %v798 = vpop.permute.xlu0 %797
      %v799 = vsel %vm380, %v796, %v788
      %v800 = vsel %vm380, %v798, %v790
      %v805 = vsel %vm380, %v788, %v796
      %v806 = vsel %vm380, %v790, %v798
      %807 = vrot.lane.b32.xlu0 %v785, 113
      %v808 = vpop.permute.xlu0 %807
      %809 = vrot.lane.b32.xlu0 %v779, 113
      %v810 = vpop.permute.xlu0 %809
      %811 = vrot.lane.b32.xlu0 %v786, 113
      %v812 = vpop.permute.xlu0 %811
      %813 = vrot.lane.b32.xlu0 %v780, 113
      %v814 = vpop.permute.xlu0 %813
      %v815 = vsel %vm389, %v808, %v810
      %v816 = vsel %vm389, %v812, %v814
      %v823 = vsel %vm389, %v810, %v808
      %v824 = vsel %vm389, %v814, %v812
      %v825 = vsel %vm395, %v815, %v805
      %v826 = vsel %vm396, %v823, %v799
      %v827 = vsel %vm395, %v816, %v806
      %v828 = vsel %vm396, %v824, %v800
      %v829 = vld [vmem:[%s3] sm:$0xff]
      %v830 = vld [vmem:[%s3 + $0x8] sm:$0xff]
      %s831 = scalar_lea.vmem %s3, 16
      %v832 = vld [vmem:[%s831] sm:$0xff]
      %v833 = vld [vmem:[%s831 + $0x8] sm:$0xff]
      %v835 = vsel %vm369, %v832, 0
      %v838 = vsel %vm369, %v833, 0
      %840 = vmatprep.subr.mxu0 %v779
      %841 = vmatpush1.msra.mxu0 %v785
      %842 = vmatprep.subr.mxu0 %v780
      %843 = vmatpush1.msra.mxu0 %v786
      %844 = vmatprep.subr.mxu0 0.0
      %845 = vmatpush1.msra.mxu0 0.0
      %846 = vmatprep.subr.mxu0 0.0
      %847 = vmatpush1.msra.mxu0 0.0
      %848 = vmatprep.subr.mxu0 0.0
      %849 = vmatpush1.msra.mxu0 0.0
      %850 = vmatprep.subr.mxu0 0.0
      %851 = vmatpush1.msra.mxu0 0.0
      %852 = vmatprep.subr.mxu0 0.0
      %853 = vmatpush1.msra.mxu0 0.0
      %854 = vmatprep.subr.mxu0 0.0
      %855 = vmatpush1.msra.mxu0 0.0
      %856 = vmatprep.subr.mxu0 0.0
      %857 = vmatpush1.msra.mxu0 0.0
      %858 = vmatprep.subr.mxu0 0.0
      %859 = vmatpush1.msra.mxu0 0.0
      %860 = vmatprep.subr.mxu0 0.0
      %861 = vmatpush1.msra.mxu0 0.0
      %862 = vmatprep.subr.mxu0 0.0
      %863 = vmatpush1.msra.mxu0 0.0
      %864 = vmatprep.subr.mxu0 0.0
      %865 = vmatpush1.msra.mxu0 0.0
      %866 = vmatprep.subr.mxu0 0.0
      %867 = vmatpush1.msra.mxu0 0.0
      %868 = vmatprep.subr.mxu0 0.0
      %869 = vmatpush1.msra.mxu0 0.0
      %870 = vmatprep.subr.mxu0 0.0
      %871 = vmatpush1.msra.mxu0 0.0
      %872 = vmatprep.subr.mxu0 0.0
      %873 = vmatpush1.msra.mxu0 0.0
      %874 = vmatprep.subr.mxu0 0.0
      %875 = vmatpush1.msra.mxu0 0.0
      %876 = vmatprep.subr.mxu0 0.0
      %877 = vmatpush1.msra.mxu0 0.0
      %878 = vmatprep.subr.mxu0 0.0
      %879 = vmatpush1.msra.mxu0 0.0
      %880 = vmatprep.subr.mxu0 0.0
      %881 = vmatpush1.msra.mxu0 0.0
      %882 = vmatprep.subr.mxu0 0.0
      %883 = vmatpush1.msra.mxu0 0.0
      %884 = vmatprep.subr.mxu0 0.0
      %885 = vmatpush1.msra.mxu0 0.0
      %886 = vmatprep.subr.mxu0 0.0
      %887 = vmatpush1.msra.mxu0 0.0
      %888 = vmatprep.subr.mxu0 0.0
      %889 = vmatpush1.msra.mxu0 0.0
      %890 = vmatprep.subr.mxu0 0.0
      %891 = vmatpush1.msra.mxu0 0.0
      %892 = vmatprep.subr.mxu0 0.0
      %893 = vmatpush1.msra.mxu0 0.0
      %894 = vmatprep.subr.mxu0 0.0
      %895 = vmatpush1.msra.mxu0 0.0
      %896 = vmatprep.subr.mxu0 0.0
      %897 = vmatpush1.msra.mxu0 0.0
      %898 = vmatprep.subr.mxu0 0.0
      %899 = vmatpush1.msra.mxu0 0.0
      %900 = vmatprep.subr.mxu0 0.0
      %901 = vmatpush1.msra.mxu0 0.0
      %902 = vmatprep.subr.mxu0 0.0
      %903 = vmatpush1.msra.mxu0 0.0
      %904 = vmatprep.mubr.f32.mxu0 0.0
      %905 = vmatmul.mubr.f32.gmra.mrb[0].mxu0 %v835
      %v906 = vpop.f32.mrb[0].mxu0
      %v907 = vadd.f32 0.0, %v906
      %v908 = vpop.f32.mrb[0].mxu0
      %v909 = vadd.f32 0.0, %v908
      %910 = vmatprep.mubr.f32.mxu0 0.0
      %911 = vmatmul.mubr.f32.gmra.mrb[0].mxu0 %v838
      %v912 = vpop.f32.mrb[0].mxu0
      %v913 = vadd.f32 0.0, %v912
      %v914 = vpop.f32.mrb[0].mxu0
      %v915 = vadd.f32 0.0, %v914
      %916 = vdwg.mxu0
      %v918 = vsel %vm369, %v829, 0
      %v921 = vsel %vm369, %v830, 0
      %923 = vmatprep.subr.mxu0 %v826
      %924 = vmatpush1.msra.mxu0 %v825
      %925 = vmatprep.subr.mxu0 %v828
      %926 = vmatpush1.msra.mxu0 %v827
      %927 = vmatprep.subr.mxu0 0.0
      %928 = vmatpush1.msra.mxu0 0.0
      %929 = vmatprep.subr.mxu0 0.0
      %930 = vmatpush1.msra.mxu0 0.0
      %931 = vmatprep.subr.mxu0 0.0
      %932 = vmatpush1.msra.mxu0 0.0
      %933 = vmatprep.subr.mxu0 0.0
      %934 = vmatpush1.msra.mxu0 0.0
      %935 = vmatprep.subr.mxu0 0.0
      %936 = vmatpush1.msra.mxu0 0.0
      %937 = vmatprep.subr.mxu0 0.0
      %938 = vmatpush1.msra.mxu0 0.0
      %939 = vmatprep.subr.mxu0 0.0
      %940 = vmatpush1.msra.mxu0 0.0
      %941 = vmatprep.subr.mxu0 0.0
      %942 = vmatpush1.msra.mxu0 0.0
      %943 = vmatprep.subr.mxu0 0.0
      %944 = vmatpush1.msra.mxu0 0.0
      %945 = vmatprep.subr.mxu0 0.0
      %946 = vmatpush1.msra.mxu0 0.0
      %947 = vmatprep.subr.mxu0 0.0
      %948 = vmatpush1.msra.mxu0 0.0
      %949 = vmatprep.subr.mxu0 0.0
      %950 = vmatpush1.msra.mxu0 0.0
      %951 = vmatprep.subr.mxu0 0.0
      %952 = vmatpush1.msra.mxu0 0.0
      %953 = vmatprep.subr.mxu0 0.0
      %954 = vmatpush1.msra.mxu0 0.0
      %955 = vmatprep.subr.mxu0 0.0
      %956 = vmatpush1.msra.mxu0 0.0
      %957 = vmatprep.subr.mxu0 0.0
      %958 = vmatpush1.msra.mxu0 0.0
      %959 = vmatprep.subr.mxu0 0.0
      %960 = vmatpush1.msra.mxu0 0.0
      %961 = vmatprep.subr.mxu0 0.0
      %962 = vmatpush1.msra.mxu0 0.0
      %963 = vmatprep.subr.mxu0 0.0
      %964 = vmatpush1.msra.mxu0 0.0
      %965 = vmatprep.subr.mxu0 0.0
      %966 = vmatpush1.msra.mxu0 0.0
      %967 = vmatprep.subr.mxu0 0.0
      %968 = vmatpush1.msra.mxu0 0.0
      %969 = vmatprep.subr.mxu0 0.0
      %970 = vmatpush1.msra.mxu0 0.0
      %971 = vmatprep.subr.mxu0 0.0
      %972 = vmatpush1.msra.mxu0 0.0
      %973 = vmatprep.subr.mxu0 0.0
      %974 = vmatpush1.msra.mxu0 0.0
      %975 = vmatprep.subr.mxu0 0.0
      %976 = vmatpush1.msra.mxu0 0.0
      %977 = vmatprep.subr.mxu0 0.0
      %978 = vmatpush1.msra.mxu0 0.0
      %979 = vmatprep.subr.mxu0 0.0
      %980 = vmatpush1.msra.mxu0 0.0
      %981 = vmatprep.subr.mxu0 0.0
      %982 = vmatpush1.msra.mxu0 0.0
      %983 = vmatprep.subr.mxu0 0.0
      %984 = vmatpush1.msra.mxu0 0.0
      %985 = vmatprep.subr.mxu0 0.0
      %986 = vmatpush1.msra.mxu0 0.0
      %987 = vmatprep.mubr.f32.mxu0 0.0
      %988 = vmatmul.mubr.f32.gmra.mrb[0].mxu0 %v918
      %v989 = vpop.f32.mrb[0].mxu0
      %v990 = vadd.f32 %v907, %v989
      %v991 = vpop.f32.mrb[0].mxu0
      %v992 = vadd.f32 %v909, %v991
      %993 = vmatprep.mubr.f32.mxu0 0.0
      %994 = vmatmul.mubr.f32.gmra.mrb[0].mxu0 %v921
      %v995 = vpop.f32.mrb[0].mxu0
      %v996 = vadd.f32 %v913, %v995
      %v997 = vpop.f32.mrb[0].mxu0
      %v998 = vadd.f32 %v915, %v997
      %999 = vdwg.mxu0
      %1000 = vrot.lane.b32.xlu0 %v785, 127
      %v1001 = vpop.permute.xlu0 %1000
      %1002 = vrot.lane.b32.xlu0 %v779, 127
      %v1003 = vpop.permute.xlu0 %1002
      %1004 = vrot.lane.b32.xlu0 %v786, 127
      %v1005 = vpop.permute.xlu0 %1004
      %1006 = vrot.lane.b32.xlu0 %v780, 127
      %v1007 = vpop.permute.xlu0 %1006
      %v1008 = vsel %vm403, %v1001, %v1003
      %v1009 = vsel %vm403, %v1005, %v1007
      %v1016 = vsel %vm403, %v1003, %v1001
      %v1017 = vsel %vm403, %v1007, %v1005
      %1018 = vrot.lane.b32.xlu0 %v779, 15
      %v1019 = vpop.permute.xlu0 %1018
      %1020 = vrot.lane.b32.xlu0 %v780, 15
      %v1021 = vpop.permute.xlu0 %1020
      %1024 = vrot.lane.b32.xlu0 %v785, 15
      %v1025 = vpop.permute.xlu0 %1024
      %1026 = vrot.lane.b32.xlu0 %v786, 15
      %v1027 = vpop.permute.xlu0 %1026
      %v1028 = vsel %vm414, %v1025, %v1019
      %v1029 = vsel %vm414, %v1027, %v1021
      %v1034 = vsel %vm414, %v1019, %v1025
      %v1035 = vsel %vm414, %v1021, %v1027
      %v1036 = vsel %vm419, %v1034, %v1008
      %v1037 = vsel %vm420, %v1028, %v1016
      %v1038 = vsel %vm419, %v1035, %v1009
      %v1039 = vsel %vm420, %v1029, %v1017
      %s1040 = scalar_lea.vmem %s3, 32
      %v1041 = vld [vmem:[%s1040] sm:$0xff]
      %v1042 = vld [vmem:[%s1040 + $0x8] sm:$0xff]
      %v1044 = vsel %vm369, %v1041, 0
      %v1047 = vsel %vm369, %v1042, 0
      %1049 = vmatprep.subr.mxu0 %v1037
      %1050 = vmatpush1.msra.mxu0 %v1036
      %1051 = vmatprep.subr.mxu0 %v1039
      %1052 = vmatpush1.msra.mxu0 %v1038
      %1053 = vmatprep.subr.mxu0 0.0
      %1054 = vmatpush1.msra.mxu0 0.0
      %1055 = vmatprep.subr.mxu0 0.0
      %1056 = vmatpush1.msra.mxu0 0.0
      %1057 = vmatprep.subr.mxu0 0.0
      %1058 = vmatpush1.msra.mxu0 0.0
      %1059 = vmatprep.subr.mxu0 0.0
      %1060 = vmatpush1.msra.mxu0 0.0
      %1061 = vmatprep.subr.mxu0 0.0
      %1062 = vmatpush1.msra.mxu0 0.0
      %1063 = vmatprep.subr.mxu0 0.0
      %1064 = vmatpush1.msra.mxu0 0.0
      %1065 = vmatprep.subr.mxu0 0.0
      %1066 = vmatpush1.msra.mxu0 0.0
      %1067 = vmatprep.subr.mxu0 0.0
      %1068 = vmatpush1.msra.mxu0 0.0
      %1069 = vmatprep.subr.mxu0 0.0
      %1070 = vmatpush1.msra.mxu0 0.0
      %1071 = vmatprep.subr.mxu0 0.0
      %1072 = vmatpush1.msra.mxu0 0.0
      %1073 = vmatprep.subr.mxu0 0.0
      %1074 = vmatpush1.msra.mxu0 0.0
      %1075 = vmatprep.subr.mxu0 0.0
      %1076 = vmatpush1.msra.mxu0 0.0
      %1077 = vmatprep.subr.mxu0 0.0
      %1078 = vmatpush1.msra.mxu0 0.0
      %1079 = vmatprep.subr.mxu0 0.0
      %1080 = vmatpush1.msra.mxu0 0.0
      %1081 = vmatprep.subr.mxu0 0.0
      %1082 = vmatpush1.msra.mxu0 0.0
      %1083 = vmatprep.subr.mxu0 0.0
      %1084 = vmatpush1.msra.mxu0 0.0
      %1085 = vmatprep.subr.mxu0 0.0
      %1086 = vmatpush1.msra.mxu0 0.0
      %1087 = vmatprep.subr.mxu0 0.0
      %1088 = vmatpush1.msra.mxu0 0.0
      %1089 = vmatprep.subr.mxu0 0.0
      %1090 = vmatpush1.msra.mxu0 0.0
      %1091 = vmatprep.subr.mxu0 0.0
      %1092 = vmatpush1.msra.mxu0 0.0
      %1093 = vmatprep.subr.mxu0 0.0
      %1094 = vmatpush1.msra.mxu0 0.0
      %1095 = vmatprep.subr.mxu0 0.0
      %1096 = vmatpush1.msra.mxu0 0.0
      %1097 = vmatprep.subr.mxu0 0.0
      %1098 = vmatpush1.msra.mxu0 0.0
      %1099 = vmatprep.subr.mxu0 0.0
      %1100 = vmatpush1.msra.mxu0 0.0
      %1101 = vmatprep.subr.mxu0 0.0
      %1102 = vmatpush1.msra.mxu0 0.0
      %1103 = vmatprep.subr.mxu0 0.0
      %1104 = vmatpush1.msra.mxu0 0.0
      %1105 = vmatprep.subr.mxu0 0.0
      %1106 = vmatpush1.msra.mxu0 0.0
      %1107 = vmatprep.subr.mxu0 0.0
      %1108 = vmatpush1.msra.mxu0 0.0
      %1109 = vmatprep.subr.mxu0 0.0
      %1110 = vmatpush1.msra.mxu0 0.0
      %1111 = vmatprep.subr.mxu0 0.0
      %1112 = vmatpush1.msra.mxu0 0.0
      %1113 = vmatprep.mubr.f32.mxu0 0.0
      %1114 = vmatmul.mubr.f32.gmra.mrb[0].mxu0 %v1044
      %v1115 = vpop.f32.mrb[0].mxu0
      %v1116 = vadd.f32 0.0, %v1115
      %v1117 = vpop.f32.mrb[0].mxu0
      %v1118 = vadd.f32 0.0, %v1117
      %1119 = vmatprep.mubr.f32.mxu0 0.0
      %1120 = vmatmul.mubr.f32.gmra.mrb[0].mxu0 %v1047
      %v1121 = vpop.f32.mrb[0].mxu0
      %v1122 = vadd.f32 0.0, %v1121
      %v1123 = vpop.f32.mrb[0].mxu0
      %v1124 = vadd.f32 0.0, %v1123
      %1125 = vdwg.mxu0
      %v1126 = vadd.f32 %v990, %v1116
      %v1127 = vadd.f32 %v992, %v1118
      %v1128 = vadd.f32 %v996, %v1122
      %v1129 = vadd.f32 %v998, %v1124
      %1130 = vrot.lane.b32.xlu0 %v762, 1
      %v1131 = vpop.permute.xlu0 %1130
      %1132 = vrot.lane.b32.xlu0 %v764, 1
      %v1133 = vpop.permute.xlu0 %1132
      %1136 = vrot.lane.b32.xlu0 %v761, 1
      %v1137 = vpop.permute.xlu0 %1136
      %1138 = vrot.lane.b32.xlu0 %v763, 1
      %v1139 = vpop.permute.xlu0 %1138
      %v1140 = vsel %vm380, %v1137, %v1131
      %v1141 = vsel %vm380, %v1139, %v1133
      %v1146 = vsel %vm380, %v1131, %v1137
      %v1147 = vsel %vm380, %v1133, %v1139
      %1148 = vrot.lane.b32.xlu0 %v761, 113
      %v1149 = vpop.permute.xlu0 %1148
      %1150 = vrot.lane.b32.xlu0 %v762, 113
      %v1151 = vpop.permute.xlu0 %1150
      %1152 = vrot.lane.b32.xlu0 %v763, 113
      %v1153 = vpop.permute.xlu0 %1152
      %1154 = vrot.lane.b32.xlu0 %v764, 113
      %v1155 = vpop.permute.xlu0 %1154
      %v1156 = vsel %vm389, %v1149, %v1151
      %v1157 = vsel %vm389, %v1153, %v1155
      %v1164 = vsel %vm389, %v1151, %v1149
      %v1165 = vsel %vm389, %v1155, %v1153
      %v1166 = vsel %vm395, %v1156, %v1146
      %v1167 = vsel %vm396, %v1164, %v1140
      %v1168 = vsel %vm395, %v1157, %v1147
      %v1169 = vsel %vm396, %v1165, %v1141
      %s1170 = scalar_lea.vmem %s3, 48
      %v1171 = vld [vmem:[%s1170] sm:$0xff]
      %v1172 = vld [vmem:[%s1170 + $0x8] sm:$0xff]
      %v1174 = vsel %vm369, %v1171, 0
      %v1177 = vsel %vm369, %v1172, 0
      %1179 = vmatprep.subr.mxu0 %v1167
      %1180 = vmatpush1.msra.mxu0 %v1166
      %1181 = vmatprep.subr.mxu0 %v1169
      %1182 = vmatpush1.msra.mxu0 %v1168
      %1183 = vmatprep.subr.mxu0 0.0
      %1184 = vmatpush1.msra.mxu0 0.0
      %1185 = vmatprep.subr.mxu0 0.0
      %1186 = vmatpush1.msra.mxu0 0.0
      %1187 = vmatprep.subr.mxu0 0.0
      %1188 = vmatpush1.msra.mxu0 0.0
      %1189 = vmatprep.subr.mxu0 0.0
      %1190 = vmatpush1.msra.mxu0 0.0
      %1191 = vmatprep.subr.mxu0 0.0
      %1192 = vmatpush1.msra.mxu0 0.0
      %1193 = vmatprep.subr.mxu0 0.0
      %1194 = vmatpush1.msra.mxu0 0.0
      %1195 = vmatprep.subr.mxu0 0.0
      %1196 = vmatpush1.msra.mxu0 0.0
      %1197 = vmatprep.subr.mxu0 0.0
      %1198 = vmatpush1.msra.mxu0 0.0
      %1199 = vmatprep.subr.mxu0 0.0
      %1200 = vmatpush1.msra.mxu0 0.0
      %1201 = vmatprep.subr.mxu0 0.0
      %1202 = vmatpush1.msra.mxu0 0.0
      %1203 = vmatprep.subr.mxu0 0.0
      %1204 = vmatpush1.msra.mxu0 0.0
      %1205 = vmatprep.subr.mxu0 0.0
      %1206 = vmatpush1.msra.mxu0 0.0
      %1207 = vmatprep.subr.mxu0 0.0
      %1208 = vmatpush1.msra.mxu0 0.0
      %1209 = vmatprep.subr.mxu0 0.0
      %1210 = vmatpush1.msra.mxu0 0.0
      %1211 = vmatprep.subr.mxu0 0.0
      %1212 = vmatpush1.msra.mxu0 0.0
      %1213 = vmatprep.subr.mxu0 0.0
      %1214 = vmatpush1.msra.mxu0 0.0
      %1215 = vmatprep.subr.mxu0 0.0
      %1216 = vmatpush1.msra.mxu0 0.0
      %1217 = vmatprep.subr.mxu0 0.0
      %1218 = vmatpush1.msra.mxu0 0.0
      %1219 = vmatprep.subr.mxu0 0.0
      %1220 = vmatpush1.msra.mxu0 0.0
      %1221 = vmatprep.subr.mxu0 0.0
      %1222 = vmatpush1.msra.mxu0 0.0
      %1223 = vmatprep.subr.mxu0 0.0
      %1224 = vmatpush1.msra.mxu0 0.0
      %1225 = vmatprep.subr.mxu0 0.0
      %1226 = vmatpush1.msra.mxu0 0.0
      %1227 = vmatprep.subr.mxu0 0.0
      %1228 = vmatpush1.msra.mxu0 0.0
      %1229 = vmatprep.subr.mxu0 0.0
      %1230 = vmatpush1.msra.mxu0 0.0
      %1231 = vmatprep.subr.mxu0 0.0
      %1232 = vmatpush1.msra.mxu0 0.0
      %1233 = vmatprep.subr.mxu0 0.0
      %1234 = vmatpush1.msra.mxu0 0.0
      %1235 = vmatprep.subr.mxu0 0.0
      %1236 = vmatpush1.msra.mxu0 0.0
      %1237 = vmatprep.subr.mxu0 0.0
      %1238 = vmatpush1.msra.mxu0 0.0
      %1239 = vmatprep.subr.mxu0 0.0
      %1240 = vmatpush1.msra.mxu0 0.0
      %1241 = vmatprep.subr.mxu0 0.0
      %1242 = vmatpush1.msra.mxu0 0.0
      %1243 = vmatprep.mubr.f32.mxu0 0.0
      %1244 = vmatmul.mubr.f32.gmra.mrb[0].mxu0 %v1174
      %v1245 = vpop.f32.mrb[0].mxu0
      %v1246 = vadd.f32 0.0, %v1245
      %v1247 = vpop.f32.mrb[0].mxu0
      %v1248 = vadd.f32 0.0, %v1247
      %1249 = vmatprep.mubr.f32.mxu0 0.0
      %1250 = vmatmul.mubr.f32.gmra.mrb[0].mxu0 %v1177
      %v1251 = vpop.f32.mrb[0].mxu0
      %v1252 = vadd.f32 0.0, %v1251
      %v1253 = vpop.f32.mrb[0].mxu0
      %v1254 = vadd.f32 0.0, %v1253
      %1255 = vdwg.mxu0
      %v1256 = vadd.f32 %v1126, %v1246
      %v1257 = vadd.f32 %v1127, %v1248
      %v1258 = vadd.f32 %v1128, %v1252
      %v1259 = vadd.f32 %v1129, %v1254
      %s1260 = scalar_lea.vmem %s3, 64
      %v1261 = vld [vmem:[%s1260] sm:$0xff]
      %v1262 = vld [vmem:[%s1260 + $0x8] sm:$0xff]
      %v1264 = vsel %vm369, %v1261, 0
      %v1267 = vsel %vm369, %v1262, 0
      %1269 = vmatprep.subr.mxu0 %v762
      %1270 = vmatpush1.msra.mxu0 %v761
      %1271 = vmatprep.subr.mxu0 %v764
      %1272 = vmatpush1.msra.mxu0 %v763
      %1273 = vmatprep.subr.mxu0 0.0
      %1274 = vmatpush1.msra.mxu0 0.0
      %1275 = vmatprep.subr.mxu0 0.0
      %1276 = vmatpush1.msra.mxu0 0.0
      %1277 = vmatprep.subr.mxu0 0.0
      %1278 = vmatpush1.msra.mxu0 0.0
      %1279 = vmatprep.subr.mxu0 0.0
      %1280 = vmatpush1.msra.mxu0 0.0
      %1281 = vmatprep.subr.mxu0 0.0
      %1282 = vmatpush1.msra.mxu0 0.0
      %1283 = vmatprep.subr.mxu0 0.0
      %1284 = vmatpush1.msra.mxu0 0.0
      %1285 = vmatprep.subr.mxu0 0.0
      %1286 = vmatpush1.msra.mxu0 0.0
      %1287 = vmatprep.subr.mxu0 0.0
      %1288 = vmatpush1.msra.mxu0 0.0
      %1289 = vmatprep.subr.mxu0 0.0
      %1290 = vmatpush1.msra.mxu0 0.0
      %1291 = vmatprep.subr.mxu0 0.0
      %1292 = vmatpush1.msra.mxu0 0.0
      %1293 = vmatprep.subr.mxu0 0.0
      %1294 = vmatpush1.msra.mxu0 0.0
      %1295 = vmatprep.subr.mxu0 0.0
      %1296 = vmatpush1.msra.mxu0 0.0
      %1297 = vmatprep.subr.mxu0 0.0
      %1298 = vmatpush1.msra.mxu0 0.0
      %1299 = vmatprep.subr.mxu0 0.0
      %1300 = vmatpush1.msra.mxu0 0.0
      %1301 = vmatprep.subr.mxu0 0.0
      %1302 = vmatpush1.msra.mxu0 0.0
      %1303 = vmatprep.subr.mxu0 0.0
      %1304 = vmatpush1.msra.mxu0 0.0
      %1305 = vmatprep.subr.mxu0 0.0
      %1306 = vmatpush1.msra.mxu0 0.0
      %1307 = vmatprep.subr.mxu0 0.0
      %1308 = vmatpush1.msra.mxu0 0.0
      %1309 = vmatprep.subr.mxu0 0.0
      %1310 = vmatpush1.msra.mxu0 0.0
      %1311 = vmatprep.subr.mxu0 0.0
      %1312 = vmatpush1.msra.mxu0 0.0
      %1313 = vmatprep.subr.mxu0 0.0
      %1314 = vmatpush1.msra.mxu0 0.0
      %1315 = vmatprep.subr.mxu0 0.0
      %1316 = vmatpush1.msra.mxu0 0.0
      %1317 = vmatprep.subr.mxu0 0.0
      %1318 = vmatpush1.msra.mxu0 0.0
      %1319 = vmatprep.subr.mxu0 0.0
      %1320 = vmatpush1.msra.mxu0 0.0
      %1321 = vmatprep.subr.mxu0 0.0
      %1322 = vmatpush1.msra.mxu0 0.0
      %1323 = vmatprep.subr.mxu0 0.0
      %1324 = vmatpush1.msra.mxu0 0.0
      %1325 = vmatprep.subr.mxu0 0.0
      %1326 = vmatpush1.msra.mxu0 0.0
      %1327 = vmatprep.subr.mxu0 0.0
      %1328 = vmatpush1.msra.mxu0 0.0
      %1329 = vmatprep.subr.mxu0 0.0
      %1330 = vmatpush1.msra.mxu0 0.0
      %1331 = vmatprep.subr.mxu0 0.0
      %1332 = vmatpush1.msra.mxu0 0.0
      %1333 = vmatprep.mubr.f32.mxu0 0.0
      %1334 = vmatmul.mubr.f32.gmra.mrb[0].mxu0 %v1264
      %v1335 = vpop.f32.mrb[0].mxu0
      %v1336 = vadd.f32 0.0, %v1335
      %v1337 = vpop.f32.mrb[0].mxu0
      %v1338 = vadd.f32 0.0, %v1337
      %1339 = vmatprep.mubr.f32.mxu0 0.0
      %1340 = vmatmul.mubr.f32.gmra.mrb[0].mxu0 %v1267
      %v1341 = vpop.f32.mrb[0].mxu0
      %v1342 = vadd.f32 0.0, %v1341
      %v1343 = vpop.f32.mrb[0].mxu0
      %v1344 = vadd.f32 0.0, %v1343
      %1345 = vdwg.mxu0
      %v1346 = vadd.f32 %v1256, %v1336
      %v1347 = vadd.f32 %v1257, %v1338
      %v1348 = vadd.f32 %v1258, %v1342
      %v1349 = vadd.f32 %v1259, %v1344
      %1350 = vrot.lane.b32.xlu0 %v761, 127
      %v1351 = vpop.permute.xlu0 %1350
      %1352 = vrot.lane.b32.xlu0 %v762, 127
      %v1353 = vpop.permute.xlu0 %1352
      %1354 = vrot.lane.b32.xlu0 %v763, 127
      %v1355 = vpop.permute.xlu0 %1354
      %1356 = vrot.lane.b32.xlu0 %v764, 127
      %v1357 = vpop.permute.xlu0 %1356
      %v1358 = vsel %vm403, %v1351, %v1353
      %v1359 = vsel %vm403, %v1355, %v1357
      %v1366 = vsel %vm403, %v1353, %v1351
      %v1367 = vsel %vm403, %v1357, %v1355
      %1368 = vrot.lane.b32.xlu0 %v762, 15
      %v1369 = vpop.permute.xlu0 %1368
      %1370 = vrot.lane.b32.xlu0 %v764, 15
      %v1371 = vpop.permute.xlu0 %1370
      %1374 = vrot.lane.b32.xlu0 %v761, 15
      %v1375 = vpop.permute.xlu0 %1374
      %1376 = vrot.lane.b32.xlu0 %v763, 15
      %v1377 = vpop.permute.xlu0 %1376
      %v1378 = vsel %vm414, %v1375, %v1369
      %v1379 = vsel %vm414, %v1377, %v1371
      %v1384 = vsel %vm414, %v1369, %v1375
      %v1385 = vsel %vm414, %v1371, %v1377
      %v1386 = vsel %vm419, %v1384, %v1358
      %v1387 = vsel %vm420, %v1378, %v1366
      %v1388 = vsel %vm419, %v1385, %v1359
      %v1389 = vsel %vm420, %v1379, %v1367
      %s1390 = scalar_lea.vmem %s3, 80
      %v1391 = vld [vmem:[%s1390] sm:$0xff]
      %v1392 = vld [vmem:[%s1390 + $0x8] sm:$0xff]
      %v1394 = vsel %vm369, %v1391, 0
      %v1397 = vsel %vm369, %v1392, 0
      %1399 = vmatprep.subr.mxu0 %v1387
      %1400 = vmatpush1.msra.mxu0 %v1386
      %1401 = vmatprep.subr.mxu0 %v1389
      %1402 = vmatpush1.msra.mxu0 %v1388
      %1403 = vmatprep.subr.mxu0 0.0
      %1404 = vmatpush1.msra.mxu0 0.0
      %1405 = vmatprep.subr.mxu0 0.0
      %1406 = vmatpush1.msra.mxu0 0.0
      %1407 = vmatprep.subr.mxu0 0.0
      %1408 = vmatpush1.msra.mxu0 0.0
      %1409 = vmatprep.subr.mxu0 0.0
      %1410 = vmatpush1.msra.mxu0 0.0
      %1411 = vmatprep.subr.mxu0 0.0
      %1412 = vmatpush1.msra.mxu0 0.0
      %1413 = vmatprep.subr.mxu0 0.0
      %1414 = vmatpush1.msra.mxu0 0.0
      %1415 = vmatprep.subr.mxu0 0.0
      %1416 = vmatpush1.msra.mxu0 0.0
      %1417 = vmatprep.subr.mxu0 0.0
      %1418 = vmatpush1.msra.mxu0 0.0
      %1419 = vmatprep.subr.mxu0 0.0
      %1420 = vmatpush1.msra.mxu0 0.0
      %1421 = vmatprep.subr.mxu0 0.0
      %1422 = vmatpush1.msra.mxu0 0.0
      %1423 = vmatprep.subr.mxu0 0.0
      %1424 = vmatpush1.msra.mxu0 0.0
      %1425 = vmatprep.subr.mxu0 0.0
      %1426 = vmatpush1.msra.mxu0 0.0
      %1427 = vmatprep.subr.mxu0 0.0
      %1428 = vmatpush1.msra.mxu0 0.0
      %1429 = vmatprep.subr.mxu0 0.0
      %1430 = vmatpush1.msra.mxu0 0.0
      %1431 = vmatprep.subr.mxu0 0.0
      %1432 = vmatpush1.msra.mxu0 0.0
      %1433 = vmatprep.subr.mxu0 0.0
      %1434 = vmatpush1.msra.mxu0 0.0
      %1435 = vmatprep.subr.mxu0 0.0
      %1436 = vmatpush1.msra.mxu0 0.0
      %1437 = vmatprep.subr.mxu0 0.0
      %1438 = vmatpush1.msra.mxu0 0.0
      %1439 = vmatprep.subr.mxu0 0.0
      %1440 = vmatpush1.msra.mxu0 0.0
      %1441 = vmatprep.subr.mxu0 0.0
      %1442 = vmatpush1.msra.mxu0 0.0
      %1443 = vmatprep.subr.mxu0 0.0
      %1444 = vmatpush1.msra.mxu0 0.0
      %1445 = vmatprep.subr.mxu0 0.0
      %1446 = vmatpush1.msra.mxu0 0.0
      %1447 = vmatprep.subr.mxu0 0.0
      %1448 = vmatpush1.msra.mxu0 0.0
      %1449 = vmatprep.subr.mxu0 0.0
      %1450 = vmatpush1.msra.mxu0 0.0
      %1451 = vmatprep.subr.mxu0 0.0
      %1452 = vmatpush1.msra.mxu0 0.0
      %1453 = vmatprep.subr.mxu0 0.0
      %1454 = vmatpush1.msra.mxu0 0.0
      %1455 = vmatprep.subr.mxu0 0.0
      %1456 = vmatpush1.msra.mxu0 0.0
      %1457 = vmatprep.subr.mxu0 0.0
      %1458 = vmatpush1.msra.mxu0 0.0
      %1459 = vmatprep.subr.mxu0 0.0
      %1460 = vmatpush1.msra.mxu0 0.0
      %1461 = vmatprep.subr.mxu0 0.0
      %1462 = vmatpush1.msra.mxu0 0.0
      %1463 = vmatprep.mubr.f32.mxu0 0.0
      %1464 = vmatmul.mubr.f32.gmra.mrb[0].mxu0 %v1394
      %v1465 = vpop.f32.mrb[0].mxu0
      %v1466 = vadd.f32 0.0, %v1465
      %v1467 = vpop.f32.mrb[0].mxu0
      %v1468 = vadd.f32 0.0, %v1467
      %1469 = vmatprep.mubr.f32.mxu0 0.0
      %1470 = vmatmul.mubr.f32.gmra.mrb[0].mxu0 %v1397
      %v1471 = vpop.f32.mrb[0].mxu0
      %v1472 = vadd.f32 0.0, %v1471
      %v1473 = vpop.f32.mrb[0].mxu0
      %v1474 = vadd.f32 0.0, %v1473
      %1475 = vdwg.mxu0
      %v1476 = vadd.f32 %v1346, %v1466
      %v1477 = vadd.f32 %v1347, %v1468
      %v1478 = vadd.f32 %v1348, %v1472
      %v1479 = vadd.f32 %v1349, %v1474
      %1480 = vrot.lane.b32.xlu0 %v761, 112
      %v1481 = vpop.permute.xlu0 %1480
      %1482 = vrot.lane.b32.xlu0 %v762, 112
      %v1483 = vpop.permute.xlu0 %1482
      %1484 = vrot.lane.b32.xlu0 %v763, 112
      %v1485 = vpop.permute.xlu0 %1484
      %1486 = vrot.lane.b32.xlu0 %v764, 112
      %v1487 = vpop.permute.xlu0 %1486
      %v1488 = vsel %vm467, %v1481, %v1483
      %v1489 = vsel %vm467, %v1485, %v1487
      %v1496 = vsel %vm467, %v1483, %v1481
      %v1497 = vsel %vm467, %v1487, %v1485
      %1500 = vrot.lane.b32.xlu0 %v1496, 1
      %v1501 = vpop.permute.xlu0 %1500
      %1502 = vrot.lane.b32.xlu0 %v1497, 1
      %v1503 = vpop.permute.xlu0 %1502
      %1506 = vrot.lane.b32.xlu0 %v1488, 1
      %v1507 = vpop.permute.xlu0 %1506
      %1508 = vrot.lane.b32.xlu0 %v1489, 1
      %v1509 = vpop.permute.xlu0 %1508
      %v1510 = vsel %vm380, %v1507, %v1501
      %v1511 = vsel %vm380, %v1509, %v1503
      %v1516 = vsel %vm380, %v1501, %v1507
      %v1517 = vsel %vm380, %v1503, %v1509
      %1518 = vrot.lane.b32.xlu0 %v1488, 113
      %v1519 = vpop.permute.xlu0 %1518
      %1520 = vrot.lane.b32.xlu0 %v1496, 113
      %v1521 = vpop.permute.xlu0 %1520
      %1522 = vrot.lane.b32.xlu0 %v1489, 113
      %v1523 = vpop.permute.xlu0 %1522
      %1524 = vrot.lane.b32.xlu0 %v1497, 113
      %v1525 = vpop.permute.xlu0 %1524
      %v1526 = vsel %vm389, %v1519, %v1521
      %v1527 = vsel %vm389, %v1523, %v1525
      %v1534 = vsel %vm389, %v1521, %v1519
      %v1535 = vsel %vm389, %v1525, %v1523
      %v1536 = vsel %vm395, %v1526, %v1516
      %v1537 = vsel %vm396, %v1534, %v1510
      %v1538 = vsel %vm395, %v1527, %v1517
      %v1539 = vsel %vm396, %v1535, %v1511
      %s1540 = scalar_lea.vmem %s3, 96
      %v1541 = vld [vmem:[%s1540] sm:$0xff]
      %v1542 = vld [vmem:[%s1540 + $0x8] sm:$0xff]
      %v1544 = vsel %vm369, %v1541, 0
      %v1547 = vsel %vm369, %v1542, 0
      %1549 = vmatprep.subr.mxu0 %v1537
      %1550 = vmatpush1.msra.mxu0 %v1536
      %1551 = vmatprep.subr.mxu0 %v1539
      %1552 = vmatpush1.msra.mxu0 %v1538
      %1553 = vmatprep.subr.mxu0 0.0
      %1554 = vmatpush1.msra.mxu0 0.0
      %1555 = vmatprep.subr.mxu0 0.0
      %1556 = vmatpush1.msra.mxu0 0.0
      %1557 = vmatprep.subr.mxu0 0.0
      %1558 = vmatpush1.msra.mxu0 0.0
      %1559 = vmatprep.subr.mxu0 0.0
      %1560 = vmatpush1.msra.mxu0 0.0
      %1561 = vmatprep.subr.mxu0 0.0
      %1562 = vmatpush1.msra.mxu0 0.0
      %1563 = vmatprep.subr.mxu0 0.0
      %1564 = vmatpush1.msra.mxu0 0.0
      %1565 = vmatprep.subr.mxu0 0.0
      %1566 = vmatpush1.msra.mxu0 0.0
      %1567 = vmatprep.subr.mxu0 0.0
      %1568 = vmatpush1.msra.mxu0 0.0
      %1569 = vmatprep.subr.mxu0 0.0
      %1570 = vmatpush1.msra.mxu0 0.0
      %1571 = vmatprep.subr.mxu0 0.0
      %1572 = vmatpush1.msra.mxu0 0.0
      %1573 = vmatprep.subr.mxu0 0.0
      %1574 = vmatpush1.msra.mxu0 0.0
      %1575 = vmatprep.subr.mxu0 0.0
      %1576 = vmatpush1.msra.mxu0 0.0
      %1577 = vmatprep.subr.mxu0 0.0
      %1578 = vmatpush1.msra.mxu0 0.0
      %1579 = vmatprep.subr.mxu0 0.0
      %1580 = vmatpush1.msra.mxu0 0.0
      %1581 = vmatprep.subr.mxu0 0.0
      %1582 = vmatpush1.msra.mxu0 0.0
      %1583 = vmatprep.subr.mxu0 0.0
      %1584 = vmatpush1.msra.mxu0 0.0
      %1585 = vmatprep.subr.mxu0 0.0
      %1586 = vmatpush1.msra.mxu0 0.0
      %1587 = vmatprep.subr.mxu0 0.0
      %1588 = vmatpush1.msra.mxu0 0.0
      %1589 = vmatprep.subr.mxu0 0.0
      %1590 = vmatpush1.msra.mxu0 0.0
      %1591 = vmatprep.subr.mxu0 0.0
      %1592 = vmatpush1.msra.mxu0 0.0
      %1593 = vmatprep.subr.mxu0 0.0
      %1594 = vmatpush1.msra.mxu0 0.0
      %1595 = vmatprep.subr.mxu0 0.0
      %1596 = vmatpush1.msra.mxu0 0.0
      %1597 = vmatprep.subr.mxu0 0.0
      %1598 = vmatpush1.msra.mxu0 0.0
      %1599 = vmatprep.subr.mxu0 0.0
      %1600 = vmatpush1.msra.mxu0 0.0
      %1601 = vmatprep.subr.mxu0 0.0
      %1602 = vmatpush1.msra.mxu0 0.0
      %1603 = vmatprep.subr.mxu0 0.0
      %1604 = vmatpush1.msra.mxu0 0.0
      %1605 = vmatprep.subr.mxu0 0.0
      %1606 = vmatpush1.msra.mxu0 0.0
      %1607 = vmatprep.subr.mxu0 0.0
      %1608 = vmatpush1.msra.mxu0 0.0
      %1609 = vmatprep.subr.mxu0 0.0
      %1610 = vmatpush1.msra.mxu0 0.0
      %1611 = vmatprep.subr.mxu0 0.0
      %1612 = vmatpush1.msra.mxu0 0.0
      %1613 = vmatprep.mubr.f32.mxu0 0.0
      %1614 = vmatmul.mubr.f32.gmra.mrb[0].mxu0 %v1544
      %v1615 = vpop.f32.mrb[0].mxu0
      %v1616 = vadd.f32 0.0, %v1615
      %v1617 = vpop.f32.mrb[0].mxu0
      %v1618 = vadd.f32 0.0, %v1617
      %1619 = vmatprep.mubr.f32.mxu0 0.0
      %1620 = vmatmul.mubr.f32.gmra.mrb[0].mxu0 %v1547
      %v1621 = vpop.f32.mrb[0].mxu0
      %v1622 = vadd.f32 0.0, %v1621
      %v1623 = vpop.f32.mrb[0].mxu0
      %v1624 = vadd.f32 0.0, %v1623
      %1625 = vdwg.mxu0
      %v1626 = vadd.f32 %v1476, %v1616
      %v1627 = vadd.f32 %v1477, %v1618
      %v1628 = vadd.f32 %v1478, %v1622
      %v1629 = vadd.f32 %v1479, %v1624
      %s1630 = scalar_lea.vmem %s3, 112
      %v1631 = vld [vmem:[%s1630] sm:$0xff]
      %v1632 = vld [vmem:[%s1630 + $0x8] sm:$0xff]
      %v1634 = vsel %vm369, %v1631, 0
      %v1637 = vsel %vm369, %v1632, 0
      %1639 = vmatprep.subr.mxu0 %v1496
      %1640 = vmatpush1.msra.mxu0 %v1488
      %1641 = vmatprep.subr.mxu0 %v1497
      %1642 = vmatpush1.msra.mxu0 %v1489
      %1643 = vmatprep.subr.mxu0 0.0
      %1644 = vmatpush1.msra.mxu0 0.0
      %1645 = vmatprep.subr.mxu0 0.0
      %1646 = vmatpush1.msra.mxu0 0.0
      %1647 = vmatprep.subr.mxu0 0.0
      %1648 = vmatpush1.msra.mxu0 0.0
      %1649 = vmatprep.subr.mxu0 0.0
      %1650 = vmatpush1.msra.mxu0 0.0
      %1651 = vmatprep.subr.mxu0 0.0
      %1652 = vmatpush1.msra.mxu0 0.0
      %1653 = vmatprep.subr.mxu0 0.0
      %1654 = vmatpush1.msra.mxu0 0.0
      %1655 = vmatprep.subr.mxu0 0.0
      %1656 = vmatpush1.msra.mxu0 0.0
      %1657 = vmatprep.subr.mxu0 0.0
      %1658 = vmatpush1.msra.mxu0 0.0
      %1659 = vmatprep.subr.mxu0 0.0
      %1660 = vmatpush1.msra.mxu0 0.0
      %1661 = vmatprep.subr.mxu0 0.0
      %1662 = vmatpush1.msra.mxu0 0.0
      %1663 = vmatprep.subr.mxu0 0.0
      %1664 = vmatpush1.msra.mxu0 0.0
      %1665 = vmatprep.subr.mxu0 0.0
      %1666 = vmatpush1.msra.mxu0 0.0
      %1667 = vmatprep.subr.mxu0 0.0
      %1668 = vmatpush1.msra.mxu0 0.0
      %1669 = vmatprep.subr.mxu0 0.0
      %1670 = vmatpush1.msra.mxu0 0.0
      %1671 = vmatprep.subr.mxu0 0.0
      %1672 = vmatpush1.msra.mxu0 0.0
      %1673 = vmatprep.subr.mxu0 0.0
      %1674 = vmatpush1.msra.mxu0 0.0
      %1675 = vmatprep.subr.mxu0 0.0
      %1676 = vmatpush1.msra.mxu0 0.0
      %1677 = vmatprep.subr.mxu0 0.0
      %1678 = vmatpush1.msra.mxu0 0.0
      %1679 = vmatprep.subr.mxu0 0.0
      %1680 = vmatpush1.msra.mxu0 0.0
      %1681 = vmatprep.subr.mxu0 0.0
      %1682 = vmatpush1.msra.mxu0 0.0
      %1683 = vmatprep.subr.mxu0 0.0
      %1684 = vmatpush1.msra.mxu0 0.0
      %1685 = vmatprep.subr.mxu0 0.0
      %1686 = vmatpush1.msra.mxu0 0.0
      %1687 = vmatprep.subr.mxu0 0.0
      %1688 = vmatpush1.msra.mxu0 0.0
      %1689 = vmatprep.subr.mxu0 0.0
      %1690 = vmatpush1.msra.mxu0 0.0
      %1691 = vmatprep.subr.mxu0 0.0
      %1692 = vmatpush1.msra.mxu0 0.0
      %1693 = vmatprep.subr.mxu0 0.0
      %1694 = vmatpush1.msra.mxu0 0.0
      %1695 = vmatprep.subr.mxu0 0.0
      %1696 = vmatpush1.msra.mxu0 0.0
      %1697 = vmatprep.subr.mxu0 0.0
      %1698 = vmatpush1.msra.mxu0 0.0
      %1699 = vmatprep.subr.mxu0 0.0
      %1700 = vmatpush1.msra.mxu0 0.0
      %1701 = vmatprep.subr.mxu0 0.0
      %1702 = vmatpush1.msra.mxu0 0.0
      %1703 = vmatprep.mubr.f32.mxu0 0.0
      %1704 = vmatmul.mubr.f32.gmra.mrb[0].mxu0 %v1634
      %v1705 = vpop.f32.mrb[0].mxu0
      %v1706 = vadd.f32 0.0, %v1705
      %v1707 = vpop.f32.mrb[0].mxu0
      %v1708 = vadd.f32 0.0, %v1707
      %1709 = vmatprep.mubr.f32.mxu0 0.0
      %1710 = vmatmul.mubr.f32.gmra.mrb[0].mxu0 %v1637
      %v1711 = vpop.f32.mrb[0].mxu0
      %v1712 = vadd.f32 0.0, %v1711
      %v1713 = vpop.f32.mrb[0].mxu0
      %v1714 = vadd.f32 0.0, %v1713
      %1715 = vdwg.mxu0
      %v1716 = vadd.f32 %v1626, %v1706
      %v1717 = vadd.f32 %v1627, %v1708
      %v1718 = vadd.f32 %v1628, %v1712
      %v1719 = vadd.f32 %v1629, %v1714
      %1720 = vrot.lane.b32.xlu0 %v1488, 127
      %v1721 = vpop.permute.xlu0 %1720
      %1722 = vrot.lane.b32.xlu0 %v1496, 127
      %v1723 = vpop.permute.xlu0 %1722
      %1724 = vrot.lane.b32.xlu0 %v1489, 127
      %v1725 = vpop.permute.xlu0 %1724
      %1726 = vrot.lane.b32.xlu0 %v1497, 127
      %v1727 = vpop.permute.xlu0 %1726
      %v1728 = vsel %vm403, %v1721, %v1723
      %v1729 = vsel %vm403, %v1725, %v1727
      %v1736 = vsel %vm403, %v1723, %v1721
      %v1737 = vsel %vm403, %v1727, %v1725
      %1738 = vrot.lane.b32.xlu0 %v1496, 15
      %v1739 = vpop.permute.xlu0 %1738
      %1740 = vrot.lane.b32.xlu0 %v1497, 15
      %v1741 = vpop.permute.xlu0 %1740
      %1744 = vrot.lane.b32.xlu0 %v1488, 15
      %v1745 = vpop.permute.xlu0 %1744
      %1746 = vrot.lane.b32.xlu0 %v1489, 15
      %v1747 = vpop.permute.xlu0 %1746
      %v1748 = vsel %vm414, %v1745, %v1739
      %v1749 = vsel %vm414, %v1747, %v1741
      %v1754 = vsel %vm414, %v1739, %v1745
      %v1755 = vsel %vm414, %v1741, %v1747
      %v1756 = vsel %vm419, %v1754, %v1728
      %v1757 = vsel %vm420, %v1748, %v1736
      %v1758 = vsel %vm419, %v1755, %v1729
      %v1759 = vsel %vm420, %v1749, %v1737
      %s1760 = scalar_lea.vmem %s3, 128
      %v1761 = vld [vmem:[%s1760] sm:$0xff]
      %v1762 = vld [vmem:[%s1760 + $0x8] sm:$0xff]
      %v1764 = vsel %vm369, %v1761, 0
      %v1767 = vsel %vm369, %v1762, 0
      %1769 = vmatprep.subr.mxu0 %v1757
      %1770 = vmatpush1.msra.mxu0 %v1756
      %1771 = vmatprep.subr.mxu0 %v1759
      %1772 = vmatpush1.msra.mxu0 %v1758
      %1773 = vmatprep.subr.mxu0 0.0
      %1774 = vmatpush1.msra.mxu0 0.0
      %1775 = vmatprep.subr.mxu0 0.0
      %1776 = vmatpush1.msra.mxu0 0.0
      %1777 = vmatprep.subr.mxu0 0.0
      %1778 = vmatpush1.msra.mxu0 0.0
      %1779 = vmatprep.subr.mxu0 0.0
      %1780 = vmatpush1.msra.mxu0 0.0
      %1781 = vmatprep.subr.mxu0 0.0
      %1782 = vmatpush1.msra.mxu0 0.0
      %1783 = vmatprep.subr.mxu0 0.0
      %1784 = vmatpush1.msra.mxu0 0.0
      %1785 = vmatprep.subr.mxu0 0.0
      %1786 = vmatpush1.msra.mxu0 0.0
      %1787 = vmatprep.subr.mxu0 0.0
      %1788 = vmatpush1.msra.mxu0 0.0
      %1789 = vmatprep.subr.mxu0 0.0
      %1790 = vmatpush1.msra.mxu0 0.0
      %1791 = vmatprep.subr.mxu0 0.0
      %1792 = vmatpush1.msra.mxu0 0.0
      %1793 = vmatprep.subr.mxu0 0.0
      %1794 = vmatpush1.msra.mxu0 0.0
      %1795 = vmatprep.subr.mxu0 0.0
      %1796 = vmatpush1.msra.mxu0 0.0
      %1797 = vmatprep.subr.mxu0 0.0
      %1798 = vmatpush1.msra.mxu0 0.0
      %1799 = vmatprep.subr.mxu0 0.0
      %1800 = vmatpush1.msra.mxu0 0.0
      %1801 = vmatprep.subr.mxu0 0.0
      %1802 = vmatpush1.msra.mxu0 0.0
      %1803 = vmatprep.subr.mxu0 0.0
      %1804 = vmatpush1.msra.mxu0 0.0
      %1805 = vmatprep.subr.mxu0 0.0
      %1806 = vmatpush1.msra.mxu0 0.0
      %1807 = vmatprep.subr.mxu0 0.0
      %1808 = vmatpush1.msra.mxu0 0.0
      %1809 = vmatprep.subr.mxu0 0.0
      %1810 = vmatpush1.msra.mxu0 0.0
      %1811 = vmatprep.subr.mxu0 0.0
      %1812 = vmatpush1.msra.mxu0 0.0
      %1813 = vmatprep.subr.mxu0 0.0
      %1814 = vmatpush1.msra.mxu0 0.0
      %1815 = vmatprep.subr.mxu0 0.0
      %1816 = vmatpush1.msra.mxu0 0.0
      %1817 = vmatprep.subr.mxu0 0.0
      %1818 = vmatpush1.msra.mxu0 0.0
      %1819 = vmatprep.subr.mxu0 0.0
      %1820 = vmatpush1.msra.mxu0 0.0
      %1821 = vmatprep.subr.mxu0 0.0
      %1822 = vmatpush1.msra.mxu0 0.0
      %1823 = vmatprep.subr.mxu0 0.0
      %1824 = vmatpush1.msra.mxu0 0.0
      %1825 = vmatprep.subr.mxu0 0.0
      %1826 = vmatpush1.msra.mxu0 0.0
      %1827 = vmatprep.subr.mxu0 0.0
      %1828 = vmatpush1.msra.mxu0 0.0
      %1829 = vmatprep.subr.mxu0 0.0
      %1830 = vmatpush1.msra.mxu0 0.0
      %1831 = vmatprep.subr.mxu0 0.0
      %1832 = vmatpush1.msra.mxu0 0.0
      %1833 = vmatprep.mubr.f32.mxu0 0.0
      %1834 = vmatmul.mubr.f32.gmra.mrb[0].mxu0 %v1764
      %v1835 = vpop.f32.mrb[0].mxu0
      %v1836 = vadd.f32 0.0, %v1835
      %v1837 = vpop.f32.mrb[0].mxu0
      %v1838 = vadd.f32 0.0, %v1837
      %1839 = vmatprep.mubr.f32.mxu0 0.0
      %1840 = vmatmul.mubr.f32.gmra.mrb[0].mxu0 %v1767
      %v1841 = vpop.f32.mrb[0].mxu0
      %v1842 = vadd.f32 0.0, %v1841
      %v1843 = vpop.f32.mrb[0].mxu0
      %v1844 = vadd.f32 0.0, %v1843
      %1845 = vdwg.mxu0
      %v1846 = vadd.f32 %v1716, %v1836
      %v1847 = vadd.f32 %v1717, %v1838
      %v1848 = vadd.f32 %v1718, %v1842
      %v1849 = vadd.f32 %v1719, %v1844
      %v1850 = vld [vmem:[%s4] sm:$0xff]
      %v1851 = vld [vmem:[%s4 + $0x8] sm:$0xff]
      %1853 = vset.pattern.permute.xlu0 0
      %1854 = vperm.xlu0 %1853, %v1850
      %v1855 = vpop.permute.xlu0 %1854
      %1858 = vset.pattern.permute.xlu0 0
      %1859 = vperm.xlu0 %1858, %v1851
      %v1860 = vpop.permute.xlu0 %1859
      %v1862 = vadd.f32 %v1846, %v1855
      %v1863 = vadd.f32 %v1847, %v1855
      %v1864 = vadd.f32 %v1848, %v1860
      %v1865 = vadd.f32 %v1849, %v1860
      %v1866 = vmax.f32 %v1862, 0.0
      %v1867 = vmax.f32 %v1863, 0.0
      %v1868 = vmax.f32 %v1864, 0.0
      %v1869 = vmax.f32 %v1865, 0.0
      %v1870 = vld [vmem:[%s5] sm:$0xff]
      %v1871 = vld [vmem:[%s5 + $0x8] sm:$0xff]
      %v1872 = vld [vmem:[%s5 + $0x10] sm:$0xff]
      %v1873 = vld [vmem:[%s5 + $0x18] sm:$0xff]
      %v1874 = vld [vmem:[%s5 + $0x20] sm:$0xff]
      %v1875 = vld [vmem:[%s5 + $0x28] sm:$0xff]
      %v1876 = vld [vmem:[%s5 + $0x30] sm:$0xff]
      %v1877 = vld [vmem:[%s5 + $0x38] sm:$0xff]
      %v1878 = vld [vmem:[%s5 + $0x40] sm:$0xff]
      %v1879 = vld [vmem:[%s5 + $0x48] sm:$0xff]
      %v1880 = vld [vmem:[%s5 + $0x50] sm:$0xff]
      %v1881 = vld [vmem:[%s5 + $0x58] sm:$0xff]
      %v1882 = vld [vmem:[%s5 + $0x60] sm:$0xff]
      %v1883 = vld [vmem:[%s5 + $0x68] sm:$0xff]
      %v1884 = vld [vmem:[%s5 + $0x70] sm:$0xff]
      %v1885 = vld [vmem:[%s5 + $0x78] sm:$0xff]
      %v1886 = vld [vmem:[%s5 + $0x80] sm:$0xff]
      %v1887 = vld [vmem:[%s5 + $0x88] sm:$0xff]
      %v1888 = vld [vmem:[%s5 + $0x90] sm:$0xff]
      %v1889 = vld [vmem:[%s5 + $0x98] sm:$0xff]
      %v1890 = vld [vmem:[%s5 + $0xa0] sm:$0xff]
      %v1891 = vld [vmem:[%s5 + $0xa8] sm:$0xff]
      %v1892 = vld [vmem:[%s5 + $0xb0] sm:$0xff]
      %v1893 = vld [vmem:[%s5 + $0xb8] sm:$0xff]
      %v1894 = vld [vmem:[%s5 + $0xc0] sm:$0xff]
      %v1895 = vld [vmem:[%s5 + $0xc8] sm:$0xff]
      %v1896 = vld [vmem:[%s5 + $0xd0] sm:$0xff]
      %v1897 = vld [vmem:[%s5 + $0xd8] sm:$0xff]
      %v1898 = vld [vmem:[%s5 + $0xe0] sm:$0xff]
      %v1899 = vld [vmem:[%s5 + $0xe8] sm:$0xff]
      %v1900 = vld [vmem:[%s5 + $0xf0] sm:$0xff]
      %v1901 = vld [vmem:[%s5 + $0xf8] sm:$0xff]
      %v1902 = vld [vmem:[%s6] sm:$0x1]
      %v1904 = vlaneseq
      %v1905 = vshrl.u32 %v1904, 7
      %v1906 = vsub.s32 0, %v1905
      %v1907 = vrot.slane %v1902, %v1906
      %1909 = vmatprep.subr.mxu0 0.0
      %1910 = vmatpush1.msra.mxu0 %v1870
      %1911 = vmatprep.subr.mxu0 0.0
      %1912 = vmatpush1.msra.mxu0 %v1871
      %1913 = vmatprep.subr.mxu0 0.0
      %1914 = vmatpush1.msra.mxu0 %v1872
      %1915 = vmatprep.subr.mxu0 0.0
      %1916 = vmatpush1.msra.mxu0 %v1873
      %1917 = vmatprep.subr.mxu0 0.0
      %1918 = vmatpush1.msra.mxu0 %v1874
      %1919 = vmatprep.subr.mxu0 0.0
      %1920 = vmatpush1.msra.mxu0 %v1875
      %1921 = vmatprep.subr.mxu0 0.0
      %1922 = vmatpush1.msra.mxu0 %v1876
      %1923 = vmatprep.subr.mxu0 0.0
      %1924 = vmatpush1.msra.mxu0 %v1877
      %1925 = vmatprep.subr.mxu0 0.0
      %1926 = vmatpush1.msra.mxu0 %v1878
      %1927 = vmatprep.subr.mxu0 0.0
      %1928 = vmatpush1.msra.mxu0 %v1879
      %1929 = vmatprep.subr.mxu0 0.0
      %1930 = vmatpush1.msra.mxu0 %v1880
      %1931 = vmatprep.subr.mxu0 0.0
      %1932 = vmatpush1.msra.mxu0 %v1881
      %1933 = vmatprep.subr.mxu0 0.0
      %1934 = vmatpush1.msra.mxu0 %v1882
      %1935 = vmatprep.subr.mxu0 0.0
      %1936 = vmatpush1.msra.mxu0 %v1883
      %1937 = vmatprep.subr.mxu0 0.0
      %1938 = vmatpush1.msra.mxu0 %v1884
      %1939 = vmatprep.subr.mxu0 0.0
      %1940 = vmatpush1.msra.mxu0 %v1885
      %1941 = vmatprep.subr.mxu0 0.0
      %1942 = vmatpush1.msra.mxu0 %v1886
      %1943 = vmatprep.subr.mxu0 0.0
      %1944 = vmatpush1.msra.mxu0 %v1887
      %1945 = vmatprep.subr.mxu0 0.0
      %1946 = vmatpush1.msra.mxu0 %v1888
      %1947 = vmatprep.subr.mxu0 0.0
      %1948 = vmatpush1.msra.mxu0 %v1889
      %1949 = vmatprep.subr.mxu0 0.0
      %1950 = vmatpush1.msra.mxu0 %v1890
      %1951 = vmatprep.subr.mxu0 0.0
      %1952 = vmatpush1.msra.mxu0 %v1891
      %1953 = vmatprep.subr.mxu0 0.0
      %1954 = vmatpush1.msra.mxu0 %v1892
      %1955 = vmatprep.subr.mxu0 0.0
      %1956 = vmatpush1.msra.mxu0 %v1893
      %1957 = vmatprep.subr.mxu0 0.0
      %1958 = vmatpush1.msra.mxu0 %v1894
      %1959 = vmatprep.subr.mxu0 0.0
      %1960 = vmatpush1.msra.mxu0 %v1895
      %1961 = vmatprep.subr.mxu0 0.0
      %1962 = vmatpush1.msra.mxu0 %v1896
      %1963 = vmatprep.subr.mxu0 0.0
      %1964 = vmatpush1.msra.mxu0 %v1897
      %1965 = vmatprep.subr.mxu0 0.0
      %1966 = vmatpush1.msra.mxu0 %v1898
      %1967 = vmatprep.subr.mxu0 0.0
      %1968 = vmatpush1.msra.mxu0 %v1899
      %1969 = vmatprep.subr.mxu0 0.0
      %1970 = vmatpush1.msra.mxu0 %v1900
      %1971 = vmatprep.subr.mxu0 0.0
      %1972 = vmatpush1.msra.mxu0 %v1901
      %1973 = vmatprep.mubr.f32.mxu0 %v1867
      %1974 = vmatmul.mubr.f32.gmra.mrb[0].mxu0 %v1866
      %v1975 = vpop.f32.mrb[0].mxu0
      %v1976 = vadd.f32 %v1907, %v1975
      %v1977 = vpop.f32.mrb[0].mxu0
      %1978 = vmatprep.mubr.f32.mxu0 %v1869
      %1979 = vmatmul.mubr.f32.gmra.mrb[0].mxu0 %v1868
      %v1980 = vpop.f32.mrb[0].mxu0
      %v1981 = vadd.f32 %v1907, %v1980
      %v1982 = vpop.f32.mrb[0].mxu0
      %1983 = vdwg.mxu0
      %v1984 = vmax.f32 %v1976, 0.0
      %v1985 = vmax.f32 %v1981, 0.0
      %v1986 = vld [vmem:[%s7] sm:$0xff]
      %v1987 = vld [vmem:[%s7 + $0x8] sm:$0xff]
      %v1988 = vld [vmem:[%s7 + $0x10] sm:$0xff]
      %v1989 = vld [vmem:[%s7 + $0x18] sm:$0xff]
      %v1990 = vld [vmem:[%s7 + $0x20] sm:$0xff]
      %v1991 = vld [vmem:[%s7 + $0x28] sm:$0xff]
      %v1992 = vld [vmem:[%s7 + $0x30] sm:$0xff]
      %v1993 = vld [vmem:[%s7 + $0x38] sm:$0xff]
      %v1994 = vld [vmem:[%s7 + $0x40] sm:$0xff]
      %v1995 = vld [vmem:[%s7 + $0x48] sm:$0xff]
      %v1996 = vld [vmem:[%s7 + $0x50] sm:$0xff]
      %v1997 = vld [vmem:[%s7 + $0x58] sm:$0xff]
      %v1998 = vld [vmem:[%s7 + $0x60] sm:$0xff]
      %v1999 = vld [vmem:[%s7 + $0x68] sm:$0xff]
      %v2000 = vld [vmem:[%s7 + $0x70] sm:$0xff]
      %v2001 = vld [vmem:[%s7 + $0x78] sm:$0xff]
      %2002 = vmatprep.subr.mxu0 0.0
      %2003 = vmatpush1.msra.mxu0 %v1986
      %2004 = vmatprep.subr.mxu0 0.0
      %2005 = vmatpush1.msra.mxu0 %v1987
      %2006 = vmatprep.subr.mxu0 0.0
      %2007 = vmatpush1.msra.mxu0 %v1988
      %2008 = vmatprep.subr.mxu0 0.0
      %2009 = vmatpush1.msra.mxu0 %v1989
      %2010 = vmatprep.subr.mxu0 0.0
      %2011 = vmatpush1.msra.mxu0 %v1990
      %2012 = vmatprep.subr.mxu0 0.0
      %2013 = vmatpush1.msra.mxu0 %v1991
      %2014 = vmatprep.subr.mxu0 0.0
      %2015 = vmatpush1.msra.mxu0 %v1992
      %2016 = vmatprep.subr.mxu0 0.0
      %2017 = vmatpush1.msra.mxu0 %v1993
      %2018 = vmatprep.subr.mxu0 0.0
      %2019 = vmatpush1.msra.mxu0 %v1994
      %2020 = vmatprep.subr.mxu0 0.0
      %2021 = vmatpush1.msra.mxu0 %v1995
      %2022 = vmatprep.subr.mxu0 0.0
      %2023 = vmatpush1.msra.mxu0 %v1996
      %2024 = vmatprep.subr.mxu0 0.0
      %2025 = vmatpush1.msra.mxu0 %v1997
      %2026 = vmatprep.subr.mxu0 0.0
      %2027 = vmatpush1.msra.mxu0 %v1998
      %2028 = vmatprep.subr.mxu0 0.0
      %2029 = vmatpush1.msra.mxu0 %v1999
      %2030 = vmatprep.subr.mxu0 0.0
      %2031 = vmatpush1.msra.mxu0 %v2000
      %2032 = vmatprep.subr.mxu0 0.0
      %2033 = vmatpush1.msra.mxu0 %v2001
      %2034 = vmatprep.subr.mxu0 0.0
      %2035 = vmatpush1.msra.mxu0 0.0
      %2036 = vmatprep.subr.mxu0 0.0
      %2037 = vmatpush1.msra.mxu0 0.0
      %2038 = vmatprep.subr.mxu0 0.0
      %2039 = vmatpush1.msra.mxu0 0.0
      %2040 = vmatprep.subr.mxu0 0.0
      %2041 = vmatpush1.msra.mxu0 0.0
      %2042 = vmatprep.subr.mxu0 0.0
      %2043 = vmatpush1.msra.mxu0 0.0
      %2044 = vmatprep.subr.mxu0 0.0
      %2045 = vmatpush1.msra.mxu0 0.0
      %2046 = vmatprep.subr.mxu0 0.0
      %2047 = vmatpush1.msra.mxu0 0.0
      %2048 = vmatprep.subr.mxu0 0.0
      %2049 = vmatpush1.msra.mxu0 0.0
      %2050 = vmatprep.subr.mxu0 0.0
      %2051 = vmatpush1.msra.mxu0 0.0
      %2052 = vmatprep.subr.mxu0 0.0
      %2053 = vmatpush1.msra.mxu0 0.0
      %2054 = vmatprep.subr.mxu0 0.0
      %2055 = vmatpush1.msra.mxu0 0.0
      %2056 = vmatprep.subr.mxu0 0.0
      %2057 = vmatpush1.msra.mxu0 0.0
      %2058 = vmatprep.subr.mxu0 0.0
      %2059 = vmatpush1.msra.mxu0 0.0
      %2060 = vmatprep.subr.mxu0 0.0
      %2061 = vmatpush1.msra.mxu0 0.0
      %2062 = vmatprep.subr.mxu0 0.0
      %2063 = vmatpush1.msra.mxu0 0.0
      %2064 = vmatprep.subr.mxu0 0.0
      %2065 = vmatpush1.msra.mxu0 0.0
      %2066 = vmatprep.mubr.f32.mxu0 0.0
      %2067 = vmatmul.mubr.f32.gmra.mrb[0].mxu0 %v1984
      %v2068 = vpop.f32.mrb[0].mxu0
      %v2069 = vadd.f32 0.0, %v2068
      %v2070 = vpop.f32.mrb[0].mxu0
      %2071 = vmatprep.mubr.f32.mxu0 0.0
      %2072 = vmatmul.mubr.f32.gmra.mrb[0].mxu0 %v1985
      %v2073 = vpop.f32.mrb[0].mxu0
      %v2074 = vadd.f32 0.0, %v2073
      %v2075 = vpop.f32.mrb[0].mxu0
      %2076 = vdwg.mxu0
      %v2077 = vstv %s514
      %v2078 = vadd.f32 %v2069, %v2077
      %v2079 = vadd.f32 %v2074, %v2077
      %vm2080 = vcmask 31744
      %2081 = vst.msk [vmem:[%s333] sm:$0xff] %vm2080, %v2078
      %2082 = vst.msk [vmem:[%s333 + $0x8] sm:$0xff] %vm2080, %v2079
      %v2083 = vld [vmem:[%s1] sm:$0xff]
      %v2084 = vld [vmem:[%s1 + $0x8] sm:$0xff]
      %2086 = vset.pattern.permute.xlu0 0
      %2087 = vperm.xlu0 %2086, %v2083
      %v2088 = vpop.permute.xlu0 %2087
      %2091 = vset.pattern.permute.xlu0 0
      %2092 = vperm.xlu0 %2091, %v2084
      %v2093 = vpop.permute.xlu0 %2092
      %v2095 = vlaneseq
      %v2096 = vshrl.u32 %v2095, 7
      %v2097 = vsub.s32 1, %v2096
      %v2098 = vrot.slane %v397, %v2097
      %v2099 = vlaneseq
      %v2100 = vshrl.u32 %v2099, 7
      %v2101 = vsub.s32 1, %v2100
      %v2102 = vrot.slane %v398, %v2101
      %v2103 = vmul.f32 %v2088, %v2098
      %v2104 = vmul.f32 %v2088, %v2102
      %v2105 = vmul.f32 %v2093, %v2098
      %v2106 = vmul.f32 %v2093, %v2102
      %v2107 = vadd.f32 %v2103, 0.0
      %v2108 = vadd.f32 %v2104, 0.0
      %v2109 = vadd.f32 %v2105, 0.0
      %v2110 = vadd.f32 %v2106, 0.0
      %2111 = vset.pattern.permute.xlu0 1
      %2112 = vperm.xlu0 %2111, %v2083
      %v2113 = vpop.permute.xlu0 %2112
      %2115 = vset.pattern.permute.xlu0 1
      %2116 = vperm.xlu0 %2115, %v2084
      %v2117 = vpop.permute.xlu0 %2116
      %v2119 = vlaneseq
      %v2120 = vshrl.u32 %v2119, 7
      %v2121 = vsub.s32 1, %v2120
      %v2122 = vrot.slane %v373, %v2121
      %v2123 = vlaneseq
      %v2124 = vshrl.u32 %v2123, 7
      %v2125 = vsub.s32 1, %v2124
      %v2126 = vrot.slane %v370, %v2125
      %v2127 = vmul.f32 %v2113, %v2122
      %v2128 = vmul.f32 %v2113, %v2126
      %v2129 = vmul.f32 %v2117, %v2122
      %v2130 = vmul.f32 %v2117, %v2126
      %v2131 = vadd.f32 %v2107, %v2127
      %v2132 = vadd.f32 %v2108, %v2128
      %v2133 = vadd.f32 %v2109, %v2129
      %v2134 = vadd.f32 %v2110, %v2130
      %2135 = vset.pattern.permute.xlu0 2
      %2136 = vperm.xlu0 %2135, %v2083
      %v2137 = vpop.permute.xlu0 %2136
      %2139 = vset.pattern.permute.xlu0 2
      %2140 = vperm.xlu0 %2139, %v2084
      %v2141 = vpop.permute.xlu0 %2140
      %v2143 = vlaneseq
      %v2144 = vshrl.u32 %v2143, 7
      %v2145 = vsub.s32 1, %v2144
      %v2146 = vrot.slane %v421, %v2145
      %v2147 = vlaneseq
      %v2148 = vshrl.u32 %v2147, 7
      %v2149 = vsub.s32 1, %v2148
      %v2150 = vrot.slane %v422, %v2149
      %v2151 = vmul.f32 %v2137, %v2146
      %v2152 = vmul.f32 %v2137, %v2150
      %v2153 = vmul.f32 %v2141, %v2146
      %v2154 = vmul.f32 %v2141, %v2150
      %v2155 = vadd.f32 %v2131, %v2151
      %v2156 = vadd.f32 %v2132, %v2152
      %v2157 = vadd.f32 %v2133, %v2153
      %v2158 = vadd.f32 %v2134, %v2154
      %2159 = vset.pattern.permute.xlu0 3
      %2160 = vperm.xlu0 %2159, %v2083
      %v2161 = vpop.permute.xlu0 %2160
      %2163 = vset.pattern.permute.xlu0 3
      %2164 = vperm.xlu0 %2163, %v2084
      %v2165 = vpop.permute.xlu0 %2164
      %v2167 = vlaneseq
      %v2168 = vshrl.u32 %v2167, 7
      %v2169 = vsub.s32 1, %v2168
      %v2170 = vrot.slane %v441, %v2169
      %v2171 = vlaneseq
      %v2172 = vshrl.u32 %v2171, 7
      %v2173 = vsub.s32 1, %v2172
      %v2174 = vrot.slane %v442, %v2173
      %v2175 = vmul.f32 %v2161, %v2170
      %v2176 = vmul.f32 %v2161, %v2174
      %v2177 = vmul.f32 %v2165, %v2170
      %v2178 = vmul.f32 %v2165, %v2174
      %v2179 = vadd.f32 %v2155, %v2175
      %v2180 = vadd.f32 %v2156, %v2176
      %v2181 = vadd.f32 %v2157, %v2177
      %v2182 = vadd.f32 %v2158, %v2178
      %2183 = vset.pattern.permute.xlu0 4
      %2184 = vperm.xlu0 %2183, %v2083
      %v2185 = vpop.permute.xlu0 %2184
      %2187 = vset.pattern.permute.xlu0 4
      %2188 = vperm.xlu0 %2187, %v2084
      %v2189 = vpop.permute.xlu0 %2188
      %v2191 = vlaneseq
      %v2192 = vshrl.u32 %v2191, 7
      %v2193 = vsub.s32 1, %v2192
      %v2194 = vrot.slane %v361, %v2193
      %v2195 = vlaneseq
      %v2196 = vshrl.u32 %v2195, 7
      %v2197 = vsub.s32 5, %v2196
      %v2198 = vrot.slane %v361, %v2197
      %v2201 = vlaneseq
      %v2202 = vshrl.u32 %v2201, 7
      %v2203 = vsub.s32 1, %v2202
      %v2204 = vrot.slane %v2194, %v2203
      %v2205 = vlaneseq
      %v2206 = vshrl.u32 %v2205, 7
      %v2207 = vsub.s32 1, %v2206
      %v2208 = vrot.slane %v2198, %v2207
      %v2209 = vmul.f32 %v2185, %v2204
      %v2210 = vmul.f32 %v2185, %v2208
      %v2211 = vmul.f32 %v2189, %v2204
      %v2212 = vmul.f32 %v2189, %v2208
      %v2213 = vadd.f32 %v2179, %v2209
      %v2214 = vadd.f32 %v2180, %v2210
      %v2215 = vadd.f32 %v2181, %v2211
      %v2216 = vadd.f32 %v2182, %v2212
      %2217 = vset.pattern.permute.xlu0 5
      %2218 = vperm.xlu0 %2217, %v2083
      %v2219 = vpop.permute.xlu0 %2218
      %2221 = vset.pattern.permute.xlu0 5
      %2222 = vperm.xlu0 %2221, %v2084
      %v2223 = vpop.permute.xlu0 %2222
      %v2225 = vlaneseq
      %v2226 = vshrl.u32 %v2225, 7
      %v2227 = vsub.s32 1, %v2226
      %v2228 = vrot.slane %v461, %v2227
      %v2229 = vlaneseq
      %v2230 = vshrl.u32 %v2229, 7
      %v2231 = vsub.s32 1, %v2230
      %v2232 = vrot.slane %v462, %v2231
      %v2233 = vmul.f32 %v2219, %v2228
      %v2234 = vmul.f32 %v2219, %v2232
      %v2235 = vmul.f32 %v2223, %v2228
      %v2236 = vmul.f32 %v2223, %v2232
      %v2237 = vadd.f32 %v2213, %v2233
      %v2238 = vadd.f32 %v2214, %v2234
      %v2239 = vadd.f32 %v2215, %v2235
      %v2240 = vadd.f32 %v2216, %v2236
      %2241 = vset.pattern.permute.xlu0 6
      %2242 = vperm.xlu0 %2241, %v2083
      %v2243 = vpop.permute.xlu0 %2242
      %2245 = vset.pattern.permute.xlu0 6
      %2246 = vperm.xlu0 %2245, %v2084
      %v2247 = vpop.permute.xlu0 %2246
      %v2249 = vlaneseq
      %v2250 = vshrl.u32 %v2249, 7
      %v2251 = vsub.s32 1, %v2250
      %v2252 = vrot.slane %v492, %v2251
      %v2253 = vlaneseq
      %v2254 = vshrl.u32 %v2253, 7
      %v2255 = vsub.s32 1, %v2254
      %v2256 = vrot.slane %v493, %v2255
      %v2257 = vmul.f32 %v2243, %v2252
      %v2258 = vmul.f32 %v2243, %v2256
      %v2259 = vmul.f32 %v2247, %v2252
      %v2260 = vmul.f32 %v2247, %v2256
      %v2261 = vadd.f32 %v2237, %v2257
      %v2262 = vadd.f32 %v2238, %v2258
      %v2263 = vadd.f32 %v2239, %v2259
      %v2264 = vadd.f32 %v2240, %v2260
      %2265 = vset.pattern.permute.xlu0 7
      %2266 = vperm.xlu0 %2265, %v2083
      %v2267 = vpop.permute.xlu0 %2266
      %2269 = vset.pattern.permute.xlu0 7
      %2270 = vperm.xlu0 %2269, %v2084
      %v2271 = vpop.permute.xlu0 %2270
      %v2273 = vlaneseq
      %v2274 = vshrl.u32 %v2273, 7
      %v2275 = vsub.s32 1, %v2274
      %v2276 = vrot.slane %v468, %v2275
      %v2277 = vlaneseq
      %v2278 = vshrl.u32 %v2277, 7
      %v2279 = vsub.s32 1, %v2278
      %v2280 = vrot.slane %v472, %v2279
      %v2281 = vmul.f32 %v2267, %v2276
      %v2282 = vmul.f32 %v2267, %v2280
      %v2283 = vmul.f32 %v2271, %v2276
      %v2284 = vmul.f32 %v2271, %v2280
      %v2285 = vadd.f32 %v2261, %v2281
      %v2286 = vadd.f32 %v2262, %v2282
      %v2287 = vadd.f32 %v2263, %v2283
      %v2288 = vadd.f32 %v2264, %v2284
      %2289 = vset.pattern.permute.xlu0 8
      %2290 = vperm.xlu0 %2289, %v2083
      %v2291 = vpop.permute.xlu0 %2290
      %2293 = vset.pattern.permute.xlu0 8
      %2294 = vperm.xlu0 %2293, %v2084
      %v2295 = vpop.permute.xlu0 %2294
      %v2297 = vlaneseq
      %v2298 = vshrl.u32 %v2297, 7
      %v2299 = vsub.s32 1, %v2298
      %v2300 = vrot.slane %v512, %v2299
      %v2301 = vlaneseq
      %v2302 = vshrl.u32 %v2301, 7
      %v2303 = vsub.s32 1, %v2302
      %v2304 = vrot.slane %v513, %v2303
      %v2305 = vmul.f32 %v2291, %v2300
      %v2306 = vmul.f32 %v2291, %v2304
      %v2307 = vmul.f32 %v2295, %v2300
      %v2308 = vmul.f32 %v2295, %v2304
      %v2309 = vadd.f32 %v2285, %v2305
      %v2310 = vadd.f32 %v2286, %v2306
      %v2311 = vadd.f32 %v2287, %v2307
      %v2312 = vadd.f32 %v2288, %v2308
      %v2313 = vld [vmem:[%s2] sm:$0xff]
      %v2314 = vld [vmem:[%s2 + $0x8] sm:$0xff]
      %2316 = vset.pattern.permute.xlu0 0
      %2317 = vperm.xlu0 %2316, %v2313
      %v2318 = vpop.permute.xlu0 %2317
      %2321 = vset.pattern.permute.xlu0 0
      %2322 = vperm.xlu0 %2321, %v2314
      %v2323 = vpop.permute.xlu0 %2322
      %v2325 = vadd.f32 %v2309, %v2318
      %v2326 = vadd.f32 %v2310, %v2318
      %v2327 = vadd.f32 %v2311, %v2323
      %v2328 = vadd.f32 %v2312, %v2323
      %v2329 = vmax.f32 %v2325, 0.0
      %v2330 = vmax.f32 %v2326, 0.0
      %v2331 = vmax.f32 %v2327, 0.0
      %v2332 = vmax.f32 %v2328, 0.0
      %2335 = vrot.lane.b32.xlu0 %v2330, 16
      %v2336 = vpop.permute.xlu0 %2335
      %2337 = vrot.lane.b32.xlu0 %v2332, 16
      %v2338 = vpop.permute.xlu0 %2337
      %2343 = vrot.lane.b32.xlu0 %v2329, 16
      %v2344 = vpop.permute.xlu0 %2343
      %2345 = vrot.lane.b32.xlu0 %v2331, 16
      %v2346 = vpop.permute.xlu0 %2345
      %v2347 = vsel %vm369, %v2344, %v2336
      %v2348 = vsel %vm369, %v2346, %v2338
      %v2353 = vsel %vm369, %v2336, %v2344
      %v2354 = vsel %vm369, %v2338, %v2346
      %2355 = vrot.lane.b32.xlu0 %v2347, 1
      %v2356 = vpop.permute.xlu0 %2355
      %2357 = vrot.lane.b32.xlu0 %v2348, 1
      %v2358 = vpop.permute.xlu0 %2357
      %2363 = vrot.lane.b32.xlu0 %v2353, 1
      %v2364 = vpop.permute.xlu0 %2363
      %2365 = vrot.lane.b32.xlu0 %v2354, 1
      %v2366 = vpop.permute.xlu0 %2365
      %v2367 = vsel %vm380, %v2364, %v2356
      %v2368 = vsel %vm380, %v2366, %v2358
      %v2373 = vsel %vm380, %v2356, %v2364
      %v2374 = vsel %vm380, %v2358, %v2366
      %2375 = vrot.lane.b32.xlu0 %v2353, 113
      %v2376 = vpop.permute.xlu0 %2375
      %2377 = vrot.lane.b32.xlu0 %v2347, 113
      %v2378 = vpop.permute.xlu0 %2377
      %2379 = vrot.lane.b32.xlu0 %v2354, 113
      %v2380 = vpop.permute.xlu0 %2379
      %2381 = vrot.lane.b32.xlu0 %v2348, 113
      %v2382 = vpop.permute.xlu0 %2381
      %v2383 = vsel %vm389, %v2376, %v2378
      %v2384 = vsel %vm389, %v2380, %v2382
      %v2391 = vsel %vm389, %v2378, %v2376
      %v2392 = vsel %vm389, %v2382, %v2380
      %v2393 = vsel %vm395, %v2383, %v2373
      %v2394 = vsel %vm396, %v2391, %v2367
      %v2395 = vsel %vm395, %v2384, %v2374
      %v2396 = vsel %vm396, %v2392, %v2368
      %v2397 = vld [vmem:[%s3] sm:$0xff]
      %v2398 = vld [vmem:[%s3 + $0x8] sm:$0xff]
      %v2399 = vld [vmem:[%s831] sm:$0xff]
      %v2400 = vld [vmem:[%s831 + $0x8] sm:$0xff]
      %v2402 = vsel %vm369, %v2399, 0
      %v2405 = vsel %vm369, %v2400, 0
      %2407 = vmatprep.subr.mxu0 %v2347
      %2408 = vmatpush1.msra.mxu0 %v2353
      %2409 = vmatprep.subr.mxu0 %v2348
      %2410 = vmatpush1.msra.mxu0 %v2354
      %2411 = vmatprep.subr.mxu0 0.0
      %2412 = vmatpush1.msra.mxu0 0.0
      %2413 = vmatprep.subr.mxu0 0.0
      %2414 = vmatpush1.msra.mxu0 0.0
      %2415 = vmatprep.subr.mxu0 0.0
      %2416 = vmatpush1.msra.mxu0 0.0
      %2417 = vmatprep.subr.mxu0 0.0
      %2418 = vmatpush1.msra.mxu0 0.0
      %2419 = vmatprep.subr.mxu0 0.0
      %2420 = vmatpush1.msra.mxu0 0.0
      %2421 = vmatprep.subr.mxu0 0.0
      %2422 = vmatpush1.msra.mxu0 0.0
      %2423 = vmatprep.subr.mxu0 0.0
      %2424 = vmatpush1.msra.mxu0 0.0
      %2425 = vmatprep.subr.mxu0 0.0
      %2426 = vmatpush1.msra.mxu0 0.0
      %2427 = vmatprep.subr.mxu0 0.0
      %2428 = vmatpush1.msra.mxu0 0.0
      %2429 = vmatprep.subr.mxu0 0.0
      %2430 = vmatpush1.msra.mxu0 0.0
      %2431 = vmatprep.subr.mxu0 0.0
      %2432 = vmatpush1.msra.mxu0 0.0
      %2433 = vmatprep.subr.mxu0 0.0
      %2434 = vmatpush1.msra.mxu0 0.0
      %2435 = vmatprep.subr.mxu0 0.0
      %2436 = vmatpush1.msra.mxu0 0.0
      %2437 = vmatprep.subr.mxu0 0.0
      %2438 = vmatpush1.msra.mxu0 0.0
      %2439 = vmatprep.subr.mxu0 0.0
      %2440 = vmatpush1.msra.mxu0 0.0
      %2441 = vmatprep.subr.mxu0 0.0
      %2442 = vmatpush1.msra.mxu0 0.0
      %2443 = vmatprep.subr.mxu0 0.0
      %2444 = vmatpush1.msra.mxu0 0.0
      %2445 = vmatprep.subr.mxu0 0.0
      %2446 = vmatpush1.msra.mxu0 0.0
      %2447 = vmatprep.subr.mxu0 0.0
      %2448 = vmatpush1.msra.mxu0 0.0
      %2449 = vmatprep.subr.mxu0 0.0
      %2450 = vmatpush1.msra.mxu0 0.0
      %2451 = vmatprep.subr.mxu0 0.0
      %2452 = vmatpush1.msra.mxu0 0.0
      %2453 = vmatprep.subr.mxu0 0.0
      %2454 = vmatpush1.msra.mxu0 0.0
      %2455 = vmatprep.subr.mxu0 0.0
      %2456 = vmatpush1.msra.mxu0 0.0
      %2457 = vmatprep.subr.mxu0 0.0
      %2458 = vmatpush1.msra.mxu0 0.0
      %2459 = vmatprep.subr.mxu0 0.0
      %2460 = vmatpush1.msra.mxu0 0.0
      %2461 = vmatprep.subr.mxu0 0.0
      %2462 = vmatpush1.msra.mxu0 0.0
      %2463 = vmatprep.subr.mxu0 0.0
      %2464 = vmatpush1.msra.mxu0 0.0
      %2465 = vmatprep.subr.mxu0 0.0
      %2466 = vmatpush1.msra.mxu0 0.0
      %2467 = vmatprep.subr.mxu0 0.0
      %2468 = vmatpush1.msra.mxu0 0.0
      %2469 = vmatprep.subr.mxu0 0.0
      %2470 = vmatpush1.msra.mxu0 0.0
      %2471 = vmatprep.mubr.f32.mxu0 0.0
      %2472 = vmatmul.mubr.f32.gmra.mrb[0].mxu0 %v2402
      %v2473 = vpop.f32.mrb[0].mxu0
      %v2474 = vadd.f32 0.0, %v2473
      %v2475 = vpop.f32.mrb[0].mxu0
      %v2476 = vadd.f32 0.0, %v2475
      %2477 = vmatprep.mubr.f32.mxu0 0.0
      %2478 = vmatmul.mubr.f32.gmra.mrb[0].mxu0 %v2405
      %v2479 = vpop.f32.mrb[0].mxu0
      %v2480 = vadd.f32 0.0, %v2479
      %v2481 = vpop.f32.mrb[0].mxu0
      %v2482 = vadd.f32 0.0, %v2481
      %2483 = vdwg.mxu0
      %v2485 = vsel %vm369, %v2397, 0
      %v2488 = vsel %vm369, %v2398, 0
      %2490 = vmatprep.subr.mxu0 %v2394
      %2491 = vmatpush1.msra.mxu0 %v2393
      %2492 = vmatprep.subr.mxu0 %v2396
      %2493 = vmatpush1.msra.mxu0 %v2395
      %2494 = vmatprep.subr.mxu0 0.0
      %2495 = vmatpush1.msra.mxu0 0.0
      %2496 = vmatprep.subr.mxu0 0.0
      %2497 = vmatpush1.msra.mxu0 0.0
      %2498 = vmatprep.subr.mxu0 0.0
      %2499 = vmatpush1.msra.mxu0 0.0
      %2500 = vmatprep.subr.mxu0 0.0
      %2501 = vmatpush1.msra.mxu0 0.0
      %2502 = vmatprep.subr.mxu0 0.0
      %2503 = vmatpush1.msra.mxu0 0.0
      %2504 = vmatprep.subr.mxu0 0.0
      %2505 = vmatpush1.msra.mxu0 0.0
      %2506 = vmatprep.subr.mxu0 0.0
      %2507 = vmatpush1.msra.mxu0 0.0
      %2508 = vmatprep.subr.mxu0 0.0
      %2509 = vmatpush1.msra.mxu0 0.0
      %2510 = vmatprep.subr.mxu0 0.0
      %2511 = vmatpush1.msra.mxu0 0.0
      %2512 = vmatprep.subr.mxu0 0.0
      %2513 = vmatpush1.msra.mxu0 0.0
      %2514 = vmatprep.subr.mxu0 0.0
      %2515 = vmatpush1.msra.mxu0 0.0
      %2516 = vmatprep.subr.mxu0 0.0
      %2517 = vmatpush1.msra.mxu0 0.0
      %2518 = vmatprep.subr.mxu0 0.0
      %2519 = vmatpush1.msra.mxu0 0.0
      %2520 = vmatprep.subr.mxu0 0.0
      %2521 = vmatpush1.msra.mxu0 0.0
      %2522 = vmatprep.subr.mxu0 0.0
      %2523 = vmatpush1.msra.mxu0 0.0
      %2524 = vmatprep.subr.mxu0 0.0
      %2525 = vmatpush1.msra.mxu0 0.0
      %2526 = vmatprep.subr.mxu0 0.0
      %2527 = vmatpush1.msra.mxu0 0.0
      %2528 = vmatprep.subr.mxu0 0.0
      %2529 = vmatpush1.msra.mxu0 0.0
      %2530 = vmatprep.subr.mxu0 0.0
      %2531 = vmatpush1.msra.mxu0 0.0
      %2532 = vmatprep.subr.mxu0 0.0
      %2533 = vmatpush1.msra.mxu0 0.0
      %2534 = vmatprep.subr.mxu0 0.0
      %2535 = vmatpush1.msra.mxu0 0.0
      %2536 = vmatprep.subr.mxu0 0.0
      %2537 = vmatpush1.msra.mxu0 0.0
      %2538 = vmatprep.subr.mxu0 0.0
      %2539 = vmatpush1.msra.mxu0 0.0
      %2540 = vmatprep.subr.mxu0 0.0
      %2541 = vmatpush1.msra.mxu0 0.0
      %2542 = vmatprep.subr.mxu0 0.0
      %2543 = vmatpush1.msra.mxu0 0.0
      %2544 = vmatprep.subr.mxu0 0.0
      %2545 = vmatpush1.msra.mxu0 0.0
      %2546 = vmatprep.subr.mxu0 0.0
      %2547 = vmatpush1.msra.mxu0 0.0
      %2548 = vmatprep.subr.mxu0 0.0
      %2549 = vmatpush1.msra.mxu0 0.0
      %2550 = vmatprep.subr.mxu0 0.0
      %2551 = vmatpush1.msra.mxu0 0.0
      %2552 = vmatprep.subr.mxu0 0.0
      %2553 = vmatpush1.msra.mxu0 0.0
      %2554 = vmatprep.mubr.f32.mxu0 0.0
      %2555 = vmatmul.mubr.f32.gmra.mrb[0].mxu0 %v2485
      %v2556 = vpop.f32.mrb[0].mxu0
      %v2557 = vadd.f32 %v2474, %v2556
      %v2558 = vpop.f32.mrb[0].mxu0
      %v2559 = vadd.f32 %v2476, %v2558
      %2560 = vmatprep.mubr.f32.mxu0 0.0
      %2561 = vmatmul.mubr.f32.gmra.mrb[0].mxu0 %v2488
      %v2562 = vpop.f32.mrb[0].mxu0
      %v2563 = vadd.f32 %v2480, %v2562
      %v2564 = vpop.f32.mrb[0].mxu0
      %v2565 = vadd.f32 %v2482, %v2564
      %2566 = vdwg.mxu0
      %2567 = vrot.lane.b32.xlu0 %v2353, 127
      %v2568 = vpop.permute.xlu0 %2567
      %2569 = vrot.lane.b32.xlu0 %v2347, 127
      %v2570 = vpop.permute.xlu0 %2569
      %2571 = vrot.lane.b32.xlu0 %v2354, 127
      %v2572 = vpop.permute.xlu0 %2571
      %2573 = vrot.lane.b32.xlu0 %v2348, 127
      %v2574 = vpop.permute.xlu0 %2573
      %v2575 = vsel %vm403, %v2568, %v2570
      %v2576 = vsel %vm403, %v2572, %v2574
      %v2583 = vsel %vm403, %v2570, %v2568
      %v2584 = vsel %vm403, %v2574, %v2572
      %2585 = vrot.lane.b32.xlu0 %v2347, 15
      %v2586 = vpop.permute.xlu0 %2585
      %2587 = vrot.lane.b32.xlu0 %v2348, 15
      %v2588 = vpop.permute.xlu0 %2587
      %2591 = vrot.lane.b32.xlu0 %v2353, 15
      %v2592 = vpop.permute.xlu0 %2591
      %2593 = vrot.lane.b32.xlu0 %v2354, 15
      %v2594 = vpop.permute.xlu0 %2593
      %v2595 = vsel %vm414, %v2592, %v2586
      %v2596 = vsel %vm414, %v2594, %v2588
      %v2601 = vsel %vm414, %v2586, %v2592
      %v2602 = vsel %vm414, %v2588, %v2594
      %v2603 = vsel %vm419, %v2601, %v2575
      %v2604 = vsel %vm420, %v2595, %v2583
      %v2605 = vsel %vm419, %v2602, %v2576
      %v2606 = vsel %vm420, %v2596, %v2584
      %v2607 = vld [vmem:[%s1040] sm:$0xff]
      %v2608 = vld [vmem:[%s1040 + $0x8] sm:$0xff]
      %v2610 = vsel %vm369, %v2607, 0
      %v2613 = vsel %vm369, %v2608, 0
      %2615 = vmatprep.subr.mxu0 %v2604
      %2616 = vmatpush1.msra.mxu0 %v2603
      %2617 = vmatprep.subr.mxu0 %v2606
      %2618 = vmatpush1.msra.mxu0 %v2605
      %2619 = vmatprep.subr.mxu0 0.0
      %2620 = vmatpush1.msra.mxu0 0.0
      %2621 = vmatprep.subr.mxu0 0.0
      %2622 = vmatpush1.msra.mxu0 0.0
      %2623 = vmatprep.subr.mxu0 0.0
      %2624 = vmatpush1.msra.mxu0 0.0
      %2625 = vmatprep.subr.mxu0 0.0
      %2626 = vmatpush1.msra.mxu0 0.0
      %2627 = vmatprep.subr.mxu0 0.0
      %2628 = vmatpush1.msra.mxu0 0.0
      %2629 = vmatprep.subr.mxu0 0.0
      %2630 = vmatpush1.msra.mxu0 0.0
      %2631 = vmatprep.subr.mxu0 0.0
      %2632 = vmatpush1.msra.mxu0 0.0
      %2633 = vmatprep.subr.mxu0 0.0
      %2634 = vmatpush1.msra.mxu0 0.0
      %2635 = vmatprep.subr.mxu0 0.0
      %2636 = vmatpush1.msra.mxu0 0.0
      %2637 = vmatprep.subr.mxu0 0.0
      %2638 = vmatpush1.msra.mxu0 0.0
      %2639 = vmatprep.subr.mxu0 0.0
      %2640 = vmatpush1.msra.mxu0 0.0
      %2641 = vmatprep.subr.mxu0 0.0
      %2642 = vmatpush1.msra.mxu0 0.0
      %2643 = vmatprep.subr.mxu0 0.0
      %2644 = vmatpush1.msra.mxu0 0.0
      %2645 = vmatprep.subr.mxu0 0.0
      %2646 = vmatpush1.msra.mxu0 0.0
      %2647 = vmatprep.subr.mxu0 0.0
      %2648 = vmatpush1.msra.mxu0 0.0
      %2649 = vmatprep.subr.mxu0 0.0
      %2650 = vmatpush1.msra.mxu0 0.0
      %2651 = vmatprep.subr.mxu0 0.0
      %2652 = vmatpush1.msra.mxu0 0.0
      %2653 = vmatprep.subr.mxu0 0.0
      %2654 = vmatpush1.msra.mxu0 0.0
      %2655 = vmatprep.subr.mxu0 0.0
      %2656 = vmatpush1.msra.mxu0 0.0
      %2657 = vmatprep.subr.mxu0 0.0
      %2658 = vmatpush1.msra.mxu0 0.0
      %2659 = vmatprep.subr.mxu0 0.0
      %2660 = vmatpush1.msra.mxu0 0.0
      %2661 = vmatprep.subr.mxu0 0.0
      %2662 = vmatpush1.msra.mxu0 0.0
      %2663 = vmatprep.subr.mxu0 0.0
      %2664 = vmatpush1.msra.mxu0 0.0
      %2665 = vmatprep.subr.mxu0 0.0
      %2666 = vmatpush1.msra.mxu0 0.0
      %2667 = vmatprep.subr.mxu0 0.0
      %2668 = vmatpush1.msra.mxu0 0.0
      %2669 = vmatprep.subr.mxu0 0.0
      %2670 = vmatpush1.msra.mxu0 0.0
      %2671 = vmatprep.subr.mxu0 0.0
      %2672 = vmatpush1.msra.mxu0 0.0
      %2673 = vmatprep.subr.mxu0 0.0
      %2674 = vmatpush1.msra.mxu0 0.0
      %2675 = vmatprep.subr.mxu0 0.0
      %2676 = vmatpush1.msra.mxu0 0.0
      %2677 = vmatprep.subr.mxu0 0.0
      %2678 = vmatpush1.msra.mxu0 0.0
      %2679 = vmatprep.mubr.f32.mxu0 0.0
      %2680 = vmatmul.mubr.f32.gmra.mrb[0].mxu0 %v2610
      %v2681 = vpop.f32.mrb[0].mxu0
      %v2682 = vadd.f32 0.0, %v2681
      %v2683 = vpop.f32.mrb[0].mxu0
      %v2684 = vadd.f32 0.0, %v2683
      %2685 = vmatprep.mubr.f32.mxu0 0.0
      %2686 = vmatmul.mubr.f32.gmra.mrb[0].mxu0 %v2613
      %v2687 = vpop.f32.mrb[0].mxu0
      %v2688 = vadd.f32 0.0, %v2687
      %v2689 = vpop.f32.mrb[0].mxu0
      %v2690 = vadd.f32 0.0, %v2689
      %2691 = vdwg.mxu0
      %v2692 = vadd.f32 %v2557, %v2682
      %v2693 = vadd.f32 %v2559, %v2684
      %v2694 = vadd.f32 %v2563, %v2688
      %v2695 = vadd.f32 %v2565, %v2690
      %2696 = vrot.lane.b32.xlu0 %v2330, 1
      %v2697 = vpop.permute.xlu0 %2696
      %2698 = vrot.lane.b32.xlu0 %v2332, 1
      %v2699 = vpop.permute.xlu0 %2698
      %2702 = vrot.lane.b32.xlu0 %v2329, 1
      %v2703 = vpop.permute.xlu0 %2702
      %2704 = vrot.lane.b32.xlu0 %v2331, 1
      %v2705 = vpop.permute.xlu0 %2704
      %v2706 = vsel %vm380, %v2703, %v2697
      %v2707 = vsel %vm380, %v2705, %v2699
      %v2712 = vsel %vm380, %v2697, %v2703
      %v2713 = vsel %vm380, %v2699, %v2705
      %2714 = vrot.lane.b32.xlu0 %v2329, 113
      %v2715 = vpop.permute.xlu0 %2714
      %2716 = vrot.lane.b32.xlu0 %v2330, 113
      %v2717 = vpop.permute.xlu0 %2716
      %2718 = vrot.lane.b32.xlu0 %v2331, 113
      %v2719 = vpop.permute.xlu0 %2718
      %2720 = vrot.lane.b32.xlu0 %v2332, 113
      %v2721 = vpop.permute.xlu0 %2720
      %v2722 = vsel %vm389, %v2715, %v2717
      %v2723 = vsel %vm389, %v2719, %v2721
      %v2730 = vsel %vm389, %v2717, %v2715
      %v2731 = vsel %vm389, %v2721, %v2719
      %v2732 = vsel %vm395, %v2722, %v2712
      %v2733 = vsel %vm396, %v2730, %v2706
      %v2734 = vsel %vm395, %v2723, %v2713
      %v2735 = vsel %vm396, %v2731, %v2707
      %v2736 = vld [vmem:[%s1170] sm:$0xff]
      %v2737 = vld [vmem:[%s1170 + $0x8] sm:$0xff]
      %v2739 = vsel %vm369, %v2736, 0
      %v2742 = vsel %vm369, %v2737, 0
      %2744 = vmatprep.subr.mxu0 %v2733
      %2745 = vmatpush1.msra.mxu0 %v2732
      %2746 = vmatprep.subr.mxu0 %v2735
      %2747 = vmatpush1.msra.mxu0 %v2734
      %2748 = vmatprep.subr.mxu0 0.0
      %2749 = vmatpush1.msra.mxu0 0.0
      %2750 = vmatprep.subr.mxu0 0.0
      %2751 = vmatpush1.msra.mxu0 0.0
      %2752 = vmatprep.subr.mxu0 0.0
      %2753 = vmatpush1.msra.mxu0 0.0
      %2754 = vmatprep.subr.mxu0 0.0
      %2755 = vmatpush1.msra.mxu0 0.0
      %2756 = vmatprep.subr.mxu0 0.0
      %2757 = vmatpush1.msra.mxu0 0.0
      %2758 = vmatprep.subr.mxu0 0.0
      %2759 = vmatpush1.msra.mxu0 0.0
      %2760 = vmatprep.subr.mxu0 0.0
      %2761 = vmatpush1.msra.mxu0 0.0
      %2762 = vmatprep.subr.mxu0 0.0
      %2763 = vmatpush1.msra.mxu0 0.0
      %2764 = vmatprep.subr.mxu0 0.0
      %2765 = vmatpush1.msra.mxu0 0.0
      %2766 = vmatprep.subr.mxu0 0.0
      %2767 = vmatpush1.msra.mxu0 0.0
      %2768 = vmatprep.subr.mxu0 0.0
      %2769 = vmatpush1.msra.mxu0 0.0
      %2770 = vmatprep.subr.mxu0 0.0
      %2771 = vmatpush1.msra.mxu0 0.0
      %2772 = vmatprep.subr.mxu0 0.0
      %2773 = vmatpush1.msra.mxu0 0.0
      %2774 = vmatprep.subr.mxu0 0.0
      %2775 = vmatpush1.msra.mxu0 0.0
      %2776 = vmatprep.subr.mxu0 0.0
      %2777 = vmatpush1.msra.mxu0 0.0
      %2778 = vmatprep.subr.mxu0 0.0
      %2779 = vmatpush1.msra.mxu0 0.0
      %2780 = vmatprep.subr.mxu0 0.0
      %2781 = vmatpush1.msra.mxu0 0.0
      %2782 = vmatprep.subr.mxu0 0.0
      %2783 = vmatpush1.msra.mxu0 0.0
      %2784 = vmatprep.subr.mxu0 0.0
      %2785 = vmatpush1.msra.mxu0 0.0
      %2786 = vmatprep.subr.mxu0 0.0
      %2787 = vmatpush1.msra.mxu0 0.0
      %2788 = vmatprep.subr.mxu0 0.0
      %2789 = vmatpush1.msra.mxu0 0.0
      %2790 = vmatprep.subr.mxu0 0.0
      %2791 = vmatpush1.msra.mxu0 0.0
      %2792 = vmatprep.subr.mxu0 0.0
      %2793 = vmatpush1.msra.mxu0 0.0
      %2794 = vmatprep.subr.mxu0 0.0
      %2795 = vmatpush1.msra.mxu0 0.0
      %2796 = vmatprep.subr.mxu0 0.0
      %2797 = vmatpush1.msra.mxu0 0.0
      %2798 = vmatprep.subr.mxu0 0.0
      %2799 = vmatpush1.msra.mxu0 0.0
      %2800 = vmatprep.subr.mxu0 0.0
      %2801 = vmatpush1.msra.mxu0 0.0
      %2802 = vmatprep.subr.mxu0 0.0
      %2803 = vmatpush1.msra.mxu0 0.0
      %2804 = vmatprep.subr.mxu0 0.0
      %2805 = vmatpush1.msra.mxu0 0.0
      %2806 = vmatprep.subr.mxu0 0.0
      %2807 = vmatpush1.msra.mxu0 0.0
      %2808 = vmatprep.mubr.f32.mxu0 0.0
      %2809 = vmatmul.mubr.f32.gmra.mrb[0].mxu0 %v2739
      %v2810 = vpop.f32.mrb[0].mxu0
      %v2811 = vadd.f32 0.0, %v2810
      %v2812 = vpop.f32.mrb[0].mxu0
      %v2813 = vadd.f32 0.0, %v2812
      %2814 = vmatprep.mubr.f32.mxu0 0.0
      %2815 = vmatmul.mubr.f32.gmra.mrb[0].mxu0 %v2742
      %v2816 = vpop.f32.mrb[0].mxu0
      %v2817 = vadd.f32 0.0, %v2816
      %v2818 = vpop.f32.mrb[0].mxu0
      %v2819 = vadd.f32 0.0, %v2818
      %2820 = vdwg.mxu0
      %v2821 = vadd.f32 %v2692, %v2811
      %v2822 = vadd.f32 %v2693, %v2813
      %v2823 = vadd.f32 %v2694, %v2817
      %v2824 = vadd.f32 %v2695, %v2819
      %v2825 = vld [vmem:[%s1260] sm:$0xff]
      %v2826 = vld [vmem:[%s1260 + $0x8] sm:$0xff]
      %v2828 = vsel %vm369, %v2825, 0
      %v2831 = vsel %vm369, %v2826, 0
      %2833 = vmatprep.subr.mxu0 %v2330
      %2834 = vmatpush1.msra.mxu0 %v2329
      %2835 = vmatprep.subr.mxu0 %v2332
      %2836 = vmatpush1.msra.mxu0 %v2331
      %2837 = vmatprep.subr.mxu0 0.0
      %2838 = vmatpush1.msra.mxu0 0.0
      %2839 = vmatprep.subr.mxu0 0.0
      %2840 = vmatpush1.msra.mxu0 0.0
      %2841 = vmatprep.subr.mxu0 0.0
      %2842 = vmatpush1.msra.mxu0 0.0
      %2843 = vmatprep.subr.mxu0 0.0
      %2844 = vmatpush1.msra.mxu0 0.0
      %2845 = vmatprep.subr.mxu0 0.0
      %2846 = vmatpush1.msra.mxu0 0.0
      %2847 = vmatprep.subr.mxu0 0.0
      %2848 = vmatpush1.msra.mxu0 0.0
      %2849 = vmatprep.subr.mxu0 0.0
      %2850 = vmatpush1.msra.mxu0 0.0
      %2851 = vmatprep.subr.mxu0 0.0
      %2852 = vmatpush1.msra.mxu0 0.0
      %2853 = vmatprep.subr.mxu0 0.0
      %2854 = vmatpush1.msra.mxu0 0.0
      %2855 = vmatprep.subr.mxu0 0.0
      %2856 = vmatpush1.msra.mxu0 0.0
      %2857 = vmatprep.subr.mxu0 0.0
      %2858 = vmatpush1.msra.mxu0 0.0
      %2859 = vmatprep.subr.mxu0 0.0
      %2860 = vmatpush1.msra.mxu0 0.0
      %2861 = vmatprep.subr.mxu0 0.0
      %2862 = vmatpush1.msra.mxu0 0.0
      %2863 = vmatprep.subr.mxu0 0.0
      %2864 = vmatpush1.msra.mxu0 0.0
      %2865 = vmatprep.subr.mxu0 0.0
      %2866 = vmatpush1.msra.mxu0 0.0
      %2867 = vmatprep.subr.mxu0 0.0
      %2868 = vmatpush1.msra.mxu0 0.0
      %2869 = vmatprep.subr.mxu0 0.0
      %2870 = vmatpush1.msra.mxu0 0.0
      %2871 = vmatprep.subr.mxu0 0.0
      %2872 = vmatpush1.msra.mxu0 0.0
      %2873 = vmatprep.subr.mxu0 0.0
      %2874 = vmatpush1.msra.mxu0 0.0
      %2875 = vmatprep.subr.mxu0 0.0
      %2876 = vmatpush1.msra.mxu0 0.0
      %2877 = vmatprep.subr.mxu0 0.0
      %2878 = vmatpush1.msra.mxu0 0.0
      %2879 = vmatprep.subr.mxu0 0.0
      %2880 = vmatpush1.msra.mxu0 0.0
      %2881 = vmatprep.subr.mxu0 0.0
      %2882 = vmatpush1.msra.mxu0 0.0
      %2883 = vmatprep.subr.mxu0 0.0
      %2884 = vmatpush1.msra.mxu0 0.0
      %2885 = vmatprep.subr.mxu0 0.0
      %2886 = vmatpush1.msra.mxu0 0.0
      %2887 = vmatprep.subr.mxu0 0.0
      %2888 = vmatpush1.msra.mxu0 0.0
      %2889 = vmatprep.subr.mxu0 0.0
      %2890 = vmatpush1.msra.mxu0 0.0
      %2891 = vmatprep.subr.mxu0 0.0
      %2892 = vmatpush1.msra.mxu0 0.0
      %2893 = vmatprep.subr.mxu0 0.0
      %2894 = vmatpush1.msra.mxu0 0.0
      %2895 = vmatprep.subr.mxu0 0.0
      %2896 = vmatpush1.msra.mxu0 0.0
      %2897 = vmatprep.mubr.f32.mxu0 0.0
      %2898 = vmatmul.mubr.f32.gmra.mrb[0].mxu0 %v2828
      %v2899 = vpop.f32.mrb[0].mxu0
      %v2900 = vadd.f32 0.0, %v2899
      %v2901 = vpop.f32.mrb[0].mxu0
      %v2902 = vadd.f32 0.0, %v2901
      %2903 = vmatprep.mubr.f32.mxu0 0.0
      %2904 = vmatmul.mubr.f32.gmra.mrb[0].mxu0 %v2831
      %v2905 = vpop.f32.mrb[0].mxu0
      %v2906 = vadd.f32 0.0, %v2905
      %v2907 = vpop.f32.mrb[0].mxu0
      %v2908 = vadd.f32 0.0, %v2907
      %2909 = vdwg.mxu0
      %v2910 = vadd.f32 %v2821, %v2900
      %v2911 = vadd.f32 %v2822, %v2902
      %v2912 = vadd.f32 %v2823, %v2906
      %v2913 = vadd.f32 %v2824, %v2908
      %2914 = vrot.lane.b32.xlu0 %v2329, 127
      %v2915 = vpop.permute.xlu0 %2914
      %2916 = vrot.lane.b32.xlu0 %v2330, 127
      %v2917 = vpop.permute.xlu0 %2916
      %2918 = vrot.lane.b32.xlu0 %v2331, 127
      %v2919 = vpop.permute.xlu0 %2918
      %2920 = vrot.lane.b32.xlu0 %v2332, 127
      %v2921 = vpop.permute.xlu0 %2920
      %v2922 = vsel %vm403, %v2915, %v2917
      %v2923 = vsel %vm403, %v2919, %v2921
      %v2930 = vsel %vm403, %v2917, %v2915
      %v2931 = vsel %vm403, %v2921, %v2919
      %2932 = vrot.lane.b32.xlu0 %v2330, 15
      %v2933 = vpop.permute.xlu0 %2932
      %2934 = vrot.lane.b32.xlu0 %v2332, 15
      %v2935 = vpop.permute.xlu0 %2934
      %2938 = vrot.lane.b32.xlu0 %v2329, 15
      %v2939 = vpop.permute.xlu0 %2938
      %2940 = vrot.lane.b32.xlu0 %v2331, 15
      %v2941 = vpop.permute.xlu0 %2940
      %v2942 = vsel %vm414, %v2939, %v2933
      %v2943 = vsel %vm414, %v2941, %v2935
      %v2948 = vsel %vm414, %v2933, %v2939
      %v2949 = vsel %vm414, %v2935, %v2941
      %v2950 = vsel %vm419, %v2948, %v2922
      %v2951 = vsel %vm420, %v2942, %v2930
      %v2952 = vsel %vm419, %v2949, %v2923
      %v2953 = vsel %vm420, %v2943, %v2931
      %v2954 = vld [vmem:[%s1390] sm:$0xff]
      %v2955 = vld [vmem:[%s1390 + $0x8] sm:$0xff]
      %v2957 = vsel %vm369, %v2954, 0
      %v2960 = vsel %vm369, %v2955, 0
      %2962 = vmatprep.subr.mxu0 %v2951
      %2963 = vmatpush1.msra.mxu0 %v2950
      %2964 = vmatprep.subr.mxu0 %v2953
      %2965 = vmatpush1.msra.mxu0 %v2952
      %2966 = vmatprep.subr.mxu0 0.0
      %2967 = vmatpush1.msra.mxu0 0.0
      %2968 = vmatprep.subr.mxu0 0.0
      %2969 = vmatpush1.msra.mxu0 0.0
      %2970 = vmatprep.subr.mxu0 0.0
      %2971 = vmatpush1.msra.mxu0 0.0
      %2972 = vmatprep.subr.mxu0 0.0
      %2973 = vmatpush1.msra.mxu0 0.0
      %2974 = vmatprep.subr.mxu0 0.0
      %2975 = vmatpush1.msra.mxu0 0.0
      %2976 = vmatprep.subr.mxu0 0.0
      %2977 = vmatpush1.msra.mxu0 0.0
      %2978 = vmatprep.subr.mxu0 0.0
      %2979 = vmatpush1.msra.mxu0 0.0
      %2980 = vmatprep.subr.mxu0 0.0
      %2981 = vmatpush1.msra.mxu0 0.0
      %2982 = vmatprep.subr.mxu0 0.0
      %2983 = vmatpush1.msra.mxu0 0.0
      %2984 = vmatprep.subr.mxu0 0.0
      %2985 = vmatpush1.msra.mxu0 0.0
      %2986 = vmatprep.subr.mxu0 0.0
      %2987 = vmatpush1.msra.mxu0 0.0
      %2988 = vmatprep.subr.mxu0 0.0
      %2989 = vmatpush1.msra.mxu0 0.0
      %2990 = vmatprep.subr.mxu0 0.0
      %2991 = vmatpush1.msra.mxu0 0.0
      %2992 = vmatprep.subr.mxu0 0.0
      %2993 = vmatpush1.msra.mxu0 0.0
      %2994 = vmatprep.subr.mxu0 0.0
      %2995 = vmatpush1.msra.mxu0 0.0
      %2996 = vmatprep.subr.mxu0 0.0
      %2997 = vmatpush1.msra.mxu0 0.0
      %2998 = vmatprep.subr.mxu0 0.0
      %2999 = vmatpush1.msra.mxu0 0.0
      %3000 = vmatprep.subr.mxu0 0.0
      %3001 = vmatpush1.msra.mxu0 0.0
      %3002 = vmatprep.subr.mxu0 0.0
      %3003 = vmatpush1.msra.mxu0 0.0
      %3004 = vmatprep.subr.mxu0 0.0
      %3005 = vmatpush1.msra.mxu0 0.0
      %3006 = vmatprep.subr.mxu0 0.0
      %3007 = vmatpush1.msra.mxu0 0.0
      %3008 = vmatprep.subr.mxu0 0.0
      %3009 = vmatpush1.msra.mxu0 0.0
      %3010 = vmatprep.subr.mxu0 0.0
      %3011 = vmatpush1.msra.mxu0 0.0
      %3012 = vmatprep.subr.mxu0 0.0
      %3013 = vmatpush1.msra.mxu0 0.0
      %3014 = vmatprep.subr.mxu0 0.0
      %3015 = vmatpush1.msra.mxu0 0.0
      %3016 = vmatprep.subr.mxu0 0.0
      %3017 = vmatpush1.msra.mxu0 0.0
      %3018 = vmatprep.subr.mxu0 0.0
      %3019 = vmatpush1.msra.mxu0 0.0
      %3020 = vmatprep.subr.mxu0 0.0
      %3021 = vmatpush1.msra.mxu0 0.0
      %3022 = vmatprep.subr.mxu0 0.0
      %3023 = vmatpush1.msra.mxu0 0.0
      %3024 = vmatprep.subr.mxu0 0.0
      %3025 = vmatpush1.msra.mxu0 0.0
      %3026 = vmatprep.mubr.f32.mxu0 0.0
      %3027 = vmatmul.mubr.f32.gmra.mrb[0].mxu0 %v2957
      %v3028 = vpop.f32.mrb[0].mxu0
      %v3029 = vadd.f32 0.0, %v3028
      %v3030 = vpop.f32.mrb[0].mxu0
      %v3031 = vadd.f32 0.0, %v3030
      %3032 = vmatprep.mubr.f32.mxu0 0.0
      %3033 = vmatmul.mubr.f32.gmra.mrb[0].mxu0 %v2960
      %v3034 = vpop.f32.mrb[0].mxu0
      %v3035 = vadd.f32 0.0, %v3034
      %v3036 = vpop.f32.mrb[0].mxu0
      %v3037 = vadd.f32 0.0, %v3036
      %3038 = vdwg.mxu0
      %v3039 = vadd.f32 %v2910, %v3029
      %v3040 = vadd.f32 %v2911, %v3031
      %v3041 = vadd.f32 %v2912, %v3035
      %v3042 = vadd.f32 %v2913, %v3037
      %3043 = vrot.lane.b32.xlu0 %v2329, 112
      %v3044 = vpop.permute.xlu0 %3043
      %3045 = vrot.lane.b32.xlu0 %v2330, 112
      %v3046 = vpop.permute.xlu0 %3045
      %3047 = vrot.lane.b32.xlu0 %v2331, 112
      %v3048 = vpop.permute.xlu0 %3047
      %3049 = vrot.lane.b32.xlu0 %v2332, 112
      %v3050 = vpop.permute.xlu0 %3049
      %v3051 = vsel %vm467, %v3044, %v3046
      %v3052 = vsel %vm467, %v3048, %v3050
      %v3059 = vsel %vm467, %v3046, %v3044
      %v3060 = vsel %vm467, %v3050, %v3048
      %3063 = vrot.lane.b32.xlu0 %v3059, 1
      %v3064 = vpop.permute.xlu0 %3063
      %3065 = vrot.lane.b32.xlu0 %v3060, 1
      %v3066 = vpop.permute.xlu0 %3065
      %3069 = vrot.lane.b32.xlu0 %v3051, 1
      %v3070 = vpop.permute.xlu0 %3069
      %3071 = vrot.lane.b32.xlu0 %v3052, 1
      %v3072 = vpop.permute.xlu0 %3071
      %v3073 = vsel %vm380, %v3070, %v3064
      %v3074 = vsel %vm380, %v3072, %v3066
      %v3079 = vsel %vm380, %v3064, %v3070
      %v3080 = vsel %vm380, %v3066, %v3072
      %3081 = vrot.lane.b32.xlu0 %v3051, 113
      %v3082 = vpop.permute.xlu0 %3081
      %3083 = vrot.lane.b32.xlu0 %v3059, 113
      %v3084 = vpop.permute.xlu0 %3083
      %3085 = vrot.lane.b32.xlu0 %v3052, 113
      %v3086 = vpop.permute.xlu0 %3085
      %3087 = vrot.lane.b32.xlu0 %v3060, 113
      %v3088 = vpop.permute.xlu0 %3087
      %v3089 = vsel %vm389, %v3082, %v3084
      %v3090 = vsel %vm389, %v3086, %v3088
      %v3097 = vsel %vm389, %v3084, %v3082
      %v3098 = vsel %vm389, %v3088, %v3086
      %v3099 = vsel %vm395, %v3089, %v3079
      %v3100 = vsel %vm396, %v3097, %v3073
      %v3101 = vsel %vm395, %v3090, %v3080
      %v3102 = vsel %vm396, %v3098, %v3074
      %v3103 = vld [vmem:[%s1540] sm:$0xff]
      %v3104 = vld [vmem:[%s1540 + $0x8] sm:$0xff]
      %v3106 = vsel %vm369, %v3103, 0
      %v3109 = vsel %vm369, %v3104, 0
      %3111 = vmatprep.subr.mxu0 %v3100
      %3112 = vmatpush1.msra.mxu0 %v3099
      %3113 = vmatprep.subr.mxu0 %v3102
      %3114 = vmatpush1.msra.mxu0 %v3101
      %3115 = vmatprep.subr.mxu0 0.0
      %3116 = vmatpush1.msra.mxu0 0.0
      %3117 = vmatprep.subr.mxu0 0.0
      %3118 = vmatpush1.msra.mxu0 0.0
      %3119 = vmatprep.subr.mxu0 0.0
      %3120 = vmatpush1.msra.mxu0 0.0
      %3121 = vmatprep.subr.mxu0 0.0
      %3122 = vmatpush1.msra.mxu0 0.0
      %3123 = vmatprep.subr.mxu0 0.0
      %3124 = vmatpush1.msra.mxu0 0.0
      %3125 = vmatprep.subr.mxu0 0.0
      %3126 = vmatpush1.msra.mxu0 0.0
      %3127 = vmatprep.subr.mxu0 0.0
      %3128 = vmatpush1.msra.mxu0 0.0
      %3129 = vmatprep.subr.mxu0 0.0
      %3130 = vmatpush1.msra.mxu0 0.0
      %3131 = vmatprep.subr.mxu0 0.0
      %3132 = vmatpush1.msra.mxu0 0.0
      %3133 = vmatprep.subr.mxu0 0.0
      %3134 = vmatpush1.msra.mxu0 0.0
      %3135 = vmatprep.subr.mxu0 0.0
      %3136 = vmatpush1.msra.mxu0 0.0
      %3137 = vmatprep.subr.mxu0 0.0
      %3138 = vmatpush1.msra.mxu0 0.0
      %3139 = vmatprep.subr.mxu0 0.0
      %3140 = vmatpush1.msra.mxu0 0.0
      %3141 = vmatprep.subr.mxu0 0.0
      %3142 = vmatpush1.msra.mxu0 0.0
      %3143 = vmatprep.subr.mxu0 0.0
      %3144 = vmatpush1.msra.mxu0 0.0
      %3145 = vmatprep.subr.mxu0 0.0
      %3146 = vmatpush1.msra.mxu0 0.0
      %3147 = vmatprep.subr.mxu0 0.0
      %3148 = vmatpush1.msra.mxu0 0.0
      %3149 = vmatprep.subr.mxu0 0.0
      %3150 = vmatpush1.msra.mxu0 0.0
      %3151 = vmatprep.subr.mxu0 0.0
      %3152 = vmatpush1.msra.mxu0 0.0
      %3153 = vmatprep.subr.mxu0 0.0
      %3154 = vmatpush1.msra.mxu0 0.0
      %3155 = vmatprep.subr.mxu0 0.0
      %3156 = vmatpush1.msra.mxu0 0.0
      %3157 = vmatprep.subr.mxu0 0.0
      %3158 = vmatpush1.msra.mxu0 0.0
      %3159 = vmatprep.subr.mxu0 0.0
      %3160 = vmatpush1.msra.mxu0 0.0
      %3161 = vmatprep.subr.mxu0 0.0
      %3162 = vmatpush1.msra.mxu0 0.0
      %3163 = vmatprep.subr.mxu0 0.0
      %3164 = vmatpush1.msra.mxu0 0.0
      %3165 = vmatprep.subr.mxu0 0.0
      %3166 = vmatpush1.msra.mxu0 0.0
      %3167 = vmatprep.subr.mxu0 0.0
      %3168 = vmatpush1.msra.mxu0 0.0
      %3169 = vmatprep.subr.mxu0 0.0
      %3170 = vmatpush1.msra.mxu0 0.0
      %3171 = vmatprep.subr.mxu0 0.0
      %3172 = vmatpush1.msra.mxu0 0.0
      %3173 = vmatprep.subr.mxu0 0.0
      %3174 = vmatpush1.msra.mxu0 0.0
      %3175 = vmatprep.mubr.f32.mxu0 0.0
      %3176 = vmatmul.mubr.f32.gmra.mrb[0].mxu0 %v3106
      %v3177 = vpop.f32.mrb[0].mxu0
      %v3178 = vadd.f32 0.0, %v3177
      %v3179 = vpop.f32.mrb[0].mxu0
      %v3180 = vadd.f32 0.0, %v3179
      %3181 = vmatprep.mubr.f32.mxu0 0.0
      %3182 = vmatmul.mubr.f32.gmra.mrb[0].mxu0 %v3109
      %v3183 = vpop.f32.mrb[0].mxu0
      %v3184 = vadd.f32 0.0, %v3183
      %v3185 = vpop.f32.mrb[0].mxu0
      %v3186 = vadd.f32 0.0, %v3185
      %3187 = vdwg.mxu0
      %v3188 = vadd.f32 %v3039, %v3178
      %v3189 = vadd.f32 %v3040, %v3180
      %v3190 = vadd.f32 %v3041, %v3184
      %v3191 = vadd.f32 %v3042, %v3186
      %v3192 = vld [vmem:[%s1630] sm:$0xff]
      %v3193 = vld [vmem:[%s1630 + $0x8] sm:$0xff]
      %v3195 = vsel %vm369, %v3192, 0
      %v3198 = vsel %vm369, %v3193, 0
      %3200 = vmatprep.subr.mxu0 %v3059
      %3201 = vmatpush1.msra.mxu0 %v3051
      %3202 = vmatprep.subr.mxu0 %v3060
      %3203 = vmatpush1.msra.mxu0 %v3052
      %3204 = vmatprep.subr.mxu0 0.0
      %3205 = vmatpush1.msra.mxu0 0.0
      %3206 = vmatprep.subr.mxu0 0.0
      %3207 = vmatpush1.msra.mxu0 0.0
      %3208 = vmatprep.subr.mxu0 0.0
      %3209 = vmatpush1.msra.mxu0 0.0
      %3210 = vmatprep.subr.mxu0 0.0
      %3211 = vmatpush1.msra.mxu0 0.0
      %3212 = vmatprep.subr.mxu0 0.0
      %3213 = vmatpush1.msra.mxu0 0.0
      %3214 = vmatprep.subr.mxu0 0.0
      %3215 = vmatpush1.msra.mxu0 0.0
      %3216 = vmatprep.subr.mxu0 0.0
      %3217 = vmatpush1.msra.mxu0 0.0
      %3218 = vmatprep.subr.mxu0 0.0
      %3219 = vmatpush1.msra.mxu0 0.0
      %3220 = vmatprep.subr.mxu0 0.0
      %3221 = vmatpush1.msra.mxu0 0.0
      %3222 = vmatprep.subr.mxu0 0.0
      %3223 = vmatpush1.msra.mxu0 0.0
      %3224 = vmatprep.subr.mxu0 0.0
      %3225 = vmatpush1.msra.mxu0 0.0
      %3226 = vmatprep.subr.mxu0 0.0
      %3227 = vmatpush1.msra.mxu0 0.0
      %3228 = vmatprep.subr.mxu0 0.0
      %3229 = vmatpush1.msra.mxu0 0.0
      %3230 = vmatprep.subr.mxu0 0.0
      %3231 = vmatpush1.msra.mxu0 0.0
      %3232 = vmatprep.subr.mxu0 0.0
      %3233 = vmatpush1.msra.mxu0 0.0
      %3234 = vmatprep.subr.mxu0 0.0
      %3235 = vmatpush1.msra.mxu0 0.0
      %3236 = vmatprep.subr.mxu0 0.0
      %3237 = vmatpush1.msra.mxu0 0.0
      %3238 = vmatprep.subr.mxu0 0.0
      %3239 = vmatpush1.msra.mxu0 0.0
      %3240 = vmatprep.subr.mxu0 0.0
      %3241 = vmatpush1.msra.mxu0 0.0
      %3242 = vmatprep.subr.mxu0 0.0
      %3243 = vmatpush1.msra.mxu0 0.0
      %3244 = vmatprep.subr.mxu0 0.0
      %3245 = vmatpush1.msra.mxu0 0.0
      %3246 = vmatprep.subr.mxu0 0.0
      %3247 = vmatpush1.msra.mxu0 0.0
      %3248 = vmatprep.subr.mxu0 0.0
      %3249 = vmatpush1.msra.mxu0 0.0
      %3250 = vmatprep.subr.mxu0 0.0
      %3251 = vmatpush1.msra.mxu0 0.0
      %3252 = vmatprep.subr.mxu0 0.0
      %3253 = vmatpush1.msra.mxu0 0.0
      %3254 = vmatprep.subr.mxu0 0.0
      %3255 = vmatpush1.msra.mxu0 0.0
      %3256 = vmatprep.subr.mxu0 0.0
      %3257 = vmatpush1.msra.mxu0 0.0
      %3258 = vmatprep.subr.mxu0 0.0
      %3259 = vmatpush1.msra.mxu0 0.0
      %3260 = vmatprep.subr.mxu0 0.0
      %3261 = vmatpush1.msra.mxu0 0.0
      %3262 = vmatprep.subr.mxu0 0.0
      %3263 = vmatpush1.msra.mxu0 0.0
      %3264 = vmatprep.mubr.f32.mxu0 0.0
      %3265 = vmatmul.mubr.f32.gmra.mrb[0].mxu0 %v3195
      %v3266 = vpop.f32.mrb[0].mxu0
      %v3267 = vadd.f32 0.0, %v3266
      %v3268 = vpop.f32.mrb[0].mxu0
      %v3269 = vadd.f32 0.0, %v3268
      %3270 = vmatprep.mubr.f32.mxu0 0.0
      %3271 = vmatmul.mubr.f32.gmra.mrb[0].mxu0 %v3198
      %v3272 = vpop.f32.mrb[0].mxu0
      %v3273 = vadd.f32 0.0, %v3272
      %v3274 = vpop.f32.mrb[0].mxu0
      %v3275 = vadd.f32 0.0, %v3274
      %3276 = vdwg.mxu0
      %v3277 = vadd.f32 %v3188, %v3267
      %v3278 = vadd.f32 %v3189, %v3269
      %v3279 = vadd.f32 %v3190, %v3273
      %v3280 = vadd.f32 %v3191, %v3275
      %3281 = vrot.lane.b32.xlu0 %v3051, 127
      %v3282 = vpop.permute.xlu0 %3281
      %3283 = vrot.lane.b32.xlu0 %v3059, 127
      %v3284 = vpop.permute.xlu0 %3283
      %3285 = vrot.lane.b32.xlu0 %v3052, 127
      %v3286 = vpop.permute.xlu0 %3285
      %3287 = vrot.lane.b32.xlu0 %v3060, 127
      %v3288 = vpop.permute.xlu0 %3287
      %v3289 = vsel %vm403, %v3282, %v3284
      %v3290 = vsel %vm403, %v3286, %v3288
      %v3297 = vsel %vm403, %v3284, %v3282
      %v3298 = vsel %vm403, %v3288, %v3286
      %3299 = vrot.lane.b32.xlu0 %v3059, 15
      %v3300 = vpop.permute.xlu0 %3299
      %3301 = vrot.lane.b32.xlu0 %v3060, 15
      %v3302 = vpop.permute.xlu0 %3301
      %3305 = vrot.lane.b32.xlu0 %v3051, 15
      %v3306 = vpop.permute.xlu0 %3305
      %3307 = vrot.lane.b32.xlu0 %v3052, 15
      %v3308 = vpop.permute.xlu0 %3307
      %v3309 = vsel %vm414, %v3306, %v3300
      %v3310 = vsel %vm414, %v3308, %v3302
      %v3315 = vsel %vm414, %v3300, %v3306
      %v3316 = vsel %vm414, %v3302, %v3308
      %v3317 = vsel %vm419, %v3315, %v3289
      %v3318 = vsel %vm420, %v3309, %v3297
      %v3319 = vsel %vm419, %v3316, %v3290
      %v3320 = vsel %vm420, %v3310, %v3298
      %v3321 = vld [vmem:[%s1760] sm:$0xff]
      %v3322 = vld [vmem:[%s1760 + $0x8] sm:$0xff]
      %v3324 = vsel %vm369, %v3321, 0
      %v3327 = vsel %vm369, %v3322, 0
      %3329 = vmatprep.subr.mxu0 %v3318
      %3330 = vmatpush1.msra.mxu0 %v3317
      %3331 = vmatprep.subr.mxu0 %v3320
      %3332 = vmatpush1.msra.mxu0 %v3319
      %3333 = vmatprep.subr.mxu0 0.0
      %3334 = vmatpush1.msra.mxu0 0.0
      %3335 = vmatprep.subr.mxu0 0.0
      %3336 = vmatpush1.msra.mxu0 0.0
      %3337 = vmatprep.subr.mxu0 0.0
      %3338 = vmatpush1.msra.mxu0 0.0
      %3339 = vmatprep.subr.mxu0 0.0
      %3340 = vmatpush1.msra.mxu0 0.0
      %3341 = vmatprep.subr.mxu0 0.0
      %3342 = vmatpush1.msra.mxu0 0.0
      %3343 = vmatprep.subr.mxu0 0.0
      %3344 = vmatpush1.msra.mxu0 0.0
      %3345 = vmatprep.subr.mxu0 0.0
      %3346 = vmatpush1.msra.mxu0 0.0
      %3347 = vmatprep.subr.mxu0 0.0
      %3348 = vmatpush1.msra.mxu0 0.0
      %3349 = vmatprep.subr.mxu0 0.0
      %3350 = vmatpush1.msra.mxu0 0.0
      %3351 = vmatprep.subr.mxu0 0.0
      %3352 = vmatpush1.msra.mxu0 0.0
      %3353 = vmatprep.subr.mxu0 0.0
      %3354 = vmatpush1.msra.mxu0 0.0
      %3355 = vmatprep.subr.mxu0 0.0
      %3356 = vmatpush1.msra.mxu0 0.0
      %3357 = vmatprep.subr.mxu0 0.0
      %3358 = vmatpush1.msra.mxu0 0.0
      %3359 = vmatprep.subr.mxu0 0.0
      %3360 = vmatpush1.msra.mxu0 0.0
      %3361 = vmatprep.subr.mxu0 0.0
      %3362 = vmatpush1.msra.mxu0 0.0
      %3363 = vmatprep.subr.mxu0 0.0
      %3364 = vmatpush1.msra.mxu0 0.0
      %3365 = vmatprep.subr.mxu0 0.0
      %3366 = vmatpush1.msra.mxu0 0.0
      %3367 = vmatprep.subr.mxu0 0.0
      %3368 = vmatpush1.msra.mxu0 0.0
      %3369 = vmatprep.subr.mxu0 0.0
      %3370 = vmatpush1.msra.mxu0 0.0
      %3371 = vmatprep.subr.mxu0 0.0
      %3372 = vmatpush1.msra.mxu0 0.0
      %3373 = vmatprep.subr.mxu0 0.0
      %3374 = vmatpush1.msra.mxu0 0.0
      %3375 = vmatprep.subr.mxu0 0.0
      %3376 = vmatpush1.msra.mxu0 0.0
      %3377 = vmatprep.subr.mxu0 0.0
      %3378 = vmatpush1.msra.mxu0 0.0
      %3379 = vmatprep.subr.mxu0 0.0
      %3380 = vmatpush1.msra.mxu0 0.0
      %3381 = vmatprep.subr.mxu0 0.0
      %3382 = vmatpush1.msra.mxu0 0.0
      %3383 = vmatprep.subr.mxu0 0.0
      %3384 = vmatpush1.msra.mxu0 0.0
      %3385 = vmatprep.subr.mxu0 0.0
      %3386 = vmatpush1.msra.mxu0 0.0
      %3387 = vmatprep.subr.mxu0 0.0
      %3388 = vmatpush1.msra.mxu0 0.0
      %3389 = vmatprep.subr.mxu0 0.0
      %3390 = vmatpush1.msra.mxu0 0.0
      %3391 = vmatprep.subr.mxu0 0.0
      %3392 = vmatpush1.msra.mxu0 0.0
      %3393 = vmatprep.mubr.f32.mxu0 0.0
      %3394 = vmatmul.mubr.f32.gmra.mrb[0].mxu0 %v3324
      %v3395 = vpop.f32.mrb[0].mxu0
      %v3396 = vadd.f32 0.0, %v3395
      %v3397 = vpop.f32.mrb[0].mxu0
      %v3398 = vadd.f32 0.0, %v3397
      %3399 = vmatprep.mubr.f32.mxu0 0.0
      %3400 = vmatmul.mubr.f32.gmra.mrb[0].mxu0 %v3327
      %v3401 = vpop.f32.mrb[0].mxu0
      %v3402 = vadd.f32 0.0, %v3401
      %v3403 = vpop.f32.mrb[0].mxu0
      %v3404 = vadd.f32 0.0, %v3403
      %3405 = vdwg.mxu0
      %v3406 = vadd.f32 %v3277, %v3396
      %v3407 = vadd.f32 %v3278, %v3398
      %v3408 = vadd.f32 %v3279, %v3402
      %v3409 = vadd.f32 %v3280, %v3404
      %v3410 = vld [vmem:[%s4] sm:$0xff]
      %v3411 = vld [vmem:[%s4 + $0x8] sm:$0xff]
      %3413 = vset.pattern.permute.xlu0 0
      %3414 = vperm.xlu0 %3413, %v3410
      %v3415 = vpop.permute.xlu0 %3414
      %3418 = vset.pattern.permute.xlu0 0
      %3419 = vperm.xlu0 %3418, %v3411
      %v3420 = vpop.permute.xlu0 %3419
      %v3422 = vadd.f32 %v3406, %v3415
      %v3423 = vadd.f32 %v3407, %v3415
      %v3424 = vadd.f32 %v3408, %v3420
      %v3425 = vadd.f32 %v3409, %v3420
      %v3426 = vmax.f32 %v3422, 0.0
      %v3427 = vmax.f32 %v3423, 0.0
      %v3428 = vmax.f32 %v3424, 0.0
      %v3429 = vmax.f32 %v3425, 0.0
      %v3430 = vld [vmem:[%s5] sm:$0xff]
      %v3431 = vld [vmem:[%s5 + $0x8] sm:$0xff]
      %v3432 = vld [vmem:[%s5 + $0x10] sm:$0xff]
      %v3433 = vld [vmem:[%s5 + $0x18] sm:$0xff]
      %v3434 = vld [vmem:[%s5 + $0x20] sm:$0xff]
      %v3435 = vld [vmem:[%s5 + $0x28] sm:$0xff]
      %v3436 = vld [vmem:[%s5 + $0x30] sm:$0xff]
      %v3437 = vld [vmem:[%s5 + $0x38] sm:$0xff]
      %v3438 = vld [vmem:[%s5 + $0x40] sm:$0xff]
      %v3439 = vld [vmem:[%s5 + $0x48] sm:$0xff]
      %v3440 = vld [vmem:[%s5 + $0x50] sm:$0xff]
      %v3441 = vld [vmem:[%s5 + $0x58] sm:$0xff]
      %v3442 = vld [vmem:[%s5 + $0x60] sm:$0xff]
      %v3443 = vld [vmem:[%s5 + $0x68] sm:$0xff]
      %v3444 = vld [vmem:[%s5 + $0x70] sm:$0xff]
      %v3445 = vld [vmem:[%s5 + $0x78] sm:$0xff]
      %v3446 = vld [vmem:[%s5 + $0x80] sm:$0xff]
      %v3447 = vld [vmem:[%s5 + $0x88] sm:$0xff]
      %v3448 = vld [vmem:[%s5 + $0x90] sm:$0xff]
      %v3449 = vld [vmem:[%s5 + $0x98] sm:$0xff]
      %v3450 = vld [vmem:[%s5 + $0xa0] sm:$0xff]
      %v3451 = vld [vmem:[%s5 + $0xa8] sm:$0xff]
      %v3452 = vld [vmem:[%s5 + $0xb0] sm:$0xff]
      %v3453 = vld [vmem:[%s5 + $0xb8] sm:$0xff]
      %v3454 = vld [vmem:[%s5 + $0xc0] sm:$0xff]
      %v3455 = vld [vmem:[%s5 + $0xc8] sm:$0xff]
      %v3456 = vld [vmem:[%s5 + $0xd0] sm:$0xff]
      %v3457 = vld [vmem:[%s5 + $0xd8] sm:$0xff]
      %v3458 = vld [vmem:[%s5 + $0xe0] sm:$0xff]
      %v3459 = vld [vmem:[%s5 + $0xe8] sm:$0xff]
      %v3460 = vld [vmem:[%s5 + $0xf0] sm:$0xff]
      %v3461 = vld [vmem:[%s5 + $0xf8] sm:$0xff]
      %v3462 = vld [vmem:[%s6] sm:$0x1]
      %v3464 = vlaneseq
      %v3465 = vshrl.u32 %v3464, 7
      %v3466 = vsub.s32 0, %v3465
      %v3467 = vrot.slane %v3462, %v3466
      %3469 = vmatprep.subr.mxu0 0.0
      %3470 = vmatpush1.msra.mxu0 %v3430
      %3471 = vmatprep.subr.mxu0 0.0
      %3472 = vmatpush1.msra.mxu0 %v3431
      %3473 = vmatprep.subr.mxu0 0.0
      %3474 = vmatpush1.msra.mxu0 %v3432
      %3475 = vmatprep.subr.mxu0 0.0
      %3476 = vmatpush1.msra.mxu0 %v3433
      %3477 = vmatprep.subr.mxu0 0.0
      %3478 = vmatpush1.msra.mxu0 %v3434
      %3479 = vmatprep.subr.mxu0 0.0
      %3480 = vmatpush1.msra.mxu0 %v3435
      %3481 = vmatprep.subr.mxu0 0.0
      %3482 = vmatpush1.msra.mxu0 %v3436
      %3483 = vmatprep.subr.mxu0 0.0
      %3484 = vmatpush1.msra.mxu0 %v3437
      %3485 = vmatprep.subr.mxu0 0.0
      %3486 = vmatpush1.msra.mxu0 %v3438
      %3487 = vmatprep.subr.mxu0 0.0
      %3488 = vmatpush1.msra.mxu0 %v3439
      %3489 = vmatprep.subr.mxu0 0.0
      %3490 = vmatpush1.msra.mxu0 %v3440
      %3491 = vmatprep.subr.mxu0 0.0
      %3492 = vmatpush1.msra.mxu0 %v3441
      %3493 = vmatprep.subr.mxu0 0.0
      %3494 = vmatpush1.msra.mxu0 %v3442
      %3495 = vmatprep.subr.mxu0 0.0
      %3496 = vmatpush1.msra.mxu0 %v3443
      %3497 = vmatprep.subr.mxu0 0.0
      %3498 = vmatpush1.msra.mxu0 %v3444
      %3499 = vmatprep.subr.mxu0 0.0
      %3500 = vmatpush1.msra.mxu0 %v3445
      %3501 = vmatprep.subr.mxu0 0.0
      %3502 = vmatpush1.msra.mxu0 %v3446
      %3503 = vmatprep.subr.mxu0 0.0
      %3504 = vmatpush1.msra.mxu0 %v3447
      %3505 = vmatprep.subr.mxu0 0.0
      %3506 = vmatpush1.msra.mxu0 %v3448
      %3507 = vmatprep.subr.mxu0 0.0
      %3508 = vmatpush1.msra.mxu0 %v3449
      %3509 = vmatprep.subr.mxu0 0.0
      %3510 = vmatpush1.msra.mxu0 %v3450
      %3511 = vmatprep.subr.mxu0 0.0
      %3512 = vmatpush1.msra.mxu0 %v3451
      %3513 = vmatprep.subr.mxu0 0.0
      %3514 = vmatpush1.msra.mxu0 %v3452
      %3515 = vmatprep.subr.mxu0 0.0
      %3516 = vmatpush1.msra.mxu0 %v3453
      %3517 = vmatprep.subr.mxu0 0.0
      %3518 = vmatpush1.msra.mxu0 %v3454
      %3519 = vmatprep.subr.mxu0 0.0
      %3520 = vmatpush1.msra.mxu0 %v3455
      %3521 = vmatprep.subr.mxu0 0.0
      %3522 = vmatpush1.msra.mxu0 %v3456
      %3523 = vmatprep.subr.mxu0 0.0
      %3524 = vmatpush1.msra.mxu0 %v3457
      %3525 = vmatprep.subr.mxu0 0.0
      %3526 = vmatpush1.msra.mxu0 %v3458
      %3527 = vmatprep.subr.mxu0 0.0
      %3528 = vmatpush1.msra.mxu0 %v3459
      %3529 = vmatprep.subr.mxu0 0.0
      %3530 = vmatpush1.msra.mxu0 %v3460
      %3531 = vmatprep.subr.mxu0 0.0
      %3532 = vmatpush1.msra.mxu0 %v3461
      %3533 = vmatprep.mubr.f32.mxu0 %v3427
      %3534 = vmatmul.mubr.f32.gmra.mrb[0].mxu0 %v3426
      %v3535 = vpop.f32.mrb[0].mxu0
      %v3536 = vadd.f32 %v3467, %v3535
      %v3537 = vpop.f32.mrb[0].mxu0
      %3538 = vmatprep.mubr.f32.mxu0 %v3429
      %3539 = vmatmul.mubr.f32.gmra.mrb[0].mxu0 %v3428
      %v3540 = vpop.f32.mrb[0].mxu0
      %v3541 = vadd.f32 %v3467, %v3540
      %v3542 = vpop.f32.mrb[0].mxu0
      %3543 = vdwg.mxu0
      %v3544 = vmax.f32 %v3536, 0.0
      %v3545 = vmax.f32 %v3541, 0.0
      %v3546 = vld [vmem:[%s7] sm:$0xff]
      %v3547 = vld [vmem:[%s7 + $0x8] sm:$0xff]
      %v3548 = vld [vmem:[%s7 + $0x10] sm:$0xff]
      %v3549 = vld [vmem:[%s7 + $0x18] sm:$0xff]
      %v3550 = vld [vmem:[%s7 + $0x20] sm:$0xff]
      %v3551 = vld [vmem:[%s7 + $0x28] sm:$0xff]
      %v3552 = vld [vmem:[%s7 + $0x30] sm:$0xff]
      %v3553 = vld [vmem:[%s7 + $0x38] sm:$0xff]
      %v3554 = vld [vmem:[%s7 + $0x40] sm:$0xff]
      %v3555 = vld [vmem:[%s7 + $0x48] sm:$0xff]
      %v3556 = vld [vmem:[%s7 + $0x50] sm:$0xff]
      %v3557 = vld [vmem:[%s7 + $0x58] sm:$0xff]
      %v3558 = vld [vmem:[%s7 + $0x60] sm:$0xff]
      %v3559 = vld [vmem:[%s7 + $0x68] sm:$0xff]
      %v3560 = vld [vmem:[%s7 + $0x70] sm:$0xff]
      %v3561 = vld [vmem:[%s7 + $0x78] sm:$0xff]
      %3562 = vmatprep.subr.mxu0 0.0
      %3563 = vmatpush1.msra.mxu0 %v3546
      %3564 = vmatprep.subr.mxu0 0.0
      %3565 = vmatpush1.msra.mxu0 %v3547
      %3566 = vmatprep.subr.mxu0 0.0
      %3567 = vmatpush1.msra.mxu0 %v3548
      %3568 = vmatprep.subr.mxu0 0.0
      %3569 = vmatpush1.msra.mxu0 %v3549
      %3570 = vmatprep.subr.mxu0 0.0
      %3571 = vmatpush1.msra.mxu0 %v3550
      %3572 = vmatprep.subr.mxu0 0.0
      %3573 = vmatpush1.msra.mxu0 %v3551
      %3574 = vmatprep.subr.mxu0 0.0
      %3575 = vmatpush1.msra.mxu0 %v3552
      %3576 = vmatprep.subr.mxu0 0.0
      %3577 = vmatpush1.msra.mxu0 %v3553
      %3578 = vmatprep.subr.mxu0 0.0
      %3579 = vmatpush1.msra.mxu0 %v3554
      %3580 = vmatprep.subr.mxu0 0.0
      %3581 = vmatpush1.msra.mxu0 %v3555
      %3582 = vmatprep.subr.mxu0 0.0
      %3583 = vmatpush1.msra.mxu0 %v3556
      %3584 = vmatprep.subr.mxu0 0.0
      %3585 = vmatpush1.msra.mxu0 %v3557
      %3586 = vmatprep.subr.mxu0 0.0
      %3587 = vmatpush1.msra.mxu0 %v3558
      %3588 = vmatprep.subr.mxu0 0.0
      %3589 = vmatpush1.msra.mxu0 %v3559
      %3590 = vmatprep.subr.mxu0 0.0
      %3591 = vmatpush1.msra.mxu0 %v3560
      %3592 = vmatprep.subr.mxu0 0.0
      %3593 = vmatpush1.msra.mxu0 %v3561
      %3594 = vmatprep.subr.mxu0 0.0
      %3595 = vmatpush1.msra.mxu0 0.0
      %3596 = vmatprep.subr.mxu0 0.0
      %3597 = vmatpush1.msra.mxu0 0.0
      %3598 = vmatprep.subr.mxu0 0.0
      %3599 = vmatpush1.msra.mxu0 0.0
      %3600 = vmatprep.subr.mxu0 0.0
      %3601 = vmatpush1.msra.mxu0 0.0
      %3602 = vmatprep.subr.mxu0 0.0
      %3603 = vmatpush1.msra.mxu0 0.0
      %3604 = vmatprep.subr.mxu0 0.0
      %3605 = vmatpush1.msra.mxu0 0.0
      %3606 = vmatprep.subr.mxu0 0.0
      %3607 = vmatpush1.msra.mxu0 0.0
      %3608 = vmatprep.subr.mxu0 0.0
      %3609 = vmatpush1.msra.mxu0 0.0
      %3610 = vmatprep.subr.mxu0 0.0
      %3611 = vmatpush1.msra.mxu0 0.0
      %3612 = vmatprep.subr.mxu0 0.0
      %3613 = vmatpush1.msra.mxu0 0.0
      %3614 = vmatprep.subr.mxu0 0.0
      %3615 = vmatpush1.msra.mxu0 0.0
      %3616 = vmatprep.subr.mxu0 0.0
      %3617 = vmatpush1.msra.mxu0 0.0
      %3618 = vmatprep.subr.mxu0 0.0
      %3619 = vmatpush1.msra.mxu0 0.0
      %3620 = vmatprep.subr.mxu0 0.0
      %3621 = vmatpush1.msra.mxu0 0.0
      %3622 = vmatprep.subr.mxu0 0.0
      %3623 = vmatpush1.msra.mxu0 0.0
      %3624 = vmatprep.subr.mxu0 0.0
      %3625 = vmatpush1.msra.mxu0 0.0
      %3626 = vmatprep.mubr.f32.mxu0 0.0
      %3627 = vmatmul.mubr.f32.gmra.mrb[0].mxu0 %v3544
      %v3628 = vpop.f32.mrb[0].mxu0
      %v3629 = vadd.f32 0.0, %v3628
      %v3630 = vpop.f32.mrb[0].mxu0
      %3631 = vmatprep.mubr.f32.mxu0 0.0
      %3632 = vmatmul.mubr.f32.gmra.mrb[0].mxu0 %v3545
      %v3633 = vpop.f32.mrb[0].mxu0
      %v3634 = vadd.f32 0.0, %v3633
      %v3635 = vpop.f32.mrb[0].mxu0
      %3636 = vdwg.mxu0
      %v3637 = vadd.f32 %v3629, %v2077
      %v3638 = vadd.f32 %v3634, %v2077
      %s3639 = scalar_lea.vmem %s333, 16
      %3640 = vst.msk [vmem:[%s3639] sm:$0xff] %vm2080, %v3637
      %3641 = vst.msk [vmem:[%s3639 + $0x8] sm:$0xff] %vm2080, %v3638
      %v3642 = vld [vmem:[%s1] sm:$0xff]
      %v3643 = vld [vmem:[%s1 + $0x8] sm:$0xff]
      %3645 = vset.pattern.permute.xlu0 0
      %3646 = vperm.xlu0 %3645, %v3642
      %v3647 = vpop.permute.xlu0 %3646
      %3650 = vset.pattern.permute.xlu0 0
      %3651 = vperm.xlu0 %3650, %v3643
      %v3652 = vpop.permute.xlu0 %3651
      %v3654 = vlaneseq
      %v3655 = vshrl.u32 %v3654, 7
      %v3656 = vsub.s32 2, %v3655
      %v3657 = vrot.slane %v397, %v3656
      %v3658 = vlaneseq
      %v3659 = vshrl.u32 %v3658, 7
      %v3660 = vsub.s32 2, %v3659
      %v3661 = vrot.slane %v398, %v3660
      %v3662 = vmul.f32 %v3647, %v3657
      %v3663 = vmul.f32 %v3647, %v3661
      %v3664 = vmul.f32 %v3652, %v3657
      %v3665 = vmul.f32 %v3652, %v3661
      %v3666 = vadd.f32 %v3662, 0.0
      %v3667 = vadd.f32 %v3663, 0.0
      %v3668 = vadd.f32 %v3664, 0.0
      %v3669 = vadd.f32 %v3665, 0.0
      %3670 = vset.pattern.permute.xlu0 1
      %3671 = vperm.xlu0 %3670, %v3642
      %v3672 = vpop.permute.xlu0 %3671
      %3674 = vset.pattern.permute.xlu0 1
      %3675 = vperm.xlu0 %3674, %v3643
      %v3676 = vpop.permute.xlu0 %3675
      %v3678 = vlaneseq
      %v3679 = vshrl.u32 %v3678, 7
      %v3680 = vsub.s32 2, %v3679
      %v3681 = vrot.slane %v373, %v3680
      %v3682 = vlaneseq
      %v3683 = vshrl.u32 %v3682, 7
      %v3684 = vsub.s32 2, %v3683
      %v3685 = vrot.slane %v370, %v3684
      %v3686 = vmul.f32 %v3672, %v3681
      %v3687 = vmul.f32 %v3672, %v3685
      %v3688 = vmul.f32 %v3676, %v3681
      %v3689 = vmul.f32 %v3676, %v3685
      %v3690 = vadd.f32 %v3666, %v3686
      %v3691 = vadd.f32 %v3667, %v3687
      %v3692 = vadd.f32 %v3668, %v3688
      %v3693 = vadd.f32 %v3669, %v3689
      %3694 = vset.pattern.permute.xlu0 2
      %3695 = vperm.xlu0 %3694, %v3642
      %v3696 = vpop.permute.xlu0 %3695
      %3698 = vset.pattern.permute.xlu0 2
      %3699 = vperm.xlu0 %3698, %v3643
      %v3700 = vpop.permute.xlu0 %3699
      %v3702 = vlaneseq
      %v3703 = vshrl.u32 %v3702, 7
      %v3704 = vsub.s32 2, %v3703
      %v3705 = vrot.slane %v421, %v3704
      %v3706 = vlaneseq
      %v3707 = vshrl.u32 %v3706, 7
      %v3708 = vsub.s32 2, %v3707
      %v3709 = vrot.slane %v422, %v3708
      %v3710 = vmul.f32 %v3696, %v3705
      %v3711 = vmul.f32 %v3696, %v3709
      %v3712 = vmul.f32 %v3700, %v3705
      %v3713 = vmul.f32 %v3700, %v3709
      %v3714 = vadd.f32 %v3690, %v3710
      %v3715 = vadd.f32 %v3691, %v3711
      %v3716 = vadd.f32 %v3692, %v3712
      %v3717 = vadd.f32 %v3693, %v3713
      %3718 = vset.pattern.permute.xlu0 3
      %3719 = vperm.xlu0 %3718, %v3642
      %v3720 = vpop.permute.xlu0 %3719
      %3722 = vset.pattern.permute.xlu0 3
      %3723 = vperm.xlu0 %3722, %v3643
      %v3724 = vpop.permute.xlu0 %3723
      %v3726 = vlaneseq
      %v3727 = vshrl.u32 %v3726, 7
      %v3728 = vsub.s32 2, %v3727
      %v3729 = vrot.slane %v441, %v3728
      %v3730 = vlaneseq
      %v3731 = vshrl.u32 %v3730, 7
      %v3732 = vsub.s32 2, %v3731
      %v3733 = vrot.slane %v442, %v3732
      %v3734 = vmul.f32 %v3720, %v3729
      %v3735 = vmul.f32 %v3720, %v3733
      %v3736 = vmul.f32 %v3724, %v3729
      %v3737 = vmul.f32 %v3724, %v3733
      %v3738 = vadd.f32 %v3714, %v3734
      %v3739 = vadd.f32 %v3715, %v3735
      %v3740 = vadd.f32 %v3716, %v3736
      %v3741 = vadd.f32 %v3717, %v3737
      %3742 = vset.pattern.permute.xlu0 4
      %3743 = vperm.xlu0 %3742, %v3642
      %v3744 = vpop.permute.xlu0 %3743
      %3746 = vset.pattern.permute.xlu0 4
      %3747 = vperm.xlu0 %3746, %v3643
      %v3748 = vpop.permute.xlu0 %3747
      %v3750 = vlaneseq
      %v3751 = vshrl.u32 %v3750, 7
      %v3752 = vsub.s32 2, %v3751
      %v3753 = vrot.slane %v361, %v3752
      %v3754 = vlaneseq
      %v3755 = vshrl.u32 %v3754, 7
      %v3756 = vsub.s32 6, %v3755
      %v3757 = vrot.slane %v361, %v3756
      %v3760 = vlaneseq
      %v3761 = vshrl.u32 %v3760, 7
      %v3762 = vsub.s32 2, %v3761
      %v3763 = vrot.slane %v3753, %v3762
      %v3764 = vlaneseq
      %v3765 = vshrl.u32 %v3764, 7
      %v3766 = vsub.s32 2, %v3765
      %v3767 = vrot.slane %v3757, %v3766
      %v3768 = vmul.f32 %v3744, %v3763
      %v3769 = vmul.f32 %v3744, %v3767
      %v3770 = vmul.f32 %v3748, %v3763
      %v3771 = vmul.f32 %v3748, %v3767
      %v3772 = vadd.f32 %v3738, %v3768
      %v3773 = vadd.f32 %v3739, %v3769
      %v3774 = vadd.f32 %v3740, %v3770
      %v3775 = vadd.f32 %v3741, %v3771
      %3776 = vset.pattern.permute.xlu0 5
      %3777 = vperm.xlu0 %3776, %v3642
      %v3778 = vpop.permute.xlu0 %3777
      %3780 = vset.pattern.permute.xlu0 5
      %3781 = vperm.xlu0 %3780, %v3643
      %v3782 = vpop.permute.xlu0 %3781
      %v3784 = vlaneseq
      %v3785 = vshrl.u32 %v3784, 7
      %v3786 = vsub.s32 2, %v3785
      %v3787 = vrot.slane %v461, %v3786
      %v3788 = vlaneseq
      %v3789 = vshrl.u32 %v3788, 7
      %v3790 = vsub.s32 2, %v3789
      %v3791 = vrot.slane %v462, %v3790
      %v3792 = vmul.f32 %v3778, %v3787
      %v3793 = vmul.f32 %v3778, %v3791
      %v3794 = vmul.f32 %v3782, %v3787
      %v3795 = vmul.f32 %v3782, %v3791
      %v3796 = vadd.f32 %v3772, %v3792
      %v3797 = vadd.f32 %v3773, %v3793
      %v3798 = vadd.f32 %v3774, %v3794
      %v3799 = vadd.f32 %v3775, %v3795
      %3800 = vset.pattern.permute.xlu0 6
      %3801 = vperm.xlu0 %3800, %v3642
      %v3802 = vpop.permute.xlu0 %3801
      %3804 = vset.pattern.permute.xlu0 6
      %3805 = vperm.xlu0 %3804, %v3643
      %v3806 = vpop.permute.xlu0 %3805
      %v3808 = vlaneseq
      %v3809 = vshrl.u32 %v3808, 7
      %v3810 = vsub.s32 2, %v3809
      %v3811 = vrot.slane %v492, %v3810
      %v3812 = vlaneseq
      %v3813 = vshrl.u32 %v3812, 7
      %v3814 = vsub.s32 2, %v3813
      %v3815 = vrot.slane %v493, %v3814
      %v3816 = vmul.f32 %v3802, %v3811
      %v3817 = vmul.f32 %v3802, %v3815
      %v3818 = vmul.f32 %v3806, %v3811
      %v3819 = vmul.f32 %v3806, %v3815
      %v3820 = vadd.f32 %v3796, %v3816
      %v3821 = vadd.f32 %v3797, %v3817
      %v3822 = vadd.f32 %v3798, %v3818
      %v3823 = vadd.f32 %v3799, %v3819
      %3824 = vset.pattern.permute.xlu0 7
      %3825 = vperm.xlu0 %3824, %v3642
      %v3826 = vpop.permute.xlu0 %3825
      %3828 = vset.pattern.permute.xlu0 7
      %3829 = vperm.xlu0 %3828, %v3643
      %v3830 = vpop.permute.xlu0 %3829
      %v3832 = vlaneseq
      %v3833 = vshrl.u32 %v3832, 7
      %v3834 = vsub.s32 2, %v3833
      %v3835 = vrot.slane %v468, %v3834
      %v3836 = vlaneseq
      %v3837 = vshrl.u32 %v3836, 7
      %v3838 = vsub.s32 2, %v3837
      %v3839 = vrot.slane %v472, %v3838
      %v3840 = vmul.f32 %v3826, %v3835
      %v3841 = vmul.f32 %v3826, %v3839
      %v3842 = vmul.f32 %v3830, %v3835
      %v3843 = vmul.f32 %v3830, %v3839
      %v3844 = vadd.f32 %v3820, %v3840
      %v3845 = vadd.f32 %v3821, %v3841
      %v3846 = vadd.f32 %v3822, %v3842
      %v3847 = vadd.f32 %v3823, %v3843
      %3848 = vset.pattern.permute.xlu0 8
      %3849 = vperm.xlu0 %3848, %v3642
      %v3850 = vpop.permute.xlu0 %3849
      %3852 = vset.pattern.permute.xlu0 8
      %3853 = vperm.xlu0 %3852, %v3643
      %v3854 = vpop.permute.xlu0 %3853
      %v3856 = vlaneseq
      %v3857 = vshrl.u32 %v3856, 7
      %v3858 = vsub.s32 2, %v3857
      %v3859 = vrot.slane %v512, %v3858
      %v3860 = vlaneseq
      %v3861 = vshrl.u32 %v3860, 7
      %v3862 = vsub.s32 2, %v3861
      %v3863 = vrot.slane %v513, %v3862
      %v3864 = vmul.f32 %v3850, %v3859
      %v3865 = vmul.f32 %v3850, %v3863
      %v3866 = vmul.f32 %v3854, %v3859
      %v3867 = vmul.f32 %v3854, %v3863
      %v3868 = vadd.f32 %v3844, %v3864
      %v3869 = vadd.f32 %v3845, %v3865
      %v3870 = vadd.f32 %v3846, %v3866
      %v3871 = vadd.f32 %v3847, %v3867
      %v3872 = vld [vmem:[%s2] sm:$0xff]
      %v3873 = vld [vmem:[%s2 + $0x8] sm:$0xff]
      %3875 = vset.pattern.permute.xlu0 0
      %3876 = vperm.xlu0 %3875, %v3872
      %v3877 = vpop.permute.xlu0 %3876
      %3880 = vset.pattern.permute.xlu0 0
      %3881 = vperm.xlu0 %3880, %v3873
      %v3882 = vpop.permute.xlu0 %3881
      %v3884 = vadd.f32 %v3868, %v3877
      %v3885 = vadd.f32 %v3869, %v3877
      %v3886 = vadd.f32 %v3870, %v3882
      %v3887 = vadd.f32 %v3871, %v3882
      %v3888 = vmax.f32 %v3884, 0.0
      %v3889 = vmax.f32 %v3885, 0.0
      %v3890 = vmax.f32 %v3886, 0.0
      %v3891 = vmax.f32 %v3887, 0.0
      %3894 = vrot.lane.b32.xlu0 %v3889, 16
      %v3895 = vpop.permute.xlu0 %3894
      %3896 = vrot.lane.b32.xlu0 %v3891, 16
      %v3897 = vpop.permute.xlu0 %3896
      %3902 = vrot.lane.b32.xlu0 %v3888, 16
      %v3903 = vpop.permute.xlu0 %3902
      %3904 = vrot.lane.b32.xlu0 %v3890, 16
      %v3905 = vpop.permute.xlu0 %3904
      %v3906 = vsel %vm369, %v3903, %v3895
      %v3907 = vsel %vm369, %v3905, %v3897
      %v3912 = vsel %vm369, %v3895, %v3903
      %v3913 = vsel %vm369, %v3897, %v3905
      %3914 = vrot.lane.b32.xlu0 %v3906, 1
      %v3915 = vpop.permute.xlu0 %3914
      %3916 = vrot.lane.b32.xlu0 %v3907, 1
      %v3917 = vpop.permute.xlu0 %3916
      %3922 = vrot.lane.b32.xlu0 %v3912, 1
      %v3923 = vpop.permute.xlu0 %3922
      %3924 = vrot.lane.b32.xlu0 %v3913, 1
      %v3925 = vpop.permute.xlu0 %3924
      %v3926 = vsel %vm380, %v3923, %v3915
      %v3927 = vsel %vm380, %v3925, %v3917
      %v3932 = vsel %vm380, %v3915, %v3923
      %v3933 = vsel %vm380, %v3917, %v3925
      %3934 = vrot.lane.b32.xlu0 %v3912, 113
      %v3935 = vpop.permute.xlu0 %3934
      %3936 = vrot.lane.b32.xlu0 %v3906, 113
      %v3937 = vpop.permute.xlu0 %3936
      %3938 = vrot.lane.b32.xlu0 %v3913, 113
      %v3939 = vpop.permute.xlu0 %3938
      %3940 = vrot.lane.b32.xlu0 %v3907, 113
      %v3941 = vpop.permute.xlu0 %3940
      %v3942 = vsel %vm389, %v3935, %v3937
      %v3943 = vsel %vm389, %v3939, %v3941
      %v3950 = vsel %vm389, %v3937, %v3935
      %v3951 = vsel %vm389, %v3941, %v3939
      %v3952 = vsel %vm395, %v3942, %v3932
      %v3953 = vsel %vm396, %v3950, %v3926
      %v3954 = vsel %vm395, %v3943, %v3933
      %v3955 = vsel %vm396, %v3951, %v3927
      %v3956 = vld [vmem:[%s3] sm:$0xff]
      %v3957 = vld [vmem:[%s3 + $0x8] sm:$0xff]
      %v3958 = vld [vmem:[%s831] sm:$0xff]
      %v3959 = vld [vmem:[%s831 + $0x8] sm:$0xff]
      %v3961 = vsel %vm369, %v3958, 0
      %v3964 = vsel %vm369, %v3959, 0
      %3966 = vmatprep.subr.mxu0 %v3906
      %3967 = vmatpush1.msra.mxu0 %v3912
      %3968 = vmatprep.subr.mxu0 %v3907
      %3969 = vmatpush1.msra.mxu0 %v3913
      %3970 = vmatprep.subr.mxu0 0.0
      %3971 = vmatpush1.msra.mxu0 0.0
      %3972 = vmatprep.subr.mxu0 0.0
      %3973 = vmatpush1.msra.mxu0 0.0
      %3974 = vmatprep.subr.mxu0 0.0
      %3975 = vmatpush1.msra.mxu0 0.0
      %3976 = vmatprep.subr.mxu0 0.0
      %3977 = vmatpush1.msra.mxu0 0.0
      %3978 = vmatprep.subr.mxu0 0.0
      %3979 = vmatpush1.msra.mxu0 0.0
      %3980 = vmatprep.subr.mxu0 0.0
      %3981 = vmatpush1.msra.mxu0 0.0
      %3982 = vmatprep.subr.mxu0 0.0
      %3983 = vmatpush1.msra.mxu0 0.0
      %3984 = vmatprep.subr.mxu0 0.0
      %3985 = vmatpush1.msra.mxu0 0.0
      %3986 = vmatprep.subr.mxu0 0.0
      %3987 = vmatpush1.msra.mxu0 0.0
      %3988 = vmatprep.subr.mxu0 0.0
      %3989 = vmatpush1.msra.mxu0 0.0
      %3990 = vmatprep.subr.mxu0 0.0
      %3991 = vmatpush1.msra.mxu0 0.0
      %3992 = vmatprep.subr.mxu0 0.0
      %3993 = vmatpush1.msra.mxu0 0.0
      %3994 = vmatprep.subr.mxu0 0.0
      %3995 = vmatpush1.msra.mxu0 0.0
      %3996 = vmatprep.subr.mxu0 0.0
      %3997 = vmatpush1.msra.mxu0 0.0
      %3998 = vmatprep.subr.mxu0 0.0
      %3999 = vmatpush1.msra.mxu0 0.0
      %4000 = vmatprep.subr.mxu0 0.0
      %4001 = vmatpush1.msra.mxu0 0.0
      %4002 = vmatprep.subr.mxu0 0.0
      %4003 = vmatpush1.msra.mxu0 0.0
      %4004 = vmatprep.subr.mxu0 0.0
      %4005 = vmatpush1.msra.mxu0 0.0
      %4006 = vmatprep.subr.mxu0 0.0
      %4007 = vmatpush1.msra.mxu0 0.0
      %4008 = vmatprep.subr.mxu0 0.0
      %4009 = vmatpush1.msra.mxu0 0.0
      %4010 = vmatprep.subr.mxu0 0.0
      %4011 = vmatpush1.msra.mxu0 0.0
      %4012 = vmatprep.subr.mxu0 0.0
      %4013 = vmatpush1.msra.mxu0 0.0
      %4014 = vmatprep.subr.mxu0 0.0
      %4015 = vmatpush1.msra.mxu0 0.0
      %4016 = vmatprep.subr.mxu0 0.0
      %4017 = vmatpush1.msra.mxu0 0.0
      %4018 = vmatprep.subr.mxu0 0.0
      %4019 = vmatpush1.msra.mxu0 0.0
      %4020 = vmatprep.subr.mxu0 0.0
      %4021 = vmatpush1.msra.mxu0 0.0
      %4022 = vmatprep.subr.mxu0 0.0
      %4023 = vmatpush1.msra.mxu0 0.0
      %4024 = vmatprep.subr.mxu0 0.0
      %4025 = vmatpush1.msra.mxu0 0.0
      %4026 = vmatprep.subr.mxu0 0.0
      %4027 = vmatpush1.msra.mxu0 0.0
      %4028 = vmatprep.subr.mxu0 0.0
      %4029 = vmatpush1.msra.mxu0 0.0
      %4030 = vmatprep.mubr.f32.mxu0 0.0
      %4031 = vmatmul.mubr.f32.gmra.mrb[0].mxu0 %v3961
      %v4032 = vpop.f32.mrb[0].mxu0
      %v4033 = vadd.f32 0.0, %v4032
      %v4034 = vpop.f32.mrb[0].mxu0
      %v4035 = vadd.f32 0.0, %v4034
      %4036 = vmatprep.mubr.f32.mxu0 0.0
      %4037 = vmatmul.mubr.f32.gmra.mrb[0].mxu0 %v3964
      %v4038 = vpop.f32.mrb[0].mxu0
      %v4039 = vadd.f32 0.0, %v4038
      %v4040 = vpop.f32.mrb[0].mxu0
      %v4041 = vadd.f32 0.0, %v4040
      %4042 = vdwg.mxu0
      %v4044 = vsel %vm369, %v3956, 0
      %v4047 = vsel %vm369, %v3957, 0
      %4049 = vmatprep.subr.mxu0 %v3953
      %4050 = vmatpush1.msra.mxu0 %v3952
      %4051 = vmatprep.subr.mxu0 %v3955
      %4052 = vmatpush1.msra.mxu0 %v3954
      %4053 = vmatprep.subr.mxu0 0.0
      %4054 = vmatpush1.msra.mxu0 0.0
      %4055 = vmatprep.subr.mxu0 0.0
      %4056 = vmatpush1.msra.mxu0 0.0
      %4057 = vmatprep.subr.mxu0 0.0
      %4058 = vmatpush1.msra.mxu0 0.0
      %4059 = vmatprep.subr.mxu0 0.0
      %4060 = vmatpush1.msra.mxu0 0.0
      %4061 = vmatprep.subr.mxu0 0.0
      %4062 = vmatpush1.msra.mxu0 0.0
      %4063 = vmatprep.subr.mxu0 0.0
      %4064 = vmatpush1.msra.mxu0 0.0
      %4065 = vmatprep.subr.mxu0 0.0
      %4066 = vmatpush1.msra.mxu0 0.0
      %4067 = vmatprep.subr.mxu0 0.0
      %4068 = vmatpush1.msra.mxu0 0.0
      %4069 = vmatprep.subr.mxu0 0.0
      %4070 = vmatpush1.msra.mxu0 0.0
      %4071 = vmatprep.subr.mxu0 0.0
      %4072 = vmatpush1.msra.mxu0 0.0
      %4073 = vmatprep.subr.mxu0 0.0
      %4074 = vmatpush1.msra.mxu0 0.0
      %4075 = vmatprep.subr.mxu0 0.0
      %4076 = vmatpush1.msra.mxu0 0.0
      %4077 = vmatprep.subr.mxu0 0.0
      %4078 = vmatpush1.msra.mxu0 0.0
      %4079 = vmatprep.subr.mxu0 0.0
      %4080 = vmatpush1.msra.mxu0 0.0
      %4081 = vmatprep.subr.mxu0 0.0
      %4082 = vmatpush1.msra.mxu0 0.0
      %4083 = vmatprep.subr.mxu0 0.0
      %4084 = vmatpush1.msra.mxu0 0.0
      %4085 = vmatprep.subr.mxu0 0.0
      %4086 = vmatpush1.msra.mxu0 0.0
      %4087 = vmatprep.subr.mxu0 0.0
      %4088 = vmatpush1.msra.mxu0 0.0
      %4089 = vmatprep.subr.mxu0 0.0
      %4090 = vmatpush1.msra.mxu0 0.0
      %4091 = vmatprep.subr.mxu0 0.0
      %4092 = vmatpush1.msra.mxu0 0.0
      %4093 = vmatprep.subr.mxu0 0.0
      %4094 = vmatpush1.msra.mxu0 0.0
      %4095 = vmatprep.subr.mxu0 0.0
      %4096 = vmatpush1.msra.mxu0 0.0
      %4097 = vmatprep.subr.mxu0 0.0
      %4098 = vmatpush1.msra.mxu0 0.0
      %4099 = vmatprep.subr.mxu0 0.0
      %4100 = vmatpush1.msra.mxu0 0.0
      %4101 = vmatprep.subr.mxu0 0.0
      %4102 = vmatpush1.msra.mxu0 0.0
      %4103 = vmatprep.subr.mxu0 0.0
      %4104 = vmatpush1.msra.mxu0 0.0
      %4105 = vmatprep.subr.mxu0 0.0
      %4106 = vmatpush1.msra.mxu0 0.0
      %4107 = vmatprep.subr.mxu0 0.0
      %4108 = vmatpush1.msra.mxu0 0.0
      %4109 = vmatprep.subr.mxu0 0.0
      %4110 = vmatpush1.msra.mxu0 0.0
      %4111 = vmatprep.subr.mxu0 0.0
      %4112 = vmatpush1.msra.mxu0 0.0
      %4113 = vmatprep.mubr.f32.mxu0 0.0
      %4114 = vmatmul.mubr.f32.gmra.mrb[0].mxu0 %v4044
      %v4115 = vpop.f32.mrb[0].mxu0
      %v4116 = vadd.f32 %v4033, %v4115
      %v4117 = vpop.f32.mrb[0].mxu0
      %v4118 = vadd.f32 %v4035, %v4117
      %4119 = vmatprep.mubr.f32.mxu0 0.0
      %4120 = vmatmul.mubr.f32.gmra.mrb[0].mxu0 %v4047
      %v4121 = vpop.f32.mrb[0].mxu0
      %v4122 = vadd.f32 %v4039, %v4121
      %v4123 = vpop.f32.mrb[0].mxu0
      %v4124 = vadd.f32 %v4041, %v4123
      %4125 = vdwg.mxu0
      %4126 = vrot.lane.b32.xlu0 %v3912, 127
      %v4127 = vpop.permute.xlu0 %4126
      %4128 = vrot.lane.b32.xlu0 %v3906, 127
      %v4129 = vpop.permute.xlu0 %4128
      %4130 = vrot.lane.b32.xlu0 %v3913, 127
      %v4131 = vpop.permute.xlu0 %4130
      %4132 = vrot.lane.b32.xlu0 %v3907, 127
      %v4133 = vpop.permute.xlu0 %4132
      %v4134 = vsel %vm403, %v4127, %v4129
      %v4135 = vsel %vm403, %v4131, %v4133
      %v4142 = vsel %vm403, %v4129, %v4127
      %v4143 = vsel %vm403, %v4133, %v4131
      %4144 = vrot.lane.b32.xlu0 %v3906, 15
      %v4145 = vpop.permute.xlu0 %4144
      %4146 = vrot.lane.b32.xlu0 %v3907, 15
      %v4147 = vpop.permute.xlu0 %4146
      %4150 = vrot.lane.b32.xlu0 %v3912, 15
      %v4151 = vpop.permute.xlu0 %4150
      %4152 = vrot.lane.b32.xlu0 %v3913, 15
      %v4153 = vpop.permute.xlu0 %4152
      %v4154 = vsel %vm414, %v4151, %v4145
      %v4155 = vsel %vm414, %v4153, %v4147
      %v4160 = vsel %vm414, %v4145, %v4151
      %v4161 = vsel %vm414, %v4147, %v4153
      %v4162 = vsel %vm419, %v4160, %v4134
      %v4163 = vsel %vm420, %v4154, %v4142
      %v4164 = vsel %vm419, %v4161, %v4135
      %v4165 = vsel %vm420, %v4155, %v4143
      %v4166 = vld [vmem:[%s1040] sm:$0xff]
      %v4167 = vld [vmem:[%s1040 + $0x8] sm:$0xff]
      %v4169 = vsel %vm369, %v4166, 0
      %v4172 = vsel %vm369, %v4167, 0
      %4174 = vmatprep.subr.mxu0 %v4163
      %4175 = vmatpush1.msra.mxu0 %v4162
      %4176 = vmatprep.subr.mxu0 %v4165
      %4177 = vmatpush1.msra.mxu0 %v4164
      %4178 = vmatprep.subr.mxu0 0.0
      %4179 = vmatpush1.msra.mxu0 0.0
      %4180 = vmatprep.subr.mxu0 0.0
      %4181 = vmatpush1.msra.mxu0 0.0
      %4182 = vmatprep.subr.mxu0 0.0
      %4183 = vmatpush1.msra.mxu0 0.0
      %4184 = vmatprep.subr.mxu0 0.0
      %4185 = vmatpush1.msra.mxu0 0.0
      %4186 = vmatprep.subr.mxu0 0.0
      %4187 = vmatpush1.msra.mxu0 0.0
      %4188 = vmatprep.subr.mxu0 0.0
      %4189 = vmatpush1.msra.mxu0 0.0
      %4190 = vmatprep.subr.mxu0 0.0
      %4191 = vmatpush1.msra.mxu0 0.0
      %4192 = vmatprep.subr.mxu0 0.0
      %4193 = vmatpush1.msra.mxu0 0.0
      %4194 = vmatprep.subr.mxu0 0.0
      %4195 = vmatpush1.msra.mxu0 0.0
      %4196 = vmatprep.subr.mxu0 0.0
      %4197 = vmatpush1.msra.mxu0 0.0
      %4198 = vmatprep.subr.mxu0 0.0
      %4199 = vmatpush1.msra.mxu0 0.0
      %4200 = vmatprep.subr.mxu0 0.0
      %4201 = vmatpush1.msra.mxu0 0.0
      %4202 = vmatprep.subr.mxu0 0.0
      %4203 = vmatpush1.msra.mxu0 0.0
      %4204 = vmatprep.subr.mxu0 0.0
      %4205 = vmatpush1.msra.mxu0 0.0
      %4206 = vmatprep.subr.mxu0 0.0
      %4207 = vmatpush1.msra.mxu0 0.0
      %4208 = vmatprep.subr.mxu0 0.0
      %4209 = vmatpush1.msra.mxu0 0.0
      %4210 = vmatprep.subr.mxu0 0.0
      %4211 = vmatpush1.msra.mxu0 0.0
      %4212 = vmatprep.subr.mxu0 0.0
      %4213 = vmatpush1.msra.mxu0 0.0
      %4214 = vmatprep.subr.mxu0 0.0
      %4215 = vmatpush1.msra.mxu0 0.0
      %4216 = vmatprep.subr.mxu0 0.0
      %4217 = vmatpush1.msra.mxu0 0.0
      %4218 = vmatprep.subr.mxu0 0.0
      %4219 = vmatpush1.msra.mxu0 0.0
      %4220 = vmatprep.subr.mxu0 0.0
      %4221 = vmatpush1.msra.mxu0 0.0
      %4222 = vmatprep.subr.mxu0 0.0
      %4223 = vmatpush1.msra.mxu0 0.0
      %4224 = vmatprep.subr.mxu0 0.0
      %4225 = vmatpush1.msra.mxu0 0.0
      %4226 = vmatprep.subr.mxu0 0.0
      %4227 = vmatpush1.msra.mxu0 0.0
      %4228 = vmatprep.subr.mxu0 0.0
      %4229 = vmatpush1.msra.mxu0 0.0
      %4230 = vmatprep.subr.mxu0 0.0
      %4231 = vmatpush1.msra.mxu0 0.0
      %4232 = vmatprep.subr.mxu0 0.0
      %4233 = vmatpush1.msra.mxu0 0.0
      %4234 = vmatprep.subr.mxu0 0.0
      %4235 = vmatpush1.msra.mxu0 0.0
      %4236 = vmatprep.subr.mxu0 0.0
      %4237 = vmatpush1.msra.mxu0 0.0
      %4238 = vmatprep.mubr.f32.mxu0 0.0
      %4239 = vmatmul.mubr.f32.gmra.mrb[0].mxu0 %v4169
      %v4240 = vpop.f32.mrb[0].mxu0
      %v4241 = vadd.f32 0.0, %v4240
      %v4242 = vpop.f32.mrb[0].mxu0
      %v4243 = vadd.f32 0.0, %v4242
      %4244 = vmatprep.mubr.f32.mxu0 0.0
      %4245 = vmatmul.mubr.f32.gmra.mrb[0].mxu0 %v4172
      %v4246 = vpop.f32.mrb[0].mxu0
      %v4247 = vadd.f32 0.0, %v4246
      %v4248 = vpop.f32.mrb[0].mxu0
      %v4249 = vadd.f32 0.0, %v4248
      %4250 = vdwg.mxu0
      %v4251 = vadd.f32 %v4116, %v4241
      %v4252 = vadd.f32 %v4118, %v4243
      %v4253 = vadd.f32 %v4122, %v4247
      %v4254 = vadd.f32 %v4124, %v4249
      %4255 = vrot.lane.b32.xlu0 %v3889, 1
      %v4256 = vpop.permute.xlu0 %4255
      %4257 = vrot.lane.b32.xlu0 %v3891, 1
      %v4258 = vpop.permute.xlu0 %4257
      %4261 = vrot.lane.b32.xlu0 %v3888, 1
      %v4262 = vpop.permute.xlu0 %4261
      %4263 = vrot.lane.b32.xlu0 %v3890, 1
      %v4264 = vpop.permute.xlu0 %4263
      %v4265 = vsel %vm380, %v4262, %v4256
      %v4266 = vsel %vm380, %v4264, %v4258
      %v4271 = vsel %vm380, %v4256, %v4262
      %v4272 = vsel %vm380, %v4258, %v4264
      %4273 = vrot.lane.b32.xlu0 %v3888, 113
      %v4274 = vpop.permute.xlu0 %4273
      %4275 = vrot.lane.b32.xlu0 %v3889, 113
      %v4276 = vpop.permute.xlu0 %4275
      %4277 = vrot.lane.b32.xlu0 %v3890, 113
      %v4278 = vpop.permute.xlu0 %4277
      %4279 = vrot.lane.b32.xlu0 %v3891, 113
      %v4280 = vpop.permute.xlu0 %4279
      %v4281 = vsel %vm389, %v4274, %v4276
      %v4282 = vsel %vm389, %v4278, %v4280
      %v4289 = vsel %vm389, %v4276, %v4274
      %v4290 = vsel %vm389, %v4280, %v4278
      %v4291 = vsel %vm395, %v4281, %v4271
      %v4292 = vsel %vm396, %v4289, %v4265
      %v4293 = vsel %vm395, %v4282, %v4272
      %v4294 = vsel %vm396, %v4290, %v4266
      %v4295 = vld [vmem:[%s1170] sm:$0xff]
      %v4296 = vld [vmem:[%s1170 + $0x8] sm:$0xff]
      %v4298 = vsel %vm369, %v4295, 0
      %v4301 = vsel %vm369, %v4296, 0
      %4303 = vmatprep.subr.mxu0 %v4292
      %4304 = vmatpush1.msra.mxu0 %v4291
      %4305 = vmatprep.subr.mxu0 %v4294
      %4306 = vmatpush1.msra.mxu0 %v4293
      %4307 = vmatprep.subr.mxu0 0.0
      %4308 = vmatpush1.msra.mxu0 0.0
      %4309 = vmatprep.subr.mxu0 0.0
      %4310 = vmatpush1.msra.mxu0 0.0
      %4311 = vmatprep.subr.mxu0 0.0
      %4312 = vmatpush1.msra.mxu0 0.0
      %4313 = vmatprep.subr.mxu0 0.0
      %4314 = vmatpush1.msra.mxu0 0.0
      %4315 = vmatprep.subr.mxu0 0.0
      %4316 = vmatpush1.msra.mxu0 0.0
      %4317 = vmatprep.subr.mxu0 0.0
      %4318 = vmatpush1.msra.mxu0 0.0
      %4319 = vmatprep.subr.mxu0 0.0
      %4320 = vmatpush1.msra.mxu0 0.0
      %4321 = vmatprep.subr.mxu0 0.0
      %4322 = vmatpush1.msra.mxu0 0.0
      %4323 = vmatprep.subr.mxu0 0.0
      %4324 = vmatpush1.msra.mxu0 0.0
      %4325 = vmatprep.subr.mxu0 0.0
      %4326 = vmatpush1.msra.mxu0 0.0
      %4327 = vmatprep.subr.mxu0 0.0
      %4328 = vmatpush1.msra.mxu0 0.0
      %4329 = vmatprep.subr.mxu0 0.0
      %4330 = vmatpush1.msra.mxu0 0.0
      %4331 = vmatprep.subr.mxu0 0.0
      %4332 = vmatpush1.msra.mxu0 0.0
      %4333 = vmatprep.subr.mxu0 0.0
      %4334 = vmatpush1.msra.mxu0 0.0
      %4335 = vmatprep.subr.mxu0 0.0
      %4336 = vmatpush1.msra.mxu0 0.0
      %4337 = vmatprep.subr.mxu0 0.0
      %4338 = vmatpush1.msra.mxu0 0.0
      %4339 = vmatprep.subr.mxu0 0.0
      %4340 = vmatpush1.msra.mxu0 0.0
      %4341 = vmatprep.subr.mxu0 0.0
      %4342 = vmatpush1.msra.mxu0 0.0
      %4343 = vmatprep.subr.mxu0 0.0
      %4344 = vmatpush1.msra.mxu0 0.0
      %4345 = vmatprep.subr.mxu0 0.0
      %4346 = vmatpush1.msra.mxu0 0.0
      %4347 = vmatprep.subr.mxu0 0.0
      %4348 = vmatpush1.msra.mxu0 0.0
      %4349 = vmatprep.subr.mxu0 0.0
      %4350 = vmatpush1.msra.mxu0 0.0
      %4351 = vmatprep.subr.mxu0 0.0
      %4352 = vmatpush1.msra.mxu0 0.0
      %4353 = vmatprep.subr.mxu0 0.0
      %4354 = vmatpush1.msra.mxu0 0.0
      %4355 = vmatprep.subr.mxu0 0.0
      %4356 = vmatpush1.msra.mxu0 0.0
      %4357 = vmatprep.subr.mxu0 0.0
      %4358 = vmatpush1.msra.mxu0 0.0
      %4359 = vmatprep.subr.mxu0 0.0
      %4360 = vmatpush1.msra.mxu0 0.0
      %4361 = vmatprep.subr.mxu0 0.0
      %4362 = vmatpush1.msra.mxu0 0.0
      %4363 = vmatprep.subr.mxu0 0.0
      %4364 = vmatpush1.msra.mxu0 0.0
      %4365 = vmatprep.subr.mxu0 0.0
      %4366 = vmatpush1.msra.mxu0 0.0
      %4367 = vmatprep.mubr.f32.mxu0 0.0
      %4368 = vmatmul.mubr.f32.gmra.mrb[0].mxu0 %v4298
      %v4369 = vpop.f32.mrb[0].mxu0
      %v4370 = vadd.f32 0.0, %v4369
      %v4371 = vpop.f32.mrb[0].mxu0
      %v4372 = vadd.f32 0.0, %v4371
      %4373 = vmatprep.mubr.f32.mxu0 0.0
      %4374 = vmatmul.mubr.f32.gmra.mrb[0].mxu0 %v4301
      %v4375 = vpop.f32.mrb[0].mxu0
      %v4376 = vadd.f32 0.0, %v4375
      %v4377 = vpop.f32.mrb[0].mxu0
      %v4378 = vadd.f32 0.0, %v4377
      %4379 = vdwg.mxu0
      %v4380 = vadd.f32 %v4251, %v4370
      %v4381 = vadd.f32 %v4252, %v4372
      %v4382 = vadd.f32 %v4253, %v4376
      %v4383 = vadd.f32 %v4254, %v4378
      %v4384 = vld [vmem:[%s1260] sm:$0xff]
      %v4385 = vld [vmem:[%s1260 + $0x8] sm:$0xff]
      %v4387 = vsel %vm369, %v4384, 0
      %v4390 = vsel %vm369, %v4385, 0
      %4392 = vmatprep.subr.mxu0 %v3889
      %4393 = vmatpush1.msra.mxu0 %v3888
      %4394 = vmatprep.subr.mxu0 %v3891
      %4395 = vmatpush1.msra.mxu0 %v3890
      %4396 = vmatprep.subr.mxu0 0.0
      %4397 = vmatpush1.msra.mxu0 0.0
      %4398 = vmatprep.subr.mxu0 0.0
      %4399 = vmatpush1.msra.mxu0 0.0
      %4400 = vmatprep.subr.mxu0 0.0
      %4401 = vmatpush1.msra.mxu0 0.0
      %4402 = vmatprep.subr.mxu0 0.0
      %4403 = vmatpush1.msra.mxu0 0.0
      %4404 = vmatprep.subr.mxu0 0.0
      %4405 = vmatpush1.msra.mxu0 0.0
      %4406 = vmatprep.subr.mxu0 0.0
      %4407 = vmatpush1.msra.mxu0 0.0
      %4408 = vmatprep.subr.mxu0 0.0
      %4409 = vmatpush1.msra.mxu0 0.0
      %4410 = vmatprep.subr.mxu0 0.0
      %4411 = vmatpush1.msra.mxu0 0.0
      %4412 = vmatprep.subr.mxu0 0.0
      %4413 = vmatpush1.msra.mxu0 0.0
      %4414 = vmatprep.subr.mxu0 0.0
      %4415 = vmatpush1.msra.mxu0 0.0
      %4416 = vmatprep.subr.mxu0 0.0
      %4417 = vmatpush1.msra.mxu0 0.0
      %4418 = vmatprep.subr.mxu0 0.0
      %4419 = vmatpush1.msra.mxu0 0.0
      %4420 = vmatprep.subr.mxu0 0.0
      %4421 = vmatpush1.msra.mxu0 0.0
      %4422 = vmatprep.subr.mxu0 0.0
      %4423 = vmatpush1.msra.mxu0 0.0
      %4424 = vmatprep.subr.mxu0 0.0
      %4425 = vmatpush1.msra.mxu0 0.0
      %4426 = vmatprep.subr.mxu0 0.0
      %4427 = vmatpush1.msra.mxu0 0.0
      %4428 = vmatprep.subr.mxu0 0.0
      %4429 = vmatpush1.msra.mxu0 0.0
      %4430 = vmatprep.subr.mxu0 0.0
      %4431 = vmatpush1.msra.mxu0 0.0
      %4432 = vmatprep.subr.mxu0 0.0
      %4433 = vmatpush1.msra.mxu0 0.0
      %4434 = vmatprep.subr.mxu0 0.0
      %4435 = vmatpush1.msra.mxu0 0.0
      %4436 = vmatprep.subr.mxu0 0.0
      %4437 = vmatpush1.msra.mxu0 0.0
      %4438 = vmatprep.subr.mxu0 0.0
      %4439 = vmatpush1.msra.mxu0 0.0
      %4440 = vmatprep.subr.mxu0 0.0
      %4441 = vmatpush1.msra.mxu0 0.0
      %4442 = vmatprep.subr.mxu0 0.0
      %4443 = vmatpush1.msra.mxu0 0.0
      %4444 = vmatprep.subr.mxu0 0.0
      %4445 = vmatpush1.msra.mxu0 0.0
      %4446 = vmatprep.subr.mxu0 0.0
      %4447 = vmatpush1.msra.mxu0 0.0
      %4448 = vmatprep.subr.mxu0 0.0
      %4449 = vmatpush1.msra.mxu0 0.0
      %4450 = vmatprep.subr.mxu0 0.0
      %4451 = vmatpush1.msra.mxu0 0.0
      %4452 = vmatprep.subr.mxu0 0.0
      %4453 = vmatpush1.msra.mxu0 0.0
      %4454 = vmatprep.subr.mxu0 0.0
      %4455 = vmatpush1.msra.mxu0 0.0
      %4456 = vmatprep.mubr.f32.mxu0 0.0
      %4457 = vmatmul.mubr.f32.gmra.mrb[0].mxu0 %v4387
      %v4458 = vpop.f32.mrb[0].mxu0
      %v4459 = vadd.f32 0.0, %v4458
      %v4460 = vpop.f32.mrb[0].mxu0
      %v4461 = vadd.f32 0.0, %v4460
      %4462 = vmatprep.mubr.f32.mxu0 0.0
      %4463 = vmatmul.mubr.f32.gmra.mrb[0].mxu0 %v4390
      %v4464 = vpop.f32.mrb[0].mxu0
      %v4465 = vadd.f32 0.0, %v4464
      %v4466 = vpop.f32.mrb[0].mxu0
      %v4467 = vadd.f32 0.0, %v4466
      %4468 = vdwg.mxu0
      %v4469 = vadd.f32 %v4380, %v4459
      %v4470 = vadd.f32 %v4381, %v4461
      %v4471 = vadd.f32 %v4382, %v4465
      %v4472 = vadd.f32 %v4383, %v4467
      %4473 = vrot.lane.b32.xlu0 %v3888, 127
      %v4474 = vpop.permute.xlu0 %4473
      %4475 = vrot.lane.b32.xlu0 %v3889, 127
      %v4476 = vpop.permute.xlu0 %4475
      %4477 = vrot.lane.b32.xlu0 %v3890, 127
      %v4478 = vpop.permute.xlu0 %4477
      %4479 = vrot.lane.b32.xlu0 %v3891, 127
      %v4480 = vpop.permute.xlu0 %4479
      %v4481 = vsel %vm403, %v4474, %v4476
      %v4482 = vsel %vm403, %v4478, %v4480
      %v4489 = vsel %vm403, %v4476, %v4474
      %v4490 = vsel %vm403, %v4480, %v4478
      %4491 = vrot.lane.b32.xlu0 %v3889, 15
      %v4492 = vpop.permute.xlu0 %4491
      %4493 = vrot.lane.b32.xlu0 %v3891, 15
      %v4494 = vpop.permute.xlu0 %4493
      %4497 = vrot.lane.b32.xlu0 %v3888, 15
      %v4498 = vpop.permute.xlu0 %4497
      %4499 = vrot.lane.b32.xlu0 %v3890, 15
      %v4500 = vpop.permute.xlu0 %4499
      %v4501 = vsel %vm414, %v4498, %v4492
      %v4502 = vsel %vm414, %v4500, %v4494
      %v4507 = vsel %vm414, %v4492, %v4498
      %v4508 = vsel %vm414, %v4494, %v4500
      %v4509 = vsel %vm419, %v4507, %v4481
      %v4510 = vsel %vm420, %v4501, %v4489
      %v4511 = vsel %vm419, %v4508, %v4482
      %v4512 = vsel %vm420, %v4502, %v4490
      %v4513 = vld [vmem:[%s1390] sm:$0xff]
      %v4514 = vld [vmem:[%s1390 + $0x8] sm:$0xff]
      %v4516 = vsel %vm369, %v4513, 0
      %v4519 = vsel %vm369, %v4514, 0
      %4521 = vmatprep.subr.mxu0 %v4510
      %4522 = vmatpush1.msra.mxu0 %v4509
      %4523 = vmatprep.subr.mxu0 %v4512
      %4524 = vmatpush1.msra.mxu0 %v4511
      %4525 = vmatprep.subr.mxu0 0.0
      %4526 = vmatpush1.msra.mxu0 0.0
      %4527 = vmatprep.subr.mxu0 0.0
      %4528 = vmatpush1.msra.mxu0 0.0
      %4529 = vmatprep.subr.mxu0 0.0
      %4530 = vmatpush1.msra.mxu0 0.0
      %4531 = vmatprep.subr.mxu0 0.0
      %4532 = vmatpush1.msra.mxu0 0.0
      %4533 = vmatprep.subr.mxu0 0.0
      %4534 = vmatpush1.msra.mxu0 0.0
      %4535 = vmatprep.subr.mxu0 0.0
      %4536 = vmatpush1.msra.mxu0 0.0
      %4537 = vmatprep.subr.mxu0 0.0
      %4538 = vmatpush1.msra.mxu0 0.0
      %4539 = vmatprep.subr.mxu0 0.0
      %4540 = vmatpush1.msra.mxu0 0.0
      %4541 = vmatprep.subr.mxu0 0.0
      %4542 = vmatpush1.msra.mxu0 0.0
      %4543 = vmatprep.subr.mxu0 0.0
      %4544 = vmatpush1.msra.mxu0 0.0
      %4545 = vmatprep.subr.mxu0 0.0
      %4546 = vmatpush1.msra.mxu0 0.0
      %4547 = vmatprep.subr.mxu0 0.0
      %4548 = vmatpush1.msra.mxu0 0.0
      %4549 = vmatprep.subr.mxu0 0.0
      %4550 = vmatpush1.msra.mxu0 0.0
      %4551 = vmatprep.subr.mxu0 0.0
      %4552 = vmatpush1.msra.mxu0 0.0
      %4553 = vmatprep.subr.mxu0 0.0
      %4554 = vmatpush1.msra.mxu0 0.0
      %4555 = vmatprep.subr.mxu0 0.0
      %4556 = vmatpush1.msra.mxu0 0.0
      %4557 = vmatprep.subr.mxu0 0.0
      %4558 = vmatpush1.msra.mxu0 0.0
      %4559 = vmatprep.subr.mxu0 0.0
      %4560 = vmatpush1.msra.mxu0 0.0
      %4561 = vmatprep.subr.mxu0 0.0
      %4562 = vmatpush1.msra.mxu0 0.0
      %4563 = vmatprep.subr.mxu0 0.0
      %4564 = vmatpush1.msra.mxu0 0.0
      %4565 = vmatprep.subr.mxu0 0.0
      %4566 = vmatpush1.msra.mxu0 0.0
      %4567 = vmatprep.subr.mxu0 0.0
      %4568 = vmatpush1.msra.mxu0 0.0
      %4569 = vmatprep.subr.mxu0 0.0
      %4570 = vmatpush1.msra.mxu0 0.0
      %4571 = vmatprep.subr.mxu0 0.0
      %4572 = vmatpush1.msra.mxu0 0.0
      %4573 = vmatprep.subr.mxu0 0.0
      %4574 = vmatpush1.msra.mxu0 0.0
      %4575 = vmatprep.subr.mxu0 0.0
      %4576 = vmatpush1.msra.mxu0 0.0
      %4577 = vmatprep.subr.mxu0 0.0
      %4578 = vmatpush1.msra.mxu0 0.0
      %4579 = vmatprep.subr.mxu0 0.0
      %4580 = vmatpush1.msra.mxu0 0.0
      %4581 = vmatprep.subr.mxu0 0.0
      %4582 = vmatpush1.msra.mxu0 0.0
      %4583 = vmatprep.subr.mxu0 0.0
      %4584 = vmatpush1.msra.mxu0 0.0
      %4585 = vmatprep.mubr.f32.mxu0 0.0
      %4586 = vmatmul.mubr.f32.gmra.mrb[0].mxu0 %v4516
      %v4587 = vpop.f32.mrb[0].mxu0
      %v4588 = vadd.f32 0.0, %v4587
      %v4589 = vpop.f32.mrb[0].mxu0
      %v4590 = vadd.f32 0.0, %v4589
      %4591 = vmatprep.mubr.f32.mxu0 0.0
      %4592 = vmatmul.mubr.f32.gmra.mrb[0].mxu0 %v4519
      %v4593 = vpop.f32.mrb[0].mxu0
      %v4594 = vadd.f32 0.0, %v4593
      %v4595 = vpop.f32.mrb[0].mxu0
      %v4596 = vadd.f32 0.0, %v4595
      %4597 = vdwg.mxu0
      %v4598 = vadd.f32 %v4469, %v4588
      %v4599 = vadd.f32 %v4470, %v4590
      %v4600 = vadd.f32 %v4471, %v4594
      %v4601 = vadd.f32 %v4472, %v4596
      %4602 = vrot.lane.b32.xlu0 %v3888, 112
      %v4603 = vpop.permute.xlu0 %4602
      %4604 = vrot.lane.b32.xlu0 %v3889, 112
      %v4605 = vpop.permute.xlu0 %4604
      %4606 = vrot.lane.b32.xlu0 %v3890, 112
      %v4607 = vpop.permute.xlu0 %4606
      %4608 = vrot.lane.b32.xlu0 %v3891, 112
      %v4609 = vpop.permute.xlu0 %4608
      %v4610 = vsel %vm467, %v4603, %v4605
      %v4611 = vsel %vm467, %v4607, %v4609
      %v4618 = vsel %vm467, %v4605, %v4603
      %v4619 = vsel %vm467, %v4609, %v4607
      %4622 = vrot.lane.b32.xlu0 %v4618, 1
      %v4623 = vpop.permute.xlu0 %4622
      %4624 = vrot.lane.b32.xlu0 %v4619, 1
      %v4625 = vpop.permute.xlu0 %4624
      %4628 = vrot.lane.b32.xlu0 %v4610, 1
      %v4629 = vpop.permute.xlu0 %4628
      %4630 = vrot.lane.b32.xlu0 %v4611, 1
      %v4631 = vpop.permute.xlu0 %4630
      %v4632 = vsel %vm380, %v4629, %v4623
      %v4633 = vsel %vm380, %v4631, %v4625
      %v4638 = vsel %vm380, %v4623, %v4629
      %v4639 = vsel %vm380, %v4625, %v4631
      %4640 = vrot.lane.b32.xlu0 %v4610, 113
      %v4641 = vpop.permute.xlu0 %4640
      %4642 = vrot.lane.b32.xlu0 %v4618, 113
      %v4643 = vpop.permute.xlu0 %4642
      %4644 = vrot.lane.b32.xlu0 %v4611, 113
      %v4645 = vpop.permute.xlu0 %4644
      %4646 = vrot.lane.b32.xlu0 %v4619, 113
      %v4647 = vpop.permute.xlu0 %4646
      %v4648 = vsel %vm389, %v4641, %v4643
      %v4649 = vsel %vm389, %v4645, %v4647
      %v4656 = vsel %vm389, %v4643, %v4641
      %v4657 = vsel %vm389, %v4647, %v4645
      %v4658 = vsel %vm395, %v4648, %v4638
      %v4659 = vsel %vm396, %v4656, %v4632
      %v4660 = vsel %vm395, %v4649, %v4639
      %v4661 = vsel %vm396, %v4657, %v4633
      %v4662 = vld [vmem:[%s1540] sm:$0xff]
      %v4663 = vld [vmem:[%s1540 + $0x8] sm:$0xff]
      %v4665 = vsel %vm369, %v4662, 0
      %v4668 = vsel %vm369, %v4663, 0
      %4670 = vmatprep.subr.mxu0 %v4659
      %4671 = vmatpush1.msra.mxu0 %v4658
      %4672 = vmatprep.subr.mxu0 %v4661
      %4673 = vmatpush1.msra.mxu0 %v4660
      %4674 = vmatprep.subr.mxu0 0.0
      %4675 = vmatpush1.msra.mxu0 0.0
      %4676 = vmatprep.subr.mxu0 0.0
      %4677 = vmatpush1.msra.mxu0 0.0
      %4678 = vmatprep.subr.mxu0 0.0
      %4679 = vmatpush1.msra.mxu0 0.0
      %4680 = vmatprep.subr.mxu0 0.0
      %4681 = vmatpush1.msra.mxu0 0.0
      %4682 = vmatprep.subr.mxu0 0.0
      %4683 = vmatpush1.msra.mxu0 0.0
      %4684 = vmatprep.subr.mxu0 0.0
      %4685 = vmatpush1.msra.mxu0 0.0
      %4686 = vmatprep.subr.mxu0 0.0
      %4687 = vmatpush1.msra.mxu0 0.0
      %4688 = vmatprep.subr.mxu0 0.0
      %4689 = vmatpush1.msra.mxu0 0.0
      %4690 = vmatprep.subr.mxu0 0.0
      %4691 = vmatpush1.msra.mxu0 0.0
      %4692 = vmatprep.subr.mxu0 0.0
      %4693 = vmatpush1.msra.mxu0 0.0
      %4694 = vmatprep.subr.mxu0 0.0
      %4695 = vmatpush1.msra.mxu0 0.0
      %4696 = vmatprep.subr.mxu0 0.0
      %4697 = vmatpush1.msra.mxu0 0.0
      %4698 = vmatprep.subr.mxu0 0.0
      %4699 = vmatpush1.msra.mxu0 0.0
      %4700 = vmatprep.subr.mxu0 0.0
      %4701 = vmatpush1.msra.mxu0 0.0
      %4702 = vmatprep.subr.mxu0 0.0
      %4703 = vmatpush1.msra.mxu0 0.0
      %4704 = vmatprep.subr.mxu0 0.0
      %4705 = vmatpush1.msra.mxu0 0.0
      %4706 = vmatprep.subr.mxu0 0.0
      %4707 = vmatpush1.msra.mxu0 0.0
      %4708 = vmatprep.subr.mxu0 0.0
      %4709 = vmatpush1.msra.mxu0 0.0
      %4710 = vmatprep.subr.mxu0 0.0
      %4711 = vmatpush1.msra.mxu0 0.0
      %4712 = vmatprep.subr.mxu0 0.0
      %4713 = vmatpush1.msra.mxu0 0.0
      %4714 = vmatprep.subr.mxu0 0.0
      %4715 = vmatpush1.msra.mxu0 0.0
      %4716 = vmatprep.subr.mxu0 0.0
      %4717 = vmatpush1.msra.mxu0 0.0
      %4718 = vmatprep.subr.mxu0 0.0
      %4719 = vmatpush1.msra.mxu0 0.0
      %4720 = vmatprep.subr.mxu0 0.0
      %4721 = vmatpush1.msra.mxu0 0.0
      %4722 = vmatprep.subr.mxu0 0.0
      %4723 = vmatpush1.msra.mxu0 0.0
      %4724 = vmatprep.subr.mxu0 0.0
      %4725 = vmatpush1.msra.mxu0 0.0
      %4726 = vmatprep.subr.mxu0 0.0
      %4727 = vmatpush1.msra.mxu0 0.0
      %4728 = vmatprep.subr.mxu0 0.0
      %4729 = vmatpush1.msra.mxu0 0.0
      %4730 = vmatprep.subr.mxu0 0.0
      %4731 = vmatpush1.msra.mxu0 0.0
      %4732 = vmatprep.subr.mxu0 0.0
      %4733 = vmatpush1.msra.mxu0 0.0
      %4734 = vmatprep.mubr.f32.mxu0 0.0
      %4735 = vmatmul.mubr.f32.gmra.mrb[0].mxu0 %v4665
      %v4736 = vpop.f32.mrb[0].mxu0
      %v4737 = vadd.f32 0.0, %v4736
      %v4738 = vpop.f32.mrb[0].mxu0
      %v4739 = vadd.f32 0.0, %v4738
      %4740 = vmatprep.mubr.f32.mxu0 0.0
      %4741 = vmatmul.mubr.f32.gmra.mrb[0].mxu0 %v4668
      %v4742 = vpop.f32.mrb[0].mxu0
      %v4743 = vadd.f32 0.0, %v4742
      %v4744 = vpop.f32.mrb[0].mxu0
      %v4745 = vadd.f32 0.0, %v4744
      %4746 = vdwg.mxu0
      %v4747 = vadd.f32 %v4598, %v4737
      %v4748 = vadd.f32 %v4599, %v4739
      %v4749 = vadd.f32 %v4600, %v4743
      %v4750 = vadd.f32 %v4601, %v4745
      %v4751 = vld [vmem:[%s1630] sm:$0xff]
      %v4752 = vld [vmem:[%s1630 + $0x8] sm:$0xff]
      %v4754 = vsel %vm369, %v4751, 0
      %v4757 = vsel %vm369, %v4752, 0
      %4759 = vmatprep.subr.mxu0 %v4618
      %4760 = vmatpush1.msra.mxu0 %v4610
      %4761 = vmatprep.subr.mxu0 %v4619
      %4762 = vmatpush1.msra.mxu0 %v4611
      %4763 = vmatprep.subr.mxu0 0.0
      %4764 = vmatpush1.msra.mxu0 0.0
      %4765 = vmatprep.subr.mxu0 0.0
      %4766 = vmatpush1.msra.mxu0 0.0
      %4767 = vmatprep.subr.mxu0 0.0
      %4768 = vmatpush1.msra.mxu0 0.0
      %4769 = vmatprep.subr.mxu0 0.0
      %4770 = vmatpush1.msra.mxu0 0.0
      %4771 = vmatprep.subr.mxu0 0.0
      %4772 = vmatpush1.msra.mxu0 0.0
      %4773 = vmatprep.subr.mxu0 0.0
      %4774 = vmatpush1.msra.mxu0 0.0
      %4775 = vmatprep.subr.mxu0 0.0
      %4776 = vmatpush1.msra.mxu0 0.0
      %4777 = vmatprep.subr.mxu0 0.0
      %4778 = vmatpush1.msra.mxu0 0.0
      %4779 = vmatprep.subr.mxu0 0.0
      %4780 = vmatpush1.msra.mxu0 0.0
      %4781 = vmatprep.subr.mxu0 0.0
      %4782 = vmatpush1.msra.mxu0 0.0
      %4783 = vmatprep.subr.mxu0 0.0
      %4784 = vmatpush1.msra.mxu0 0.0
      %4785 = vmatprep.subr.mxu0 0.0
      %4786 = vmatpush1.msra.mxu0 0.0
      %4787 = vmatprep.subr.mxu0 0.0
      %4788 = vmatpush1.msra.mxu0 0.0
      %4789 = vmatprep.subr.mxu0 0.0
      %4790 = vmatpush1.msra.mxu0 0.0
      %4791 = vmatprep.subr.mxu0 0.0
      %4792 = vmatpush1.msra.mxu0 0.0
      %4793 = vmatprep.subr.mxu0 0.0
      %4794 = vmatpush1.msra.mxu0 0.0
      %4795 = vmatprep.subr.mxu0 0.0
      %4796 = vmatpush1.msra.mxu0 0.0
      %4797 = vmatprep.subr.mxu0 0.0
      %4798 = vmatpush1.msra.mxu0 0.0
      %4799 = vmatprep.subr.mxu0 0.0
      %4800 = vmatpush1.msra.mxu0 0.0
      %4801 = vmatprep.subr.mxu0 0.0
      %4802 = vmatpush1.msra.mxu0 0.0
      %4803 = vmatprep.subr.mxu0 0.0
      %4804 = vmatpush1.msra.mxu0 0.0
      %4805 = vmatprep.subr.mxu0 0.0
      %4806 = vmatpush1.msra.mxu0 0.0
      %4807 = vmatprep.subr.mxu0 0.0
      %4808 = vmatpush1.msra.mxu0 0.0
      %4809 = vmatprep.subr.mxu0 0.0
      %4810 = vmatpush1.msra.mxu0 0.0
      %4811 = vmatprep.subr.mxu0 0.0
      %4812 = vmatpush1.msra.mxu0 0.0
      %4813 = vmatprep.subr.mxu0 0.0
      %4814 = vmatpush1.msra.mxu0 0.0
      %4815 = vmatprep.subr.mxu0 0.0
      %4816 = vmatpush1.msra.mxu0 0.0
      %4817 = vmatprep.subr.mxu0 0.0
      %4818 = vmatpush1.msra.mxu0 0.0
      %4819 = vmatprep.subr.mxu0 0.0
      %4820 = vmatpush1.msra.mxu0 0.0
      %4821 = vmatprep.subr.mxu0 0.0
      %4822 = vmatpush1.msra.mxu0 0.0
      %4823 = vmatprep.mubr.f32.mxu0 0.0
      %4824 = vmatmul.mubr.f32.gmra.mrb[0].mxu0 %v4754
      %v4825 = vpop.f32.mrb[0].mxu0
      %v4826 = vadd.f32 0.0, %v4825
      %v4827 = vpop.f32.mrb[0].mxu0
      %v4828 = vadd.f32 0.0, %v4827
      %4829 = vmatprep.mubr.f32.mxu0 0.0
      %4830 = vmatmul.mubr.f32.gmra.mrb[0].mxu0 %v4757
      %v4831 = vpop.f32.mrb[0].mxu0
      %v4832 = vadd.f32 0.0, %v4831
      %v4833 = vpop.f32.mrb[0].mxu0
      %v4834 = vadd.f32 0.0, %v4833
      %4835 = vdwg.mxu0
      %v4836 = vadd.f32 %v4747, %v4826
      %v4837 = vadd.f32 %v4748, %v4828
      %v4838 = vadd.f32 %v4749, %v4832
      %v4839 = vadd.f32 %v4750, %v4834
      %4840 = vrot.lane.b32.xlu0 %v4610, 127
      %v4841 = vpop.permute.xlu0 %4840
      %4842 = vrot.lane.b32.xlu0 %v4618, 127
      %v4843 = vpop.permute.xlu0 %4842
      %4844 = vrot.lane.b32.xlu0 %v4611, 127
      %v4845 = vpop.permute.xlu0 %4844
      %4846 = vrot.lane.b32.xlu0 %v4619, 127
      %v4847 = vpop.permute.xlu0 %4846
      %v4848 = vsel %vm403, %v4841, %v4843
      %v4849 = vsel %vm403, %v4845, %v4847
      %v4856 = vsel %vm403, %v4843, %v4841
      %v4857 = vsel %vm403, %v4847, %v4845
      %4858 = vrot.lane.b32.xlu0 %v4618, 15
      %v4859 = vpop.permute.xlu0 %4858
      %4860 = vrot.lane.b32.xlu0 %v4619, 15
      %v4861 = vpop.permute.xlu0 %4860
      %4864 = vrot.lane.b32.xlu0 %v4610, 15
      %v4865 = vpop.permute.xlu0 %4864
      %4866 = vrot.lane.b32.xlu0 %v4611, 15
      %v4867 = vpop.permute.xlu0 %4866
      %v4868 = vsel %vm414, %v4865, %v4859
      %v4869 = vsel %vm414, %v4867, %v4861
      %v4874 = vsel %vm414, %v4859, %v4865
      %v4875 = vsel %vm414, %v4861, %v4867
      %v4876 = vsel %vm419, %v4874, %v4848
      %v4877 = vsel %vm420, %v4868, %v4856
      %v4878 = vsel %vm419, %v4875, %v4849
      %v4879 = vsel %vm420, %v4869, %v4857
      %v4880 = vld [vmem:[%s1760] sm:$0xff]
      %v4881 = vld [vmem:[%s1760 + $0x8] sm:$0xff]
      %v4883 = vsel %vm369, %v4880, 0
      %v4886 = vsel %vm369, %v4881, 0
      %4888 = vmatprep.subr.mxu0 %v4877
      %4889 = vmatpush1.msra.mxu0 %v4876
      %4890 = vmatprep.subr.mxu0 %v4879
      %4891 = vmatpush1.msra.mxu0 %v4878
      %4892 = vmatprep.subr.mxu0 0.0
      %4893 = vmatpush1.msra.mxu0 0.0
      %4894 = vmatprep.subr.mxu0 0.0
      %4895 = vmatpush1.msra.mxu0 0.0
      %4896 = vmatprep.subr.mxu0 0.0
      %4897 = vmatpush1.msra.mxu0 0.0
      %4898 = vmatprep.subr.mxu0 0.0
      %4899 = vmatpush1.msra.mxu0 0.0
      %4900 = vmatprep.subr.mxu0 0.0
      %4901 = vmatpush1.msra.mxu0 0.0
      %4902 = vmatprep.subr.mxu0 0.0
      %4903 = vmatpush1.msra.mxu0 0.0
      %4904 = vmatprep.subr.mxu0 0.0
      %4905 = vmatpush1.msra.mxu0 0.0
      %4906 = vmatprep.subr.mxu0 0.0
      %4907 = vmatpush1.msra.mxu0 0.0
      %4908 = vmatprep.subr.mxu0 0.0
      %4909 = vmatpush1.msra.mxu0 0.0
      %4910 = vmatprep.subr.mxu0 0.0
      %4911 = vmatpush1.msra.mxu0 0.0
      %4912 = vmatprep.subr.mxu0 0.0
      %4913 = vmatpush1.msra.mxu0 0.0
      %4914 = vmatprep.subr.mxu0 0.0
      %4915 = vmatpush1.msra.mxu0 0.0
      %4916 = vmatprep.subr.mxu0 0.0
      %4917 = vmatpush1.msra.mxu0 0.0
      %4918 = vmatprep.subr.mxu0 0.0
      %4919 = vmatpush1.msra.mxu0 0.0
      %4920 = vmatprep.subr.mxu0 0.0
      %4921 = vmatpush1.msra.mxu0 0.0
      %4922 = vmatprep.subr.mxu0 0.0
      %4923 = vmatpush1.msra.mxu0 0.0
      %4924 = vmatprep.subr.mxu0 0.0
      %4925 = vmatpush1.msra.mxu0 0.0
      %4926 = vmatprep.subr.mxu0 0.0
      %4927 = vmatpush1.msra.mxu0 0.0
      %4928 = vmatprep.subr.mxu0 0.0
      %4929 = vmatpush1.msra.mxu0 0.0
      %4930 = vmatprep.subr.mxu0 0.0
      %4931 = vmatpush1.msra.mxu0 0.0
      %4932 = vmatprep.subr.mxu0 0.0
      %4933 = vmatpush1.msra.mxu0 0.0
      %4934 = vmatprep.subr.mxu0 0.0
      %4935 = vmatpush1.msra.mxu0 0.0
      %4936 = vmatprep.subr.mxu0 0.0
      %4937 = vmatpush1.msra.mxu0 0.0
      %4938 = vmatprep.subr.mxu0 0.0
      %4939 = vmatpush1.msra.mxu0 0.0
      %4940 = vmatprep.subr.mxu0 0.0
      %4941 = vmatpush1.msra.mxu0 0.0
      %4942 = vmatprep.subr.mxu0 0.0
      %4943 = vmatpush1.msra.mxu0 0.0
      %4944 = vmatprep.subr.mxu0 0.0
      %4945 = vmatpush1.msra.mxu0 0.0
      %4946 = vmatprep.subr.mxu0 0.0
      %4947 = vmatpush1.msra.mxu0 0.0
      %4948 = vmatprep.subr.mxu0 0.0
      %4949 = vmatpush1.msra.mxu0 0.0
      %4950 = vmatprep.subr.mxu0 0.0
      %4951 = vmatpush1.msra.mxu0 0.0
      %4952 = vmatprep.mubr.f32.mxu0 0.0
      %4953 = vmatmul.mubr.f32.gmra.mrb[0].mxu0 %v4883
      %v4954 = vpop.f32.mrb[0].mxu0
      %v4955 = vadd.f32 0.0, %v4954
      %v4956 = vpop.f32.mrb[0].mxu0
      %v4957 = vadd.f32 0.0, %v4956
      %4958 = vmatprep.mubr.f32.mxu0 0.0
      %4959 = vmatmul.mubr.f32.gmra.mrb[0].mxu0 %v4886
      %v4960 = vpop.f32.mrb[0].mxu0
      %v4961 = vadd.f32 0.0, %v4960
      %v4962 = vpop.f32.mrb[0].mxu0
      %v4963 = vadd.f32 0.0, %v4962
      %4964 = vdwg.mxu0
      %v4965 = vadd.f32 %v4836, %v4955
      %v4966 = vadd.f32 %v4837, %v4957
      %v4967 = vadd.f32 %v4838, %v4961
      %v4968 = vadd.f32 %v4839, %v4963
      %v4969 = vld [vmem:[%s4] sm:$0xff]
      %v4970 = vld [vmem:[%s4 + $0x8] sm:$0xff]
      %4972 = vset.pattern.permute.xlu0 0
      %4973 = vperm.xlu0 %4972, %v4969
      %v4974 = vpop.permute.xlu0 %4973
      %4977 = vset.pattern.permute.xlu0 0
      %4978 = vperm.xlu0 %4977, %v4970
      %v4979 = vpop.permute.xlu0 %4978
      %v4981 = vadd.f32 %v4965, %v4974
      %v4982 = vadd.f32 %v4966, %v4974
      %v4983 = vadd.f32 %v4967, %v4979
      %v4984 = vadd.f32 %v4968, %v4979
      %v4985 = vmax.f32 %v4981, 0.0
      %v4986 = vmax.f32 %v4982, 0.0
      %v4987 = vmax.f32 %v4983, 0.0
      %v4988 = vmax.f32 %v4984, 0.0
      %v4989 = vld [vmem:[%s5] sm:$0xff]
      %v4990 = vld [vmem:[%s5 + $0x8] sm:$0xff]
      %v4991 = vld [vmem:[%s5 + $0x10] sm:$0xff]
      %v4992 = vld [vmem:[%s5 + $0x18] sm:$0xff]
      %v4993 = vld [vmem:[%s5 + $0x20] sm:$0xff]
      %v4994 = vld [vmem:[%s5 + $0x28] sm:$0xff]
      %v4995 = vld [vmem:[%s5 + $0x30] sm:$0xff]
      %v4996 = vld [vmem:[%s5 + $0x38] sm:$0xff]
      %v4997 = vld [vmem:[%s5 + $0x40] sm:$0xff]
      %v4998 = vld [vmem:[%s5 + $0x48] sm:$0xff]
      %v4999 = vld [vmem:[%s5 + $0x50] sm:$0xff]
      %v5000 = vld [vmem:[%s5 + $0x58] sm:$0xff]
      %v5001 = vld [vmem:[%s5 + $0x60] sm:$0xff]
      %v5002 = vld [vmem:[%s5 + $0x68] sm:$0xff]
      %v5003 = vld [vmem:[%s5 + $0x70] sm:$0xff]
      %v5004 = vld [vmem:[%s5 + $0x78] sm:$0xff]
      %v5005 = vld [vmem:[%s5 + $0x80] sm:$0xff]
      %v5006 = vld [vmem:[%s5 + $0x88] sm:$0xff]
      %v5007 = vld [vmem:[%s5 + $0x90] sm:$0xff]
      %v5008 = vld [vmem:[%s5 + $0x98] sm:$0xff]
      %v5009 = vld [vmem:[%s5 + $0xa0] sm:$0xff]
      %v5010 = vld [vmem:[%s5 + $0xa8] sm:$0xff]
      %v5011 = vld [vmem:[%s5 + $0xb0] sm:$0xff]
      %v5012 = vld [vmem:[%s5 + $0xb8] sm:$0xff]
      %v5013 = vld [vmem:[%s5 + $0xc0] sm:$0xff]
      %v5014 = vld [vmem:[%s5 + $0xc8] sm:$0xff]
      %v5015 = vld [vmem:[%s5 + $0xd0] sm:$0xff]
      %v5016 = vld [vmem:[%s5 + $0xd8] sm:$0xff]
      %v5017 = vld [vmem:[%s5 + $0xe0] sm:$0xff]
      %v5018 = vld [vmem:[%s5 + $0xe8] sm:$0xff]
      %v5019 = vld [vmem:[%s5 + $0xf0] sm:$0xff]
      %v5020 = vld [vmem:[%s5 + $0xf8] sm:$0xff]
      %v5021 = vld [vmem:[%s6] sm:$0x1]
      %v5023 = vlaneseq
      %v5024 = vshrl.u32 %v5023, 7
      %v5025 = vsub.s32 0, %v5024
      %v5026 = vrot.slane %v5021, %v5025
      %5028 = vmatprep.subr.mxu0 0.0
      %5029 = vmatpush1.msra.mxu0 %v4989
      %5030 = vmatprep.subr.mxu0 0.0
      %5031 = vmatpush1.msra.mxu0 %v4990
      %5032 = vmatprep.subr.mxu0 0.0
      %5033 = vmatpush1.msra.mxu0 %v4991
      %5034 = vmatprep.subr.mxu0 0.0
      %5035 = vmatpush1.msra.mxu0 %v4992
      %5036 = vmatprep.subr.mxu0 0.0
      %5037 = vmatpush1.msra.mxu0 %v4993
      %5038 = vmatprep.subr.mxu0 0.0
      %5039 = vmatpush1.msra.mxu0 %v4994
      %5040 = vmatprep.subr.mxu0 0.0
      %5041 = vmatpush1.msra.mxu0 %v4995
      %5042 = vmatprep.subr.mxu0 0.0
      %5043 = vmatpush1.msra.mxu0 %v4996
      %5044 = vmatprep.subr.mxu0 0.0
      %5045 = vmatpush1.msra.mxu0 %v4997
      %5046 = vmatprep.subr.mxu0 0.0
      %5047 = vmatpush1.msra.mxu0 %v4998
      %5048 = vmatprep.subr.mxu0 0.0
      %5049 = vmatpush1.msra.mxu0 %v4999
      %5050 = vmatprep.subr.mxu0 0.0
      %5051 = vmatpush1.msra.mxu0 %v5000
      %5052 = vmatprep.subr.mxu0 0.0
      %5053 = vmatpush1.msra.mxu0 %v5001
      %5054 = vmatprep.subr.mxu0 0.0
      %5055 = vmatpush1.msra.mxu0 %v5002
      %5056 = vmatprep.subr.mxu0 0.0
      %5057 = vmatpush1.msra.mxu0 %v5003
      %5058 = vmatprep.subr.mxu0 0.0
      %5059 = vmatpush1.msra.mxu0 %v5004
      %5060 = vmatprep.subr.mxu0 0.0
      %5061 = vmatpush1.msra.mxu0 %v5005
      %5062 = vmatprep.subr.mxu0 0.0
      %5063 = vmatpush1.msra.mxu0 %v5006
      %5064 = vmatprep.subr.mxu0 0.0
      %5065 = vmatpush1.msra.mxu0 %v5007
      %5066 = vmatprep.subr.mxu0 0.0
      %5067 = vmatpush1.msra.mxu0 %v5008
      %5068 = vmatprep.subr.mxu0 0.0
      %5069 = vmatpush1.msra.mxu0 %v5009
      %5070 = vmatprep.subr.mxu0 0.0
      %5071 = vmatpush1.msra.mxu0 %v5010
      %5072 = vmatprep.subr.mxu0 0.0
      %5073 = vmatpush1.msra.mxu0 %v5011
      %5074 = vmatprep.subr.mxu0 0.0
      %5075 = vmatpush1.msra.mxu0 %v5012
      %5076 = vmatprep.subr.mxu0 0.0
      %5077 = vmatpush1.msra.mxu0 %v5013
      %5078 = vmatprep.subr.mxu0 0.0
      %5079 = vmatpush1.msra.mxu0 %v5014
      %5080 = vmatprep.subr.mxu0 0.0
      %5081 = vmatpush1.msra.mxu0 %v5015
      %5082 = vmatprep.subr.mxu0 0.0
      %5083 = vmatpush1.msra.mxu0 %v5016
      %5084 = vmatprep.subr.mxu0 0.0
      %5085 = vmatpush1.msra.mxu0 %v5017
      %5086 = vmatprep.subr.mxu0 0.0
      %5087 = vmatpush1.msra.mxu0 %v5018
      %5088 = vmatprep.subr.mxu0 0.0
      %5089 = vmatpush1.msra.mxu0 %v5019
      %5090 = vmatprep.subr.mxu0 0.0
      %5091 = vmatpush1.msra.mxu0 %v5020
      %5092 = vmatprep.mubr.f32.mxu0 %v4986
      %5093 = vmatmul.mubr.f32.gmra.mrb[0].mxu0 %v4985
      %v5094 = vpop.f32.mrb[0].mxu0
      %v5095 = vadd.f32 %v5026, %v5094
      %v5096 = vpop.f32.mrb[0].mxu0
      %5097 = vmatprep.mubr.f32.mxu0 %v4988
      %5098 = vmatmul.mubr.f32.gmra.mrb[0].mxu0 %v4987
      %v5099 = vpop.f32.mrb[0].mxu0
      %v5100 = vadd.f32 %v5026, %v5099
      %v5101 = vpop.f32.mrb[0].mxu0
      %5102 = vdwg.mxu0
      %v5103 = vmax.f32 %v5095, 0.0
      %v5104 = vmax.f32 %v5100, 0.0
      %v5105 = vld [vmem:[%s7] sm:$0xff]
      %v5106 = vld [vmem:[%s7 + $0x8] sm:$0xff]
      %v5107 = vld [vmem:[%s7 + $0x10] sm:$0xff]
      %v5108 = vld [vmem:[%s7 + $0x18] sm:$0xff]
      %v5109 = vld [vmem:[%s7 + $0x20] sm:$0xff]
      %v5110 = vld [vmem:[%s7 + $0x28] sm:$0xff]
      %v5111 = vld [vmem:[%s7 + $0x30] sm:$0xff]
      %v5112 = vld [vmem:[%s7 + $0x38] sm:$0xff]
      %v5113 = vld [vmem:[%s7 + $0x40] sm:$0xff]
      %v5114 = vld [vmem:[%s7 + $0x48] sm:$0xff]
      %v5115 = vld [vmem:[%s7 + $0x50] sm:$0xff]
      %v5116 = vld [vmem:[%s7 + $0x58] sm:$0xff]
      %v5117 = vld [vmem:[%s7 + $0x60] sm:$0xff]
      %v5118 = vld [vmem:[%s7 + $0x68] sm:$0xff]
      %v5119 = vld [vmem:[%s7 + $0x70] sm:$0xff]
      %v5120 = vld [vmem:[%s7 + $0x78] sm:$0xff]
      %5121 = vmatprep.subr.mxu0 0.0
      %5122 = vmatpush1.msra.mxu0 %v5105
      %5123 = vmatprep.subr.mxu0 0.0
      %5124 = vmatpush1.msra.mxu0 %v5106
      %5125 = vmatprep.subr.mxu0 0.0
      %5126 = vmatpush1.msra.mxu0 %v5107
      %5127 = vmatprep.subr.mxu0 0.0
      %5128 = vmatpush1.msra.mxu0 %v5108
      %5129 = vmatprep.subr.mxu0 0.0
      %5130 = vmatpush1.msra.mxu0 %v5109
      %5131 = vmatprep.subr.mxu0 0.0
      %5132 = vmatpush1.msra.mxu0 %v5110
      %5133 = vmatprep.subr.mxu0 0.0
      %5134 = vmatpush1.msra.mxu0 %v5111
      %5135 = vmatprep.subr.mxu0 0.0
      %5136 = vmatpush1.msra.mxu0 %v5112
      %5137 = vmatprep.subr.mxu0 0.0
      %5138 = vmatpush1.msra.mxu0 %v5113
      %5139 = vmatprep.subr.mxu0 0.0
      %5140 = vmatpush1.msra.mxu0 %v5114
      %5141 = vmatprep.subr.mxu0 0.0
      %5142 = vmatpush1.msra.mxu0 %v5115
      %5143 = vmatprep.subr.mxu0 0.0
      %5144 = vmatpush1.msra.mxu0 %v5116
      %5145 = vmatprep.subr.mxu0 0.0
      %5146 = vmatpush1.msra.mxu0 %v5117
      %5147 = vmatprep.subr.mxu0 0.0
      %5148 = vmatpush1.msra.mxu0 %v5118
      %5149 = vmatprep.subr.mxu0 0.0
      %5150 = vmatpush1.msra.mxu0 %v5119
      %5151 = vmatprep.subr.mxu0 0.0
      %5152 = vmatpush1.msra.mxu0 %v5120
      %5153 = vmatprep.subr.mxu0 0.0
      %5154 = vmatpush1.msra.mxu0 0.0
      %5155 = vmatprep.subr.mxu0 0.0
      %5156 = vmatpush1.msra.mxu0 0.0
      %5157 = vmatprep.subr.mxu0 0.0
      %5158 = vmatpush1.msra.mxu0 0.0
      %5159 = vmatprep.subr.mxu0 0.0
      %5160 = vmatpush1.msra.mxu0 0.0
      %5161 = vmatprep.subr.mxu0 0.0
      %5162 = vmatpush1.msra.mxu0 0.0
      %5163 = vmatprep.subr.mxu0 0.0
      %5164 = vmatpush1.msra.mxu0 0.0
      %5165 = vmatprep.subr.mxu0 0.0
      %5166 = vmatpush1.msra.mxu0 0.0
      %5167 = vmatprep.subr.mxu0 0.0
      %5168 = vmatpush1.msra.mxu0 0.0
      %5169 = vmatprep.subr.mxu0 0.0
      %5170 = vmatpush1.msra.mxu0 0.0
      %5171 = vmatprep.subr.mxu0 0.0
      %5172 = vmatpush1.msra.mxu0 0.0
      %5173 = vmatprep.subr.mxu0 0.0
      %5174 = vmatpush1.msra.mxu0 0.0
      %5175 = vmatprep.subr.mxu0 0.0
      %5176 = vmatpush1.msra.mxu0 0.0
      %5177 = vmatprep.subr.mxu0 0.0
      %5178 = vmatpush1.msra.mxu0 0.0
      %5179 = vmatprep.subr.mxu0 0.0
      %5180 = vmatpush1.msra.mxu0 0.0
      %5181 = vmatprep.subr.mxu0 0.0
      %5182 = vmatpush1.msra.mxu0 0.0
      %5183 = vmatprep.subr.mxu0 0.0
      %5184 = vmatpush1.msra.mxu0 0.0
      %5185 = vmatprep.mubr.f32.mxu0 0.0
      %5186 = vmatmul.mubr.f32.gmra.mrb[0].mxu0 %v5103
      %v5187 = vpop.f32.mrb[0].mxu0
      %v5188 = vadd.f32 0.0, %v5187
      %v5189 = vpop.f32.mrb[0].mxu0
      %5190 = vmatprep.mubr.f32.mxu0 0.0
      %5191 = vmatmul.mubr.f32.gmra.mrb[0].mxu0 %v5104
      %v5192 = vpop.f32.mrb[0].mxu0
      %v5193 = vadd.f32 0.0, %v5192
      %v5194 = vpop.f32.mrb[0].mxu0
      %5195 = vdwg.mxu0
      %v5196 = vadd.f32 %v5188, %v2077
      %v5197 = vadd.f32 %v5193, %v2077
      %s5198 = scalar_lea.vmem %s333, 32
      %5199 = vst.msk [vmem:[%s5198] sm:$0xff] %vm2080, %v5196
      %5200 = vst.msk [vmem:[%s5198 + $0x8] sm:$0xff] %vm2080, %v5197
      %v5201 = vld [vmem:[%s1] sm:$0xff]
      %v5202 = vld [vmem:[%s1 + $0x8] sm:$0xff]
      %5204 = vset.pattern.permute.xlu0 0
      %5205 = vperm.xlu0 %5204, %v5201
      %v5206 = vpop.permute.xlu0 %5205
      %5209 = vset.pattern.permute.xlu0 0
      %5210 = vperm.xlu0 %5209, %v5202
      %v5211 = vpop.permute.xlu0 %5210
      %v5213 = vlaneseq
      %v5214 = vshrl.u32 %v5213, 7
      %v5215 = vsub.s32 3, %v5214
      %v5216 = vrot.slane %v397, %v5215
      %v5217 = vlaneseq
      %v5218 = vshrl.u32 %v5217, 7
      %v5219 = vsub.s32 3, %v5218
      %v5220 = vrot.slane %v398, %v5219
      %v5221 = vmul.f32 %v5206, %v5216
      %v5222 = vmul.f32 %v5206, %v5220
      %v5223 = vmul.f32 %v5211, %v5216
      %v5224 = vmul.f32 %v5211, %v5220
      %v5225 = vadd.f32 %v5221, 0.0
      %v5226 = vadd.f32 %v5222, 0.0
      %v5227 = vadd.f32 %v5223, 0.0
      %v5228 = vadd.f32 %v5224, 0.0
      %5229 = vset.pattern.permute.xlu0 1
      %5230 = vperm.xlu0 %5229, %v5201
      %v5231 = vpop.permute.xlu0 %5230
      %5233 = vset.pattern.permute.xlu0 1
      %5234 = vperm.xlu0 %5233, %v5202
      %v5235 = vpop.permute.xlu0 %5234
      %v5237 = vlaneseq
      %v5238 = vshrl.u32 %v5237, 7
      %v5239 = vsub.s32 3, %v5238
      %v5240 = vrot.slane %v373, %v5239
      %v5241 = vlaneseq
      %v5242 = vshrl.u32 %v5241, 7
      %v5243 = vsub.s32 3, %v5242
      %v5244 = vrot.slane %v370, %v5243
      %v5245 = vmul.f32 %v5231, %v5240
      %v5246 = vmul.f32 %v5231, %v5244
      %v5247 = vmul.f32 %v5235, %v5240
      %v5248 = vmul.f32 %v5235, %v5244
      %v5249 = vadd.f32 %v5225, %v5245
      %v5250 = vadd.f32 %v5226, %v5246
      %v5251 = vadd.f32 %v5227, %v5247
      %v5252 = vadd.f32 %v5228, %v5248
      %5253 = vset.pattern.permute.xlu0 2
      %5254 = vperm.xlu0 %5253, %v5201
      %v5255 = vpop.permute.xlu0 %5254
      %5257 = vset.pattern.permute.xlu0 2
      %5258 = vperm.xlu0 %5257, %v5202
      %v5259 = vpop.permute.xlu0 %5258
      %v5261 = vlaneseq
      %v5262 = vshrl.u32 %v5261, 7
      %v5263 = vsub.s32 3, %v5262
      %v5264 = vrot.slane %v421, %v5263
      %v5265 = vlaneseq
      %v5266 = vshrl.u32 %v5265, 7
      %v5267 = vsub.s32 3, %v5266
      %v5268 = vrot.slane %v422, %v5267
      %v5269 = vmul.f32 %v5255, %v5264
      %v5270 = vmul.f32 %v5255, %v5268
      %v5271 = vmul.f32 %v5259, %v5264
      %v5272 = vmul.f32 %v5259, %v5268
      %v5273 = vadd.f32 %v5249, %v5269
      %v5274 = vadd.f32 %v5250, %v5270
      %v5275 = vadd.f32 %v5251, %v5271
      %v5276 = vadd.f32 %v5252, %v5272
      %5277 = vset.pattern.permute.xlu0 3
      %5278 = vperm.xlu0 %5277, %v5201
      %v5279 = vpop.permute.xlu0 %5278
      %5281 = vset.pattern.permute.xlu0 3
      %5282 = vperm.xlu0 %5281, %v5202
      %v5283 = vpop.permute.xlu0 %5282
      %v5285 = vlaneseq
      %v5286 = vshrl.u32 %v5285, 7
      %v5287 = vsub.s32 3, %v5286
      %v5288 = vrot.slane %v441, %v5287
      %v5289 = vlaneseq
      %v5290 = vshrl.u32 %v5289, 7
      %v5291 = vsub.s32 3, %v5290
      %v5292 = vrot.slane %v442, %v5291
      %v5293 = vmul.f32 %v5279, %v5288
      %v5294 = vmul.f32 %v5279, %v5292
      %v5295 = vmul.f32 %v5283, %v5288
      %v5296 = vmul.f32 %v5283, %v5292
      %v5297 = vadd.f32 %v5273, %v5293
      %v5298 = vadd.f32 %v5274, %v5294
      %v5299 = vadd.f32 %v5275, %v5295
      %v5300 = vadd.f32 %v5276, %v5296
      %5301 = vset.pattern.permute.xlu0 4
      %5302 = vperm.xlu0 %5301, %v5201
      %v5303 = vpop.permute.xlu0 %5302
      %5305 = vset.pattern.permute.xlu0 4
      %5306 = vperm.xlu0 %5305, %v5202
      %v5307 = vpop.permute.xlu0 %5306
      %v5309 = vlaneseq
      %v5310 = vshrl.u32 %v5309, 7
      %v5311 = vsub.s32 3, %v5310
      %v5312 = vrot.slane %v361, %v5311
      %v5313 = vlaneseq
      %v5314 = vshrl.u32 %v5313, 7
      %v5315 = vsub.s32 7, %v5314
      %v5316 = vrot.slane %v361, %v5315
      %v5319 = vlaneseq
      %v5320 = vshrl.u32 %v5319, 7
      %v5321 = vsub.s32 3, %v5320
      %v5322 = vrot.slane %v5312, %v5321
      %v5323 = vlaneseq
      %v5324 = vshrl.u32 %v5323, 7
      %v5325 = vsub.s32 3, %v5324
      %v5326 = vrot.slane %v5316, %v5325
      %v5327 = vmul.f32 %v5303, %v5322
      %v5328 = vmul.f32 %v5303, %v5326
      %v5329 = vmul.f32 %v5307, %v5322
      %v5330 = vmul.f32 %v5307, %v5326
      %v5331 = vadd.f32 %v5297, %v5327
      %v5332 = vadd.f32 %v5298, %v5328
      %v5333 = vadd.f32 %v5299, %v5329
      %v5334 = vadd.f32 %v5300, %v5330
      %5335 = vset.pattern.permute.xlu0 5
      %5336 = vperm.xlu0 %5335, %v5201
      %v5337 = vpop.permute.xlu0 %5336
      %5339 = vset.pattern.permute.xlu0 5
      %5340 = vperm.xlu0 %5339, %v5202
      %v5341 = vpop.permute.xlu0 %5340
      %v5343 = vlaneseq
      %v5344 = vshrl.u32 %v5343, 7
      %v5345 = vsub.s32 3, %v5344
      %v5346 = vrot.slane %v461, %v5345
      %v5347 = vlaneseq
      %v5348 = vshrl.u32 %v5347, 7
      %v5349 = vsub.s32 3, %v5348
      %v5350 = vrot.slane %v462, %v5349
      %v5351 = vmul.f32 %v5337, %v5346
      %v5352 = vmul.f32 %v5337, %v5350
      %v5353 = vmul.f32 %v5341, %v5346
      %v5354 = vmul.f32 %v5341, %v5350
      %v5355 = vadd.f32 %v5331, %v5351
      %v5356 = vadd.f32 %v5332, %v5352
      %v5357 = vadd.f32 %v5333, %v5353
      %v5358 = vadd.f32 %v5334, %v5354
      %5359 = vset.pattern.permute.xlu0 6
      %5360 = vperm.xlu0 %5359, %v5201
      %v5361 = vpop.permute.xlu0 %5360
      %5363 = vset.pattern.permute.xlu0 6
      %5364 = vperm.xlu0 %5363, %v5202
      %v5365 = vpop.permute.xlu0 %5364
      %v5367 = vlaneseq
      %v5368 = vshrl.u32 %v5367, 7
      %v5369 = vsub.s32 3, %v5368
      %v5370 = vrot.slane %v492, %v5369
      %v5371 = vlaneseq
      %v5372 = vshrl.u32 %v5371, 7
      %v5373 = vsub.s32 3, %v5372
      %v5374 = vrot.slane %v493, %v5373
      %v5375 = vmul.f32 %v5361, %v5370
      %v5376 = vmul.f32 %v5361, %v5374
      %v5377 = vmul.f32 %v5365, %v5370
      %v5378 = vmul.f32 %v5365, %v5374
      %v5379 = vadd.f32 %v5355, %v5375
      %v5380 = vadd.f32 %v5356, %v5376
      %v5381 = vadd.f32 %v5357, %v5377
      %v5382 = vadd.f32 %v5358, %v5378
      %5383 = vset.pattern.permute.xlu0 7
      %5384 = vperm.xlu0 %5383, %v5201
      %v5385 = vpop.permute.xlu0 %5384
      %5387 = vset.pattern.permute.xlu0 7
      %5388 = vperm.xlu0 %5387, %v5202
      %v5389 = vpop.permute.xlu0 %5388
      %v5391 = vlaneseq
      %v5392 = vshrl.u32 %v5391, 7
      %v5393 = vsub.s32 3, %v5392
      %v5394 = vrot.slane %v468, %v5393
      %v5395 = vlaneseq
      %v5396 = vshrl.u32 %v5395, 7
      %v5397 = vsub.s32 3, %v5396
      %v5398 = vrot.slane %v472, %v5397
      %v5399 = vmul.f32 %v5385, %v5394
      %v5400 = vmul.f32 %v5385, %v5398
      %v5401 = vmul.f32 %v5389, %v5394
      %v5402 = vmul.f32 %v5389, %v5398
      %v5403 = vadd.f32 %v5379, %v5399
      %v5404 = vadd.f32 %v5380, %v5400
      %v5405 = vadd.f32 %v5381, %v5401
      %v5406 = vadd.f32 %v5382, %v5402
      %5407 = vset.pattern.permute.xlu0 8
      %5408 = vperm.xlu0 %5407, %v5201
      %v5409 = vpop.permute.xlu0 %5408
      %5411 = vset.pattern.permute.xlu0 8
      %5412 = vperm.xlu0 %5411, %v5202
      %v5413 = vpop.permute.xlu0 %5412
      %v5415 = vlaneseq
      %v5416 = vshrl.u32 %v5415, 7
      %v5417 = vsub.s32 3, %v5416
      %v5418 = vrot.slane %v512, %v5417
      %v5419 = vlaneseq
      %v5420 = vshrl.u32 %v5419, 7
      %v5421 = vsub.s32 3, %v5420
      %v5422 = vrot.slane %v513, %v5421
      %v5423 = vmul.f32 %v5409, %v5418
      %v5424 = vmul.f32 %v5409, %v5422
      %v5425 = vmul.f32 %v5413, %v5418
      %v5426 = vmul.f32 %v5413, %v5422
      %v5427 = vadd.f32 %v5403, %v5423
      %v5428 = vadd.f32 %v5404, %v5424
      %v5429 = vadd.f32 %v5405, %v5425
      %v5430 = vadd.f32 %v5406, %v5426
      %v5431 = vld [vmem:[%s2] sm:$0xff]
      %v5432 = vld [vmem:[%s2 + $0x8] sm:$0xff]
      %5434 = vset.pattern.permute.xlu0 0
      %5435 = vperm.xlu0 %5434, %v5431
      %v5436 = vpop.permute.xlu0 %5435
      %5439 = vset.pattern.permute.xlu0 0
      %5440 = vperm.xlu0 %5439, %v5432
      %v5441 = vpop.permute.xlu0 %5440
      %v5443 = vadd.f32 %v5427, %v5436
      %v5444 = vadd.f32 %v5428, %v5436
      %v5445 = vadd.f32 %v5429, %v5441
      %v5446 = vadd.f32 %v5430, %v5441
      %v5447 = vmax.f32 %v5443, 0.0
      %v5448 = vmax.f32 %v5444, 0.0
      %v5449 = vmax.f32 %v5445, 0.0
      %v5450 = vmax.f32 %v5446, 0.0
      %5453 = vrot.lane.b32.xlu0 %v5448, 16
      %v5454 = vpop.permute.xlu0 %5453
      %5455 = vrot.lane.b32.xlu0 %v5450, 16
      %v5456 = vpop.permute.xlu0 %5455
      %5461 = vrot.lane.b32.xlu0 %v5447, 16
      %v5462 = vpop.permute.xlu0 %5461
      %5463 = vrot.lane.b32.xlu0 %v5449, 16
      %v5464 = vpop.permute.xlu0 %5463
      %v5465 = vsel %vm369, %v5462, %v5454
      %v5466 = vsel %vm369, %v5464, %v5456
      %v5471 = vsel %vm369, %v5454, %v5462
      %v5472 = vsel %vm369, %v5456, %v5464
      %5473 = vrot.lane.b32.xlu0 %v5465, 1
      %v5474 = vpop.permute.xlu0 %5473
      %5475 = vrot.lane.b32.xlu0 %v5466, 1
      %v5476 = vpop.permute.xlu0 %5475
      %5481 = vrot.lane.b32.xlu0 %v5471, 1
      %v5482 = vpop.permute.xlu0 %5481
      %5483 = vrot.lane.b32.xlu0 %v5472, 1
      %v5484 = vpop.permute.xlu0 %5483
      %v5485 = vsel %vm380, %v5482, %v5474
      %v5486 = vsel %vm380, %v5484, %v5476
      %v5491 = vsel %vm380, %v5474, %v5482
      %v5492 = vsel %vm380, %v5476, %v5484
      %5493 = vrot.lane.b32.xlu0 %v5471, 113
      %v5494 = vpop.permute.xlu0 %5493
      %5495 = vrot.lane.b32.xlu0 %v5465, 113
      %v5496 = vpop.permute.xlu0 %5495
      %5497 = vrot.lane.b32.xlu0 %v5472, 113
      %v5498 = vpop.permute.xlu0 %5497
      %5499 = vrot.lane.b32.xlu0 %v5466, 113
      %v5500 = vpop.permute.xlu0 %5499
      %v5501 = vsel %vm389, %v5494, %v5496
      %v5502 = vsel %vm389, %v5498, %v5500
      %v5509 = vsel %vm389, %v5496, %v5494
      %v5510 = vsel %vm389, %v5500, %v5498
      %v5511 = vsel %vm395, %v5501, %v5491
      %v5512 = vsel %vm396, %v5509, %v5485
      %v5513 = vsel %vm395, %v5502, %v5492
      %v5514 = vsel %vm396, %v5510, %v5486
      %v5515 = vld [vmem:[%s3] sm:$0xff]
      %v5516 = vld [vmem:[%s3 + $0x8] sm:$0xff]
      %v5517 = vld [vmem:[%s831] sm:$0xff]
      %v5518 = vld [vmem:[%s831 + $0x8] sm:$0xff]
      %v5520 = vsel %vm369, %v5517, 0
      %v5523 = vsel %vm369, %v5518, 0
      %5525 = vmatprep.subr.mxu0 %v5465
      %5526 = vmatpush1.msra.mxu0 %v5471
      %5527 = vmatprep.subr.mxu0 %v5466
      %5528 = vmatpush1.msra.mxu0 %v5472
      %5529 = vmatprep.subr.mxu0 0.0
      %5530 = vmatpush1.msra.mxu0 0.0
      %5531 = vmatprep.subr.mxu0 0.0
      %5532 = vmatpush1.msra.mxu0 0.0
      %5533 = vmatprep.subr.mxu0 0.0
      %5534 = vmatpush1.msra.mxu0 0.0
      %5535 = vmatprep.subr.mxu0 0.0
      %5536 = vmatpush1.msra.mxu0 0.0
      %5537 = vmatprep.subr.mxu0 0.0
      %5538 = vmatpush1.msra.mxu0 0.0
      %5539 = vmatprep.subr.mxu0 0.0
      %5540 = vmatpush1.msra.mxu0 0.0
      %5541 = vmatprep.subr.mxu0 0.0
      %5542 = vmatpush1.msra.mxu0 0.0
      %5543 = vmatprep.subr.mxu0 0.0
      %5544 = vmatpush1.msra.mxu0 0.0
      %5545 = vmatprep.subr.mxu0 0.0
      %5546 = vmatpush1.msra.mxu0 0.0
      %5547 = vmatprep.subr.mxu0 0.0
      %5548 = vmatpush1.msra.mxu0 0.0
      %5549 = vmatprep.subr.mxu0 0.0
      %5550 = vmatpush1.msra.mxu0 0.0
      %5551 = vmatprep.subr.mxu0 0.0
      %5552 = vmatpush1.msra.mxu0 0.0
      %5553 = vmatprep.subr.mxu0 0.0
      %5554 = vmatpush1.msra.mxu0 0.0
      %5555 = vmatprep.subr.mxu0 0.0
      %5556 = vmatpush1.msra.mxu0 0.0
      %5557 = vmatprep.subr.mxu0 0.0
      %5558 = vmatpush1.msra.mxu0 0.0
      %5559 = vmatprep.subr.mxu0 0.0
      %5560 = vmatpush1.msra.mxu0 0.0
      %5561 = vmatprep.subr.mxu0 0.0
      %5562 = vmatpush1.msra.mxu0 0.0
      %5563 = vmatprep.subr.mxu0 0.0
      %5564 = vmatpush1.msra.mxu0 0.0
      %5565 = vmatprep.subr.mxu0 0.0
      %5566 = vmatpush1.msra.mxu0 0.0
      %5567 = vmatprep.subr.mxu0 0.0
      %5568 = vmatpush1.msra.mxu0 0.0
      %5569 = vmatprep.subr.mxu0 0.0
      %5570 = vmatpush1.msra.mxu0 0.0
      %5571 = vmatprep.subr.mxu0 0.0
      %5572 = vmatpush1.msra.mxu0 0.0
      %5573 = vmatprep.subr.mxu0 0.0
      %5574 = vmatpush1.msra.mxu0 0.0
      %5575 = vmatprep.subr.mxu0 0.0
      %5576 = vmatpush1.msra.mxu0 0.0
      %5577 = vmatprep.subr.mxu0 0.0
      %5578 = vmatpush1.msra.mxu0 0.0
      %5579 = vmatprep.subr.mxu0 0.0
      %5580 = vmatpush1.msra.mxu0 0.0
      %5581 = vmatprep.subr.mxu0 0.0
      %5582 = vmatpush1.msra.mxu0 0.0
      %5583 = vmatprep.subr.mxu0 0.0
      %5584 = vmatpush1.msra.mxu0 0.0
      %5585 = vmatprep.subr.mxu0 0.0
      %5586 = vmatpush1.msra.mxu0 0.0
      %5587 = vmatprep.subr.mxu0 0.0
      %5588 = vmatpush1.msra.mxu0 0.0
      %5589 = vmatprep.mubr.f32.mxu0 0.0
      %5590 = vmatmul.mubr.f32.gmra.mrb[0].mxu0 %v5520
      %v5591 = vpop.f32.mrb[0].mxu0
      %v5592 = vadd.f32 0.0, %v5591
      %v5593 = vpop.f32.mrb[0].mxu0
      %v5594 = vadd.f32 0.0, %v5593
      %5595 = vmatprep.mubr.f32.mxu0 0.0
      %5596 = vmatmul.mubr.f32.gmra.mrb[0].mxu0 %v5523
      %v5597 = vpop.f32.mrb[0].mxu0
      %v5598 = vadd.f32 0.0, %v5597
      %v5599 = vpop.f32.mrb[0].mxu0
      %v5600 = vadd.f32 0.0, %v5599
      %5601 = vdwg.mxu0
      %v5603 = vsel %vm369, %v5515, 0
      %v5606 = vsel %vm369, %v5516, 0
      %5608 = vmatprep.subr.mxu0 %v5512
      %5609 = vmatpush1.msra.mxu0 %v5511
      %5610 = vmatprep.subr.mxu0 %v5514
      %5611 = vmatpush1.msra.mxu0 %v5513
      %5612 = vmatprep.subr.mxu0 0.0
      %5613 = vmatpush1.msra.mxu0 0.0
      %5614 = vmatprep.subr.mxu0 0.0
      %5615 = vmatpush1.msra.mxu0 0.0
      %5616 = vmatprep.subr.mxu0 0.0
      %5617 = vmatpush1.msra.mxu0 0.0
      %5618 = vmatprep.subr.mxu0 0.0
      %5619 = vmatpush1.msra.mxu0 0.0
      %5620 = vmatprep.subr.mxu0 0.0
      %5621 = vmatpush1.msra.mxu0 0.0
      %5622 = vmatprep.subr.mxu0 0.0
      %5623 = vmatpush1.msra.mxu0 0.0
      %5624 = vmatprep.subr.mxu0 0.0
      %5625 = vmatpush1.msra.mxu0 0.0
      %5626 = vmatprep.subr.mxu0 0.0
      %5627 = vmatpush1.msra.mxu0 0.0
      %5628 = vmatprep.subr.mxu0 0.0
      %5629 = vmatpush1.msra.mxu0 0.0
      %5630 = vmatprep.subr.mxu0 0.0
      %5631 = vmatpush1.msra.mxu0 0.0
      %5632 = vmatprep.subr.mxu0 0.0
      %5633 = vmatpush1.msra.mxu0 0.0
      %5634 = vmatprep.subr.mxu0 0.0
      %5635 = vmatpush1.msra.mxu0 0.0
      %5636 = vmatprep.subr.mxu0 0.0
      %5637 = vmatpush1.msra.mxu0 0.0
      %5638 = vmatprep.subr.mxu0 0.0
      %5639 = vmatpush1.msra.mxu0 0.0
      %5640 = vmatprep.subr.mxu0 0.0
      %5641 = vmatpush1.msra.mxu0 0.0
      %5642 = vmatprep.subr.mxu0 0.0
      %5643 = vmatpush1.msra.mxu0 0.0
      %5644 = vmatprep.subr.mxu0 0.0
      %5645 = vmatpush1.msra.mxu0 0.0
      %5646 = vmatprep.subr.mxu0 0.0
      %5647 = vmatpush1.msra.mxu0 0.0
      %5648 = vmatprep.subr.mxu0 0.0
      %5649 = vmatpush1.msra.mxu0 0.0
      %5650 = vmatprep.subr.mxu0 0.0
      %5651 = vmatpush1.msra.mxu0 0.0
      %5652 = vmatprep.subr.mxu0 0.0
      %5653 = vmatpush1.msra.mxu0 0.0
      %5654 = vmatprep.subr.mxu0 0.0
      %5655 = vmatpush1.msra.mxu0 0.0
      %5656 = vmatprep.subr.mxu0 0.0
      %5657 = vmatpush1.msra.mxu0 0.0
      %5658 = vmatprep.subr.mxu0 0.0
      %5659 = vmatpush1.msra.mxu0 0.0
      %5660 = vmatprep.subr.mxu0 0.0
      %5661 = vmatpush1.msra.mxu0 0.0
      %5662 = vmatprep.subr.mxu0 0.0
      %5663 = vmatpush1.msra.mxu0 0.0
      %5664 = vmatprep.subr.mxu0 0.0
      %5665 = vmatpush1.msra.mxu0 0.0
      %5666 = vmatprep.subr.mxu0 0.0
      %5667 = vmatpush1.msra.mxu0 0.0
      %5668 = vmatprep.subr.mxu0 0.0
      %5669 = vmatpush1.msra.mxu0 0.0
      %5670 = vmatprep.subr.mxu0 0.0
      %5671 = vmatpush1.msra.mxu0 0.0
      %5672 = vmatprep.mubr.f32.mxu0 0.0
      %5673 = vmatmul.mubr.f32.gmra.mrb[0].mxu0 %v5603
      %v5674 = vpop.f32.mrb[0].mxu0
      %v5675 = vadd.f32 %v5592, %v5674
      %v5676 = vpop.f32.mrb[0].mxu0
      %v5677 = vadd.f32 %v5594, %v5676
      %5678 = vmatprep.mubr.f32.mxu0 0.0
      %5679 = vmatmul.mubr.f32.gmra.mrb[0].mxu0 %v5606
      %v5680 = vpop.f32.mrb[0].mxu0
      %v5681 = vadd.f32 %v5598, %v5680
      %v5682 = vpop.f32.mrb[0].mxu0
      %v5683 = vadd.f32 %v5600, %v5682
      %5684 = vdwg.mxu0
      %5685 = vrot.lane.b32.xlu0 %v5471, 127
      %v5686 = vpop.permute.xlu0 %5685
      %5687 = vrot.lane.b32.xlu0 %v5465, 127
      %v5688 = vpop.permute.xlu0 %5687
      %5689 = vrot.lane.b32.xlu0 %v5472, 127
      %v5690 = vpop.permute.xlu0 %5689
      %5691 = vrot.lane.b32.xlu0 %v5466, 127
      %v5692 = vpop.permute.xlu0 %5691
      %v5693 = vsel %vm403, %v5686, %v5688
      %v5694 = vsel %vm403, %v5690, %v5692
      %v5701 = vsel %vm403, %v5688, %v5686
      %v5702 = vsel %vm403, %v5692, %v5690
      %5703 = vrot.lane.b32.xlu0 %v5465, 15
      %v5704 = vpop.permute.xlu0 %5703
      %5705 = vrot.lane.b32.xlu0 %v5466, 15
      %v5706 = vpop.permute.xlu0 %5705
      %5709 = vrot.lane.b32.xlu0 %v5471, 15
      %v5710 = vpop.permute.xlu0 %5709
      %5711 = vrot.lane.b32.xlu0 %v5472, 15
      %v5712 = vpop.permute.xlu0 %5711
      %v5713 = vsel %vm414, %v5710, %v5704
      %v5714 = vsel %vm414, %v5712, %v5706
      %v5719 = vsel %vm414, %v5704, %v5710
      %v5720 = vsel %vm414, %v5706, %v5712
      %v5721 = vsel %vm419, %v5719, %v5693
      %v5722 = vsel %vm420, %v5713, %v5701
      %v5723 = vsel %vm419, %v5720, %v5694
      %v5724 = vsel %vm420, %v5714, %v5702
      %v5725 = vld [vmem:[%s1040] sm:$0xff]
      %v5726 = vld [vmem:[%s1040 + $0x8] sm:$0xff]
      %v5728 = vsel %vm369, %v5725, 0
      %v5731 = vsel %vm369, %v5726, 0
      %5733 = vmatprep.subr.mxu0 %v5722
      %5734 = vmatpush1.msra.mxu0 %v5721
      %5735 = vmatprep.subr.mxu0 %v5724
      %5736 = vmatpush1.msra.mxu0 %v5723
      %5737 = vmatprep.subr.mxu0 0.0
      %5738 = vmatpush1.msra.mxu0 0.0
      %5739 = vmatprep.subr.mxu0 0.0
      %5740 = vmatpush1.msra.mxu0 0.0
      %5741 = vmatprep.subr.mxu0 0.0
      %5742 = vmatpush1.msra.mxu0 0.0
      %5743 = vmatprep.subr.mxu0 0.0
      %5744 = vmatpush1.msra.mxu0 0.0
      %5745 = vmatprep.subr.mxu0 0.0
      %5746 = vmatpush1.msra.mxu0 0.0
      %5747 = vmatprep.subr.mxu0 0.0
      %5748 = vmatpush1.msra.mxu0 0.0
      %5749 = vmatprep.subr.mxu0 0.0
      %5750 = vmatpush1.msra.mxu0 0.0
      %5751 = vmatprep.subr.mxu0 0.0
      %5752 = vmatpush1.msra.mxu0 0.0
      %5753 = vmatprep.subr.mxu0 0.0
      %5754 = vmatpush1.msra.mxu0 0.0
      %5755 = vmatprep.subr.mxu0 0.0
      %5756 = vmatpush1.msra.mxu0 0.0
      %5757 = vmatprep.subr.mxu0 0.0
      %5758 = vmatpush1.msra.mxu0 0.0
      %5759 = vmatprep.subr.mxu0 0.0
      %5760 = vmatpush1.msra.mxu0 0.0
      %5761 = vmatprep.subr.mxu0 0.0
      %5762 = vmatpush1.msra.mxu0 0.0
      %5763 = vmatprep.subr.mxu0 0.0
      %5764 = vmatpush1.msra.mxu0 0.0
      %5765 = vmatprep.subr.mxu0 0.0
      %5766 = vmatpush1.msra.mxu0 0.0
      %5767 = vmatprep.subr.mxu0 0.0
      %5768 = vmatpush1.msra.mxu0 0.0
      %5769 = vmatprep.subr.mxu0 0.0
      %5770 = vmatpush1.msra.mxu0 0.0
      %5771 = vmatprep.subr.mxu0 0.0
      %5772 = vmatpush1.msra.mxu0 0.0
      %5773 = vmatprep.subr.mxu0 0.0
      %5774 = vmatpush1.msra.mxu0 0.0
      %5775 = vmatprep.subr.mxu0 0.0
      %5776 = vmatpush1.msra.mxu0 0.0
      %5777 = vmatprep.subr.mxu0 0.0
      %5778 = vmatpush1.msra.mxu0 0.0
      %5779 = vmatprep.subr.mxu0 0.0
      %5780 = vmatpush1.msra.mxu0 0.0
      %5781 = vmatprep.subr.mxu0 0.0
      %5782 = vmatpush1.msra.mxu0 0.0
      %5783 = vmatprep.subr.mxu0 0.0
      %5784 = vmatpush1.msra.mxu0 0.0
      %5785 = vmatprep.subr.mxu0 0.0
      %5786 = vmatpush1.msra.mxu0 0.0
      %5787 = vmatprep.subr.mxu0 0.0
      %5788 = vmatpush1.msra.mxu0 0.0
      %5789 = vmatprep.subr.mxu0 0.0
      %5790 = vmatpush1.msra.mxu0 0.0
      %5791 = vmatprep.subr.mxu0 0.0
      %5792 = vmatpush1.msra.mxu0 0.0
      %5793 = vmatprep.subr.mxu0 0.0
      %5794 = vmatpush1.msra.mxu0 0.0
      %5795 = vmatprep.subr.mxu0 0.0
      %5796 = vmatpush1.msra.mxu0 0.0
      %5797 = vmatprep.mubr.f32.mxu0 0.0
      %5798 = vmatmul.mubr.f32.gmra.mrb[0].mxu0 %v5728
      %v5799 = vpop.f32.mrb[0].mxu0
      %v5800 = vadd.f32 0.0, %v5799
      %v5801 = vpop.f32.mrb[0].mxu0
      %v5802 = vadd.f32 0.0, %v5801
      %5803 = vmatprep.mubr.f32.mxu0 0.0
      %5804 = vmatmul.mubr.f32.gmra.mrb[0].mxu0 %v5731
      %v5805 = vpop.f32.mrb[0].mxu0
      %v5806 = vadd.f32 0.0, %v5805
      %v5807 = vpop.f32.mrb[0].mxu0
      %v5808 = vadd.f32 0.0, %v5807
      %5809 = vdwg.mxu0
      %v5810 = vadd.f32 %v5675, %v5800
      %v5811 = vadd.f32 %v5677, %v5802
      %v5812 = vadd.f32 %v5681, %v5806
      %v5813 = vadd.f32 %v5683, %v5808
      %5814 = vrot.lane.b32.xlu0 %v5448, 1
      %v5815 = vpop.permute.xlu0 %5814
      %5816 = vrot.lane.b32.xlu0 %v5450, 1
      %v5817 = vpop.permute.xlu0 %5816
      %5820 = vrot.lane.b32.xlu0 %v5447, 1
      %v5821 = vpop.permute.xlu0 %5820
      %5822 = vrot.lane.b32.xlu0 %v5449, 1
      %v5823 = vpop.permute.xlu0 %5822
      %v5824 = vsel %vm380, %v5821, %v5815
      %v5825 = vsel %vm380, %v5823, %v5817
      %v5830 = vsel %vm380, %v5815, %v5821
      %v5831 = vsel %vm380, %v5817, %v5823
      %5832 = vrot.lane.b32.xlu0 %v5447, 113
      %v5833 = vpop.permute.xlu0 %5832
      %5834 = vrot.lane.b32.xlu0 %v5448, 113
      %v5835 = vpop.permute.xlu0 %5834
      %5836 = vrot.lane.b32.xlu0 %v5449, 113
      %v5837 = vpop.permute.xlu0 %5836
      %5838 = vrot.lane.b32.xlu0 %v5450, 113
      %v5839 = vpop.permute.xlu0 %5838
      %v5840 = vsel %vm389, %v5833, %v5835
      %v5841 = vsel %vm389, %v5837, %v5839
      %v5848 = vsel %vm389, %v5835, %v5833
      %v5849 = vsel %vm389, %v5839, %v5837
      %v5850 = vsel %vm395, %v5840, %v5830
      %v5851 = vsel %vm396, %v5848, %v5824
      %v5852 = vsel %vm395, %v5841, %v5831
      %v5853 = vsel %vm396, %v5849, %v5825
      %v5854 = vld [vmem:[%s1170] sm:$0xff]
      %v5855 = vld [vmem:[%s1170 + $0x8] sm:$0xff]
      %v5857 = vsel %vm369, %v5854, 0
      %v5860 = vsel %vm369, %v5855, 0
      %5862 = vmatprep.subr.mxu0 %v5851
      %5863 = vmatpush1.msra.mxu0 %v5850
      %5864 = vmatprep.subr.mxu0 %v5853
      %5865 = vmatpush1.msra.mxu0 %v5852
      %5866 = vmatprep.subr.mxu0 0.0
      %5867 = vmatpush1.msra.mxu0 0.0
      %5868 = vmatprep.subr.mxu0 0.0
      %5869 = vmatpush1.msra.mxu0 0.0
      %5870 = vmatprep.subr.mxu0 0.0
      %5871 = vmatpush1.msra.mxu0 0.0
      %5872 = vmatprep.subr.mxu0 0.0
      %5873 = vmatpush1.msra.mxu0 0.0
      %5874 = vmatprep.subr.mxu0 0.0
      %5875 = vmatpush1.msra.mxu0 0.0
      %5876 = vmatprep.subr.mxu0 0.0
      %5877 = vmatpush1.msra.mxu0 0.0
      %5878 = vmatprep.subr.mxu0 0.0
      %5879 = vmatpush1.msra.mxu0 0.0
      %5880 = vmatprep.subr.mxu0 0.0
      %5881 = vmatpush1.msra.mxu0 0.0
      %5882 = vmatprep.subr.mxu0 0.0
      %5883 = vmatpush1.msra.mxu0 0.0
      %5884 = vmatprep.subr.mxu0 0.0
      %5885 = vmatpush1.msra.mxu0 0.0
      %5886 = vmatprep.subr.mxu0 0.0
      %5887 = vmatpush1.msra.mxu0 0.0
      %5888 = vmatprep.subr.mxu0 0.0
      %5889 = vmatpush1.msra.mxu0 0.0
      %5890 = vmatprep.subr.mxu0 0.0
      %5891 = vmatpush1.msra.mxu0 0.0
      %5892 = vmatprep.subr.mxu0 0.0
      %5893 = vmatpush1.msra.mxu0 0.0
      %5894 = vmatprep.subr.mxu0 0.0
      %5895 = vmatpush1.msra.mxu0 0.0
      %5896 = vmatprep.subr.mxu0 0.0
      %5897 = vmatpush1.msra.mxu0 0.0
      %5898 = vmatprep.subr.mxu0 0.0
      %5899 = vmatpush1.msra.mxu0 0.0
      %5900 = vmatprep.subr.mxu0 0.0
      %5901 = vmatpush1.msra.mxu0 0.0
      %5902 = vmatprep.subr.mxu0 0.0
      %5903 = vmatpush1.msra.mxu0 0.0
      %5904 = vmatprep.subr.mxu0 0.0
      %5905 = vmatpush1.msra.mxu0 0.0
      %5906 = vmatprep.subr.mxu0 0.0
      %5907 = vmatpush1.msra.mxu0 0.0
      %5908 = vmatprep.subr.mxu0 0.0
      %5909 = vmatpush1.msra.mxu0 0.0
      %5910 = vmatprep.subr.mxu0 0.0
      %5911 = vmatpush1.msra.mxu0 0.0
      %5912 = vmatprep.subr.mxu0 0.0
      %5913 = vmatpush1.msra.mxu0 0.0
      %5914 = vmatprep.subr.mxu0 0.0
      %5915 = vmatpush1.msra.mxu0 0.0
      %5916 = vmatprep.subr.mxu0 0.0
      %5917 = vmatpush1.msra.mxu0 0.0
      %5918 = vmatprep.subr.mxu0 0.0
      %5919 = vmatpush1.msra.mxu0 0.0
      %5920 = vmatprep.subr.mxu0 0.0
      %5921 = vmatpush1.msra.mxu0 0.0
      %5922 = vmatprep.subr.mxu0 0.0
      %5923 = vmatpush1.msra.mxu0 0.0
      %5924 = vmatprep.subr.mxu0 0.0
      %5925 = vmatpush1.msra.mxu0 0.0
      %5926 = vmatprep.mubr.f32.mxu0 0.0
      %5927 = vmatmul.mubr.f32.gmra.mrb[0].mxu0 %v5857
      %v5928 = vpop.f32.mrb[0].mxu0
      %v5929 = vadd.f32 0.0, %v5928
      %v5930 = vpop.f32.mrb[0].mxu0
      %v5931 = vadd.f32 0.0, %v5930
      %5932 = vmatprep.mubr.f32.mxu0 0.0
      %5933 = vmatmul.mubr.f32.gmra.mrb[0].mxu0 %v5860
      %v5934 = vpop.f32.mrb[0].mxu0
      %v5935 = vadd.f32 0.0, %v5934
      %v5936 = vpop.f32.mrb[0].mxu0
      %v5937 = vadd.f32 0.0, %v5936
      %5938 = vdwg.mxu0
      %v5939 = vadd.f32 %v5810, %v5929
      %v5940 = vadd.f32 %v5811, %v5931
      %v5941 = vadd.f32 %v5812, %v5935
      %v5942 = vadd.f32 %v5813, %v5937
      %v5943 = vld [vmem:[%s1260] sm:$0xff]
      %v5944 = vld [vmem:[%s1260 + $0x8] sm:$0xff]
      %v5946 = vsel %vm369, %v5943, 0
      %v5949 = vsel %vm369, %v5944, 0
      %5951 = vmatprep.subr.mxu0 %v5448
      %5952 = vmatpush1.msra.mxu0 %v5447
      %5953 = vmatprep.subr.mxu0 %v5450
      %5954 = vmatpush1.msra.mxu0 %v5449
      %5955 = vmatprep.subr.mxu0 0.0
      %5956 = vmatpush1.msra.mxu0 0.0
      %5957 = vmatprep.subr.mxu0 0.0
      %5958 = vmatpush1.msra.mxu0 0.0
      %5959 = vmatprep.subr.mxu0 0.0
      %5960 = vmatpush1.msra.mxu0 0.0
      %5961 = vmatprep.subr.mxu0 0.0
      %5962 = vmatpush1.msra.mxu0 0.0
      %5963 = vmatprep.subr.mxu0 0.0
      %5964 = vmatpush1.msra.mxu0 0.0
      %5965 = vmatprep.subr.mxu0 0.0
      %5966 = vmatpush1.msra.mxu0 0.0
      %5967 = vmatprep.subr.mxu0 0.0
      %5968 = vmatpush1.msra.mxu0 0.0
      %5969 = vmatprep.subr.mxu0 0.0
      %5970 = vmatpush1.msra.mxu0 0.0
      %5971 = vmatprep.subr.mxu0 0.0
      %5972 = vmatpush1.msra.mxu0 0.0
      %5973 = vmatprep.subr.mxu0 0.0
      %5974 = vmatpush1.msra.mxu0 0.0
      %5975 = vmatprep.subr.mxu0 0.0
      %5976 = vmatpush1.msra.mxu0 0.0
      %5977 = vmatprep.subr.mxu0 0.0
      %5978 = vmatpush1.msra.mxu0 0.0
      %5979 = vmatprep.subr.mxu0 0.0
      %5980 = vmatpush1.msra.mxu0 0.0
      %5981 = vmatprep.subr.mxu0 0.0
      %5982 = vmatpush1.msra.mxu0 0.0
      %5983 = vmatprep.subr.mxu0 0.0
      %5984 = vmatpush1.msra.mxu0 0.0
      %5985 = vmatprep.subr.mxu0 0.0
      %5986 = vmatpush1.msra.mxu0 0.0
      %5987 = vmatprep.subr.mxu0 0.0
      %5988 = vmatpush1.msra.mxu0 0.0
      %5989 = vmatprep.subr.mxu0 0.0
      %5990 = vmatpush1.msra.mxu0 0.0
      %5991 = vmatprep.subr.mxu0 0.0
      %5992 = vmatpush1.msra.mxu0 0.0
      %5993 = vmatprep.subr.mxu0 0.0
      %5994 = vmatpush1.msra.mxu0 0.0
      %5995 = vmatprep.subr.mxu0 0.0
      %5996 = vmatpush1.msra.mxu0 0.0
      %5997 = vmatprep.subr.mxu0 0.0
      %5998 = vmatpush1.msra.mxu0 0.0
      %5999 = vmatprep.subr.mxu0 0.0
      %6000 = vmatpush1.msra.mxu0 0.0
      %6001 = vmatprep.subr.mxu0 0.0
      %6002 = vmatpush1.msra.mxu0 0.0
      %6003 = vmatprep.subr.mxu0 0.0
      %6004 = vmatpush1.msra.mxu0 0.0
      %6005 = vmatprep.subr.mxu0 0.0
      %6006 = vmatpush1.msra.mxu0 0.0
      %6007 = vmatprep.subr.mxu0 0.0
      %6008 = vmatpush1.msra.mxu0 0.0
      %6009 = vmatprep.subr.mxu0 0.0
      %6010 = vmatpush1.msra.mxu0 0.0
      %6011 = vmatprep.subr.mxu0 0.0
      %6012 = vmatpush1.msra.mxu0 0.0
      %6013 = vmatprep.subr.mxu0 0.0
      %6014 = vmatpush1.msra.mxu0 0.0
      %6015 = vmatprep.mubr.f32.mxu0 0.0
      %6016 = vmatmul.mubr.f32.gmra.mrb[0].mxu0 %v5946
      %v6017 = vpop.f32.mrb[0].mxu0
      %v6018 = vadd.f32 0.0, %v6017
      %v6019 = vpop.f32.mrb[0].mxu0
      %v6020 = vadd.f32 0.0, %v6019
      %6021 = vmatprep.mubr.f32.mxu0 0.0
      %6022 = vmatmul.mubr.f32.gmra.mrb[0].mxu0 %v5949
      %v6023 = vpop.f32.mrb[0].mxu0
      %v6024 = vadd.f32 0.0, %v6023
      %v6025 = vpop.f32.mrb[0].mxu0
      %v6026 = vadd.f32 0.0, %v6025
      %6027 = vdwg.mxu0
      %v6028 = vadd.f32 %v5939, %v6018
      %v6029 = vadd.f32 %v5940, %v6020
      %v6030 = vadd.f32 %v5941, %v6024
      %v6031 = vadd.f32 %v5942, %v6026
      %6032 = vrot.lane.b32.xlu0 %v5447, 127
      %v6033 = vpop.permute.xlu0 %6032
      %6034 = vrot.lane.b32.xlu0 %v5448, 127
      %v6035 = vpop.permute.xlu0 %6034
      %6036 = vrot.lane.b32.xlu0 %v5449, 127
      %v6037 = vpop.permute.xlu0 %6036
      %6038 = vrot.lane.b32.xlu0 %v5450, 127
      %v6039 = vpop.permute.xlu0 %6038
      %v6040 = vsel %vm403, %v6033, %v6035
      %v6041 = vsel %vm403, %v6037, %v6039
      %v6048 = vsel %vm403, %v6035, %v6033
      %v6049 = vsel %vm403, %v6039, %v6037
      %6050 = vrot.lane.b32.xlu0 %v5448, 15
      %v6051 = vpop.permute.xlu0 %6050
      %6052 = vrot.lane.b32.xlu0 %v5450, 15
      %v6053 = vpop.permute.xlu0 %6052
      %6056 = vrot.lane.b32.xlu0 %v5447, 15
      %v6057 = vpop.permute.xlu0 %6056
      %6058 = vrot.lane.b32.xlu0 %v5449, 15
      %v6059 = vpop.permute.xlu0 %6058
      %v6060 = vsel %vm414, %v6057, %v6051
      %v6061 = vsel %vm414, %v6059, %v6053
      %v6066 = vsel %vm414, %v6051, %v6057
      %v6067 = vsel %vm414, %v6053, %v6059
      %v6068 = vsel %vm419, %v6066, %v6040
      %v6069 = vsel %vm420, %v6060, %v6048
      %v6070 = vsel %vm419, %v6067, %v6041
      %v6071 = vsel %vm420, %v6061, %v6049
      %v6072 = vld [vmem:[%s1390] sm:$0xff]
      %v6073 = vld [vmem:[%s1390 + $0x8] sm:$0xff]
      %v6075 = vsel %vm369, %v6072, 0
      %v6078 = vsel %vm369, %v6073, 0
      %6080 = vmatprep.subr.mxu0 %v6069
      %6081 = vmatpush1.msra.mxu0 %v6068
      %6082 = vmatprep.subr.mxu0 %v6071
      %6083 = vmatpush1.msra.mxu0 %v6070
      %6084 = vmatprep.subr.mxu0 0.0
      %6085 = vmatpush1.msra.mxu0 0.0
      %6086 = vmatprep.subr.mxu0 0.0
      %6087 = vmatpush1.msra.mxu0 0.0
      %6088 = vmatprep.subr.mxu0 0.0
      %6089 = vmatpush1.msra.mxu0 0.0
      %6090 = vmatprep.subr.mxu0 0.0
      %6091 = vmatpush1.msra.mxu0 0.0
      %6092 = vmatprep.subr.mxu0 0.0
      %6093 = vmatpush1.msra.mxu0 0.0
      %6094 = vmatprep.subr.mxu0 0.0
      %6095 = vmatpush1.msra.mxu0 0.0
      %6096 = vmatprep.subr.mxu0 0.0
      %6097 = vmatpush1.msra.mxu0 0.0
      %6098 = vmatprep.subr.mxu0 0.0
      %6099 = vmatpush1.msra.mxu0 0.0
      %6100 = vmatprep.subr.mxu0 0.0
      %6101 = vmatpush1.msra.mxu0 0.0
      %6102 = vmatprep.subr.mxu0 0.0
      %6103 = vmatpush1.msra.mxu0 0.0
      %6104 = vmatprep.subr.mxu0 0.0
      %6105 = vmatpush1.msra.mxu0 0.0
      %6106 = vmatprep.subr.mxu0 0.0
      %6107 = vmatpush1.msra.mxu0 0.0
      %6108 = vmatprep.subr.mxu0 0.0
      %6109 = vmatpush1.msra.mxu0 0.0
      %6110 = vmatprep.subr.mxu0 0.0
      %6111 = vmatpush1.msra.mxu0 0.0
      %6112 = vmatprep.subr.mxu0 0.0
      %6113 = vmatpush1.msra.mxu0 0.0
      %6114 = vmatprep.subr.mxu0 0.0
      %6115 = vmatpush1.msra.mxu0 0.0
      %6116 = vmatprep.subr.mxu0 0.0
      %6117 = vmatpush1.msra.mxu0 0.0
      %6118 = vmatprep.subr.mxu0 0.0
      %6119 = vmatpush1.msra.mxu0 0.0
      %6120 = vmatprep.subr.mxu0 0.0
      %6121 = vmatpush1.msra.mxu0 0.0
      %6122 = vmatprep.subr.mxu0 0.0
      %6123 = vmatpush1.msra.mxu0 0.0
      %6124 = vmatprep.subr.mxu0 0.0
      %6125 = vmatpush1.msra.mxu0 0.0
      %6126 = vmatprep.subr.mxu0 0.0
      %6127 = vmatpush1.msra.mxu0 0.0
      %6128 = vmatprep.subr.mxu0 0.0
      %6129 = vmatpush1.msra.mxu0 0.0
      %6130 = vmatprep.subr.mxu0 0.0
      %6131 = vmatpush1.msra.mxu0 0.0
      %6132 = vmatprep.subr.mxu0 0.0
      %6133 = vmatpush1.msra.mxu0 0.0
      %6134 = vmatprep.subr.mxu0 0.0
      %6135 = vmatpush1.msra.mxu0 0.0
      %6136 = vmatprep.subr.mxu0 0.0
      %6137 = vmatpush1.msra.mxu0 0.0
      %6138 = vmatprep.subr.mxu0 0.0
      %6139 = vmatpush1.msra.mxu0 0.0
      %6140 = vmatprep.subr.mxu0 0.0
      %6141 = vmatpush1.msra.mxu0 0.0
      %6142 = vmatprep.subr.mxu0 0.0
      %6143 = vmatpush1.msra.mxu0 0.0
      %6144 = vmatprep.mubr.f32.mxu0 0.0
      %6145 = vmatmul.mubr.f32.gmra.mrb[0].mxu0 %v6075
      %v6146 = vpop.f32.mrb[0].mxu0
      %v6147 = vadd.f32 0.0, %v6146
      %v6148 = vpop.f32.mrb[0].mxu0
      %v6149 = vadd.f32 0.0, %v6148
      %6150 = vmatprep.mubr.f32.mxu0 0.0
      %6151 = vmatmul.mubr.f32.gmra.mrb[0].mxu0 %v6078
      %v6152 = vpop.f32.mrb[0].mxu0
      %v6153 = vadd.f32 0.0, %v6152
      %v6154 = vpop.f32.mrb[0].mxu0
      %v6155 = vadd.f32 0.0, %v6154
      %6156 = vdwg.mxu0
      %v6157 = vadd.f32 %v6028, %v6147
      %v6158 = vadd.f32 %v6029, %v6149
      %v6159 = vadd.f32 %v6030, %v6153
      %v6160 = vadd.f32 %v6031, %v6155
      %6161 = vrot.lane.b32.xlu0 %v5447, 112
      %v6162 = vpop.permute.xlu0 %6161
      %6163 = vrot.lane.b32.xlu0 %v5448, 112
      %v6164 = vpop.permute.xlu0 %6163
      %6165 = vrot.lane.b32.xlu0 %v5449, 112
      %v6166 = vpop.permute.xlu0 %6165
      %6167 = vrot.lane.b32.xlu0 %v5450, 112
      %v6168 = vpop.permute.xlu0 %6167
      %v6169 = vsel %vm467, %v6162, %v6164
      %v6170 = vsel %vm467, %v6166, %v6168
      %v6177 = vsel %vm467, %v6164, %v6162
      %v6178 = vsel %vm467, %v6168, %v6166
      %6181 = vrot.lane.b32.xlu0 %v6177, 1
      %v6182 = vpop.permute.xlu0 %6181
      %6183 = vrot.lane.b32.xlu0 %v6178, 1
      %v6184 = vpop.permute.xlu0 %6183
      %6187 = vrot.lane.b32.xlu0 %v6169, 1
      %v6188 = vpop.permute.xlu0 %6187
      %6189 = vrot.lane.b32.xlu0 %v6170, 1
      %v6190 = vpop.permute.xlu0 %6189
      %v6191 = vsel %vm380, %v6188, %v6182
      %v6192 = vsel %vm380, %v6190, %v6184
      %v6197 = vsel %vm380, %v6182, %v6188
      %v6198 = vsel %vm380, %v6184, %v6190
      %6199 = vrot.lane.b32.xlu0 %v6169, 113
      %v6200 = vpop.permute.xlu0 %6199
      %6201 = vrot.lane.b32.xlu0 %v6177, 113
      %v6202 = vpop.permute.xlu0 %6201
      %6203 = vrot.lane.b32.xlu0 %v6170, 113
      %v6204 = vpop.permute.xlu0 %6203
      %6205 = vrot.lane.b32.xlu0 %v6178, 113
      %v6206 = vpop.permute.xlu0 %6205
      %v6207 = vsel %vm389, %v6200, %v6202
      %v6208 = vsel %vm389, %v6204, %v6206
      %v6215 = vsel %vm389, %v6202, %v6200
      %v6216 = vsel %vm389, %v6206, %v6204
      %v6217 = vsel %vm395, %v6207, %v6197
      %v6218 = vsel %vm396, %v6215, %v6191
      %v6219 = vsel %vm395, %v6208, %v6198
      %v6220 = vsel %vm396, %v6216, %v6192
      %v6221 = vld [vmem:[%s1540] sm:$0xff]
      %v6222 = vld [vmem:[%s1540 + $0x8] sm:$0xff]
      %v6224 = vsel %vm369, %v6221, 0
      %v6227 = vsel %vm369, %v6222, 0
      %6229 = vmatprep.subr.mxu0 %v6218
      %6230 = vmatpush1.msra.mxu0 %v6217
      %6231 = vmatprep.subr.mxu0 %v6220
      %6232 = vmatpush1.msra.mxu0 %v6219
      %6233 = vmatprep.subr.mxu0 0.0
      %6234 = vmatpush1.msra.mxu0 0.0
      %6235 = vmatprep.subr.mxu0 0.0
      %6236 = vmatpush1.msra.mxu0 0.0
      %6237 = vmatprep.subr.mxu0 0.0
      %6238 = vmatpush1.msra.mxu0 0.0
      %6239 = vmatprep.subr.mxu0 0.0
      %6240 = vmatpush1.msra.mxu0 0.0
      %6241 = vmatprep.subr.mxu0 0.0
      %6242 = vmatpush1.msra.mxu0 0.0
      %6243 = vmatprep.subr.mxu0 0.0
      %6244 = vmatpush1.msra.mxu0 0.0
      %6245 = vmatprep.subr.mxu0 0.0
      %6246 = vmatpush1.msra.mxu0 0.0
      %6247 = vmatprep.subr.mxu0 0.0
      %6248 = vmatpush1.msra.mxu0 0.0
      %6249 = vmatprep.subr.mxu0 0.0
      %6250 = vmatpush1.msra.mxu0 0.0
      %6251 = vmatprep.subr.mxu0 0.0
      %6252 = vmatpush1.msra.mxu0 0.0
      %6253 = vmatprep.subr.mxu0 0.0
      %6254 = vmatpush1.msra.mxu0 0.0
      %6255 = vmatprep.subr.mxu0 0.0
      %6256 = vmatpush1.msra.mxu0 0.0
      %6257 = vmatprep.subr.mxu0 0.0
      %6258 = vmatpush1.msra.mxu0 0.0
      %6259 = vmatprep.subr.mxu0 0.0
      %6260 = vmatpush1.msra.mxu0 0.0
      %6261 = vmatprep.subr.mxu0 0.0
      %6262 = vmatpush1.msra.mxu0 0.0
      %6263 = vmatprep.subr.mxu0 0.0
      %6264 = vmatpush1.msra.mxu0 0.0
      %6265 = vmatprep.subr.mxu0 0.0
      %6266 = vmatpush1.msra.mxu0 0.0
      %6267 = vmatprep.subr.mxu0 0.0
      %6268 = vmatpush1.msra.mxu0 0.0
      %6269 = vmatprep.subr.mxu0 0.0
      %6270 = vmatpush1.msra.mxu0 0.0
      %6271 = vmatprep.subr.mxu0 0.0
      %6272 = vmatpush1.msra.mxu0 0.0
      %6273 = vmatprep.subr.mxu0 0.0
      %6274 = vmatpush1.msra.mxu0 0.0
      %6275 = vmatprep.subr.mxu0 0.0
      %6276 = vmatpush1.msra.mxu0 0.0
      %6277 = vmatprep.subr.mxu0 0.0
      %6278 = vmatpush1.msra.mxu0 0.0
      %6279 = vmatprep.subr.mxu0 0.0
      %6280 = vmatpush1.msra.mxu0 0.0
      %6281 = vmatprep.subr.mxu0 0.0
      %6282 = vmatpush1.msra.mxu0 0.0
      %6283 = vmatprep.subr.mxu0 0.0
      %6284 = vmatpush1.msra.mxu0 0.0
      %6285 = vmatprep.subr.mxu0 0.0
      %6286 = vmatpush1.msra.mxu0 0.0
      %6287 = vmatprep.subr.mxu0 0.0
      %6288 = vmatpush1.msra.mxu0 0.0
      %6289 = vmatprep.subr.mxu0 0.0
      %6290 = vmatpush1.msra.mxu0 0.0
      %6291 = vmatprep.subr.mxu0 0.0
      %6292 = vmatpush1.msra.mxu0 0.0
      %6293 = vmatprep.mubr.f32.mxu0 0.0
      %6294 = vmatmul.mubr.f32.gmra.mrb[0].mxu0 %v6224
      %v6295 = vpop.f32.mrb[0].mxu0
      %v6296 = vadd.f32 0.0, %v6295
      %v6297 = vpop.f32.mrb[0].mxu0
      %v6298 = vadd.f32 0.0, %v6297
      %6299 = vmatprep.mubr.f32.mxu0 0.0
      %6300 = vmatmul.mubr.f32.gmra.mrb[0].mxu0 %v6227
      %v6301 = vpop.f32.mrb[0].mxu0
      %v6302 = vadd.f32 0.0, %v6301
      %v6303 = vpop.f32.mrb[0].mxu0
      %v6304 = vadd.f32 0.0, %v6303
      %6305 = vdwg.mxu0
      %v6306 = vadd.f32 %v6157, %v6296
      %v6307 = vadd.f32 %v6158, %v6298
      %v6308 = vadd.f32 %v6159, %v6302
      %v6309 = vadd.f32 %v6160, %v6304
      %v6310 = vld [vmem:[%s1630] sm:$0xff]
      %v6311 = vld [vmem:[%s1630 + $0x8] sm:$0xff]
      %v6313 = vsel %vm369, %v6310, 0
      %v6316 = vsel %vm369, %v6311, 0
      %6318 = vmatprep.subr.mxu0 %v6177
      %6319 = vmatpush1.msra.mxu0 %v6169
      %6320 = vmatprep.subr.mxu0 %v6178
      %6321 = vmatpush1.msra.mxu0 %v6170
      %6322 = vmatprep.subr.mxu0 0.0
      %6323 = vmatpush1.msra.mxu0 0.0
      %6324 = vmatprep.subr.mxu0 0.0
      %6325 = vmatpush1.msra.mxu0 0.0
      %6326 = vmatprep.subr.mxu0 0.0
      %6327 = vmatpush1.msra.mxu0 0.0
      %6328 = vmatprep.subr.mxu0 0.0
      %6329 = vmatpush1.msra.mxu0 0.0
      %6330 = vmatprep.subr.mxu0 0.0
      %6331 = vmatpush1.msra.mxu0 0.0
      %6332 = vmatprep.subr.mxu0 0.0
      %6333 = vmatpush1.msra.mxu0 0.0
      %6334 = vmatprep.subr.mxu0 0.0
      %6335 = vmatpush1.msra.mxu0 0.0
      %6336 = vmatprep.subr.mxu0 0.0
      %6337 = vmatpush1.msra.mxu0 0.0
      %6338 = vmatprep.subr.mxu0 0.0
      %6339 = vmatpush1.msra.mxu0 0.0
      %6340 = vmatprep.subr.mxu0 0.0
      %6341 = vmatpush1.msra.mxu0 0.0
      %6342 = vmatprep.subr.mxu0 0.0
      %6343 = vmatpush1.msra.mxu0 0.0
      %6344 = vmatprep.subr.mxu0 0.0
      %6345 = vmatpush1.msra.mxu0 0.0
      %6346 = vmatprep.subr.mxu0 0.0
      %6347 = vmatpush1.msra.mxu0 0.0
      %6348 = vmatprep.subr.mxu0 0.0
      %6349 = vmatpush1.msra.mxu0 0.0
      %6350 = vmatprep.subr.mxu0 0.0
      %6351 = vmatpush1.msra.mxu0 0.0
      %6352 = vmatprep.subr.mxu0 0.0
      %6353 = vmatpush1.msra.mxu0 0.0
      %6354 = vmatprep.subr.mxu0 0.0
      %6355 = vmatpush1.msra.mxu0 0.0
      %6356 = vmatprep.subr.mxu0 0.0
      %6357 = vmatpush1.msra.mxu0 0.0
      %6358 = vmatprep.subr.mxu0 0.0
      %6359 = vmatpush1.msra.mxu0 0.0
      %6360 = vmatprep.subr.mxu0 0.0
      %6361 = vmatpush1.msra.mxu0 0.0
      %6362 = vmatprep.subr.mxu0 0.0
      %6363 = vmatpush1.msra.mxu0 0.0
      %6364 = vmatprep.subr.mxu0 0.0
      %6365 = vmatpush1.msra.mxu0 0.0
      %6366 = vmatprep.subr.mxu0 0.0
      %6367 = vmatpush1.msra.mxu0 0.0
      %6368 = vmatprep.subr.mxu0 0.0
      %6369 = vmatpush1.msra.mxu0 0.0
      %6370 = vmatprep.subr.mxu0 0.0
      %6371 = vmatpush1.msra.mxu0 0.0
      %6372 = vmatprep.subr.mxu0 0.0
      %6373 = vmatpush1.msra.mxu0 0.0
      %6374 = vmatprep.subr.mxu0 0.0
      %6375 = vmatpush1.msra.mxu0 0.0
      %6376 = vmatprep.subr.mxu0 0.0
      %6377 = vmatpush1.msra.mxu0 0.0
      %6378 = vmatprep.subr.mxu0 0.0
      %6379 = vmatpush1.msra.mxu0 0.0
      %6380 = vmatprep.subr.mxu0 0.0
      %6381 = vmatpush1.msra.mxu0 0.0
      %6382 = vmatprep.mubr.f32.mxu0 0.0
      %6383 = vmatmul.mubr.f32.gmra.mrb[0].mxu0 %v6313
      %v6384 = vpop.f32.mrb[0].mxu0
      %v6385 = vadd.f32 0.0, %v6384
      %v6386 = vpop.f32.mrb[0].mxu0
      %v6387 = vadd.f32 0.0, %v6386
      %6388 = vmatprep.mubr.f32.mxu0 0.0
      %6389 = vmatmul.mubr.f32.gmra.mrb[0].mxu0 %v6316
      %v6390 = vpop.f32.mrb[0].mxu0
      %v6391 = vadd.f32 0.0, %v6390
      %v6392 = vpop.f32.mrb[0].mxu0
      %v6393 = vadd.f32 0.0, %v6392
      %6394 = vdwg.mxu0
      %v6395 = vadd.f32 %v6306, %v6385
      %v6396 = vadd.f32 %v6307, %v6387
      %v6397 = vadd.f32 %v6308, %v6391
      %v6398 = vadd.f32 %v6309, %v6393
      %6399 = vrot.lane.b32.xlu0 %v6169, 127
      %v6400 = vpop.permute.xlu0 %6399
      %6401 = vrot.lane.b32.xlu0 %v6177, 127
      %v6402 = vpop.permute.xlu0 %6401
      %6403 = vrot.lane.b32.xlu0 %v6170, 127
      %v6404 = vpop.permute.xlu0 %6403
      %6405 = vrot.lane.b32.xlu0 %v6178, 127
      %v6406 = vpop.permute.xlu0 %6405
      %v6407 = vsel %vm403, %v6400, %v6402
      %v6408 = vsel %vm403, %v6404, %v6406
      %v6415 = vsel %vm403, %v6402, %v6400
      %v6416 = vsel %vm403, %v6406, %v6404
      %6417 = vrot.lane.b32.xlu0 %v6177, 15
      %v6418 = vpop.permute.xlu0 %6417
      %6419 = vrot.lane.b32.xlu0 %v6178, 15
      %v6420 = vpop.permute.xlu0 %6419
      %6423 = vrot.lane.b32.xlu0 %v6169, 15
      %v6424 = vpop.permute.xlu0 %6423
      %6425 = vrot.lane.b32.xlu0 %v6170, 15
      %v6426 = vpop.permute.xlu0 %6425
      %v6427 = vsel %vm414, %v6424, %v6418
      %v6428 = vsel %vm414, %v6426, %v6420
      %v6433 = vsel %vm414, %v6418, %v6424
      %v6434 = vsel %vm414, %v6420, %v6426
      %v6435 = vsel %vm419, %v6433, %v6407
      %v6436 = vsel %vm420, %v6427, %v6415
      %v6437 = vsel %vm419, %v6434, %v6408
      %v6438 = vsel %vm420, %v6428, %v6416
      %v6439 = vld [vmem:[%s1760] sm:$0xff]
      %v6440 = vld [vmem:[%s1760 + $0x8] sm:$0xff]
      %v6442 = vsel %vm369, %v6439, 0
      %v6445 = vsel %vm369, %v6440, 0
      %6447 = vmatprep.subr.mxu0 %v6436
      %6448 = vmatpush1.msra.mxu0 %v6435
      %6449 = vmatprep.subr.mxu0 %v6438
      %6450 = vmatpush1.msra.mxu0 %v6437
      %6451 = vmatprep.subr.mxu0 0.0
      %6452 = vmatpush1.msra.mxu0 0.0
      %6453 = vmatprep.subr.mxu0 0.0
      %6454 = vmatpush1.msra.mxu0 0.0
      %6455 = vmatprep.subr.mxu0 0.0
      %6456 = vmatpush1.msra.mxu0 0.0
      %6457 = vmatprep.subr.mxu0 0.0
      %6458 = vmatpush1.msra.mxu0 0.0
      %6459 = vmatprep.subr.mxu0 0.0
      %6460 = vmatpush1.msra.mxu0 0.0
      %6461 = vmatprep.subr.mxu0 0.0
      %6462 = vmatpush1.msra.mxu0 0.0
      %6463 = vmatprep.subr.mxu0 0.0
      %6464 = vmatpush1.msra.mxu0 0.0
      %6465 = vmatprep.subr.mxu0 0.0
      %6466 = vmatpush1.msra.mxu0 0.0
      %6467 = vmatprep.subr.mxu0 0.0
      %6468 = vmatpush1.msra.mxu0 0.0
      %6469 = vmatprep.subr.mxu0 0.0
      %6470 = vmatpush1.msra.mxu0 0.0
      %6471 = vmatprep.subr.mxu0 0.0
      %6472 = vmatpush1.msra.mxu0 0.0
      %6473 = vmatprep.subr.mxu0 0.0
      %6474 = vmatpush1.msra.mxu0 0.0
      %6475 = vmatprep.subr.mxu0 0.0
      %6476 = vmatpush1.msra.mxu0 0.0
      %6477 = vmatprep.subr.mxu0 0.0
      %6478 = vmatpush1.msra.mxu0 0.0
      %6479 = vmatprep.subr.mxu0 0.0
      %6480 = vmatpush1.msra.mxu0 0.0
      %6481 = vmatprep.subr.mxu0 0.0
      %6482 = vmatpush1.msra.mxu0 0.0
      %6483 = vmatprep.subr.mxu0 0.0
      %6484 = vmatpush1.msra.mxu0 0.0
      %6485 = vmatprep.subr.mxu0 0.0
      %6486 = vmatpush1.msra.mxu0 0.0
      %6487 = vmatprep.subr.mxu0 0.0
      %6488 = vmatpush1.msra.mxu0 0.0
      %6489 = vmatprep.subr.mxu0 0.0
      %6490 = vmatpush1.msra.mxu0 0.0
      %6491 = vmatprep.subr.mxu0 0.0
      %6492 = vmatpush1.msra.mxu0 0.0
      %6493 = vmatprep.subr.mxu0 0.0
      %6494 = vmatpush1.msra.mxu0 0.0
      %6495 = vmatprep.subr.mxu0 0.0
      %6496 = vmatpush1.msra.mxu0 0.0
      %6497 = vmatprep.subr.mxu0 0.0
      %6498 = vmatpush1.msra.mxu0 0.0
      %6499 = vmatprep.subr.mxu0 0.0
      %6500 = vmatpush1.msra.mxu0 0.0
      %6501 = vmatprep.subr.mxu0 0.0
      %6502 = vmatpush1.msra.mxu0 0.0
      %6503 = vmatprep.subr.mxu0 0.0
      %6504 = vmatpush1.msra.mxu0 0.0
      %6505 = vmatprep.subr.mxu0 0.0
      %6506 = vmatpush1.msra.mxu0 0.0
      %6507 = vmatprep.subr.mxu0 0.0
      %6508 = vmatpush1.msra.mxu0 0.0
      %6509 = vmatprep.subr.mxu0 0.0
      %6510 = vmatpush1.msra.mxu0 0.0
      %6511 = vmatprep.mubr.f32.mxu0 0.0
      %6512 = vmatmul.mubr.f32.gmra.mrb[0].mxu0 %v6442
      %v6513 = vpop.f32.mrb[0].mxu0
      %v6514 = vadd.f32 0.0, %v6513
      %v6515 = vpop.f32.mrb[0].mxu0
      %v6516 = vadd.f32 0.0, %v6515
      %6517 = vmatprep.mubr.f32.mxu0 0.0
      %6518 = vmatmul.mubr.f32.gmra.mrb[0].mxu0 %v6445
      %v6519 = vpop.f32.mrb[0].mxu0
      %v6520 = vadd.f32 0.0, %v6519
      %v6521 = vpop.f32.mrb[0].mxu0
      %v6522 = vadd.f32 0.0, %v6521
      %6523 = vdwg.mxu0
      %v6524 = vadd.f32 %v6395, %v6514
      %v6525 = vadd.f32 %v6396, %v6516
      %v6526 = vadd.f32 %v6397, %v6520
      %v6527 = vadd.f32 %v6398, %v6522
      %v6528 = vld [vmem:[%s4] sm:$0xff]
      %v6529 = vld [vmem:[%s4 + $0x8] sm:$0xff]
      %6531 = vset.pattern.permute.xlu0 0
      %6532 = vperm.xlu0 %6531, %v6528
      %v6533 = vpop.permute.xlu0 %6532
      %6536 = vset.pattern.permute.xlu0 0
      %6537 = vperm.xlu0 %6536, %v6529
      %v6538 = vpop.permute.xlu0 %6537
      %v6540 = vadd.f32 %v6524, %v6533
      %v6541 = vadd.f32 %v6525, %v6533
      %v6542 = vadd.f32 %v6526, %v6538
      %v6543 = vadd.f32 %v6527, %v6538
      %v6544 = vmax.f32 %v6540, 0.0
      %v6545 = vmax.f32 %v6541, 0.0
      %v6546 = vmax.f32 %v6542, 0.0
      %v6547 = vmax.f32 %v6543, 0.0
      %v6548 = vld [vmem:[%s5] sm:$0xff]
      %v6549 = vld [vmem:[%s5 + $0x8] sm:$0xff]
      %v6550 = vld [vmem:[%s5 + $0x10] sm:$0xff]
      %v6551 = vld [vmem:[%s5 + $0x18] sm:$0xff]
      %v6552 = vld [vmem:[%s5 + $0x20] sm:$0xff]
      %v6553 = vld [vmem:[%s5 + $0x28] sm:$0xff]
      %v6554 = vld [vmem:[%s5 + $0x30] sm:$0xff]
      %v6555 = vld [vmem:[%s5 + $0x38] sm:$0xff]
      %v6556 = vld [vmem:[%s5 + $0x40] sm:$0xff]
      %v6557 = vld [vmem:[%s5 + $0x48] sm:$0xff]
      %v6558 = vld [vmem:[%s5 + $0x50] sm:$0xff]
      %v6559 = vld [vmem:[%s5 + $0x58] sm:$0xff]
      %v6560 = vld [vmem:[%s5 + $0x60] sm:$0xff]
      %v6561 = vld [vmem:[%s5 + $0x68] sm:$0xff]
      %v6562 = vld [vmem:[%s5 + $0x70] sm:$0xff]
      %v6563 = vld [vmem:[%s5 + $0x78] sm:$0xff]
      %v6564 = vld [vmem:[%s5 + $0x80] sm:$0xff]
      %v6565 = vld [vmem:[%s5 + $0x88] sm:$0xff]
      %v6566 = vld [vmem:[%s5 + $0x90] sm:$0xff]
      %v6567 = vld [vmem:[%s5 + $0x98] sm:$0xff]
      %v6568 = vld [vmem:[%s5 + $0xa0] sm:$0xff]
      %v6569 = vld [vmem:[%s5 + $0xa8] sm:$0xff]
      %v6570 = vld [vmem:[%s5 + $0xb0] sm:$0xff]
      %v6571 = vld [vmem:[%s5 + $0xb8] sm:$0xff]
      %v6572 = vld [vmem:[%s5 + $0xc0] sm:$0xff]
      %v6573 = vld [vmem:[%s5 + $0xc8] sm:$0xff]
      %v6574 = vld [vmem:[%s5 + $0xd0] sm:$0xff]
      %v6575 = vld [vmem:[%s5 + $0xd8] sm:$0xff]
      %v6576 = vld [vmem:[%s5 + $0xe0] sm:$0xff]
      %v6577 = vld [vmem:[%s5 + $0xe8] sm:$0xff]
      %v6578 = vld [vmem:[%s5 + $0xf0] sm:$0xff]
      %v6579 = vld [vmem:[%s5 + $0xf8] sm:$0xff]
      %v6580 = vld [vmem:[%s6] sm:$0x1]
      %v6582 = vlaneseq
      %v6583 = vshrl.u32 %v6582, 7
      %v6584 = vsub.s32 0, %v6583
      %v6585 = vrot.slane %v6580, %v6584
      %6587 = vmatprep.subr.mxu0 0.0
      %6588 = vmatpush1.msra.mxu0 %v6548
      %6589 = vmatprep.subr.mxu0 0.0
      %6590 = vmatpush1.msra.mxu0 %v6549
      %6591 = vmatprep.subr.mxu0 0.0
      %6592 = vmatpush1.msra.mxu0 %v6550
      %6593 = vmatprep.subr.mxu0 0.0
      %6594 = vmatpush1.msra.mxu0 %v6551
      %6595 = vmatprep.subr.mxu0 0.0
      %6596 = vmatpush1.msra.mxu0 %v6552
      %6597 = vmatprep.subr.mxu0 0.0
      %6598 = vmatpush1.msra.mxu0 %v6553
      %6599 = vmatprep.subr.mxu0 0.0
      %6600 = vmatpush1.msra.mxu0 %v6554
      %6601 = vmatprep.subr.mxu0 0.0
      %6602 = vmatpush1.msra.mxu0 %v6555
      %6603 = vmatprep.subr.mxu0 0.0
      %6604 = vmatpush1.msra.mxu0 %v6556
      %6605 = vmatprep.subr.mxu0 0.0
      %6606 = vmatpush1.msra.mxu0 %v6557
      %6607 = vmatprep.subr.mxu0 0.0
      %6608 = vmatpush1.msra.mxu0 %v6558
      %6609 = vmatprep.subr.mxu0 0.0
      %6610 = vmatpush1.msra.mxu0 %v6559
      %6611 = vmatprep.subr.mxu0 0.0
      %6612 = vmatpush1.msra.mxu0 %v6560
      %6613 = vmatprep.subr.mxu0 0.0
      %6614 = vmatpush1.msra.mxu0 %v6561
      %6615 = vmatprep.subr.mxu0 0.0
      %6616 = vmatpush1.msra.mxu0 %v6562
      %6617 = vmatprep.subr.mxu0 0.0
      %6618 = vmatpush1.msra.mxu0 %v6563
      %6619 = vmatprep.subr.mxu0 0.0
      %6620 = vmatpush1.msra.mxu0 %v6564
      %6621 = vmatprep.subr.mxu0 0.0
      %6622 = vmatpush1.msra.mxu0 %v6565
      %6623 = vmatprep.subr.mxu0 0.0
      %6624 = vmatpush1.msra.mxu0 %v6566
      %6625 = vmatprep.subr.mxu0 0.0
      %6626 = vmatpush1.msra.mxu0 %v6567
      %6627 = vmatprep.subr.mxu0 0.0
      %6628 = vmatpush1.msra.mxu0 %v6568
      %6629 = vmatprep.subr.mxu0 0.0
      %6630 = vmatpush1.msra.mxu0 %v6569
      %6631 = vmatprep.subr.mxu0 0.0
      %6632 = vmatpush1.msra.mxu0 %v6570
      %6633 = vmatprep.subr.mxu0 0.0
      %6634 = vmatpush1.msra.mxu0 %v6571
      %6635 = vmatprep.subr.mxu0 0.0
      %6636 = vmatpush1.msra.mxu0 %v6572
      %6637 = vmatprep.subr.mxu0 0.0
      %6638 = vmatpush1.msra.mxu0 %v6573
      %6639 = vmatprep.subr.mxu0 0.0
      %6640 = vmatpush1.msra.mxu0 %v6574
      %6641 = vmatprep.subr.mxu0 0.0
      %6642 = vmatpush1.msra.mxu0 %v6575
      %6643 = vmatprep.subr.mxu0 0.0
      %6644 = vmatpush1.msra.mxu0 %v6576
      %6645 = vmatprep.subr.mxu0 0.0
      %6646 = vmatpush1.msra.mxu0 %v6577
      %6647 = vmatprep.subr.mxu0 0.0
      %6648 = vmatpush1.msra.mxu0 %v6578
      %6649 = vmatprep.subr.mxu0 0.0
      %6650 = vmatpush1.msra.mxu0 %v6579
      %6651 = vmatprep.mubr.f32.mxu0 %v6545
      %6652 = vmatmul.mubr.f32.gmra.mrb[0].mxu0 %v6544
      %v6653 = vpop.f32.mrb[0].mxu0
      %v6654 = vadd.f32 %v6585, %v6653
      %v6655 = vpop.f32.mrb[0].mxu0
      %6656 = vmatprep.mubr.f32.mxu0 %v6547
      %6657 = vmatmul.mubr.f32.gmra.mrb[0].mxu0 %v6546
      %v6658 = vpop.f32.mrb[0].mxu0
      %v6659 = vadd.f32 %v6585, %v6658
      %v6660 = vpop.f32.mrb[0].mxu0
      %6661 = vdwg.mxu0
      %v6662 = vmax.f32 %v6654, 0.0
      %v6663 = vmax.f32 %v6659, 0.0
      %v6664 = vld [vmem:[%s7] sm:$0xff]
      %v6665 = vld [vmem:[%s7 + $0x8] sm:$0xff]
      %v6666 = vld [vmem:[%s7 + $0x10] sm:$0xff]
      %v6667 = vld [vmem:[%s7 + $0x18] sm:$0xff]
      %v6668 = vld [vmem:[%s7 + $0x20] sm:$0xff]
      %v6669 = vld [vmem:[%s7 + $0x28] sm:$0xff]
      %v6670 = vld [vmem:[%s7 + $0x30] sm:$0xff]
      %v6671 = vld [vmem:[%s7 + $0x38] sm:$0xff]
      %v6672 = vld [vmem:[%s7 + $0x40] sm:$0xff]
      %v6673 = vld [vmem:[%s7 + $0x48] sm:$0xff]
      %v6674 = vld [vmem:[%s7 + $0x50] sm:$0xff]
      %v6675 = vld [vmem:[%s7 + $0x58] sm:$0xff]
      %v6676 = vld [vmem:[%s7 + $0x60] sm:$0xff]
      %v6677 = vld [vmem:[%s7 + $0x68] sm:$0xff]
      %v6678 = vld [vmem:[%s7 + $0x70] sm:$0xff]
      %v6679 = vld [vmem:[%s7 + $0x78] sm:$0xff]
      %6680 = vmatprep.subr.mxu0 0.0
      %6681 = vmatpush1.msra.mxu0 %v6664
      %6682 = vmatprep.subr.mxu0 0.0
      %6683 = vmatpush1.msra.mxu0 %v6665
      %6684 = vmatprep.subr.mxu0 0.0
      %6685 = vmatpush1.msra.mxu0 %v6666
      %6686 = vmatprep.subr.mxu0 0.0
      %6687 = vmatpush1.msra.mxu0 %v6667
      %6688 = vmatprep.subr.mxu0 0.0
      %6689 = vmatpush1.msra.mxu0 %v6668
      %6690 = vmatprep.subr.mxu0 0.0
      %6691 = vmatpush1.msra.mxu0 %v6669
      %6692 = vmatprep.subr.mxu0 0.0
      %6693 = vmatpush1.msra.mxu0 %v6670
      %6694 = vmatprep.subr.mxu0 0.0
      %6695 = vmatpush1.msra.mxu0 %v6671
      %6696 = vmatprep.subr.mxu0 0.0
      %6697 = vmatpush1.msra.mxu0 %v6672
      %6698 = vmatprep.subr.mxu0 0.0
      %6699 = vmatpush1.msra.mxu0 %v6673
      %6700 = vmatprep.subr.mxu0 0.0
      %6701 = vmatpush1.msra.mxu0 %v6674
      %6702 = vmatprep.subr.mxu0 0.0
      %6703 = vmatpush1.msra.mxu0 %v6675
      %6704 = vmatprep.subr.mxu0 0.0
      %6705 = vmatpush1.msra.mxu0 %v6676
      %6706 = vmatprep.subr.mxu0 0.0
      %6707 = vmatpush1.msra.mxu0 %v6677
      %6708 = vmatprep.subr.mxu0 0.0
      %6709 = vmatpush1.msra.mxu0 %v6678
      %6710 = vmatprep.subr.mxu0 0.0
      %6711 = vmatpush1.msra.mxu0 %v6679
      %6712 = vmatprep.subr.mxu0 0.0
      %6713 = vmatpush1.msra.mxu0 0.0
      %6714 = vmatprep.subr.mxu0 0.0
      %6715 = vmatpush1.msra.mxu0 0.0
      %6716 = vmatprep.subr.mxu0 0.0
      %6717 = vmatpush1.msra.mxu0 0.0
      %6718 = vmatprep.subr.mxu0 0.0
      %6719 = vmatpush1.msra.mxu0 0.0
      %6720 = vmatprep.subr.mxu0 0.0
      %6721 = vmatpush1.msra.mxu0 0.0
      %6722 = vmatprep.subr.mxu0 0.0
      %6723 = vmatpush1.msra.mxu0 0.0
      %6724 = vmatprep.subr.mxu0 0.0
      %6725 = vmatpush1.msra.mxu0 0.0
      %6726 = vmatprep.subr.mxu0 0.0
      %6727 = vmatpush1.msra.mxu0 0.0
      %6728 = vmatprep.subr.mxu0 0.0
      %6729 = vmatpush1.msra.mxu0 0.0
      %6730 = vmatprep.subr.mxu0 0.0
      %6731 = vmatpush1.msra.mxu0 0.0
      %6732 = vmatprep.subr.mxu0 0.0
      %6733 = vmatpush1.msra.mxu0 0.0
      %6734 = vmatprep.subr.mxu0 0.0
      %6735 = vmatpush1.msra.mxu0 0.0
      %6736 = vmatprep.subr.mxu0 0.0
      %6737 = vmatpush1.msra.mxu0 0.0
      %6738 = vmatprep.subr.mxu0 0.0
      %6739 = vmatpush1.msra.mxu0 0.0
      %6740 = vmatprep.subr.mxu0 0.0
      %6741 = vmatpush1.msra.mxu0 0.0
      %6742 = vmatprep.subr.mxu0 0.0
      %6743 = vmatpush1.msra.mxu0 0.0
      %6744 = vmatprep.mubr.f32.mxu0 0.0
      %6745 = vmatmul.mubr.f32.gmra.mrb[0].mxu0 %v6662
      %v6746 = vpop.f32.mrb[0].mxu0
      %v6747 = vadd.f32 0.0, %v6746
      %v6748 = vpop.f32.mrb[0].mxu0
      %6749 = vmatprep.mubr.f32.mxu0 0.0
      %6750 = vmatmul.mubr.f32.gmra.mrb[0].mxu0 %v6663
      %v6751 = vpop.f32.mrb[0].mxu0
      %v6752 = vadd.f32 0.0, %v6751
      %v6753 = vpop.f32.mrb[0].mxu0
      %6754 = vdwg.mxu0
      %v6755 = vadd.f32 %v6747, %v2077
      %v6756 = vadd.f32 %v6752, %v2077
      %s6757 = scalar_lea.vmem %s333, 48
      %6758 = vst.msk [vmem:[%s6757] sm:$0xff] %vm2080, %v6755
      %6759 = vst.msk [vmem:[%s6757 + $0x8] sm:$0xff] %vm2080, %v6756
      %p6760 = scmp.lt.s32.totalorder %s21, 1
      %s6761 = scalar_select %p6760, %s21, 1
      %s6762 = smul.addr %s6761, 8
      %s6763 = smul.addr %s6762, 8
      %s6764 = scalar_lea.vmem %s9, %s6763
      // Predicated region
      $region57: #{energy_model_forward.1} parent=55 // pred_check
        %p6765 = pneg %p233
      $region58: #{energy_model_forward.1} parent=55 // pred_check_branch
        %6767 = sbr.rel (%p6765) target = $region60
      $region59: #{energy_model_forward.1} parent=55 // pred_region
        _
      $region60: #{energy_model_forward.1} parent=55 // pred_fallthru
        _
    $region56: #{energy_model_forward.1} parent=5 // pred_fallthru
      _
    %p6768 = scmp.le.s32.totalorder 2, %s16
    // Predicated region
    $region61: #{energy_model_forward.1} parent=5 // pred_check
      %p6769 = pneg %p6768
    $region62: #{energy_model_forward.1} parent=5 // pred_check_branch
      %6771 = sbr.rel (%p6769) target = $region64
    $region63: #{energy_model_forward.1} parent=5 // pred_region
      %s6772 = ssub.s32 %s16, 2
      // Predicated region
      $region65: #{energy_model_forward.1} parent=63 // pred_check
        %p6773 = pneg %p239
      $region66: #{energy_model_forward.1} parent=63 // pred_check_branch
        %6775 = sbr.rel (%p6773) target = $region68
      $region67: #{energy_model_forward.1} parent=63 // pred_region
        %p6776 = scmp.lt.s32.totalorder %s22, 1
        %s6777 = scalar_select %p6776, %s22, 1
        %s6778 = smul.addr %s6777, 8
        %s6779 = smul.addr %s6778, 8
        %s6780 = scalar_lea.vmem %s9, %s6779
      $region68: #{energy_model_forward.1} parent=63 // pred_fallthru
        _
    $region64: #{energy_model_forward.1} parent=5 // pred_fallthru
      _
  $region6: #{energy_model_forward.1} parent=0 // loop_footer
    %s20 = sadd.s32 1, %s16
  $region7: #{energy_model_forward.1} parent=0 // loop_footer_branch
    %15 = sbr.rel target = $region3
  $region8: #{energy_model_forward.1} parent=0 // loop_exit
    _

</llo_original>
